<compile_context>
chip_gen: v7x
topology: tpu7x:2x2x1
jax: 0.10.0
libtpu: 0.0.40
codegen_flags: <defaults>
</compile_context>

<pallas_src>
import math

import numpy as np
import jax
import jax.numpy as jnp
from jax.experimental import pallas as pl
from jax.experimental.pallas import tpu as pltpu


_VMEM_LIMIT_BYTES = 32 * 1024 * 1024


def _tm_caps():
    """Row-tile caps (pointwise, deconv); halved on 64 MiB-VMEM parts (v7x)."""
    cap_pw, cap_dc = 1024, 512
    try:
        info = pltpu.get_tpu_info()
        vmem = int(getattr(info, "vmem_capacity_bytes", 128 * 1024 * 1024))
        if vmem <= 64 * 1024 * 1024:
            cap_pw, cap_dc = 512, 256
    except Exception:
        pass
    return cap_pw, cap_dc


_TM_PW_CAP, _TM_DC_CAP = _tm_caps()


def _round_up(x, m):
    return ((x + m - 1) // m) * m


def _pick_tm(m, cap):
    # multiple of 16 so bf16 blocks stay sublane-pack friendly
    return int(min(cap, _round_up(max(m, 1), 16)))


def _pad_rows(x, tm):
    m = x.shape[0]
    mp = _round_up(m, tm)
    if mp != m:
        x = jnp.pad(x, [(0, mp - m)] + [(0, 0)] * (x.ndim - 1))
    return x


def _compiler_params():
    return pltpu.CompilerParams(
        dimension_semantics=("parallel",),
        vmem_limit_bytes=_VMEM_LIMIT_BYTES)


# ----------------------------------------------------------------------------
# Kernels
# ----------------------------------------------------------------------------
def _pointwise_relu_kernel(x_ref, w_ref, b_ref, o_ref):
    # x: (TM, Cin) bf16   w: (Cin, Cout) bf16   b: (1, Cout) f32
    y = jnp.dot(x_ref[...], w_ref[...], preferred_element_type=jnp.float32)
    o_ref[...] = jnp.maximum(y + b_ref[...], 0.0).astype(o_ref.dtype)


def _deconv_res_kernel(a_ref, w_ref, r_ref, o_ref):
    # a: (TM, 9*Cin) bf16  w: (9*Cin, f*f*Cout) bf16  r: (TM, f*f*Cout) bf16
    acc = jnp.dot(a_ref[...], w_ref[...], preferred_element_type=jnp.float32)
    o_ref[...] = (acc + r_ref[...].astype(jnp.float32)).astype(o_ref.dtype)


def _make_deconv_score_kernel(dim_out, dim_pad, n_sub):
    def kernel(a_ref, w_ref, b_ref, score_ref, label_ref):
        # one lane-dense matmul = second deconv with the 1x1 score conv folded
        # into its weight; epilogue: +bias, ReLU (score head), per-sub-pixel
        # masked argmax over the real classes.
        y = jnp.dot(a_ref[...], w_ref[...], preferred_element_type=jnp.float32)
        y = jnp.maximum(y + b_ref[...], 0.0)
        score_ref[...] = y.astype(score_ref.dtype)
        tm = y.shape[0]
        cls = jax.lax.broadcasted_iota(jnp.int32, (tm, dim_pad), 1)
        for r in range(n_sub):
            seg = y[:, r * dim_pad:(r + 1) * dim_pad]
            seg = jnp.where(cls < dim_out, seg, -jnp.inf)   # mask padded classes
            maxv = jnp.max(seg, axis=-1, keepdims=True)
            lab = jnp.min(jnp.where(seg == maxv, cls, dim_pad),
                          axis=-1, keepdims=True)           # first index of max
            label_ref[:, r:r + 1] = lab.astype(jnp.int32)
    return kernel


# ----------------------------------------------------------------------------
# Pallas wrappers
# ----------------------------------------------------------------------------
def pointwise_conv_relu(x2d, w, b):
    m, cin = x2d.shape
    cout = w.shape[1]
    tm = _pick_tm(m, _TM_PW_CAP)
    xp = _pad_rows(x2d.astype(jnp.bfloat16), tm)
    mp = xp.shape[0]
    out = pl.pallas_call(
        _pointwise_relu_kernel,
        out_shape=jax.ShapeDtypeStruct((mp, cout), jnp.bfloat16),
        grid=(mp // tm,),
        in_specs=[pl.BlockSpec((tm, cin), lambda i: (i, 0)),
                  pl.BlockSpec((cin, cout), lambda i: (0, 0)),
                  pl.BlockSpec((1, cout), lambda i: (0, 0))],
        out_specs=pl.BlockSpec((tm, cout), lambda i: (i, 0)),
        compiler_params=_compiler_params(),
    )(xp, w.astype(jnp.bfloat16), b.astype(jnp.float32).reshape(1, cout))
    return out[:m]


def _im2col_3x3(x_nhwc):
    # TODO(synk): this still materializes one (M, 9*Cin) bf16 im2col in HBM;
    # a halo'd manual-DMA variant would cut activation read traffic further.
    n, h, w, c = x_nhwc.shape
    xp = jnp.pad(x_nhwc, ((0, 0), (1, 1), (1, 1), (0, 0)))
    cols = [xp[:, ay:ay + h, ax:ax + w, :]
            for ay in range(3) for ax in range(3)]
    return (jnp.concatenate(cols, axis=-1)
            .reshape(n * h * w, 9 * c).astype(jnp.bfloat16))


def deconv_residual(x_nhwc, w_big, res_sub):
    """ConvTranspose2d(k=2f, s=f, p=f//2, bias=0) + fused residual add.

    x_nhwc: (N,H,W,Cin)   w_big: (9*Cin, f*f*Cout)   res_sub: (N*H*W, f*f*Cout)
    Returns (N*H*W, f*f*Cout) bf16 with column layout ((ry*f+rx)*Cout + co).
    """
    n, h, w, _ = x_nhwc.shape
    m = n * h * w
    kdim, nout = w_big.shape
    tm = _pick_tm(m, _TM_DC_CAP)
    a = _pad_rows(_im2col_3x3(x_nhwc), tm)
    r = _pad_rows(res_sub.astype(jnp.bfloat16), tm)
    mp = a.shape[0]
    out = pl.pallas_call(
        _deconv_res_kernel,
        out_shape=jax.ShapeDtypeStruct((mp, nout), jnp.bfloat16),
        grid=(mp // tm,),
        in_specs=[pl.BlockSpec((tm, kdim), lambda i: (i, 0)),
                  pl.BlockSpec((kdim, nout), lambda i: (0, 0)),
                  pl.BlockSpec((tm, nout), lambda i: (i, 0))],
        out_specs=pl.BlockSpec((tm, nout), lambda i: (i, 0)),
        compiler_params=_compiler_params(),
    )(a, w_big, r)
    return out[:m]


def deconv_score_argmax(x_nhwc, w_comb, b_comb, factor, dim_out, dim_pad):
    """Second deconv with folded 1x1 score conv + ReLU + per-pixel argmax."""
    n, h, w, _ = x_nhwc.shape
    m = n * h * w
    nsub = factor * factor
    kdim, nout = w_comb.shape
    tm = _pick_tm(m, _TM_DC_CAP)
    a = _pad_rows(_im2col_3x3(x_nhwc), tm)
    mp = a.shape[0]
    score_sub, label_sub = pl.pallas_call(
        _make_deconv_score_kernel(dim_out, dim_pad, nsub),
        out_shape=(jax.ShapeDtypeStruct((mp, nout), jnp.float32),
                   jax.ShapeDtypeStruct((mp, nsub), jnp.int32)),
        grid=(mp // tm,),
        in_specs=[pl.BlockSpec((tm, kdim), lambda i: (i, 0)),
                  pl.BlockSpec((kdim, nout), lambda i: (0, 0)),
                  pl.BlockSpec((1, nout), lambda i: (0, 0))],
        out_specs=(pl.BlockSpec((tm, nout), lambda i: (i, 0)),
                   pl.BlockSpec((tm, nsub), lambda i: (i, 0))),
        compiler_params=_compiler_params(),
    )(a, w_comb, b_comb)
    return score_sub[:m], label_sub[:m]


# ----------------------------------------------------------------------------
# Weight preprocessing (one-time, host side)
# ----------------------------------------------------------------------------
def _subpixel_weight(weight, s):
    """torch ConvTranspose2d weight (Cin,Cout,2s,2s) -> (9*Cin, s*s*Cout).

    Row index = (ay*3+ax)*Cin + ci : shifted tap over the 1-px zero-padded
                                     input (input row y+ay-1, col x+ax-1).
    Col index = (ry*s+rx)*Cout + co: output sub-pixel.
    Tap (ay,ax) maps to kernel element ky = ry + s/2 + (1-ay)*s (when in
    range); out-of-range taps are structural zeros.
    """
    k = 2 * s
    p = s // 2
    wnp = np.asarray(weight, np.float32)
    cin, cout = wnp.shape[0], wnp.shape[1]
    wsub = np.zeros((3, 3, cin, s, s, cout), np.float32)
    for ry in range(s):
        for ay in range(3):
            ky = ry + p + (1 - ay) * s
            if not (0 <= ky < k):
                continue
            for rx in range(s):
                for ax in range(3):
                    kx = rx + p + (1 - ax) * s
                    if not (0 <= kx < k):
                        continue
                    wsub[ay, ax, :, ry, rx, :] = wnp[:, :, ky, kx]
    return wsub.reshape(9 * cin, s * s * cout)


def prepare_params(params):
    """Inference-style weight folding / layout prep (run once)."""
    nu = params["num_units"]
    f1, f2 = params["factor1"], params["factor2"]
    dim_out = params["dim_out"]

    # pad the class dim so the fused score tile's last dim is a multiple of 128
    unit = max(8, 128 // math.gcd(f2 * f2, 128))
    dim_pad = unit * int(math.ceil(dim_out / unit))

    w_up5_big = _subpixel_weight(params["w_up5"], f1)        # (9nu, f1^2*nu)
    w_up_big = _subpixel_weight(params["w_up"], f2)          # (9nu, f2^2*nu)

    # Fold the final 1x1 score conv into the second deconv:
    #   upscore = A @ W_up (linear, no bias), score = relu(upscore @ Ws + b)
    #   => score = relu(A @ (W_up . Ws) + b);  `upscore` never materializes.
    wsc = np.zeros((nu, dim_pad), np.float32)
    wsc[:, :dim_out] = np.asarray(params["w_score"], np.float32)
    w_comb = np.einsum("kru,up->krp",
                       w_up_big.reshape(9 * nu, f2 * f2, nu),
                       wsc).reshape(9 * nu, f2 * f2 * dim_pad)
    bsc = np.zeros((dim_pad,), np.float32)
    bsc[:dim_out] = np.asarray(params["b_score"], np.float32)
    b_comb = np.tile(bsc, f2 * f2)[None, :]

    return dict(
        num_units=nu, factor1=f1, factor2=f2,
        dim_out=dim_out, dim_pad=dim_pad,
        w_sc4=jnp.asarray(params["w_sc4"], jnp.bfloat16),
        b_sc4=jnp.asarray(params["b_sc4"], jnp.float32),
        w_sc5=jnp.asarray(params["w_sc5"], jnp.bfloat16),
        b_sc5=jnp.asarray(params["b_sc5"], jnp.float32),
        w_up5_big=jnp.asarray(w_up5_big, jnp.bfloat16),
        w_comb=jnp.asarray(w_comb, jnp.bfloat16),
        b_comb=jnp.asarray(b_comb, jnp.float32),
    )


# ----------------------------------------------------------------------------
# SemanticMaskHead forward
# ----------------------------------------------------------------------------
def semantic_mask_head_forward(conv0, conv1, prepared):
    """conv0 (N,C0,H0,W0), conv1 (N,C1,H1,W1), NCHW.

    Returns (score (N, dim_out, H0*f2, W0*f2) f32,
             label2d (N, H0*f2, W0*f2) int32).
    """
    n, c0, h0, w0 = conv0.shape
    _, c1, h1, w1 = conv1.shape
    nu = prepared["num_units"]
    f1, f2 = prepared["factor1"], prepared["factor2"]
    dim_out, dim_pad = prepared["dim_out"], prepared["dim_pad"]
    assert h1 * f1 == h0 and w1 * f1 == w0

    x0 = jnp.transpose(conv0, (0, 2, 3, 1)).reshape(n * h0 * w0, c0)
    x1 = jnp.transpose(conv1, (0, 2, 3, 1)).reshape(n * h1 * w1, c1)

    sc4 = pointwise_conv_relu(x0, prepared["w_sc4"], prepared["b_sc4"])
    sc5 = pointwise_conv_relu(x1, prepared["w_sc5"], prepared["b_sc5"])

    # residual (= sc_conv4) rearranged into the sub-pixel-folded layout of the
    # first deconv output so the add runs inside the kernel epilogue.
    res_sub = (sc4.reshape(n, h1, f1, w1, f1, nu)
               .transpose(0, 1, 3, 2, 4, 5)
               .reshape(n * h1 * w1, f1 * f1 * nu))
    add_sub = deconv_residual(sc5.reshape(n, h1, w1, nu),
                              prepared["w_up5_big"], res_sub)
    add_nhwc = (add_sub.reshape(n, h1, w1, f1, f1, nu)
                .transpose(0, 1, 3, 2, 4, 5)
                .reshape(n, h0, w0, nu))

    # second deconv fused with the (weight-folded) score conv + ReLU + argmax
    score_sub, label_sub = deconv_score_argmax(
        add_nhwc, prepared["w_comb"], prepared["b_comb"], f2, dim_out, dim_pad)

    hf, wf = h0 * f2, w0 * f2
    score = (score_sub.reshape(n, h0, w0, f2, f2, dim_pad)[..., :dim_out]
             .transpose(0, 5, 1, 3, 2, 4)
             .reshape(n, dim_out, hf, wf))
    # TODO(synk): PyTorch argmax yields int64; int32 labels are returned here.
    label2d = (label_sub.reshape(n, h0, w0, f2, f2)
               .transpose(0, 1, 3, 2, 4)
               .reshape(n, hf, wf))
    return score, label2d


def init_params(key, conv0_dim_in, conv1_dim_in, conv0_scale, conv1_scale,
                dim_out, num_units=64):
    f1 = int(round(conv0_scale / conv1_scale))
    f2 = int(round(1.0 / conv0_scale))
    assert f1 >= 2 and f1 % 2 == 0 and f2 >= 2 and f2 % 2 == 0
    k = jax.random.split(key, 8)

    def u(kk, shape, scale):
        return jax.random.uniform(kk, shape, jnp.float32, -1.0, 1.0) * scale

    return dict(
        num_units=num_units, factor1=f1, factor2=f2, dim_out=dim_out,
        # 1x1 convs: weight stored as (Cin, Cout), bias (Cout,)
        w_sc4=u(k[0], (conv0_dim_in, num_units), 0.1),
        b_sc4=u(k[1], (num_units,), 0.1),
        w_sc5=u(k[2], (conv1_dim_in, num_units), 0.1),
        b_sc5=u(k[3], (num_units,), 0.1),
        # ConvTranspose2d weights, torch layout (Cin, Cout, kH, kW); the
        # module zeroes their biases, so no bias term here.
        w_up5=u(k[4], (num_units, num_units, 2 * f1, 2 * f1), 0.05),
        w_up=u(k[5], (num_units, num_units, 2 * f2, 2 * f2), 0.05),
        w_score=u(k[6], (num_units, dim_out), 0.1),
        b_score=u(k[7], (dim_out,), 0.1),
    )


# ----------------------------------------------------------------------------
# Pure-JAX f32 reference (for correctness check only)
# ----------------------------------------------------------------------------
def _ref_conv_transpose(x, w, s):
    k = w.shape[-1]
    p = s // 2
    wt = jnp.transpose(w, (1, 0, 2, 3))[:, :, ::-1, ::-1]
    return jax.lax.conv_general_dilated(
        x, wt, window_strides=(1, 1),
        padding=[(k - 1 - p, k - 1 - p)] * 2,
        lhs_dilation=(s, s),
        dimension_numbers=("NCHW", "OIHW", "NCHW"),
        precision=jax.lax.Precision.HIGHEST)


def _ref_forward(conv0, conv1, params):
    def pw(x, w, b):
        y = jnp.einsum("nchw,cd->ndhw", x, w,
                       precision=jax.lax.Precision.HIGHEST)
        return jnp.maximum(y + b[None, :, None, None], 0.0)
    sc4 = pw(conv0, params["w_sc4"], params["b_sc4"])
    sc5 = pw(conv1, params["w_sc5"], params["b_sc5"])
    add = sc4 + _ref_conv_transpose(sc5, params["w_up5"], params["factor1"])
    up = _ref_conv_transpose(add, params["w_up"], params["factor2"])
    score = pw(up, params["w_score"], params["b_score"])
    label = jnp.argmax(jax.nn.softmax(score, axis=1), axis=1)
    return score, label


if __name__ == "__main__":
    key = jax.random.PRNGKey(0)
    kp, k0, k1 = jax.random.split(key, 3)

    conv0_dim_in, conv1_dim_in = 16, 32
    conv0_scale, conv1_scale = 0.25, 0.125   # factor1 = 2, factor2 = 4
    dim_out, num_units = 5, 64

    params = init_params(kp, conv0_dim_in, conv1_dim_in,
                         conv0_scale, conv1_scale, dim_out, num_units)
    prepared = prepare_params(params)

    conv0 = jax.random.normal(k0, (2, conv0_dim_in, 8, 8), jnp.float32)
    conv1 = jax.random.normal(k1, (2, conv1_dim_in, 4, 4), jnp.float32)

    fwd = jax.jit(lambda a, b: semantic_mask_head_forward(a, b, prepared))
    score, label2d = fwd(conv0, conv1)
    jax.block_until_ready((score, label2d))

    assert score.shape == (2, dim_out, 32, 32), score.shape
    assert label2d.shape == (2, 32, 32), label2d.shape
    assert label2d.dtype == jnp.int32, label2d.dtype

    # correctness: bf16 MXU inputs -> loose absolute tolerance vs f32 reference;
    # the in-kernel argmax must exactly match an argmax over the kernel's score.
    score_ref, _ = _ref_forward(conv0, conv1, params)
    err = float(jnp.max(jnp.abs(score - score_ref)))
    assert err < 5e-2, f"score mismatch vs reference: max|diff|={err}"
    assert bool(jnp.all(jnp.argmax(score, axis=1).astype(jnp.int32) == label2d))

    print("KERNEL_OK")
</pallas_src>

<mosaic_0001>
module attributes {stable_mosaic.version = 11 : i64} {
  func.func @_pointwise_relu_kernel(%arg0: i32, %arg1: memref<32x32xbf16, #tpu.memory_space<vmem>>, %arg2: memref<32x64xbf16, #tpu.memory_space<vmem>>, %arg3: memref<1x64xf32, #tpu.memory_space<vmem>>, %arg4: memref<32x64xbf16, #tpu.memory_space<vmem>>) attributes {dimension_semantics = [#tpu.dimension_semantics<parallel>], iteration_bounds = array<i64: 1>, scalar_prefetch = 0 : i64, scratch_operands = 0 : i64, tpu.core_type = #tpu.core_type<tc>, window_params = [{transform_indices = @transform_0, window_bounds = array<i64: 32, 32>}, {pipeline_mode = #tpu.pipeline_mode<synchronous>, transform_indices = @transform_1, window_bounds = array<i64: 32, 64>}, {pipeline_mode = #tpu.pipeline_mode<synchronous>, transform_indices = @transform_2, window_bounds = array<i64: 1, 64>}, {transform_indices = @transform_3, window_bounds = array<i64: 32, 64>}]} {
    %c0 = arith.constant 0 : index
    %c0_0 = arith.constant 0 : index
    %0 = vector.load %arg1[%c0, %c0_0] : memref<32x32xbf16, #tpu.memory_space<vmem>>, vector<32x32xbf16>
    %c0_1 = arith.constant 0 : index
    %c0_2 = arith.constant 0 : index
    %1 = vector.load %arg2[%c0_1, %c0_2] : memref<32x64xbf16, #tpu.memory_space<vmem>>, vector<32x64xbf16>
    %cst = arith.constant dense<0.000000e+00> : vector<32x64xf32>
    %2 = tpu.matmul %0, %1, %cst {dimension_numbers = #tpu.dot_dimension_numbers<[1], [0], [0], [1], [0, 0, 1, 1], [], []>} : vector<32x32xbf16>, vector<32x64xbf16>, vector<32x64xf32> -> vector<32x64xf32>
    %c0_3 = arith.constant 0 : index
    %c0_4 = arith.constant 0 : index
    %3 = vector.load %arg3[%c0_3, %c0_4] : memref<1x64xf32, #tpu.memory_space<vmem>>, vector<1x64xf32>
    %4 = vector.broadcast %3 : vector<1x64xf32> to vector<32x64xf32>
    %5 = arith.addf %2, %4 : vector<32x64xf32>
    %cst_5 = arith.constant 0.000000e+00 : f32
    %6 = vector.broadcast %cst_5 : f32 to vector<32x64xf32>
    %7 = arith.maximumf %5, %6 : vector<32x64xf32>
    %8 = arith.truncf %7 : vector<32x64xf32> to vector<32x64xbf16>
    %c0_6 = arith.constant 0 : index
    %c0_7 = arith.constant 0 : index
    %9 = vector.load %arg4[%c0_6, %c0_7] : memref<32x64xbf16, #tpu.memory_space<vmem>>, vector<32x64xbf16>
    tpu.vector_store %arg4[%c0_6, %c0_7], %8 {strides = array<i32>} : memref<32x64xbf16, #tpu.memory_space<vmem>>, vector<32x64xbf16>,
    return
  }
  func.func @transform_0(%arg0: i32) -> (i32, i32) {
    %c0_i32 = arith.constant 0 : i32
    %c0_i32_0 = arith.constant 0 : i32
    return %arg0, %c0_i32 : i32, i32
  }
  func.func @transform_1(%arg0: i32) -> (i32, i32) {
    %c0_i32 = arith.constant 0 : i32
    %c0_i32_0 = arith.constant 0 : i32
    %c0_i32_1 = arith.constant 0 : i32
    return %c0_i32, %c0_i32_0 : i32, i32
  }
  func.func @transform_2(%arg0: i32) -> (i32, i32) {
    %c0_i32 = arith.constant 0 : i32
    %c0_i32_0 = arith.constant 0 : i32
    %c0_i32_1 = arith.constant 0 : i32
    return %c0_i32, %c0_i32_0 : i32, i32
  }
  func.func @transform_3(%arg0: i32) -> (i32, i32) {
    %c0_i32 = arith.constant 0 : i32
    %c0_i32_0 = arith.constant 0 : i32
    return %arg0, %c0_i32 : i32, i32
  }
}

module attributes {stable_mosaic.version = 11 : i64} {
  func.func @_pointwise_relu_kernel(%arg0: i32, %arg1: memref<128x16xbf16, #tpu.memory_space<vmem>>, %arg2: memref<16x64xbf16, #tpu.memory_space<vmem>>, %arg3: memref<1x64xf32, #tpu.memory_space<vmem>>, %arg4: memref<128x64xbf16, #tpu.memory_space<vmem>>) attributes {dimension_semantics = [#tpu.dimension_semantics<parallel>], iteration_bounds = array<i64: 1>, scalar_prefetch = 0 : i64, scratch_operands = 0 : i64, tpu.core_type = #tpu.core_type<tc>, window_params = [{transform_indices = @transform_0, window_bounds = array<i64: 128, 16>}, {pipeline_mode = #tpu.pipeline_mode<synchronous>, transform_indices = @transform_1, window_bounds = array<i64: 16, 64>}, {pipeline_mode = #tpu.pipeline_mode<synchronous>, transform_indices = @transform_2, window_bounds = array<i64: 1, 64>}, {transform_indices = @transform_3, window_bounds = array<i64: 128, 64>}]} {
    %c0 = arith.constant 0 : index
    %c0_0 = arith.constant 0 : index
    %0 = vector.load %arg1[%c0, %c0_0] : memref<128x16xbf16, #tpu.memory_space<vmem>>, vector<128x16xbf16>
    %c0_1 = arith.constant 0 : index
    %c0_2 = arith.constant 0 : index
    %1 = vector.load %arg2[%c0_1, %c0_2] : memref<16x64xbf16, #tpu.memory_space<vmem>>, vector<16x64xbf16>
    %cst = arith.constant dense<0.000000e+00> : vector<128x64xf32>
    %2 = tpu.matmul %0, %1, %cst {dimension_numbers = #tpu.dot_dimension_numbers<[1], [0], [0], [1], [0, 0, 1, 1], [], []>} : vector<128x16xbf16>, vector<16x64xbf16>, vector<128x64xf32> -> vector<128x64xf32>
    %c0_3 = arith.constant 0 : index
    %c0_4 = arith.constant 0 : index
    %3 = vector.load %arg3[%c0_3, %c0_4] : memref<1x64xf32, #tpu.memory_space<vmem>>, vector<1x64xf32>
    %4 = vector.broadcast %3 : vector<1x64xf32> to vector<128x64xf32>
    %5 = arith.addf %2, %4 : vector<128x64xf32>
    %cst_5 = arith.constant 0.000000e+00 : f32
    %6 = vector.broadcast %cst_5 : f32 to vector<128x64xf32>
    %7 = arith.maximumf %5, %6 : vector<128x64xf32>
    %8 = arith.truncf %7 : vector<128x64xf32> to vector<128x64xbf16>
    %c0_6 = arith.constant 0 : index
    %c0_7 = arith.constant 0 : index
    %9 = vector.load %arg4[%c0_6, %c0_7] : memref<128x64xbf16, #tpu.memory_space<vmem>>, vector<128x64xbf16>
    tpu.vector_store %arg4[%c0_6, %c0_7], %8 {strides = array<i32>} : memref<128x64xbf16, #tpu.memory_space<vmem>>, vector<128x64xbf16>,
    return
  }
  func.func @transform_0(%arg0: i32) -> (i32, i32) {
    %c0_i32 = arith.constant 0 : i32
    %c0_i32_0 = arith.constant 0 : i32
    return %arg0, %c0_i32 : i32, i32
  }
  func.func @transform_1(%arg0: i32) -> (i32, i32) {
    %c0_i32 = arith.constant 0 : i32
    %c0_i32_0 = arith.constant 0 : i32
    %c0_i32_1 = arith.constant 0 : i32
    return %c0_i32, %c0_i32_0 : i32, i32
  }
  func.func @transform_2(%arg0: i32) -> (i32, i32) {
    %c0_i32 = arith.constant 0 : i32
    %c0_i32_0 = arith.constant 0 : i32
    %c0_i32_1 = arith.constant 0 : i32
    return %c0_i32, %c0_i32_0 : i32, i32
  }
  func.func @transform_3(%arg0: i32) -> (i32, i32) {
    %c0_i32 = arith.constant 0 : i32
    %c0_i32_0 = arith.constant 0 : i32
    return %arg0, %c0_i32 : i32, i32
  }
}

module attributes {stable_mosaic.version = 11 : i64} {
  func.func @_deconv_res_kernel(%arg0: i32, %arg1: memref<32x576xbf16, #tpu.memory_space<vmem>>, %arg2: memref<576x256xbf16, #tpu.memory_space<vmem>>, %arg3: memref<32x256xbf16, #tpu.memory_space<vmem>>, %arg4: memref<32x256xbf16, #tpu.memory_space<vmem>>) attributes {dimension_semantics = [#tpu.dimension_semantics<parallel>], iteration_bounds = array<i64: 1>, scalar_prefetch = 0 : i64, scratch_operands = 0 : i64, tpu.core_type = #tpu.core_type<tc>, window_params = [{transform_indices = @transform_0, window_bounds = array<i64: 32, 576>}, {pipeline_mode = #tpu.pipeline_mode<synchronous>, transform_indices = @transform_1, window_bounds = array<i64: 576, 256>}, {transform_indices = @transform_2, window_bounds = array<i64: 32, 256>}, {transform_indices = @transform_3, window_bounds = array<i64: 32, 256>}]} {
    %c0 = arith.constant 0 : index
    %c0_0 = arith.constant 0 : index
    %0 = vector.load %arg1[%c0, %c0_0] : memref<32x576xbf16, #tpu.memory_space<vmem>>, vector<32x576xbf16>
    %c0_1 = arith.constant 0 : index
    %c0_2 = arith.constant 0 : index
    %1 = vector.load %arg2[%c0_1, %c0_2] : memref<576x256xbf16, #tpu.memory_space<vmem>>, vector<576x256xbf16>
    %cst = arith.constant dense<0.000000e+00> : vector<32x256xf32>
    %2 = tpu.matmul %0, %1, %cst {dimension_numbers = #tpu.dot_dimension_numbers<[1], [0], [0], [1], [0, 0, 1, 1], [], []>} : vector<32x576xbf16>, vector<576x256xbf16>, vector<32x256xf32> -> vector<32x256xf32>
    %c0_3 = arith.constant 0 : index
    %c0_4 = arith.constant 0 : index
    %3 = vector.load %arg3[%c0_3, %c0_4] : memref<32x256xbf16, #tpu.memory_space<vmem>>, vector<32x256xbf16>
    %4 = arith.extf %3 : vector<32x256xbf16> to vector<32x256xf32>
    %5 = arith.addf %2, %4 : vector<32x256xf32>
    %6 = arith.truncf %5 : vector<32x256xf32> to vector<32x256xbf16>
    %c0_5 = arith.constant 0 : index
    %c0_6 = arith.constant 0 : index
    %7 = vector.load %arg4[%c0_5, %c0_6] : memref<32x256xbf16, #tpu.memory_space<vmem>>, vector<32x256xbf16>
    tpu.vector_store %arg4[%c0_5, %c0_6], %6 {strides = array<i32>} : memref<32x256xbf16, #tpu.memory_space<vmem>>, vector<32x256xbf16>,
    return
  }
  func.func @transform_0(%arg0: i32) -> (i32, i32) {
    %c0_i32 = arith.constant 0 : i32
    %c0_i32_0 = arith.constant 0 : i32
    return %arg0, %c0_i32 : i32, i32
  }
  func.func @transform_1(%arg0: i32) -> (i32, i32) {
    %c0_i32 = arith.constant 0 : i32
    %c0_i32_0 = arith.constant 0 : i32
    %c0_i32_1 = arith.constant 0 : i32
    return %c0_i32, %c0_i32_0 : i32, i32
  }
  func.func @transform_2(%arg0: i32) -> (i32, i32) {
    %c0_i32 = arith.constant 0 : i32
    %c0_i32_0 = arith.constant 0 : i32
    return %arg0, %c0_i32 : i32, i32
  }
  func.func @transform_3(%arg0: i32) -> (i32, i32) {
    %c0_i32 = arith.constant 0 : i32
    %c0_i32_0 = arith.constant 0 : i32
    return %arg0, %c0_i32 : i32, i32
  }
}

module attributes {stable_mosaic.version = 11 : i64} {
  func.func @kernel(%arg0: i32, %arg1: memref<128x576xbf16, #tpu.memory_space<vmem>>, %arg2: memref<576x128xbf16, #tpu.memory_space<vmem>>, %arg3: memref<1x128xf32, #tpu.memory_space<vmem>>, %arg4: memref<128x128xf32, #tpu.memory_space<vmem>>, %arg5: memref<128x16xi32, #tpu.memory_space<vmem>>) attributes {dimension_semantics = [#tpu.dimension_semantics<parallel>], iteration_bounds = array<i64: 1>, scalar_prefetch = 0 : i64, scratch_operands = 0 : i64, tpu.core_type = #tpu.core_type<tc>, window_params = [{transform_indices = @transform_0, window_bounds = array<i64: 128, 576>}, {pipeline_mode = #tpu.pipeline_mode<synchronous>, transform_indices = @transform_1, window_bounds = array<i64: 576, 128>}, {pipeline_mode = #tpu.pipeline_mode<synchronous>, transform_indices = @transform_2, window_bounds = array<i64: 1, 128>}, {transform_indices = @transform_3, window_bounds = array<i64: 128, 128>}, {transform_indices = @transform_4, window_bounds = array<i64: 128, 16>}]} {
    %c0 = arith.constant 0 : index
    %c0_0 = arith.constant 0 : index
    %0 = vector.load %arg1[%c0, %c0_0] : memref<128x576xbf16, #tpu.memory_space<vmem>>, vector<128x576xbf16>
    %c0_1 = arith.constant 0 : index
    %c0_2 = arith.constant 0 : index
    %1 = vector.load %arg2[%c0_1, %c0_2] : memref<576x128xbf16, #tpu.memory_space<vmem>>, vector<576x128xbf16>
    %cst = arith.constant dense<0.000000e+00> : vector<128x128xf32>
    %2 = tpu.matmul %0, %1, %cst {dimension_numbers = #tpu.dot_dimension_numbers<[1], [0], [0], [1], [0, 0, 1, 1], [], []>} : vector<128x576xbf16>, vector<576x128xbf16>, vector<128x128xf32> -> vector<128x128xf32>
    %c0_3 = arith.constant 0 : index
    %c0_4 = arith.constant 0 : index
    %3 = vector.load %arg3[%c0_3, %c0_4] : memref<1x128xf32, #tpu.memory_space<vmem>>, vector<1x128xf32>
    %4 = vector.broadcast %3 : vector<1x128xf32> to vector<128x128xf32>
    %5 = arith.addf %2, %4 : vector<128x128xf32>
    %cst_5 = arith.constant 0.000000e+00 : f32
    %6 = vector.broadcast %cst_5 : f32 to vector<128x128xf32>
    %7 = arith.maximumf %5, %6 : vector<128x128xf32>
    %c0_6 = arith.constant 0 : index
    %c0_7 = arith.constant 0 : index
    %8 = vector.load %arg4[%c0_6, %c0_7] : memref<128x128xf32, #tpu.memory_space<vmem>>, vector<128x128xf32>
    tpu.vector_store %arg4[%c0_6, %c0_7], %7 {strides = array<i32>} : memref<128x128xf32, #tpu.memory_space<vmem>>, vector<128x128xf32>,
    %9 = tpu.iota {dimensions = array<i32: 1>} : vector<128x8xi32>
    %10 = vector.extract_strided_slice %7 {offsets = [0, 0], sizes = [128, 8], strides = [1, 1]} : vector<128x128xf32> to vector<128x8xf32>
    %c5_i32 = arith.constant 5 : i32
    %11 = vector.broadcast %c5_i32 : i32 to vector<128x8xi32>
    %12 = arith.cmpi slt, %9, %11 : vector<128x8xi32>
    %cst_8 = arith.constant 0xFF800000 : f32
    %13 = vector.broadcast %cst_8 : f32 to vector<128x8xf32>
    %14 = arith.select %12, %10, %13 : vector<128x8xi1>, vector<128x8xf32>
    %cst_9 = arith.constant dense<0xFF800000> : vector<128xf32>
    %15 = vector.multi_reduction <maximumf>, %14, %cst_9 [1] : vector<128x8xf32> to vector<128xf32>
    %16 = vector.shape_cast %15 : vector<128xf32> to vector<128x1xf32>
    %17 = vector.broadcast %16 : vector<128x1xf32> to vector<128x8xf32>
    %18 = arith.cmpf oeq, %14, %17 : vector<128x8xf32>
    %c8_i32 = arith.constant 8 : i32
    %19 = vector.broadcast %c8_i32 : i32 to vector<128x8xi32>
    %20 = arith.select %18, %9, %19 : vector<128x8xi1>, vector<128x8xi32>
    %cst_10 = arith.constant dense<2147483647> : vector<128xi32>
    %21 = vector.multi_reduction <minsi>, %20, %cst_10 [1] : vector<128x8xi32> to vector<128xi32>
    %22 = vector.shape_cast %21 : vector<128xi32> to vector<128x1xi32>
    %c0_11 = arith.constant 0 : index
    %c0_12 = arith.constant 0 : index
    %23 = vector.load %arg5[%c0_11, %c0_12] : memref<128x16xi32, #tpu.memory_space<vmem>>, vector<128x1xi32>
    tpu.vector_store %arg5[%c0_11, %c0_12], %22 {strides = array<i32>} : memref<128x16xi32, #tpu.memory_space<vmem>>, vector<128x1xi32>,
    %24 = vector.extract_strided_slice %7 {offsets = [0, 8], sizes = [128, 8], strides = [1, 1]} : vector<128x128xf32> to vector<128x8xf32>
    %c5_i32_13 = arith.constant 5 : i32
    %25 = vector.broadcast %c5_i32_13 : i32 to vector<128x8xi32>
    %26 = arith.cmpi slt, %9, %25 : vector<128x8xi32>
    %cst_14 = arith.constant 0xFF800000 : f32
    %27 = vector.broadcast %cst_14 : f32 to vector<128x8xf32>
    %28 = arith.select %26, %24, %27 : vector<128x8xi1>, vector<128x8xf32>
    %cst_15 = arith.constant dense<0xFF800000> : vector<128xf32>
    %29 = vector.multi_reduction <maximumf>, %28, %cst_15 [1] : vector<128x8xf32> to vector<128xf32>
    %30 = vector.shape_cast %29 : vector<128xf32> to vector<128x1xf32>
    %31 = vector.broadcast %30 : vector<128x1xf32> to vector<128x8xf32>
    %32 = arith.cmpf oeq, %28, %31 : vector<128x8xf32>
    %c8_i32_16 = arith.constant 8 : i32
    %33 = vector.broadcast %c8_i32_16 : i32 to vector<128x8xi32>
    %34 = arith.select %32, %9, %33 : vector<128x8xi1>, vector<128x8xi32>
    %cst_17 = arith.constant dense<2147483647> : vector<128xi32>
    %35 = vector.multi_reduction <minsi>, %34, %cst_17 [1] : vector<128x8xi32> to vector<128xi32>
    %36 = vector.shape_cast %35 : vector<128xi32> to vector<128x1xi32>
    %c0_18 = arith.constant 0 : index
    %c1 = arith.constant 1 : index
    %37 = vector.load %arg5[%c0_18, %c1] : memref<128x16xi32, #tpu.memory_space<vmem>>, vector<128x1xi32>
    tpu.vector_store %arg5[%c0_18, %c1], %36 {strides = array<i32>} : memref<128x16xi32, #tpu.memory_space<vmem>>, vector<128x1xi32>,
    %38 = vector.extract_strided_slice %7 {offsets = [0, 16], sizes = [128, 8], strides = [1, 1]} : vector<128x128xf32> to vector<128x8xf32>
    %c5_i32_19 = arith.constant 5 : i32
    %39 = vector.broadcast %c5_i32_19 : i32 to vector<128x8xi32>
    %40 = arith.cmpi slt, %9, %39 : vector<128x8xi32>
    %cst_20 = arith.constant 0xFF800000 : f32
    %41 = vector.broadcast %cst_20 : f32 to vector<128x8xf32>
    %42 = arith.select %40, %38, %41 : vector<128x8xi1>, vector<128x8xf32>
    %cst_21 = arith.constant dense<0xFF800000> : vector<128xf32>
    %43 = vector.multi_reduction <maximumf>, %42, %cst_21 [1] : vector<128x8xf32> to vector<128xf32>
    %44 = vector.shape_cast %43 : vector<128xf32> to vector<128x1xf32>
    %45 = vector.broadcast %44 : vector<128x1xf32> to vector<128x8xf32>
    %46 = arith.cmpf oeq, %42, %45 : vector<128x8xf32>
    %c8_i32_22 = arith.constant 8 : i32
    %47 = vector.broadcast %c8_i32_22 : i32 to vector<128x8xi32>
    %48 = arith.select %46, %9, %47 : vector<128x8xi1>, vector<128x8xi32>
    %cst_23 = arith.constant dense<2147483647> : vector<128xi32>
    %49 = vector.multi_reduction <minsi>, %48, %cst_23 [1] : vector<128x8xi32> to vector<128xi32>
    %50 = vector.shape_cast %49 : vector<128xi32> to vector<128x1xi32>
    %c0_24 = arith.constant 0 : index
    %c2 = arith.constant 2 : index
    %51 = vector.load %arg5[%c0_24, %c2] : memref<128x16xi32, #tpu.memory_space<vmem>>, vector<128x1xi32>
    tpu.vector_store %arg5[%c0_24, %c2], %50 {strides = array<i32>} : memref<128x16xi32, #tpu.memory_space<vmem>>, vector<128x1xi32>,
    %52 = vector.extract_strided_slice %7 {offsets = [0, 24], sizes = [128, 8], strides = [1, 1]} : vector<128x128xf32> to vector<128x8xf32>
    %c5_i32_25 = arith.constant 5 : i32
    %53 = vector.broadcast %c5_i32_25 : i32 to vector<128x8xi32>
    %54 = arith.cmpi slt, %9, %53 : vector<128x8xi32>
    %cst_26 = arith.constant 0xFF800000 : f32
    %55 = vector.broadcast %cst_26 : f32 to vector<128x8xf32>
    %56 = arith.select %54, %52, %55 : vector<128x8xi1>, vector<128x8xf32>
    %cst_27 = arith.constant dense<0xFF800000> : vector<128xf32>
    %57 = vector.multi_reduction <maximumf>, %56, %cst_27 [1] : vector<128x8xf32> to vector<128xf32>
    %58 = vector.shape_cast %57 : vector<128xf32> to vector<128x1xf32>
    %59 = vector.broadcast %58 : vector<128x1xf32> to vector<128x8xf32>
    %60 = arith.cmpf oeq, %56, %59 : vector<128x8xf32>
    %c8_i32_28 = arith.constant 8 : i32
    %61 = vector.broadcast %c8_i32_28 : i32 to vector<128x8xi32>
    %62 = arith.select %60, %9, %61 : vector<128x8xi1>, vector<128x8xi32>
    %cst_29 = arith.constant dense<2147483647> : vector<128xi32>
    %63 = vector.multi_reduction <minsi>, %62, %cst_29 [1] : vector<128x8xi32> to vector<128xi32>
    %64 = vector.shape_cast %63 : vector<128xi32> to vector<128x1xi32>
    %c0_30 = arith.constant 0 : index
    %c3 = arith.constant 3 : index
    %65 = vector.load %arg5[%c0_30, %c3] : memref<128x16xi32, #tpu.memory_space<vmem>>, vector<128x1xi32>
    tpu.vector_store %arg5[%c0_30, %c3], %64 {strides = array<i32>} : memref<128x16xi32, #tpu.memory_space<vmem>>, vector<128x1xi32>,
    %66 = vector.extract_strided_slice %7 {offsets = [0, 32], sizes = [128, 8], strides = [1, 1]} : vector<128x128xf32> to vector<128x8xf32>
    %c5_i32_31 = arith.constant 5 : i32
    %67 = vector.broadcast %c5_i32_31 : i32 to vector<128x8xi32>
    %68 = arith.cmpi slt, %9, %67 : vector<128x8xi32>
    %cst_32 = arith.constant 0xFF800000 : f32
    %69 = vector.broadcast %cst_32 : f32 to vector<128x8xf32>
    %70 = arith.select %68, %66, %69 : vector<128x8xi1>, vector<128x8xf32>
    %cst_33 = arith.constant dense<0xFF800000> : vector<128xf32>
    %71 = vector.multi_reduction <maximumf>, %70, %cst_33 [1] : vector<128x8xf32> to vector<128xf32>
    %72 = vector.shape_cast %71 : vector<128xf32> to vector<128x1xf32>
    %73 = vector.broadcast %72 : vector<128x1xf32> to vector<128x8xf32>
    %74 = arith.cmpf oeq, %70, %73 : vector<128x8xf32>
    %c8_i32_34 = arith.constant 8 : i32
    %75 = vector.broadcast %c8_i32_34 : i32 to vector<128x8xi32>
    %76 = arith.select %74, %9, %75 : vector<128x8xi1>, vector<128x8xi32>
    %cst_35 = arith.constant dense<2147483647> : vector<128xi32>
    %77 = vector.multi_reduction <minsi>, %76, %cst_35 [1] : vector<128x8xi32> to vector<128xi32>
    %78 = vector.shape_cast %77 : vector<128xi32> to vector<128x1xi32>
    %c0_36 = arith.constant 0 : index
    %c4 = arith.constant 4 : index
    %79 = vector.load %arg5[%c0_36, %c4] : memref<128x16xi32, #tpu.memory_space<vmem>>, vector<128x1xi32>
    tpu.vector_store %arg5[%c0_36, %c4], %78 {strides = array<i32>} : memref<128x16xi32, #tpu.memory_space<vmem>>, vector<128x1xi32>,
    %80 = vector.extract_strided_slice %7 {offsets = [0, 40], sizes = [128, 8], strides = [1, 1]} : vector<128x128xf32> to vector<128x8xf32>
    %c5_i32_37 = arith.constant 5 : i32
    %81 = vector.broadcast %c5_i32_37 : i32 to vector<128x8xi32>
    %82 = arith.cmpi slt, %9, %81 : vector<128x8xi32>
    %cst_38 = arith.constant 0xFF800000 : f32
    %83 = vector.broadcast %cst_38 : f32 to vector<128x8xf32>
    %84 = arith.select %82, %80, %83 : vector<128x8xi1>, vector<128x8xf32>
    %cst_39 = arith.constant dense<0xFF800000> : vector<128xf32>
    %85 = vector.multi_reduction <maximumf>, %84, %cst_39 [1] : vector<128x8xf32> to vector<128xf32>
    %86 = vector.shape_cast %85 : vector<128xf32> to vector<128x1xf32>
    %87 = vector.broadcast %86 : vector<128x1xf32> to vector<128x8xf32>
    %88 = arith.cmpf oeq, %84, %87 : vector<128x8xf32>
    %c8_i32_40 = arith.constant 8 : i32
    %89 = vector.broadcast %c8_i32_40 : i32 to vector<128x8xi32>
    %90 = arith.select %88, %9, %89 : vector<128x8xi1>, vector<128x8xi32>
    %cst_41 = arith.constant dense<2147483647> : vector<128xi32>
    %91 = vector.multi_reduction <minsi>, %90, %cst_41 [1] : vector<128x8xi32> to vector<128xi32>
    %92 = vector.shape_cast %91 : vector<128xi32> to vector<128x1xi32>
    %c0_42 = arith.constant 0 : index
    %c5 = arith.constant 5 : index
    %93 = vector.load %arg5[%c0_42, %c5] : memref<128x16xi32, #tpu.memory_space<vmem>>, vector<128x1xi32>
    tpu.vector_store %arg5[%c0_42, %c5], %92 {strides = array<i32>} : memref<128x16xi32, #tpu.memory_space<vmem>>, vector<128x1xi32>,
    %94 = vector.extract_strided_slice %7 {offsets = [0, 48], sizes = [128, 8], strides = [1, 1]} : vector<128x128xf32> to vector<128x8xf32>
    %c5_i32_43 = arith.constant 5 : i32
    %95 = vector.broadcast %c5_i32_43 : i32 to vector<128x8xi32>
    %96 = arith.cmpi slt, %9, %95 : vector<128x8xi32>
    %cst_44 = arith.constant 0xFF800000 : f32
    %97 = vector.broadcast %cst_44 : f32 to vector<128x8xf32>
    %98 = arith.select %96, %94, %97 : vector<128x8xi1>, vector<128x8xf32>
    %cst_45 = arith.constant dense<0xFF800000> : vector<128xf32>
    %99 = vector.multi_reduction <maximumf>, %98, %cst_45 [1] : vector<128x8xf32> to vector<128xf32>
    %100 = vector.shape_cast %99 : vector<128xf32> to vector<128x1xf32>
    %101 = vector.broadcast %100 : vector<128x1xf32> to vector<128x8xf32>
    %102 = arith.cmpf oeq, %98, %101 : vector<128x8xf32>
    %c8_i32_46 = arith.constant 8 : i32
    %103 = vector.broadcast %c8_i32_46 : i32 to vector<128x8xi32>
    %104 = arith.select %102, %9, %103 : vector<128x8xi1>, vector<128x8xi32>
    %cst_47 = arith.constant dense<2147483647> : vector<128xi32>
    %105 = vector.multi_reduction <minsi>, %104, %cst_47 [1] : vector<128x8xi32> to vector<128xi32>
    %106 = vector.shape_cast %105 : vector<128xi32> to vector<128x1xi32>
    %c0_48 = arith.constant 0 : index
    %c6 = arith.constant 6 : index
    %107 = vector.load %arg5[%c0_48, %c6] : memref<128x16xi32, #tpu.memory_space<vmem>>, vector<128x1xi32>
    tpu.vector_store %arg5[%c0_48, %c6], %106 {strides = array<i32>} : memref<128x16xi32, #tpu.memory_space<vmem>>, vector<128x1xi32>,
    %108 = vector.extract_strided_slice %7 {offsets = [0, 56], sizes = [128, 8], strides = [1, 1]} : vector<128x128xf32> to vector<128x8xf32>
    %c5_i32_49 = arith.constant 5 : i32
    %109 = vector.broadcast %c5_i32_49 : i32 to vector<128x8xi32>
    %110 = arith.cmpi slt, %9, %109 : vector<128x8xi32>
    %cst_50 = arith.constant 0xFF800000 : f32
    %111 = vector.broadcast %cst_50 : f32 to vector<128x8xf32>
    %112 = arith.select %110, %108, %111 : vector<128x8xi1>, vector<128x8xf32>
    %cst_51 = arith.constant dense<0xFF800000> : vector<128xf32>
    %113 = vector.multi_reduction <maximumf>, %112, %cst_51 [1] : vector<128x8xf32> to vector<128xf32>
    %114 = vector.shape_cast %113 : vector<128xf32> to vector<128x1xf32>
    %115 = vector.broadcast %114 : vector<128x1xf32> to vector<128x8xf32>
    %116 = arith.cmpf oeq, %112, %115 : vector<128x8xf32>
    %c8_i32_52 = arith.constant 8 : i32
    %117 = vector.broadcast %c8_i32_52 : i32 to vector<128x8xi32>
    %118 = arith.select %116, %9, %117 : vector<128x8xi1>, vector<128x8xi32>
    %cst_53 = arith.constant dense<2147483647> : vector<128xi32>
    %119 = vector.multi_reduction <minsi>, %118, %cst_53 [1] : vector<128x8xi32> to vector<128xi32>
    %120 = vector.shape_cast %119 : vector<128xi32> to vector<128x1xi32>
    %c0_54 = arith.constant 0 : index
    %c7 = arith.constant 7 : index
    %121 = vector.load %arg5[%c0_54, %c7] : memref<128x16xi32, #tpu.memory_space<vmem>>, vector<128x1xi32>
    tpu.vector_store %arg5[%c0_54, %c7], %120 {strides = array<i32>} : memref<128x16xi32, #tpu.memory_space<vmem>>, vector<128x1xi32>,
    %122 = vector.extract_strided_slice %7 {offsets = [0, 64], sizes = [128, 8], strides = [1, 1]} : vector<128x128xf32> to vector<128x8xf32>
    %c5_i32_55 = arith.constant 5 : i32
    %123 = vector.broadcast %c5_i32_55 : i32 to vector<128x8xi32>
    %124 = arith.cmpi slt, %9, %123 : vector<128x8xi32>
    %cst_56 = arith.constant 0xFF800000 : f32
    %125 = vector.broadcast %cst_56 : f32 to vector<128x8xf32>
    %126 = arith.select %124, %122, %125 : vector<128x8xi1>, vector<128x8xf32>
    %cst_57 = arith.constant dense<0xFF800000> : vector<128xf32>
    %127 = vector.multi_reduction <maximumf>, %126, %cst_57 [1] : vector<128x8xf32> to vector<128xf32>
    %128 = vector.shape_cast %127 : vector<128xf32> to vector<128x1xf32>
    %129 = vector.broadcast %128 : vector<128x1xf32> to vector<128x8xf32>
    %130 = arith.cmpf oeq, %126, %129 : vector<128x8xf32>
    %c8_i32_58 = arith.constant 8 : i32
    %131 = vector.broadcast %c8_i32_58 : i32 to vector<128x8xi32>
    %132 = arith.select %130, %9, %131 : vector<128x8xi1>, vector<128x8xi32>
    %cst_59 = arith.constant dense<2147483647> : vector<128xi32>
    %133 = vector.multi_reduction <minsi>, %132, %cst_59 [1] : vector<128x8xi32> to vector<128xi32>
    %134 = vector.shape_cast %133 : vector<128xi32> to vector<128x1xi32>
    %c0_60 = arith.constant 0 : index
    %c8 = arith.constant 8 : index
    %135 = vector.load %arg5[%c0_60, %c8] : memref<128x16xi32, #tpu.memory_space<vmem>>, vector<128x1xi32>
    tpu.vector_store %arg5[%c0_60, %c8], %134 {strides = array<i32>} : memref<128x16xi32, #tpu.memory_space<vmem>>, vector<128x1xi32>,
    %136 = vector.extract_strided_slice %7 {offsets = [0, 72], sizes = [128, 8], strides = [1, 1]} : vector<128x128xf32> to vector<128x8xf32>
    %c5_i32_61 = arith.constant 5 : i32
    %137 = vector.broadcast %c5_i32_61 : i32 to vector<128x8xi32>
    %138 = arith.cmpi slt, %9, %137 : vector<128x8xi32>
    %cst_62 = arith.constant 0xFF800000 : f32
    %139 = vector.broadcast %cst_62 : f32 to vector<128x8xf32>
    %140 = arith.select %138, %136, %139 : vector<128x8xi1>, vector<128x8xf32>
    %cst_63 = arith.constant dense<0xFF800000> : vector<128xf32>
    %141 = vector.multi_reduction <maximumf>, %140, %cst_63 [1] : vector<128x8xf32> to vector<128xf32>
    %142 = vector.shape_cast %141 : vector<128xf32> to vector<128x1xf32>
    %143 = vector.broadcast %142 : vector<128x1xf32> to vector<128x8xf32>
    %144 = arith.cmpf oeq, %140, %143 : vector<128x8xf32>
    %c8_i32_64 = arith.constant 8 : i32
    %145 = vector.broadcast %c8_i32_64 : i32 to vector<128x8xi32>
    %146 = arith.select %144, %9, %145 : vector<128x8xi1>, vector<128x8xi32>
    %cst_65 = arith.constant dense<2147483647> : vector<128xi32>
    %147 = vector.multi_reduction <minsi>, %146, %cst_65 [1] : vector<128x8xi32> to vector<128xi32>
    %148 = vector.shape_cast %147 : vector<128xi32> to vector<128x1xi32>
    %c0_66 = arith.constant 0 : index
    %c9 = arith.constant 9 : index
    %149 = vector.load %arg5[%c0_66, %c9] : memref<128x16xi32, #tpu.memory_space<vmem>>, vector<128x1xi32>
    tpu.vector_store %arg5[%c0_66, %c9], %148 {strides = array<i32>} : memref<128x16xi32, #tpu.memory_space<vmem>>, vector<128x1xi32>,
    %150 = vector.extract_strided_slice %7 {offsets = [0, 80], sizes = [128, 8], strides = [1, 1]} : vector<128x128xf32> to vector<128x8xf32>
    %c5_i32_67 = arith.constant 5 : i32
    %151 = vector.broadcast %c5_i32_67 : i32 to vector<128x8xi32>
    %152 = arith.cmpi slt, %9, %151 : vector<128x8xi32>
    %cst_68 = arith.constant 0xFF800000 : f32
    %153 = vector.broadcast %cst_68 : f32 to vector<128x8xf32>
    %154 = arith.select %152, %150, %153 : vector<128x8xi1>, vector<128x8xf32>
    %cst_69 = arith.constant dense<0xFF800000> : vector<128xf32>
    %155 = vector.multi_reduction <maximumf>, %154, %cst_69 [1] : vector<128x8xf32> to vector<128xf32>
    %156 = vector.shape_cast %155 : vector<128xf32> to vector<128x1xf32>
    %157 = vector.broadcast %156 : vector<128x1xf32> to vector<128x8xf32>
    %158 = arith.cmpf oeq, %154, %157 : vector<128x8xf32>
    %c8_i32_70 = arith.constant 8 : i32
    %159 = vector.broadcast %c8_i32_70 : i32 to vector<128x8xi32>
    %160 = arith.select %158, %9, %159 : vector<128x8xi1>, vector<128x8xi32>
    %cst_71 = arith.constant dense<2147483647> : vector<128xi32>
    %161 = vector.multi_reduction <minsi>, %160, %cst_71 [1] : vector<128x8xi32> to vector<128xi32>
    %162 = vector.shape_cast %161 : vector<128xi32> to vector<128x1xi32>
    %c0_72 = arith.constant 0 : index
    %c10 = arith.constant 10 : index
    %163 = vector.load %arg5[%c0_72, %c10] : memref<128x16xi32, #tpu.memory_space<vmem>>, vector<128x1xi32>
    tpu.vector_store %arg5[%c0_72, %c10], %162 {strides = array<i32>} : memref<128x16xi32, #tpu.memory_space<vmem>>, vector<128x1xi32>,
    %164 = vector.extract_strided_slice %7 {offsets = [0, 88], sizes = [128, 8], strides = [1, 1]} : vector<128x128xf32> to vector<128x8xf32>
    %c5_i32_73 = arith.constant 5 : i32
    %165 = vector.broadcast %c5_i32_73 : i32 to vector<128x8xi32>
    %166 = arith.cmpi slt, %9, %165 : vector<128x8xi32>
    %cst_74 = arith.constant 0xFF800000 : f32
    %167 = vector.broadcast %cst_74 : f32 to vector<128x8xf32>
    %168 = arith.select %166, %164, %167 : vector<128x8xi1>, vector<128x8xf32>
    %cst_75 = arith.constant dense<0xFF800000> : vector<128xf32>
    %169 = vector.multi_reduction <maximumf>, %168, %cst_75 [1] : vector<128x8xf32> to vector<128xf32>
    %170 = vector.shape_cast %169 : vector<128xf32> to vector<128x1xf32>
    %171 = vector.broadcast %170 : vector<128x1xf32> to vector<128x8xf32>
    %172 = arith.cmpf oeq, %168, %171 : vector<128x8xf32>
    %c8_i32_76 = arith.constant 8 : i32
    %173 = vector.broadcast %c8_i32_76 : i32 to vector<128x8xi32>
    %174 = arith.select %172, %9, %173 : vector<128x8xi1>, vector<128x8xi32>
    %cst_77 = arith.constant dense<2147483647> : vector<128xi32>
    %175 = vector.multi_reduction <minsi>, %174, %cst_77 [1] : vector<128x8xi32> to vector<128xi32>
    %176 = vector.shape_cast %175 : vector<128xi32> to vector<128x1xi32>
    %c0_78 = arith.constant 0 : index
    %c11 = arith.constant 11 : index
    %177 = vector.load %arg5[%c0_78, %c11] : memref<128x16xi32, #tpu.memory_space<vmem>>, vector<128x1xi32>
    tpu.vector_store %arg5[%c0_78, %c11], %176 {strides = array<i32>} : memref<128x16xi32, #tpu.memory_space<vmem>>, vector<128x1xi32>,
    %178 = vector.extract_strided_slice %7 {offsets = [0, 96], sizes = [128, 8], strides = [1, 1]} : vector<128x128xf32> to vector<128x8xf32>
    %c5_i32_79 = arith.constant 5 : i32
    %179 = vector.broadcast %c5_i32_79 : i32 to vector<128x8xi32>
    %180 = arith.cmpi slt, %9, %179 : vector<128x8xi32>
    %cst_80 = arith.constant 0xFF800000 : f32
    %181 = vector.broadcast %cst_80 : f32 to vector<128x8xf32>
    %182 = arith.select %180, %178, %181 : vector<128x8xi1>, vector<128x8xf32>
    %cst_81 = arith.constant dense<0xFF800000> : vector<128xf32>
    %183 = vector.multi_reduction <maximumf>, %182, %cst_81 [1] : vector<128x8xf32> to vector<128xf32>
    %184 = vector.shape_cast %183 : vector<128xf32> to vector<128x1xf32>
    %185 = vector.broadcast %184 : vector<128x1xf32> to vector<128x8xf32>
    %186 = arith.cmpf oeq, %182, %185 : vector<128x8xf32>
    %c8_i32_82 = arith.constant 8 : i32
    %187 = vector.broadcast %c8_i32_82 : i32 to vector<128x8xi32>
    %188 = arith.select %186, %9, %187 : vector<128x8xi1>, vector<128x8xi32>
    %cst_83 = arith.constant dense<2147483647> : vector<128xi32>
    %189 = vector.multi_reduction <minsi>, %188, %cst_83 [1] : vector<128x8xi32> to vector<128xi32>
    %190 = vector.shape_cast %189 : vector<128xi32> to vector<128x1xi32>
    %c0_84 = arith.constant 0 : index
    %c12 = arith.constant 12 : index
    %191 = vector.load %arg5[%c0_84, %c12] : memref<128x16xi32, #tpu.memory_space<vmem>>, vector<128x1xi32>
    tpu.vector_store %arg5[%c0_84, %c12], %190 {strides = array<i32>} : memref<128x16xi32, #tpu.memory_space<vmem>>, vector<128x1xi32>,
    %192 = vector.extract_strided_slice %7 {offsets = [0, 104], sizes = [128, 8], strides = [1, 1]} : vector<128x128xf32> to vector<128x8xf32>
    %c5_i32_85 = arith.constant 5 : i32
    %193 = vector.broadcast %c5_i32_85 : i32 to vector<128x8xi32>
    %194 = arith.cmpi slt, %9, %193 : vector<128x8xi32>
    %cst_86 = arith.constant 0xFF800000 : f32
    %195 = vector.broadcast %cst_86 : f32 to vector<128x8xf32>
    %196 = arith.select %194, %192, %195 : vector<128x8xi1>, vector<128x8xf32>
    %cst_87 = arith.constant dense<0xFF800000> : vector<128xf32>
    %197 = vector.multi_reduction <maximumf>, %196, %cst_87 [1] : vector<128x8xf32> to vector<128xf32>
    %198 = vector.shape_cast %197 : vector<128xf32> to vector<128x1xf32>
    %199 = vector.broadcast %198 : vector<128x1xf32> to vector<128x8xf32>
    %200 = arith.cmpf oeq, %196, %199 : vector<128x8xf32>
    %c8_i32_88 = arith.constant 8 : i32
    %201 = vector.broadcast %c8_i32_88 : i32 to vector<128x8xi32>
    %202 = arith.select %200, %9, %201 : vector<128x8xi1>, vector<128x8xi32>
    %cst_89 = arith.constant dense<2147483647> : vector<128xi32>
    %203 = vector.multi_reduction <minsi>, %202, %cst_89 [1] : vector<128x8xi32> to vector<128xi32>
    %204 = vector.shape_cast %203 : vector<128xi32> to vector<128x1xi32>
    %c0_90 = arith.constant 0 : index
    %c13 = arith.constant 13 : index
    %205 = vector.load %arg5[%c0_90, %c13] : memref<128x16xi32, #tpu.memory_space<vmem>>, vector<128x1xi32>
    tpu.vector_store %arg5[%c0_90, %c13], %204 {strides = array<i32>} : memref<128x16xi32, #tpu.memory_space<vmem>>, vector<128x1xi32>,
    %206 = vector.extract_strided_slice %7 {offsets = [0, 112], sizes = [128, 8], strides = [1, 1]} : vector<128x128xf32> to vector<128x8xf32>
    %c5_i32_91 = arith.constant 5 : i32
    %207 = vector.broadcast %c5_i32_91 : i32 to vector<128x8xi32>
    %208 = arith.cmpi slt, %9, %207 : vector<128x8xi32>
    %cst_92 = arith.constant 0xFF800000 : f32
    %209 = vector.broadcast %cst_92 : f32 to vector<128x8xf32>
    %210 = arith.select %208, %206, %209 : vector<128x8xi1>, vector<128x8xf32>
    %cst_93 = arith.constant dense<0xFF800000> : vector<128xf32>
    %211 = vector.multi_reduction <maximumf>, %210, %cst_93 [1] : vector<128x8xf32> to vector<128xf32>
    %212 = vector.shape_cast %211 : vector<128xf32> to vector<128x1xf32>
    %213 = vector.broadcast %212 : vector<128x1xf32> to vector<128x8xf32>
    %214 = arith.cmpf oeq, %210, %213 : vector<128x8xf32>
    %c8_i32_94 = arith.constant 8 : i32
    %215 = vector.broadcast %c8_i32_94 : i32 to vector<128x8xi32>
    %216 = arith.select %214, %9, %215 : vector<128x8xi1>, vector<128x8xi32>
    %cst_95 = arith.constant dense<2147483647> : vector<128xi32>
    %217 = vector.multi_reduction <minsi>, %216, %cst_95 [1] : vector<128x8xi32> to vector<128xi32>
    %218 = vector.shape_cast %217 : vector<128xi32> to vector<128x1xi32>
    %c0_96 = arith.constant 0 : index
    %c14 = arith.constant 14 : index
    %219 = vector.load %arg5[%c0_96, %c14] : memref<128x16xi32, #tpu.memory_space<vmem>>, vector<128x1xi32>
    tpu.vector_store %arg5[%c0_96, %c14], %218 {strides = array<i32>} : memref<128x16xi32, #tpu.memory_space<vmem>>, vector<128x1xi32>,
    %220 = vector.extract_strided_slice %7 {offsets = [0, 120], sizes = [128, 8], strides = [1, 1]} : vector<128x128xf32> to vector<128x8xf32>
    %c5_i32_97 = arith.constant 5 : i32
    %221 = vector.broadcast %c5_i32_97 : i32 to vector<128x8xi32>
    %222 = arith.cmpi slt, %9, %221 : vector<128x8xi32>
    %cst_98 = arith.constant 0xFF800000 : f32
    %223 = vector.broadcast %cst_98 : f32 to vector<128x8xf32>
    %224 = arith.select %222, %220, %223 : vector<128x8xi1>, vector<128x8xf32>
    %cst_99 = arith.constant dense<0xFF800000> : vector<128xf32>
    %225 = vector.multi_reduction <maximumf>, %224, %cst_99 [1] : vector<128x8xf32> to vector<128xf32>
    %226 = vector.shape_cast %225 : vector<128xf32> to vector<128x1xf32>
    %227 = vector.broadcast %226 : vector<128x1xf32> to vector<128x8xf32>
    %228 = arith.cmpf oeq, %224, %227 : vector<128x8xf32>
    %c8_i32_100 = arith.constant 8 : i32
    %229 = vector.broadcast %c8_i32_100 : i32 to vector<128x8xi32>
    %230 = arith.select %228, %9, %229 : vector<128x8xi1>, vector<128x8xi32>
    %cst_101 = arith.constant dense<2147483647> : vector<128xi32>
    %231 = vector.multi_reduction <minsi>, %230, %cst_101 [1] : vector<128x8xi32> to vector<128xi32>
    %232 = vector.shape_cast %231 : vector<128xi32> to vector<128x1xi32>
    %c0_102 = arith.constant 0 : index
    %c15 = arith.constant 15 : index
    %233 = vector.load %arg5[%c0_102, %c15] : memref<128x16xi32, #tpu.memory_space<vmem>>, vector<128x1xi32>
    tpu.vector_store %arg5[%c0_102, %c15], %232 {strides = array<i32>} : memref<128x16xi32, #tpu.memory_space<vmem>>, vector<128x1xi32>,
    return
  }
  func.func @transform_0(%arg0: i32) -> (i32, i32) {
    %c0_i32 = arith.constant 0 : i32
    %c0_i32_0 = arith.constant 0 : i32
    return %arg0, %c0_i32 : i32, i32
  }
  func.func @transform_1(%arg0: i32) -> (i32, i32) {
    %c0_i32 = arith.constant 0 : i32
    %c0_i32_0 = arith.constant 0 : i32
    %c0_i32_1 = arith.constant 0 : i32
    return %c0_i32, %c0_i32_0 : i32, i32
  }
  func.func @transform_2(%arg0: i32) -> (i32, i32) {
    %c0_i32 = arith.constant 0 : i32
    %c0_i32_0 = arith.constant 0 : i32
    %c0_i32_1 = arith.constant 0 : i32
    return %c0_i32, %c0_i32_0 : i32, i32
  }
  func.func @transform_3(%arg0: i32) -> (i32, i32) {
    %c0_i32 = arith.constant 0 : i32
    %c0_i32_0 = arith.constant 0 : i32
    return %arg0, %c0_i32 : i32, i32
  }
  func.func @transform_4(%arg0: i32) -> (i32, i32) {
    %c0_i32 = arith.constant 0 : i32
    %c0_i32_0 = arith.constant 0 : i32
    return %arg0, %c0_i32 : i32, i32
  }
}

</mosaic_0001>

<llo_original>
// kernel: _lambda_.5
$region0: #{_lambda_.5}
  #allocation0 [shape = 'u32[]', space=smem, size = 0x4, offset = 0x4, fixed_abs, tag = 'smem constant byte address 0x4 - core index']
  #allocation1 [shape = 'u32[144,128]{1,0:T(1,128)}', space=vmem, size = 0x12000, scoped, tag = 'internal scratch']
  %s0 = inlined_call_operand.vmem [shape: bf16[32,32], index: 0, kind: input, shape index: {}]
  %s1 = inlined_call_operand.hbm [shape: bf16[32,64], index: 1, kind: input, shape index: {}]
  %s2 = inlined_call_operand.hbm [shape: f32[1,64], index: 2, kind: input, shape index: {}]
  %s3 = inlined_call_operand.vmem [shape: bf16[32,64], index: 3, kind: output, shape index: {}]
  %s4 = sld [smem:[#allocation0]]
  $region30: #{_lambda_.5} parent=0
    _
  %s6 = ssub.s32 1, %s4
  %s7 = scalar_select 0, %s6, %s4
  $region1: #{_lambda_.5} parent=0
    #allocation2 [shape = 'u8[8192]{0}', space=vmem, size = 0x2000, scoped, tag = 'input window, operand 1, single buffered']
    #allocation3 [shape = 's32[1]{0}', space=sflag, size = 0x4, scoped, tag = 'scoped memory for _lambda_.5']
    #allocation4 [shape = 'u8[512]{0}', space=vmem, size = 0x400, scoped, tag = 'input window, operand 2, single buffered']
    #allocation5 [shape = 's32[1]{0}', space=sflag, size = 0x4, scoped, tag = 'scoped memory for _lambda_.5']
    %8 = vsyncpa [#allocation3], 0
    %9 = vsyncpa [#allocation5], 0
    // Predicated region
    $region2: #{_lambda_.5} parent=1 // pred_check
      _
    $region3: #{_lambda_.5} parent=1 // pred_check_branch
      %11 = sbr.rel (0) target = $region5
    $region4: #{_lambda_.5} parent=1 // pred_region
      _
    $region5: #{_lambda_.5} parent=1 // pred_fallthru
      _
    // Predicated region
    $region6: #{_lambda_.5} parent=1 // pred_check
      _
    $region7: #{_lambda_.5} parent=1 // pred_check_branch
      %13 = sbr.rel (0) target = $region9
    $region8: #{_lambda_.5} parent=1 // pred_region
      %s15 = ssub.s32 256, 256
      %16 = vsyncadd [#allocation3], %s15
      %s17 = sshll.u32 [#allocation2], 4
      %s18 = int_to_ptr.vmem [resolvable:$true] %s17
      %23 = dma.hbm_to_vmem [thread:$0]  %s1, 256, %s18, [#allocation3], 64, 64, 4
    $region9: #{_lambda_.5} parent=1 // pred_fallthru
      _
    // Predicated region
    $region10: #{_lambda_.5} parent=1 // pred_check
      _
    $region11: #{_lambda_.5} parent=1 // pred_check_branch
      %25 = sbr.rel (0) target = $region13
    $region12: #{_lambda_.5} parent=1 // pred_region
      %s27 = ssub.s32 16, 16
      %28 = vsyncadd [#allocation5], %s27
      %s30 = sshll.u32 [#allocation4], 4
      %s31 = int_to_ptr.vmem [resolvable:$true] %s30
      %33 = dma.hbm_to_vmem [thread:$0]  %s2, 16, %s31, [#allocation5]
    $region13: #{_lambda_.5} parent=1 // pred_fallthru
      _
    // Predicated region
    $region14: #{_lambda_.5} parent=1 // pred_check
      _
    $region15: #{_lambda_.5} parent=1 // pred_check_branch
      %35 = sbr.rel (0) target = $region17
    $region16: #{_lambda_.5} parent=1 // pred_region
      %36 = dma.done [#allocation3], 256
    $region17: #{_lambda_.5} parent=1 // pred_fallthru
      _
    // Predicated region
    $region18: #{_lambda_.5} parent=1 // pred_check
      _
    $region19: #{_lambda_.5} parent=1 // pred_check_branch
      %38 = sbr.rel (0) target = $region21
    $region20: #{_lambda_.5} parent=1 // pred_region
      %39 = dma.done [#allocation5], 16
    $region21: #{_lambda_.5} parent=1 // pred_fallthru
      _
    %v41 = vld [vmem:[%s0] sm:$0xf]
    %v42 = vld [vmem:[%s0 + $0x4] sm:$0xf]
    %v43 = vld [vmem:[%s0 + $0x8] sm:$0xf]
    %v44 = vld [vmem:[%s0 + $0xc] sm:$0xf]
    %v45 = vld [vmem:[#allocation2] sm:$0xf]
    %v46 = vld [vmem:[#allocation2 + $0x4] sm:$0xf]
    %v47 = vld [vmem:[#allocation2 + $0x8] sm:$0xf]
    %v48 = vld [vmem:[#allocation2 + $0xc] sm:$0xf]
    %v49 = vld [vmem:[#allocation4] sm:$0x1]
    %v51 = vlaneseq
    %v52 = vshrl.u32 %v51, 7
    %v53 = vsub.s32 0, %v52
    %v54 = vrot.slane %v49, %v53
    %v60 = vunpack.c.l.b16 %v41
    %v61 = vunpack.c.l.b16 %v42
    %v62 = vunpack.c.l.b16 %v43
    %v63 = vunpack.c.l.b16 %v44
    %v64 = vpack.c.b16 %v61, %v60
    %v65 = vpack.c.b16 %v63, %v62
    %v70 = vunpack.c.l.b16 %v45
    %v71 = vunpack.c.l.b16 %v46
    %v72 = vunpack.c.l.b16 %v47
    %v73 = vunpack.c.l.b16 %v48
    %v74 = vpack.c.b16 %v71, %v70
    %v75 = vpack.c.b16 %v73, %v72
    %vm78 = vcmask 261120
    %v80 = vsel %vm78, %v64, 0
    %v83 = vsel %vm78, %v65, 0
    %85 = vmatprep.subr.bf16.mxu0 0
    %86 = vmatpush1.bf16.msra.mxu0 %v74
    %87 = vmatprep.subr.bf16.mxu0 0
    %88 = vmatpush1.bf16.msra.mxu0 %v75
    %89 = vmatprep.subr.bf16.mxu0 0
    %90 = vmatpush1.bf16.msra.mxu0 0
    %91 = vmatprep.subr.bf16.mxu0 0
    %92 = vmatpush1.bf16.msra.mxu0 0
    %93 = vmatprep.subr.bf16.mxu0 0
    %94 = vmatpush1.bf16.msra.mxu0 0
    %95 = vmatprep.subr.bf16.mxu0 0
    %96 = vmatpush1.bf16.msra.mxu0 0
    %97 = vmatprep.subr.bf16.mxu0 0
    %98 = vmatpush1.bf16.msra.mxu0 0
    %99 = vmatprep.subr.bf16.mxu0 0
    %100 = vmatpush1.bf16.msra.mxu0 0
    %101 = vmatprep.subr.bf16.mxu0 0
    %102 = vmatpush1.bf16.msra.mxu0 0
    %103 = vmatprep.subr.bf16.mxu0 0
    %104 = vmatpush1.bf16.msra.mxu0 0
    %105 = vmatprep.subr.bf16.mxu0 0
    %106 = vmatpush1.bf16.msra.mxu0 0
    %107 = vmatprep.subr.bf16.mxu0 0
    %108 = vmatpush1.bf16.msra.mxu0 0
    %109 = vmatprep.subr.bf16.mxu0 0
    %110 = vmatpush1.bf16.msra.mxu0 0
    %111 = vmatprep.subr.bf16.mxu0 0
    %112 = vmatpush1.bf16.msra.mxu0 0
    %113 = vmatprep.subr.bf16.mxu0 0
    %114 = vmatpush1.bf16.msra.mxu0 0
    %115 = vmatprep.subr.bf16.mxu0 0
    %116 = vmatpush1.bf16.msra.mxu0 0
    %117 = vmatprep.mubr.bf16.mxu0 0
    %118 = vmatmul.mubr.bf16.gmra.mrb[0].mxu0 %v80
    %v119 = vpop.f32.mrb[0].mxu0
    %v120 = vadd.f32 %v54, %v119
    %v121 = vpop.f32.mrb[0].mxu0
    %v122 = vpop.f32.mrb[0].mxu0
    %v123 = vadd.f32 %v54, %v122
    %v124 = vpop.f32.mrb[0].mxu0
    %125 = vmatprep.mubr.bf16.mxu0 0
    %126 = vmatmul.mubr.bf16.gmra.mrb[0].mxu0 %v83
    %v127 = vpop.f32.mrb[0].mxu0
    %v128 = vadd.f32 %v54, %v127
    %v129 = vpop.f32.mrb[0].mxu0
    %v130 = vpop.f32.mrb[0].mxu0
    %v131 = vadd.f32 %v54, %v130
    %v132 = vpop.f32.mrb[0].mxu0
    %133 = vdwg.mxu0
    %v134 = vmax.f32 %v120, 0.0
    %v135 = vmax.f32 %v123, 0.0
    %v136 = vmax.f32 %v128, 0.0
    %v137 = vmax.f32 %v131, 0.0
    %v138 = vpack.c.bf16 %v135, %v134
    %v139 = vpack.c.bf16 %v137, %v136
    %v142 = vunpack.c.l.b16 %v138
    %v143 = vunpack.c.h.b16 %v138
    %v144 = vunpack.c.l.b16 %v139
    %v145 = vunpack.c.h.b16 %v139
    %v146 = vpack.c.b16 %v142, %v142
    %v147 = vpack.c.b16 %v143, %v143
    %v148 = vpack.c.b16 %v144, %v144
    %v149 = vpack.c.b16 %v145, %v145
    %vm154 = vcmask 519168
    %155 = vst.msk [vmem:[%s3] sm:$0xf] %vm154, %v146
    %156 = vst.msk [vmem:[%s3 + $0x4] sm:$0xf] %vm154, %v147
    %157 = vst.msk [vmem:[%s3 + $0x8] sm:$0xf] %vm154, %v148
    %158 = vst.msk [vmem:[%s3 + $0xc] sm:$0xf] %vm154, %v149
    // Predicated region
    $region22: #{_lambda_.5} parent=1 // pred_check
      _
    $region23: #{_lambda_.5} parent=1 // pred_check_branch
      %160 = sbr.rel (0) target = $region25
    $region24: #{_lambda_.5} parent=1 // pred_region
      _
    $region25: #{_lambda_.5} parent=1 // pred_fallthru
      _
    // Predicated region
    $region26: #{_lambda_.5} parent=1 // pred_check
      _
    $region27: #{_lambda_.5} parent=1 // pred_check_branch
      %162 = sbr.rel (0) target = $region29
    $region28: #{_lambda_.5} parent=1 // pred_region
      _
    $region29: #{_lambda_.5} parent=1 // pred_fallthru
      _
    %163 = vsyncpa [#allocation3], 1
    %164 = vsyncpa [#allocation5], 1

// kernel: _lambda_.4
$region0: #{_lambda_.4}
  #allocation0 [shape = 'u32[]', space=smem, size = 0x4, offset = 0x4, fixed_abs, tag = 'smem constant byte address 0x4 - core index']
  #allocation1 [shape = 'u32[144,128]{1,0:T(1,128)}', space=vmem, size = 0x12000, scoped, tag = 'internal scratch']
  %s0 = inlined_call_operand.vmem [shape: bf16[128,16], index: 0, kind: input, shape index: {}]
  %s1 = inlined_call_operand.hbm [shape: bf16[16,64], index: 1, kind: input, shape index: {}]
  %s2 = inlined_call_operand.hbm [shape: f32[1,64], index: 2, kind: input, shape index: {}]
  %s3 = inlined_call_operand.vmem [shape: bf16[128,64], index: 3, kind: output, shape index: {}]
  %s4 = sld [smem:[#allocation0]]
  $region30: #{_lambda_.4} parent=0
    _
  %s6 = ssub.s32 1, %s4
  %s7 = scalar_select 0, %s6, %s4
  $region1: #{_lambda_.4} parent=0
    #allocation2 [shape = 'u8[4096]{0}', space=vmem, size = 0x1000, scoped, tag = 'input window, operand 1, single buffered']
    #allocation3 [shape = 's32[1]{0}', space=sflag, size = 0x4, scoped, tag = 'scoped memory for _lambda_.4']
    #allocation4 [shape = 'u8[512]{0}', space=vmem, size = 0x400, scoped, tag = 'input window, operand 2, single buffered']
    #allocation5 [shape = 's32[1]{0}', space=sflag, size = 0x4, scoped, tag = 'scoped memory for _lambda_.4']
    %8 = vsyncpa [#allocation3], 0
    %9 = vsyncpa [#allocation5], 0
    // Predicated region
    $region2: #{_lambda_.4} parent=1 // pred_check
      _
    $region3: #{_lambda_.4} parent=1 // pred_check_branch
      %11 = sbr.rel (0) target = $region5
    $region4: #{_lambda_.4} parent=1 // pred_region
      _
    $region5: #{_lambda_.4} parent=1 // pred_fallthru
      _
    // Predicated region
    $region6: #{_lambda_.4} parent=1 // pred_check
      _
    $region7: #{_lambda_.4} parent=1 // pred_check_branch
      %13 = sbr.rel (0) target = $region9
    $region8: #{_lambda_.4} parent=1 // pred_region
      %s15 = ssub.s32 128, 128
      %16 = vsyncadd [#allocation3], %s15
      %s17 = sshll.u32 [#allocation2], 4
      %s18 = int_to_ptr.vmem [resolvable:$true] %s17
      %23 = dma.hbm_to_vmem [thread:$0]  %s1, 128, %s18, [#allocation3], 64, 64, 4
    $region9: #{_lambda_.4} parent=1 // pred_fallthru
      _
    // Predicated region
    $region10: #{_lambda_.4} parent=1 // pred_check
      _
    $region11: #{_lambda_.4} parent=1 // pred_check_branch
      %25 = sbr.rel (0) target = $region13
    $region12: #{_lambda_.4} parent=1 // pred_region
      %s27 = ssub.s32 16, 16
      %28 = vsyncadd [#allocation5], %s27
      %s30 = sshll.u32 [#allocation4], 4
      %s31 = int_to_ptr.vmem [resolvable:$true] %s30
      %33 = dma.hbm_to_vmem [thread:$0]  %s2, 16, %s31, [#allocation5]
    $region13: #{_lambda_.4} parent=1 // pred_fallthru
      _
    // Predicated region
    $region14: #{_lambda_.4} parent=1 // pred_check
      _
    $region15: #{_lambda_.4} parent=1 // pred_check_branch
      %35 = sbr.rel (0) target = $region17
    $region16: #{_lambda_.4} parent=1 // pred_region
      %36 = dma.done [#allocation3], 128
    $region17: #{_lambda_.4} parent=1 // pred_fallthru
      _
    // Predicated region
    $region18: #{_lambda_.4} parent=1 // pred_check
      _
    $region19: #{_lambda_.4} parent=1 // pred_check_branch
      %38 = sbr.rel (0) target = $region21
    $region20: #{_lambda_.4} parent=1 // pred_region
      %39 = dma.done [#allocation5], 16
    $region21: #{_lambda_.4} parent=1 // pred_fallthru
      _
    %v41 = vld [vmem:[%s0] sm:$0xf]
    %v42 = vld [vmem:[%s0 + $0x4] sm:$0xf]
    %v43 = vld [vmem:[%s0 + $0x8] sm:$0xf]
    %v44 = vld [vmem:[%s0 + $0xc] sm:$0xf]
    %v45 = vld [vmem:[%s0 + $0x10] sm:$0xf]
    %v46 = vld [vmem:[%s0 + $0x14] sm:$0xf]
    %v47 = vld [vmem:[%s0 + $0x18] sm:$0xf]
    %v48 = vld [vmem:[%s0 + $0x1c] sm:$0xf]
    %v49 = vld [vmem:[%s0 + $0x20] sm:$0xf]
    %v50 = vld [vmem:[%s0 + $0x24] sm:$0xf]
    %v51 = vld [vmem:[%s0 + $0x28] sm:$0xf]
    %v52 = vld [vmem:[%s0 + $0x2c] sm:$0xf]
    %v53 = vld [vmem:[%s0 + $0x30] sm:$0xf]
    %v54 = vld [vmem:[%s0 + $0x34] sm:$0xf]
    %v55 = vld [vmem:[%s0 + $0x38] sm:$0xf]
    %v56 = vld [vmem:[%s0 + $0x3c] sm:$0xf]
    %v57 = vld [vmem:[#allocation2] sm:$0xf]
    %v58 = vld [vmem:[#allocation2 + $0x4] sm:$0xf]
    %v59 = vld [vmem:[#allocation4] sm:$0x1]
    %v61 = vlaneseq
    %v62 = vshrl.u32 %v61, 7
    %v63 = vsub.s32 0, %v62
    %v64 = vrot.slane %v59, %v63
    %v82 = vunpack.c.l.b16 %v41
    %v83 = vunpack.c.l.b16 %v42
    %v84 = vunpack.c.l.b16 %v43
    %v85 = vunpack.c.l.b16 %v44
    %v86 = vunpack.c.l.b16 %v45
    %v87 = vunpack.c.l.b16 %v46
    %v88 = vunpack.c.l.b16 %v47
    %v89 = vunpack.c.l.b16 %v48
    %v90 = vunpack.c.l.b16 %v49
    %v91 = vunpack.c.l.b16 %v50
    %v92 = vunpack.c.l.b16 %v51
    %v93 = vunpack.c.l.b16 %v52
    %v94 = vunpack.c.l.b16 %v53
    %v95 = vunpack.c.l.b16 %v54
    %v96 = vunpack.c.l.b16 %v55
    %v97 = vunpack.c.l.b16 %v56
    %v98 = vpack.c.b16 %v83, %v82
    %v99 = vpack.c.b16 %v85, %v84
    %v100 = vpack.c.b16 %v87, %v86
    %v101 = vpack.c.b16 %v89, %v88
    %v102 = vpack.c.b16 %v91, %v90
    %v103 = vpack.c.b16 %v93, %v92
    %v104 = vpack.c.b16 %v95, %v94
    %v105 = vpack.c.b16 %v97, %v96
    %v108 = vunpack.c.l.b16 %v57
    %v109 = vunpack.c.l.b16 %v58
    %v110 = vpack.c.b16 %v109, %v108
    %vm112 = vcmask 130048
    %v114 = vsel %vm112, %v98, 0
    %v117 = vsel %vm112, %v99, 0
    %v120 = vsel %vm112, %v100, 0
    %v123 = vsel %vm112, %v101, 0
    %v126 = vsel %vm112, %v102, 0
    %v129 = vsel %vm112, %v103, 0
    %v132 = vsel %vm112, %v104, 0
    %v135 = vsel %vm112, %v105, 0
    %137 = vmatprep.subr.bf16.mxu0 0
    %138 = vmatpush1.bf16.msra.mxu0 %v110
    %139 = vmatprep.subr.bf16.mxu0 0
    %140 = vmatpush1.bf16.msra.mxu0 0
    %141 = vmatprep.subr.bf16.mxu0 0
    %142 = vmatpush1.bf16.msra.mxu0 0
    %143 = vmatprep.subr.bf16.mxu0 0
    %144 = vmatpush1.bf16.msra.mxu0 0
    %145 = vmatprep.subr.bf16.mxu0 0
    %146 = vmatpush1.bf16.msra.mxu0 0
    %147 = vmatprep.subr.bf16.mxu0 0
    %148 = vmatpush1.bf16.msra.mxu0 0
    %149 = vmatprep.subr.bf16.mxu0 0
    %150 = vmatpush1.bf16.msra.mxu0 0
    %151 = vmatprep.subr.bf16.mxu0 0
    %152 = vmatpush1.bf16.msra.mxu0 0
    %153 = vmatprep.subr.bf16.mxu0 0
    %154 = vmatpush1.bf16.msra.mxu0 0
    %155 = vmatprep.subr.bf16.mxu0 0
    %156 = vmatpush1.bf16.msra.mxu0 0
    %157 = vmatprep.subr.bf16.mxu0 0
    %158 = vmatpush1.bf16.msra.mxu0 0
    %159 = vmatprep.subr.bf16.mxu0 0
    %160 = vmatpush1.bf16.msra.mxu0 0
    %161 = vmatprep.subr.bf16.mxu0 0
    %162 = vmatpush1.bf16.msra.mxu0 0
    %163 = vmatprep.subr.bf16.mxu0 0
    %164 = vmatpush1.bf16.msra.mxu0 0
    %165 = vmatprep.subr.bf16.mxu0 0
    %166 = vmatpush1.bf16.msra.mxu0 0
    %167 = vmatprep.subr.bf16.mxu0 0
    %168 = vmatpush1.bf16.msra.mxu0 0
    %169 = vmatprep.mubr.bf16.mxu0 0
    %170 = vmatmul.mubr.bf16.gmra.mrb[0].mxu0 %v114
    %v171 = vpop.f32.mrb[0].mxu0
    %v172 = vadd.f32 %v64, %v171
    %v173 = vpop.f32.mrb[0].mxu0
    %v174 = vpop.f32.mrb[0].mxu0
    %v175 = vadd.f32 %v64, %v174
    %v176 = vpop.f32.mrb[0].mxu0
    %177 = vmatprep.mubr.bf16.mxu0 0
    %178 = vmatmul.mubr.bf16.gmra.mrb[0].mxu0 %v117
    %v179 = vpop.f32.mrb[0].mxu0
    %v180 = vadd.f32 %v64, %v179
    %v181 = vpop.f32.mrb[0].mxu0
    %v182 = vpop.f32.mrb[0].mxu0
    %v183 = vadd.f32 %v64, %v182
    %v184 = vpop.f32.mrb[0].mxu0
    %185 = vmatprep.mubr.bf16.mxu0 0
    %186 = vmatmul.mubr.bf16.gmra.mrb[0].mxu0 %v120
    %v187 = vpop.f32.mrb[0].mxu0
    %v188 = vadd.f32 %v64, %v187
    %v189 = vpop.f32.mrb[0].mxu0
    %v190 = vpop.f32.mrb[0].mxu0
    %v191 = vadd.f32 %v64, %v190
    %v192 = vpop.f32.mrb[0].mxu0
    %193 = vmatprep.mubr.bf16.mxu0 0
    %194 = vmatmul.mubr.bf16.gmra.mrb[0].mxu0 %v123
    %v195 = vpop.f32.mrb[0].mxu0
    %v196 = vadd.f32 %v64, %v195
    %v197 = vpop.f32.mrb[0].mxu0
    %v198 = vpop.f32.mrb[0].mxu0
    %v199 = vadd.f32 %v64, %v198
    %v200 = vpop.f32.mrb[0].mxu0
    %201 = vmatprep.mubr.bf16.mxu0 0
    %202 = vmatmul.mubr.bf16.gmra.mrb[0].mxu0 %v126
    %v203 = vpop.f32.mrb[0].mxu0
    %v204 = vadd.f32 %v64, %v203
    %v205 = vpop.f32.mrb[0].mxu0
    %v206 = vpop.f32.mrb[0].mxu0
    %v207 = vadd.f32 %v64, %v206
    %v208 = vpop.f32.mrb[0].mxu0
    %209 = vmatprep.mubr.bf16.mxu0 0
    %210 = vmatmul.mubr.bf16.gmra.mrb[0].mxu0 %v129
    %v211 = vpop.f32.mrb[0].mxu0
    %v212 = vadd.f32 %v64, %v211
    %v213 = vpop.f32.mrb[0].mxu0
    %v214 = vpop.f32.mrb[0].mxu0
    %v215 = vadd.f32 %v64, %v214
    %v216 = vpop.f32.mrb[0].mxu0
    %217 = vmatprep.mubr.bf16.mxu0 0
    %218 = vmatmul.mubr.bf16.gmra.mrb[0].mxu0 %v132
    %v219 = vpop.f32.mrb[0].mxu0
    %v220 = vadd.f32 %v64, %v219
    %v221 = vpop.f32.mrb[0].mxu0
    %v222 = vpop.f32.mrb[0].mxu0
    %v223 = vadd.f32 %v64, %v222
    %v224 = vpop.f32.mrb[0].mxu0
    %225 = vmatprep.mubr.bf16.mxu0 0
    %226 = vmatmul.mubr.bf16.gmra.mrb[0].mxu0 %v135
    %v227 = vpop.f32.mrb[0].mxu0
    %v228 = vadd.f32 %v64, %v227
    %v229 = vpop.f32.mrb[0].mxu0
    %v230 = vpop.f32.mrb[0].mxu0
    %v231 = vadd.f32 %v64, %v230
    %v232 = vpop.f32.mrb[0].mxu0
    %233 = vdwg.mxu0
    %v234 = vmax.f32 %v172, 0.0
    %v235 = vmax.f32 %v175, 0.0
    %v236 = vmax.f32 %v180, 0.0
    %v237 = vmax.f32 %v183, 0.0
    %v238 = vmax.f32 %v188, 0.0
    %v239 = vmax.f32 %v191, 0.0
    %v240 = vmax.f32 %v196, 0.0
    %v241 = vmax.f32 %v199, 0.0
    %v242 = vmax.f32 %v204, 0.0
    %v243 = vmax.f32 %v207, 0.0
    %v244 = vmax.f32 %v212, 0.0
    %v245 = vmax.f32 %v215, 0.0
    %v246 = vmax.f32 %v220, 0.0
    %v247 = vmax.f32 %v223, 0.0
    %v248 = vmax.f32 %v228, 0.0
    %v249 = vmax.f32 %v231, 0.0
    %v250 = vpack.c.bf16 %v235, %v234
    %v251 = vpack.c.bf16 %v237, %v236
    %v252 = vpack.c.bf16 %v239, %v238
    %v253 = vpack.c.bf16 %v241, %v240
    %v254 = vpack.c.bf16 %v243, %v242
    %v255 = vpack.c.bf16 %v245, %v244
    %v256 = vpack.c.bf16 %v247, %v246
    %v257 = vpack.c.bf16 %v249, %v248
    %v266 = vunpack.c.l.b16 %v250
    %v267 = vunpack.c.h.b16 %v250
    %v268 = vunpack.c.l.b16 %v251
    %v269 = vunpack.c.h.b16 %v251
    %v270 = vunpack.c.l.b16 %v252
    %v271 = vunpack.c.h.b16 %v252
    %v272 = vunpack.c.l.b16 %v253
    %v273 = vunpack.c.h.b16 %v253
    %v274 = vunpack.c.l.b16 %v254
    %v275 = vunpack.c.h.b16 %v254
    %v276 = vunpack.c.l.b16 %v255
    %v277 = vunpack.c.h.b16 %v255
    %v278 = vunpack.c.l.b16 %v256
    %v279 = vunpack.c.h.b16 %v256
    %v280 = vunpack.c.l.b16 %v257
    %v281 = vunpack.c.h.b16 %v257
    %v282 = vpack.c.b16 %v266, %v266
    %v283 = vpack.c.b16 %v267, %v267
    %v284 = vpack.c.b16 %v268, %v268
    %v285 = vpack.c.b16 %v269, %v269
    %v286 = vpack.c.b16 %v270, %v270
    %v287 = vpack.c.b16 %v271, %v271
    %v288 = vpack.c.b16 %v272, %v272
    %v289 = vpack.c.b16 %v273, %v273
    %v290 = vpack.c.b16 %v274, %v274
    %v291 = vpack.c.b16 %v275, %v275
    %v292 = vpack.c.b16 %v276, %v276
    %v293 = vpack.c.b16 %v277, %v277
    %v294 = vpack.c.b16 %v278, %v278
    %v295 = vpack.c.b16 %v279, %v279
    %v296 = vpack.c.b16 %v280, %v280
    %v297 = vpack.c.b16 %v281, %v281
    %vm314 = vcmask 519168
    %315 = vst.msk [vmem:[%s3] sm:$0xf] %vm314, %v282
    %316 = vst.msk [vmem:[%s3 + $0x4] sm:$0xf] %vm314, %v283
    %317 = vst.msk [vmem:[%s3 + $0x8] sm:$0xf] %vm314, %v284
    %318 = vst.msk [vmem:[%s3 + $0xc] sm:$0xf] %vm314, %v285
    %319 = vst.msk [vmem:[%s3 + $0x10] sm:$0xf] %vm314, %v286
    %320 = vst.msk [vmem:[%s3 + $0x14] sm:$0xf] %vm314, %v287
    %321 = vst.msk [vmem:[%s3 + $0x18] sm:$0xf] %vm314, %v288
    %322 = vst.msk [vmem:[%s3 + $0x1c] sm:$0xf] %vm314, %v289
    %323 = vst.msk [vmem:[%s3 + $0x20] sm:$0xf] %vm314, %v290
    %324 = vst.msk [vmem:[%s3 + $0x24] sm:$0xf] %vm314, %v291
    %325 = vst.msk [vmem:[%s3 + $0x28] sm:$0xf] %vm314, %v292
    %326 = vst.msk [vmem:[%s3 + $0x2c] sm:$0xf] %vm314, %v293
    %327 = vst.msk [vmem:[%s3 + $0x30] sm:$0xf] %vm314, %v294
    %328 = vst.msk [vmem:[%s3 + $0x34] sm:$0xf] %vm314, %v295
    %329 = vst.msk [vmem:[%s3 + $0x38] sm:$0xf] %vm314, %v296
    %330 = vst.msk [vmem:[%s3 + $0x3c] sm:$0xf] %vm314, %v297
    // Predicated region
    $region22: #{_lambda_.4} parent=1 // pred_check
      _
    $region23: #{_lambda_.4} parent=1 // pred_check_branch
      %332 = sbr.rel (0) target = $region25
    $region24: #{_lambda_.4} parent=1 // pred_region
      _
    $region25: #{_lambda_.4} parent=1 // pred_fallthru
      _
    // Predicated region
    $region26: #{_lambda_.4} parent=1 // pred_check
      _
    $region27: #{_lambda_.4} parent=1 // pred_check_branch
      %334 = sbr.rel (0) target = $region29
    $region28: #{_lambda_.4} parent=1 // pred_region
      _
    $region29: #{_lambda_.4} parent=1 // pred_fallthru
      _
    %335 = vsyncpa [#allocation3], 1
    %336 = vsyncpa [#allocation5], 1

// kernel: _lambda_.6
$region0: #{_lambda_.6}
  #allocation0 [shape = 'u32[]', space=smem, size = 0x4, offset = 0x4, fixed_abs, tag = 'smem constant byte address 0x4 - core index']
  #allocation1 [shape = 'u32[144,128]{1,0:T(1,128)}', space=vmem, size = 0x12000, scoped, tag = 'internal scratch']
  %s0 = inlined_call_operand.vmem [shape: bf16[32,576], index: 0, kind: input, shape index: {}]
  %s1 = inlined_call_operand.vmem [shape: bf16[576,256], index: 1, kind: input, shape index: {}]
  %s2 = inlined_call_operand.vmem [shape: bf16[32,256], index: 2, kind: input, shape index: {}]
  %s3 = inlined_call_operand.vmem [shape: bf16[32,256], index: 3, kind: output, shape index: {}]
  %s4 = sld [smem:[#allocation0]]
  $region22: #{_lambda_.6} parent=0
    _
  %s6 = ssub.s32 1, %s4
  %s7 = scalar_select 0, %s6, %s4
  // Predicated region
  $region2: #{_lambda_.6} parent=0 // pred_check
    _
  $region3: #{_lambda_.6} parent=0 // pred_check_branch
    %9 = sbr.rel (0) target = $region5
  $region4: #{_lambda_.6} parent=0 // pred_region
    _
  $region5: #{_lambda_.6} parent=0 // pred_fallthru
    _
  // Predicated region
  $region6: #{_lambda_.6} parent=0 // pred_check
    _
  $region7: #{_lambda_.6} parent=0 // pred_check_branch
    %11 = sbr.rel (0) target = $region9
  $region8: #{_lambda_.6} parent=0 // pred_region
    _
  $region9: #{_lambda_.6} parent=0 // pred_fallthru
    _
  // Predicated region
  $region10: #{_lambda_.6} parent=0 // pred_check
    _
  $region11: #{_lambda_.6} parent=0 // pred_check_branch
    %13 = sbr.rel (0) target = $region13
  $region12: #{_lambda_.6} parent=0 // pred_region
    _
  $region13: #{_lambda_.6} parent=0 // pred_fallthru
    _
  %v15 = vld [vmem:[%s0] sm:$0xff]
  %v16 = vld [vmem:[%s0 + $0x8] sm:$0xff]
  %v17 = vld [vmem:[%s0 + $0x10] sm:$0xf]
  %v18 = vld [vmem:[%s0 + $0x14] sm:$0xff]
  %v19 = vld [vmem:[%s0 + $0x1c] sm:$0xff]
  %v20 = vld [vmem:[%s0 + $0x24] sm:$0xf]
  %v21 = vld [vmem:[%s0 + $0x28] sm:$0xff]
  %v22 = vld [vmem:[%s0 + $0x30] sm:$0xff]
  %v23 = vld [vmem:[%s0 + $0x38] sm:$0xf]
  %v24 = vld [vmem:[%s0 + $0x3c] sm:$0xff]
  %v25 = vld [vmem:[%s0 + $0x44] sm:$0xff]
  %v26 = vld [vmem:[%s0 + $0x4c] sm:$0xf]
  %v27 = vld [vmem:[%s1] sm:$0xff]
  %v28 = vld [vmem:[%s1 + $0x8] sm:$0xff]
  %v29 = vld [vmem:[%s1 + $0x10] sm:$0xff]
  %v30 = vld [vmem:[%s1 + $0x18] sm:$0xff]
  %v31 = vld [vmem:[%s1 + $0x20] sm:$0xff]
  %v32 = vld [vmem:[%s1 + $0x28] sm:$0xff]
  %v33 = vld [vmem:[%s1 + $0x30] sm:$0xff]
  %v34 = vld [vmem:[%s1 + $0x38] sm:$0xff]
  %v35 = vld [vmem:[%s1 + $0x40] sm:$0xff]
  %v36 = vld [vmem:[%s1 + $0x48] sm:$0xff]
  %v37 = vld [vmem:[%s1 + $0x50] sm:$0xff]
  %v38 = vld [vmem:[%s1 + $0x58] sm:$0xff]
  %v39 = vld [vmem:[%s1 + $0x60] sm:$0xff]
  %v40 = vld [vmem:[%s1 + $0x68] sm:$0xff]
  %v41 = vld [vmem:[%s1 + $0x70] sm:$0xff]
  %v42 = vld [vmem:[%s1 + $0x78] sm:$0xff]
  %v43 = vld [vmem:[%s1 + $0x80] sm:$0xff]
  %v44 = vld [vmem:[%s1 + $0x88] sm:$0xff]
  %v45 = vld [vmem:[%s1 + $0x90] sm:$0xff]
  %v46 = vld [vmem:[%s1 + $0x98] sm:$0xff]
  %v47 = vld [vmem:[%s1 + $0xa0] sm:$0xff]
  %v48 = vld [vmem:[%s1 + $0xa8] sm:$0xff]
  %v49 = vld [vmem:[%s1 + $0xb0] sm:$0xff]
  %v50 = vld [vmem:[%s1 + $0xb8] sm:$0xff]
  %v51 = vld [vmem:[%s1 + $0xc0] sm:$0xff]
  %v52 = vld [vmem:[%s1 + $0xc8] sm:$0xff]
  %v53 = vld [vmem:[%s1 + $0xd0] sm:$0xff]
  %v54 = vld [vmem:[%s1 + $0xd8] sm:$0xff]
  %v55 = vld [vmem:[%s1 + $0xe0] sm:$0xff]
  %v56 = vld [vmem:[%s1 + $0xe8] sm:$0xff]
  %v57 = vld [vmem:[%s1 + $0xf0] sm:$0xff]
  %v58 = vld [vmem:[%s1 + $0xf8] sm:$0xff]
  %v59 = vld [vmem:[%s1 + $0x100] sm:$0xff]
  %v60 = vld [vmem:[%s1 + $0x108] sm:$0xff]
  %v61 = vld [vmem:[%s1 + $0x110] sm:$0xff]
  %v62 = vld [vmem:[%s1 + $0x118] sm:$0xff]
  %v63 = vld [vmem:[%s1 + $0x120] sm:$0xff]
  %v64 = vld [vmem:[%s1 + $0x128] sm:$0xff]
  %v65 = vld [vmem:[%s1 + $0x130] sm:$0xff]
  %v66 = vld [vmem:[%s1 + $0x138] sm:$0xff]
  %v67 = vld [vmem:[%s1 + $0x140] sm:$0xff]
  %v68 = vld [vmem:[%s1 + $0x148] sm:$0xff]
  %v69 = vld [vmem:[%s1 + $0x150] sm:$0xff]
  %v70 = vld [vmem:[%s1 + $0x158] sm:$0xff]
  %v71 = vld [vmem:[%s1 + $0x160] sm:$0xff]
  %v72 = vld [vmem:[%s1 + $0x168] sm:$0xff]
  %v73 = vld [vmem:[%s1 + $0x170] sm:$0xff]
  %v74 = vld [vmem:[%s1 + $0x178] sm:$0xff]
  %v75 = vld [vmem:[%s1 + $0x180] sm:$0xff]
  %v76 = vld [vmem:[%s1 + $0x188] sm:$0xff]
  %v77 = vld [vmem:[%s1 + $0x190] sm:$0xff]
  %v78 = vld [vmem:[%s1 + $0x198] sm:$0xff]
  %v79 = vld [vmem:[%s1 + $0x1a0] sm:$0xff]
  %v80 = vld [vmem:[%s1 + $0x1a8] sm:$0xff]
  %v81 = vld [vmem:[%s1 + $0x1b0] sm:$0xff]
  %v82 = vld [vmem:[%s1 + $0x1b8] sm:$0xff]
  %v83 = vld [vmem:[%s1 + $0x1c0] sm:$0xff]
  %v84 = vld [vmem:[%s1 + $0x1c8] sm:$0xff]
  %v85 = vld [vmem:[%s1 + $0x1d0] sm:$0xff]
  %v86 = vld [vmem:[%s1 + $0x1d8] sm:$0xff]
  %v87 = vld [vmem:[%s1 + $0x1e0] sm:$0xff]
  %v88 = vld [vmem:[%s1 + $0x1e8] sm:$0xff]
  %v89 = vld [vmem:[%s1 + $0x1f0] sm:$0xff]
  %v90 = vld [vmem:[%s1 + $0x1f8] sm:$0xff]
  %v91 = vld [vmem:[%s1 + $0x200] sm:$0xff]
  %v92 = vld [vmem:[%s1 + $0x208] sm:$0xff]
  %v93 = vld [vmem:[%s1 + $0x210] sm:$0xff]
  %v94 = vld [vmem:[%s1 + $0x218] sm:$0xff]
  %v95 = vld [vmem:[%s1 + $0x220] sm:$0xff]
  %v96 = vld [vmem:[%s1 + $0x228] sm:$0xff]
  %v97 = vld [vmem:[%s1 + $0x230] sm:$0xff]
  %v98 = vld [vmem:[%s1 + $0x238] sm:$0xff]
  %v99 = vld [vmem:[%s2] sm:$0xff]
  %v100 = vld [vmem:[%s2 + $0x8] sm:$0xff]
  %v101 = vld [vmem:[%s2 + $0x10] sm:$0xff]
  %v102 = vld [vmem:[%s2 + $0x18] sm:$0xff]
  %v103 = vunpack.c.l.bf16 %v99
  %v104 = vunpack.c.h.bf16 %v99
  %v105 = vunpack.c.l.bf16 %v100
  %v106 = vunpack.c.h.bf16 %v100
  %v107 = vunpack.c.l.bf16 %v101
  %v108 = vunpack.c.h.bf16 %v101
  %v109 = vunpack.c.l.bf16 %v102
  %v110 = vunpack.c.h.bf16 %v102
  %v123 = vunpack.c.l.b16 %v15
  %v124 = vunpack.c.h.b16 %v15
  %v125 = vunpack.c.l.b16 %v16
  %v126 = vunpack.c.h.b16 %v16
  %v127 = vunpack.c.l.b16 %v17
  %v128 = vunpack.c.l.b16 %v18
  %v129 = vunpack.c.h.b16 %v18
  %v130 = vunpack.c.l.b16 %v19
  %v131 = vunpack.c.h.b16 %v19
  %v132 = vunpack.c.l.b16 %v20
  %v133 = vunpack.c.l.b16 %v21
  %v134 = vunpack.c.h.b16 %v21
  %v135 = vunpack.c.l.b16 %v22
  %v136 = vunpack.c.h.b16 %v22
  %v137 = vunpack.c.l.b16 %v23
  %v138 = vunpack.c.l.b16 %v24
  %v139 = vunpack.c.h.b16 %v24
  %v140 = vunpack.c.l.b16 %v25
  %v141 = vunpack.c.h.b16 %v25
  %v142 = vunpack.c.l.b16 %v26
  %v143 = vpack.c.b16 %v128, %v123
  %v144 = vpack.c.b16 %v129, %v124
  %v145 = vpack.c.b16 %v130, %v125
  %v146 = vpack.c.b16 %v131, %v126
  %v147 = vpack.c.b16 %v132, %v127
  %v148 = vpack.c.b16 %v138, %v133
  %v149 = vpack.c.b16 %v139, %v134
  %v150 = vpack.c.b16 %v140, %v135
  %v151 = vpack.c.b16 %v141, %v136
  %v152 = vpack.c.b16 %v142, %v137
  %v233 = vunpack.c.l.b16 %v27
  %v234 = vunpack.c.h.b16 %v27
  %v235 = vunpack.c.l.b16 %v28
  %v236 = vunpack.c.h.b16 %v28
  %v237 = vunpack.c.l.b16 %v29
  %v238 = vunpack.c.h.b16 %v29
  %v239 = vunpack.c.l.b16 %v30
  %v240 = vunpack.c.h.b16 %v30
  %v241 = vunpack.c.l.b16 %v31
  %v242 = vunpack.c.h.b16 %v31
  %v243 = vunpack.c.l.b16 %v32
  %v244 = vunpack.c.h.b16 %v32
  %v245 = vunpack.c.l.b16 %v33
  %v246 = vunpack.c.h.b16 %v33
  %v247 = vunpack.c.l.b16 %v34
  %v248 = vunpack.c.h.b16 %v34
  %v249 = vunpack.c.l.b16 %v35
  %v250 = vunpack.c.h.b16 %v35
  %v251 = vunpack.c.l.b16 %v36
  %v252 = vunpack.c.h.b16 %v36
  %v253 = vunpack.c.l.b16 %v37
  %v254 = vunpack.c.h.b16 %v37
  %v255 = vunpack.c.l.b16 %v38
  %v256 = vunpack.c.h.b16 %v38
  %v257 = vunpack.c.l.b16 %v39
  %v258 = vunpack.c.h.b16 %v39
  %v259 = vunpack.c.l.b16 %v40
  %v260 = vunpack.c.h.b16 %v40
  %v261 = vunpack.c.l.b16 %v41
  %v262 = vunpack.c.h.b16 %v41
  %v263 = vunpack.c.l.b16 %v42
  %v264 = vunpack.c.h.b16 %v42
  %v265 = vunpack.c.l.b16 %v43
  %v266 = vunpack.c.h.b16 %v43
  %v267 = vunpack.c.l.b16 %v44
  %v268 = vunpack.c.h.b16 %v44
  %v269 = vunpack.c.l.b16 %v45
  %v270 = vunpack.c.h.b16 %v45
  %v271 = vunpack.c.l.b16 %v46
  %v272 = vunpack.c.h.b16 %v46
  %v273 = vunpack.c.l.b16 %v47
  %v274 = vunpack.c.h.b16 %v47
  %v275 = vunpack.c.l.b16 %v48
  %v276 = vunpack.c.h.b16 %v48
  %v277 = vunpack.c.l.b16 %v49
  %v278 = vunpack.c.h.b16 %v49
  %v279 = vunpack.c.l.b16 %v50
  %v280 = vunpack.c.h.b16 %v50
  %v281 = vunpack.c.l.b16 %v51
  %v282 = vunpack.c.h.b16 %v51
  %v283 = vunpack.c.l.b16 %v52
  %v284 = vunpack.c.h.b16 %v52
  %v285 = vunpack.c.l.b16 %v53
  %v286 = vunpack.c.h.b16 %v53
  %v287 = vunpack.c.l.b16 %v54
  %v288 = vunpack.c.h.b16 %v54
  %v289 = vunpack.c.l.b16 %v55
  %v290 = vunpack.c.h.b16 %v55
  %v291 = vunpack.c.l.b16 %v56
  %v292 = vunpack.c.h.b16 %v56
  %v293 = vunpack.c.l.b16 %v57
  %v294 = vunpack.c.h.b16 %v57
  %v295 = vunpack.c.l.b16 %v58
  %v296 = vunpack.c.h.b16 %v58
  %v297 = vunpack.c.l.b16 %v59
  %v298 = vunpack.c.h.b16 %v59
  %v299 = vunpack.c.l.b16 %v60
  %v300 = vunpack.c.h.b16 %v60
  %v301 = vunpack.c.l.b16 %v61
  %v302 = vunpack.c.h.b16 %v61
  %v303 = vunpack.c.l.b16 %v62
  %v304 = vunpack.c.h.b16 %v62
  %v305 = vunpack.c.l.b16 %v63
  %v306 = vunpack.c.h.b16 %v63
  %v307 = vunpack.c.l.b16 %v64
  %v308 = vunpack.c.h.b16 %v64
  %v309 = vunpack.c.l.b16 %v65
  %v310 = vunpack.c.h.b16 %v65
  %v311 = vunpack.c.l.b16 %v66
  %v312 = vunpack.c.h.b16 %v66
  %v313 = vunpack.c.l.b16 %v67
  %v314 = vunpack.c.h.b16 %v67
  %v315 = vunpack.c.l.b16 %v68
  %v316 = vunpack.c.h.b16 %v68
  %v317 = vunpack.c.l.b16 %v69
  %v318 = vunpack.c.h.b16 %v69
  %v319 = vunpack.c.l.b16 %v70
  %v320 = vunpack.c.h.b16 %v70
  %v321 = vunpack.c.l.b16 %v71
  %v322 = vunpack.c.h.b16 %v71
  %v323 = vunpack.c.l.b16 %v72
  %v324 = vunpack.c.h.b16 %v72
  %v325 = vunpack.c.l.b16 %v73
  %v326 = vunpack.c.h.b16 %v73
  %v327 = vunpack.c.l.b16 %v74
  %v328 = vunpack.c.h.b16 %v74
  %v329 = vunpack.c.l.b16 %v75
  %v330 = vunpack.c.h.b16 %v75
  %v331 = vunpack.c.l.b16 %v76
  %v332 = vunpack.c.h.b16 %v76
  %v333 = vunpack.c.l.b16 %v77
  %v334 = vunpack.c.h.b16 %v77
  %v335 = vunpack.c.l.b16 %v78
  %v336 = vunpack.c.h.b16 %v78
  %v337 = vunpack.c.l.b16 %v79
  %v338 = vunpack.c.h.b16 %v79
  %v339 = vunpack.c.l.b16 %v80
  %v340 = vunpack.c.h.b16 %v80
  %v341 = vunpack.c.l.b16 %v81
  %v342 = vunpack.c.h.b16 %v81
  %v343 = vunpack.c.l.b16 %v82
  %v344 = vunpack.c.h.b16 %v82
  %v345 = vunpack.c.l.b16 %v83
  %v346 = vunpack.c.h.b16 %v83
  %v347 = vunpack.c.l.b16 %v84
  %v348 = vunpack.c.h.b16 %v84
  %v349 = vunpack.c.l.b16 %v85
  %v350 = vunpack.c.h.b16 %v85
  %v351 = vunpack.c.l.b16 %v86
  %v352 = vunpack.c.h.b16 %v86
  %v353 = vunpack.c.l.b16 %v87
  %v354 = vunpack.c.h.b16 %v87
  %v355 = vunpack.c.l.b16 %v88
  %v356 = vunpack.c.h.b16 %v88
  %v357 = vunpack.c.l.b16 %v89
  %v358 = vunpack.c.h.b16 %v89
  %v359 = vunpack.c.l.b16 %v90
  %v360 = vunpack.c.h.b16 %v90
  %v361 = vunpack.c.l.b16 %v91
  %v362 = vunpack.c.h.b16 %v91
  %v363 = vunpack.c.l.b16 %v92
  %v364 = vunpack.c.h.b16 %v92
  %v365 = vunpack.c.l.b16 %v93
  %v366 = vunpack.c.h.b16 %v93
  %v367 = vunpack.c.l.b16 %v94
  %v368 = vunpack.c.h.b16 %v94
  %v369 = vunpack.c.l.b16 %v95
  %v370 = vunpack.c.h.b16 %v95
  %v371 = vunpack.c.l.b16 %v96
  %v372 = vunpack.c.h.b16 %v96
  %v373 = vunpack.c.l.b16 %v97
  %v374 = vunpack.c.h.b16 %v97
  %v375 = vunpack.c.l.b16 %v98
  %v376 = vunpack.c.h.b16 %v98
  %v377 = vpack.c.b16 %v235, %v233
  %v378 = vpack.c.b16 %v236, %v234
  %v379 = vpack.c.b16 %v239, %v237
  %v380 = vpack.c.b16 %v240, %v238
  %v381 = vpack.c.b16 %v243, %v241
  %v382 = vpack.c.b16 %v244, %v242
  %v383 = vpack.c.b16 %v247, %v245
  %v384 = vpack.c.b16 %v248, %v246
  %v385 = vpack.c.b16 %v251, %v249
  %v386 = vpack.c.b16 %v252, %v250
  %v387 = vpack.c.b16 %v255, %v253
  %v388 = vpack.c.b16 %v256, %v254
  %v389 = vpack.c.b16 %v259, %v257
  %v390 = vpack.c.b16 %v260, %v258
  %v391 = vpack.c.b16 %v263, %v261
  %v392 = vpack.c.b16 %v264, %v262
  %v393 = vpack.c.b16 %v267, %v265
  %v394 = vpack.c.b16 %v268, %v266
  %v395 = vpack.c.b16 %v271, %v269
  %v396 = vpack.c.b16 %v272, %v270
  %v397 = vpack.c.b16 %v275, %v273
  %v398 = vpack.c.b16 %v276, %v274
  %v399 = vpack.c.b16 %v279, %v277
  %v400 = vpack.c.b16 %v280, %v278
  %v401 = vpack.c.b16 %v283, %v281
  %v402 = vpack.c.b16 %v284, %v282
  %v403 = vpack.c.b16 %v287, %v285
  %v404 = vpack.c.b16 %v288, %v286
  %v405 = vpack.c.b16 %v291, %v289
  %v406 = vpack.c.b16 %v292, %v290
  %v407 = vpack.c.b16 %v295, %v293
  %v408 = vpack.c.b16 %v296, %v294
  %v409 = vpack.c.b16 %v299, %v297
  %v410 = vpack.c.b16 %v300, %v298
  %v411 = vpack.c.b16 %v303, %v301
  %v412 = vpack.c.b16 %v304, %v302
  %v413 = vpack.c.b16 %v307, %v305
  %v414 = vpack.c.b16 %v308, %v306
  %v415 = vpack.c.b16 %v311, %v309
  %v416 = vpack.c.b16 %v312, %v310
  %v417 = vpack.c.b16 %v315, %v313
  %v418 = vpack.c.b16 %v316, %v314
  %v419 = vpack.c.b16 %v319, %v317
  %v420 = vpack.c.b16 %v320, %v318
  %v421 = vpack.c.b16 %v323, %v321
  %v422 = vpack.c.b16 %v324, %v322
  %v423 = vpack.c.b16 %v327, %v325
  %v424 = vpack.c.b16 %v328, %v326
  %v425 = vpack.c.b16 %v331, %v329
  %v426 = vpack.c.b16 %v332, %v330
  %v427 = vpack.c.b16 %v335, %v333
  %v428 = vpack.c.b16 %v336, %v334
  %v429 = vpack.c.b16 %v339, %v337
  %v430 = vpack.c.b16 %v340, %v338
  %v431 = vpack.c.b16 %v343, %v341
  %v432 = vpack.c.b16 %v344, %v342
  %v433 = vpack.c.b16 %v347, %v345
  %v434 = vpack.c.b16 %v348, %v346
  %v435 = vpack.c.b16 %v351, %v349
  %v436 = vpack.c.b16 %v352, %v350
  %v437 = vpack.c.b16 %v355, %v353
  %v438 = vpack.c.b16 %v356, %v354
  %v439 = vpack.c.b16 %v359, %v357
  %v440 = vpack.c.b16 %v360, %v358
  %v441 = vpack.c.b16 %v363, %v361
  %v442 = vpack.c.b16 %v364, %v362
  %v443 = vpack.c.b16 %v367, %v365
  %v444 = vpack.c.b16 %v368, %v366
  %v445 = vpack.c.b16 %v371, %v369
  %v446 = vpack.c.b16 %v372, %v370
  %v447 = vpack.c.b16 %v375, %v373
  %v448 = vpack.c.b16 %v376, %v374
  %vm521 = vcmask 523264
  %v523 = vsel %vm521, %v147, 0
  %v526 = vsel %vm521, %v152, 0
  %528 = vmatprep.subr.bf16.mxu0 %v378
  %529 = vmatpush1.bf16.msra.mxu0 %v377
  %530 = vmatprep.subr.bf16.mxu0 %v380
  %531 = vmatpush1.bf16.msra.mxu0 %v379
  %532 = vmatprep.subr.bf16.mxu0 %v382
  %533 = vmatpush1.bf16.msra.mxu0 %v381
  %534 = vmatprep.subr.bf16.mxu0 %v384
  %535 = vmatpush1.bf16.msra.mxu0 %v383
  %536 = vmatprep.subr.bf16.mxu0 %v386
  %537 = vmatpush1.bf16.msra.mxu0 %v385
  %538 = vmatprep.subr.bf16.mxu0 %v388
  %539 = vmatpush1.bf16.msra.mxu0 %v387
  %540 = vmatprep.subr.bf16.mxu0 %v390
  %541 = vmatpush1.bf16.msra.mxu0 %v389
  %542 = vmatprep.subr.bf16.mxu0 %v392
  %543 = vmatpush1.bf16.msra.mxu0 %v391
  %544 = vmatprep.subr.bf16.mxu0 %v394
  %545 = vmatpush1.bf16.msra.mxu0 %v393
  %546 = vmatprep.subr.bf16.mxu0 %v396
  %547 = vmatpush1.bf16.msra.mxu0 %v395
  %548 = vmatprep.subr.bf16.mxu0 %v398
  %549 = vmatpush1.bf16.msra.mxu0 %v397
  %550 = vmatprep.subr.bf16.mxu0 %v400
  %551 = vmatpush1.bf16.msra.mxu0 %v399
  %552 = vmatprep.subr.bf16.mxu0 %v402
  %553 = vmatpush1.bf16.msra.mxu0 %v401
  %554 = vmatprep.subr.bf16.mxu0 %v404
  %555 = vmatpush1.bf16.msra.mxu0 %v403
  %556 = vmatprep.subr.bf16.mxu0 %v406
  %557 = vmatpush1.bf16.msra.mxu0 %v405
  %558 = vmatprep.subr.bf16.mxu0 %v408
  %559 = vmatpush1.bf16.msra.mxu0 %v407
  %560 = vmatprep.mubr.bf16.mxu0 %v144
  %561 = vmatmul.mubr.bf16.gmra.mrb[0].mxu0 %v143
  %v562 = vpop.f32.mrb[0].mxu0
  %v563 = vadd.f32 %v103, %v562
  %v564 = vpop.f32.mrb[0].mxu0
  %v565 = vadd.f32 %v104, %v564
  %v566 = vpop.f32.mrb[0].mxu0
  %v567 = vadd.f32 %v105, %v566
  %v568 = vpop.f32.mrb[0].mxu0
  %v569 = vadd.f32 %v106, %v568
  %570 = vmatprep.mubr.bf16.mxu0 %v149
  %571 = vmatmul.mubr.bf16.gmra.mrb[0].mxu0 %v148
  %v572 = vpop.f32.mrb[0].mxu0
  %v573 = vadd.f32 %v107, %v572
  %v574 = vpop.f32.mrb[0].mxu0
  %v575 = vadd.f32 %v108, %v574
  %v576 = vpop.f32.mrb[0].mxu0
  %v577 = vadd.f32 %v109, %v576
  %v578 = vpop.f32.mrb[0].mxu0
  %v579 = vadd.f32 %v110, %v578
  %580 = vdwg.mxu0
  %581 = vmatprep.subr.bf16.mxu0 %v410
  %582 = vmatpush1.bf16.msra.mxu0 %v409
  %583 = vmatprep.subr.bf16.mxu0 %v412
  %584 = vmatpush1.bf16.msra.mxu0 %v411
  %585 = vmatprep.subr.bf16.mxu0 %v414
  %586 = vmatpush1.bf16.msra.mxu0 %v413
  %587 = vmatprep.subr.bf16.mxu0 %v416
  %588 = vmatpush1.bf16.msra.mxu0 %v415
  %589 = vmatprep.subr.bf16.mxu0 %v418
  %590 = vmatpush1.bf16.msra.mxu0 %v417
  %591 = vmatprep.subr.bf16.mxu0 %v420
  %592 = vmatpush1.bf16.msra.mxu0 %v419
  %593 = vmatprep.subr.bf16.mxu0 %v422
  %594 = vmatpush1.bf16.msra.mxu0 %v421
  %595 = vmatprep.subr.bf16.mxu0 %v424
  %596 = vmatpush1.bf16.msra.mxu0 %v423
  %597 = vmatprep.subr.bf16.mxu0 %v426
  %598 = vmatpush1.bf16.msra.mxu0 %v425
  %599 = vmatprep.subr.bf16.mxu0 %v428
  %600 = vmatpush1.bf16.msra.mxu0 %v427
  %601 = vmatprep.subr.bf16.mxu0 %v430
  %602 = vmatpush1.bf16.msra.mxu0 %v429
  %603 = vmatprep.subr.bf16.mxu0 %v432
  %604 = vmatpush1.bf16.msra.mxu0 %v431
  %605 = vmatprep.subr.bf16.mxu0 %v434
  %606 = vmatpush1.bf16.msra.mxu0 %v433
  %607 = vmatprep.subr.bf16.mxu0 %v436
  %608 = vmatpush1.bf16.msra.mxu0 %v435
  %609 = vmatprep.subr.bf16.mxu0 %v438
  %610 = vmatpush1.bf16.msra.mxu0 %v437
  %611 = vmatprep.subr.bf16.mxu0 %v440
  %612 = vmatpush1.bf16.msra.mxu0 %v439
  %613 = vmatprep.mubr.bf16.mxu0 %v146
  %614 = vmatmul.mubr.bf16.gmra.mrb[0].mxu0 %v145
  %v615 = vpop.f32.mrb[0].mxu0
  %v616 = vadd.f32 %v563, %v615
  %v617 = vpop.f32.mrb[0].mxu0
  %v618 = vadd.f32 %v565, %v617
  %v619 = vpop.f32.mrb[0].mxu0
  %v620 = vadd.f32 %v567, %v619
  %v621 = vpop.f32.mrb[0].mxu0
  %v622 = vadd.f32 %v569, %v621
  %623 = vmatprep.mubr.bf16.mxu0 %v151
  %624 = vmatmul.mubr.bf16.gmra.mrb[0].mxu0 %v150
  %v625 = vpop.f32.mrb[0].mxu0
  %v626 = vadd.f32 %v573, %v625
  %v627 = vpop.f32.mrb[0].mxu0
  %v628 = vadd.f32 %v575, %v627
  %v629 = vpop.f32.mrb[0].mxu0
  %v630 = vadd.f32 %v577, %v629
  %v631 = vpop.f32.mrb[0].mxu0
  %v632 = vadd.f32 %v579, %v631
  %633 = vdwg.mxu0
  %634 = vmatprep.subr.bf16.mxu0 %v442
  %635 = vmatpush1.bf16.msra.mxu0 %v441
  %636 = vmatprep.subr.bf16.mxu0 %v444
  %637 = vmatpush1.bf16.msra.mxu0 %v443
  %638 = vmatprep.subr.bf16.mxu0 %v446
  %639 = vmatpush1.bf16.msra.mxu0 %v445
  %640 = vmatprep.subr.bf16.mxu0 %v448
  %641 = vmatpush1.bf16.msra.mxu0 %v447
  %642 = vmatprep.subr.bf16.mxu0 0
  %643 = vmatpush1.bf16.msra.mxu0 0
  %644 = vmatprep.subr.bf16.mxu0 0
  %645 = vmatpush1.bf16.msra.mxu0 0
  %646 = vmatprep.subr.bf16.mxu0 0
  %647 = vmatpush1.bf16.msra.mxu0 0
  %648 = vmatprep.subr.bf16.mxu0 0
  %649 = vmatpush1.bf16.msra.mxu0 0
  %650 = vmatprep.subr.bf16.mxu0 0
  %651 = vmatpush1.bf16.msra.mxu0 0
  %652 = vmatprep.subr.bf16.mxu0 0
  %653 = vmatpush1.bf16.msra.mxu0 0
  %654 = vmatprep.subr.bf16.mxu0 0
  %655 = vmatpush1.bf16.msra.mxu0 0
  %656 = vmatprep.subr.bf16.mxu0 0
  %657 = vmatpush1.bf16.msra.mxu0 0
  %658 = vmatprep.subr.bf16.mxu0 0
  %659 = vmatpush1.bf16.msra.mxu0 0
  %660 = vmatprep.subr.bf16.mxu0 0
  %661 = vmatpush1.bf16.msra.mxu0 0
  %662 = vmatprep.subr.bf16.mxu0 0
  %663 = vmatpush1.bf16.msra.mxu0 0
  %664 = vmatprep.subr.bf16.mxu0 0
  %665 = vmatpush1.bf16.msra.mxu0 0
  %666 = vmatprep.mubr.bf16.mxu0 0
  %667 = vmatmul.mubr.bf16.gmra.mrb[0].mxu0 %v523
  %v668 = vpop.f32.mrb[0].mxu0
  %v669 = vadd.f32 %v616, %v668
  %v670 = vpop.f32.mrb[0].mxu0
  %v671 = vadd.f32 %v618, %v670
  %v672 = vpop.f32.mrb[0].mxu0
  %v673 = vadd.f32 %v620, %v672
  %v674 = vpop.f32.mrb[0].mxu0
  %v675 = vadd.f32 %v622, %v674
  %676 = vmatprep.mubr.bf16.mxu0 0
  %677 = vmatmul.mubr.bf16.gmra.mrb[0].mxu0 %v526
  %v678 = vpop.f32.mrb[0].mxu0
  %v679 = vadd.f32 %v626, %v678
  %v680 = vpop.f32.mrb[0].mxu0
  %v681 = vadd.f32 %v628, %v680
  %v682 = vpop.f32.mrb[0].mxu0
  %v683 = vadd.f32 %v630, %v682
  %v684 = vpop.f32.mrb[0].mxu0
  %v685 = vadd.f32 %v632, %v684
  %686 = vdwg.mxu0
  %v687 = vpack.c.bf16 %v673, %v669
  %v688 = vpack.c.bf16 %v675, %v671
  %v689 = vpack.c.bf16 %v683, %v679
  %v690 = vpack.c.bf16 %v685, %v681
  %v695 = vunpack.c.l.b16 %v687
  %v696 = vunpack.c.l.b16 %v688
  %v697 = vunpack.c.h.b16 %v687
  %v698 = vunpack.c.h.b16 %v688
  %v699 = vunpack.c.l.b16 %v689
  %v700 = vunpack.c.l.b16 %v690
  %v701 = vunpack.c.h.b16 %v689
  %v702 = vunpack.c.h.b16 %v690
  %v703 = vpack.c.b16 %v696, %v695
  %v704 = vpack.c.b16 %v698, %v697
  %v705 = vpack.c.b16 %v700, %v699
  %v706 = vpack.c.b16 %v702, %v701
  %711 = vst [vmem:[%s3] sm:$0xff] %v703
  %712 = vst [vmem:[%s3 + $0x8] sm:$0xff] %v704
  %713 = vst [vmem:[%s3 + $0x10] sm:$0xff] %v705
  %714 = vst [vmem:[%s3 + $0x18] sm:$0xff] %v706
  // Predicated region
  $region14: #{_lambda_.6} parent=0 // pred_check
    _
  $region15: #{_lambda_.6} parent=0 // pred_check_branch
    %716 = sbr.rel (0) target = $region17
  $region16: #{_lambda_.6} parent=0 // pred_region
    _
  $region17: #{_lambda_.6} parent=0 // pred_fallthru
    _
  // Predicated region
  $region18: #{_lambda_.6} parent=0 // pred_check
    _
  $region19: #{_lambda_.6} parent=0 // pred_check_branch
    %718 = sbr.rel (0) target = $region21
  $region20: #{_lambda_.6} parent=0 // pred_region
    _
  $region21: #{_lambda_.6} parent=0 // pred_fallthru
    _

// kernel: _lambda_.7
$region0: #{_lambda_.7}
  #allocation0 [shape = 'u32[]', space=smem, size = 0x4, offset = 0x4, fixed_abs, tag = 'smem constant byte address 0x4 - core index']
  #allocation1 [shape = 'u32[144,128]{1,0:T(1,128)}', space=vmem, size = 0x12000, scoped, tag = 'internal scratch']
  %s0 = inlined_call_operand.vmem [shape: bf16[128,576], index: 0, kind: input, shape index: {}]
  %s1 = inlined_call_operand.vmem [shape: bf16[576,128], index: 1, kind: input, shape index: {}]
  %s2 = inlined_call_operand.vmem [shape: f32[1,128], index: 2, kind: input, shape index: {}]
  %s3 = inlined_call_operand.vmem [shape: f32[128,128], index: 3, kind: output, shape index: {0}]
  %s4 = inlined_call_operand.vmem [shape: s32[128,16], index: 4, kind: output, shape index: {1}]
  %5 = xla_tuple %s3, %s4
  %s6 = sld [smem:[#allocation0]]
  $region30: #{_lambda_.7} parent=0
    _
  %s8 = ssub.s32 1, %s6
  %s9 = scalar_select 0, %s8, %s6
  // Predicated region
  $region2: #{_lambda_.7} parent=0 // pred_check
    _
  $region3: #{_lambda_.7} parent=0 // pred_check_branch
    %11 = sbr.rel (0) target = $region5
  $region4: #{_lambda_.7} parent=0 // pred_region
    _
  $region5: #{_lambda_.7} parent=0 // pred_fallthru
    _
  // Predicated region
  $region6: #{_lambda_.7} parent=0 // pred_check
    _
  $region7: #{_lambda_.7} parent=0 // pred_check_branch
    %13 = sbr.rel (0) target = $region9
  $region8: #{_lambda_.7} parent=0 // pred_region
    _
  $region9: #{_lambda_.7} parent=0 // pred_fallthru
    _
  // Predicated region
  $region10: #{_lambda_.7} parent=0 // pred_check
    _
  $region11: #{_lambda_.7} parent=0 // pred_check_branch
    %15 = sbr.rel (0) target = $region13
  $region12: #{_lambda_.7} parent=0 // pred_region
    _
  $region13: #{_lambda_.7} parent=0 // pred_fallthru
    _
  %v17 = vld [vmem:[%s0] sm:$0xff]
  %v18 = vld [vmem:[%s0 + $0x8] sm:$0xff]
  %v19 = vld [vmem:[%s0 + $0x10] sm:$0xf]
  %v20 = vld [vmem:[%s0 + $0x14] sm:$0xff]
  %v21 = vld [vmem:[%s0 + $0x1c] sm:$0xff]
  %v22 = vld [vmem:[%s0 + $0x24] sm:$0xf]
  %v23 = vld [vmem:[%s0 + $0x28] sm:$0xff]
  %v24 = vld [vmem:[%s0 + $0x30] sm:$0xff]
  %v25 = vld [vmem:[%s0 + $0x38] sm:$0xf]
  %v26 = vld [vmem:[%s0 + $0x3c] sm:$0xff]
  %v27 = vld [vmem:[%s0 + $0x44] sm:$0xff]
  %v28 = vld [vmem:[%s0 + $0x4c] sm:$0xf]
  %v29 = vld [vmem:[%s0 + $0x50] sm:$0xff]
  %v30 = vld [vmem:[%s0 + $0x58] sm:$0xff]
  %v31 = vld [vmem:[%s0 + $0x60] sm:$0xf]
  %v32 = vld [vmem:[%s0 + $0x64] sm:$0xff]
  %v33 = vld [vmem:[%s0 + $0x6c] sm:$0xff]
  %v34 = vld [vmem:[%s0 + $0x74] sm:$0xf]
  %v35 = vld [vmem:[%s0 + $0x78] sm:$0xff]
  %v36 = vld [vmem:[%s0 + $0x80] sm:$0xff]
  %v37 = vld [vmem:[%s0 + $0x88] sm:$0xf]
  %v38 = vld [vmem:[%s0 + $0x8c] sm:$0xff]
  %v39 = vld [vmem:[%s0 + $0x94] sm:$0xff]
  %v40 = vld [vmem:[%s0 + $0x9c] sm:$0xf]
  %v41 = vld [vmem:[%s0 + $0xa0] sm:$0xff]
  %v42 = vld [vmem:[%s0 + $0xa8] sm:$0xff]
  %v43 = vld [vmem:[%s0 + $0xb0] sm:$0xf]
  %v44 = vld [vmem:[%s0 + $0xb4] sm:$0xff]
  %v45 = vld [vmem:[%s0 + $0xbc] sm:$0xff]
  %v46 = vld [vmem:[%s0 + $0xc4] sm:$0xf]
  %v47 = vld [vmem:[%s0 + $0xc8] sm:$0xff]
  %v48 = vld [vmem:[%s0 + $0xd0] sm:$0xff]
  %v49 = vld [vmem:[%s0 + $0xd8] sm:$0xf]
  %v50 = vld [vmem:[%s0 + $0xdc] sm:$0xff]
  %v51 = vld [vmem:[%s0 + $0xe4] sm:$0xff]
  %v52 = vld [vmem:[%s0 + $0xec] sm:$0xf]
  %v53 = vld [vmem:[%s0 + $0xf0] sm:$0xff]
  %v54 = vld [vmem:[%s0 + $0xf8] sm:$0xff]
  %v55 = vld [vmem:[%s0 + $0x100] sm:$0xf]
  %v56 = vld [vmem:[%s0 + $0x104] sm:$0xff]
  %v57 = vld [vmem:[%s0 + $0x10c] sm:$0xff]
  %v58 = vld [vmem:[%s0 + $0x114] sm:$0xf]
  %v59 = vld [vmem:[%s0 + $0x118] sm:$0xff]
  %v60 = vld [vmem:[%s0 + $0x120] sm:$0xff]
  %v61 = vld [vmem:[%s0 + $0x128] sm:$0xf]
  %v62 = vld [vmem:[%s0 + $0x12c] sm:$0xff]
  %v63 = vld [vmem:[%s0 + $0x134] sm:$0xff]
  %v64 = vld [vmem:[%s0 + $0x13c] sm:$0xf]
  %v65 = vld [vmem:[%s1] sm:$0xf]
  %v66 = vld [vmem:[%s1 + $0x4] sm:$0xf]
  %v67 = vld [vmem:[%s1 + $0x8] sm:$0xf]
  %v68 = vld [vmem:[%s1 + $0xc] sm:$0xf]
  %v69 = vld [vmem:[%s1 + $0x10] sm:$0xf]
  %v70 = vld [vmem:[%s1 + $0x14] sm:$0xf]
  %v71 = vld [vmem:[%s1 + $0x18] sm:$0xf]
  %v72 = vld [vmem:[%s1 + $0x1c] sm:$0xf]
  %v73 = vld [vmem:[%s1 + $0x20] sm:$0xf]
  %v74 = vld [vmem:[%s1 + $0x24] sm:$0xf]
  %v75 = vld [vmem:[%s1 + $0x28] sm:$0xf]
  %v76 = vld [vmem:[%s1 + $0x2c] sm:$0xf]
  %v77 = vld [vmem:[%s1 + $0x30] sm:$0xf]
  %v78 = vld [vmem:[%s1 + $0x34] sm:$0xf]
  %v79 = vld [vmem:[%s1 + $0x38] sm:$0xf]
  %v80 = vld [vmem:[%s1 + $0x3c] sm:$0xf]
  %v81 = vld [vmem:[%s1 + $0x40] sm:$0xf]
  %v82 = vld [vmem:[%s1 + $0x44] sm:$0xf]
  %v83 = vld [vmem:[%s1 + $0x48] sm:$0xf]
  %v84 = vld [vmem:[%s1 + $0x4c] sm:$0xf]
  %v85 = vld [vmem:[%s1 + $0x50] sm:$0xf]
  %v86 = vld [vmem:[%s1 + $0x54] sm:$0xf]
  %v87 = vld [vmem:[%s1 + $0x58] sm:$0xf]
  %v88 = vld [vmem:[%s1 + $0x5c] sm:$0xf]
  %v89 = vld [vmem:[%s1 + $0x60] sm:$0xf]
  %v90 = vld [vmem:[%s1 + $0x64] sm:$0xf]
  %v91 = vld [vmem:[%s1 + $0x68] sm:$0xf]
  %v92 = vld [vmem:[%s1 + $0x6c] sm:$0xf]
  %v93 = vld [vmem:[%s1 + $0x70] sm:$0xf]
  %v94 = vld [vmem:[%s1 + $0x74] sm:$0xf]
  %v95 = vld [vmem:[%s1 + $0x78] sm:$0xf]
  %v96 = vld [vmem:[%s1 + $0x7c] sm:$0xf]
  %v97 = vld [vmem:[%s1 + $0x80] sm:$0xf]
  %v98 = vld [vmem:[%s1 + $0x84] sm:$0xf]
  %v99 = vld [vmem:[%s1 + $0x88] sm:$0xf]
  %v100 = vld [vmem:[%s1 + $0x8c] sm:$0xf]
  %v101 = vld [vmem:[%s1 + $0x90] sm:$0xf]
  %v102 = vld [vmem:[%s1 + $0x94] sm:$0xf]
  %v103 = vld [vmem:[%s1 + $0x98] sm:$0xf]
  %v104 = vld [vmem:[%s1 + $0x9c] sm:$0xf]
  %v105 = vld [vmem:[%s1 + $0xa0] sm:$0xf]
  %v106 = vld [vmem:[%s1 + $0xa4] sm:$0xf]
  %v107 = vld [vmem:[%s1 + $0xa8] sm:$0xf]
  %v108 = vld [vmem:[%s1 + $0xac] sm:$0xf]
  %v109 = vld [vmem:[%s1 + $0xb0] sm:$0xf]
  %v110 = vld [vmem:[%s1 + $0xb4] sm:$0xf]
  %v111 = vld [vmem:[%s1 + $0xb8] sm:$0xf]
  %v112 = vld [vmem:[%s1 + $0xbc] sm:$0xf]
  %v113 = vld [vmem:[%s1 + $0xc0] sm:$0xf]
  %v114 = vld [vmem:[%s1 + $0xc4] sm:$0xf]
  %v115 = vld [vmem:[%s1 + $0xc8] sm:$0xf]
  %v116 = vld [vmem:[%s1 + $0xcc] sm:$0xf]
  %v117 = vld [vmem:[%s1 + $0xd0] sm:$0xf]
  %v118 = vld [vmem:[%s1 + $0xd4] sm:$0xf]
  %v119 = vld [vmem:[%s1 + $0xd8] sm:$0xf]
  %v120 = vld [vmem:[%s1 + $0xdc] sm:$0xf]
  %v121 = vld [vmem:[%s1 + $0xe0] sm:$0xf]
  %v122 = vld [vmem:[%s1 + $0xe4] sm:$0xf]
  %v123 = vld [vmem:[%s1 + $0xe8] sm:$0xf]
  %v124 = vld [vmem:[%s1 + $0xec] sm:$0xf]
  %v125 = vld [vmem:[%s1 + $0xf0] sm:$0xf]
  %v126 = vld [vmem:[%s1 + $0xf4] sm:$0xf]
  %v127 = vld [vmem:[%s1 + $0xf8] sm:$0xf]
  %v128 = vld [vmem:[%s1 + $0xfc] sm:$0xf]
  %v129 = vld [vmem:[%s1 + $0x100] sm:$0xf]
  %v130 = vld [vmem:[%s1 + $0x104] sm:$0xf]
  %v131 = vld [vmem:[%s1 + $0x108] sm:$0xf]
  %v132 = vld [vmem:[%s1 + $0x10c] sm:$0xf]
  %v133 = vld [vmem:[%s1 + $0x110] sm:$0xf]
  %v134 = vld [vmem:[%s1 + $0x114] sm:$0xf]
  %v135 = vld [vmem:[%s1 + $0x118] sm:$0xf]
  %v136 = vld [vmem:[%s1 + $0x11c] sm:$0xf]
  %v137 = vld [vmem:[%s2] sm:$0x1]
  %v139 = vlaneseq
  %v140 = vshrl.u32 %v139, 7
  %v141 = vsub.s32 0, %v140
  %v142 = vrot.slane %v137, %v141
  %v192 = vunpack.c.l.b16 %v17
  %v193 = vunpack.c.h.b16 %v17
  %v194 = vunpack.c.l.b16 %v18
  %v195 = vunpack.c.h.b16 %v18
  %v196 = vunpack.c.l.b16 %v19
  %v197 = vunpack.c.l.b16 %v20
  %v198 = vunpack.c.h.b16 %v20
  %v199 = vunpack.c.l.b16 %v21
  %v200 = vunpack.c.h.b16 %v21
  %v201 = vunpack.c.l.b16 %v22
  %v202 = vunpack.c.l.b16 %v23
  %v203 = vunpack.c.h.b16 %v23
  %v204 = vunpack.c.l.b16 %v24
  %v205 = vunpack.c.h.b16 %v24
  %v206 = vunpack.c.l.b16 %v25
  %v207 = vunpack.c.l.b16 %v26
  %v208 = vunpack.c.h.b16 %v26
  %v209 = vunpack.c.l.b16 %v27
  %v210 = vunpack.c.h.b16 %v27
  %v211 = vunpack.c.l.b16 %v28
  %v212 = vunpack.c.l.b16 %v29
  %v213 = vunpack.c.h.b16 %v29
  %v214 = vunpack.c.l.b16 %v30
  %v215 = vunpack.c.h.b16 %v30
  %v216 = vunpack.c.l.b16 %v31
  %v217 = vunpack.c.l.b16 %v32
  %v218 = vunpack.c.h.b16 %v32
  %v219 = vunpack.c.l.b16 %v33
  %v220 = vunpack.c.h.b16 %v33
  %v221 = vunpack.c.l.b16 %v34
  %v222 = vunpack.c.l.b16 %v35
  %v223 = vunpack.c.h.b16 %v35
  %v224 = vunpack.c.l.b16 %v36
  %v225 = vunpack.c.h.b16 %v36
  %v226 = vunpack.c.l.b16 %v37
  %v227 = vunpack.c.l.b16 %v38
  %v228 = vunpack.c.h.b16 %v38
  %v229 = vunpack.c.l.b16 %v39
  %v230 = vunpack.c.h.b16 %v39
  %v231 = vunpack.c.l.b16 %v40
  %v232 = vunpack.c.l.b16 %v41
  %v233 = vunpack.c.h.b16 %v41
  %v234 = vunpack.c.l.b16 %v42
  %v235 = vunpack.c.h.b16 %v42
  %v236 = vunpack.c.l.b16 %v43
  %v237 = vunpack.c.l.b16 %v44
  %v238 = vunpack.c.h.b16 %v44
  %v239 = vunpack.c.l.b16 %v45
  %v240 = vunpack.c.h.b16 %v45
  %v241 = vunpack.c.l.b16 %v46
  %v242 = vunpack.c.l.b16 %v47
  %v243 = vunpack.c.h.b16 %v47
  %v244 = vunpack.c.l.b16 %v48
  %v245 = vunpack.c.h.b16 %v48
  %v246 = vunpack.c.l.b16 %v49
  %v247 = vunpack.c.l.b16 %v50
  %v248 = vunpack.c.h.b16 %v50
  %v249 = vunpack.c.l.b16 %v51
  %v250 = vunpack.c.h.b16 %v51
  %v251 = vunpack.c.l.b16 %v52
  %v252 = vunpack.c.l.b16 %v53
  %v253 = vunpack.c.h.b16 %v53
  %v254 = vunpack.c.l.b16 %v54
  %v255 = vunpack.c.h.b16 %v54
  %v256 = vunpack.c.l.b16 %v55
  %v257 = vunpack.c.l.b16 %v56
  %v258 = vunpack.c.h.b16 %v56
  %v259 = vunpack.c.l.b16 %v57
  %v260 = vunpack.c.h.b16 %v57
  %v261 = vunpack.c.l.b16 %v58
  %v262 = vunpack.c.l.b16 %v59
  %v263 = vunpack.c.h.b16 %v59
  %v264 = vunpack.c.l.b16 %v60
  %v265 = vunpack.c.h.b16 %v60
  %v266 = vunpack.c.l.b16 %v61
  %v267 = vunpack.c.l.b16 %v62
  %v268 = vunpack.c.h.b16 %v62
  %v269 = vunpack.c.l.b16 %v63
  %v270 = vunpack.c.h.b16 %v63
  %v271 = vunpack.c.l.b16 %v64
  %v272 = vpack.c.b16 %v197, %v192
  %v273 = vpack.c.b16 %v198, %v193
  %v274 = vpack.c.b16 %v199, %v194
  %v275 = vpack.c.b16 %v200, %v195
  %v276 = vpack.c.b16 %v201, %v196
  %v277 = vpack.c.b16 %v207, %v202
  %v278 = vpack.c.b16 %v208, %v203
  %v279 = vpack.c.b16 %v209, %v204
  %v280 = vpack.c.b16 %v210, %v205
  %v281 = vpack.c.b16 %v211, %v206
  %v282 = vpack.c.b16 %v217, %v212
  %v283 = vpack.c.b16 %v218, %v213
  %v284 = vpack.c.b16 %v219, %v214
  %v285 = vpack.c.b16 %v220, %v215
  %v286 = vpack.c.b16 %v221, %v216
  %v287 = vpack.c.b16 %v227, %v222
  %v288 = vpack.c.b16 %v228, %v223
  %v289 = vpack.c.b16 %v229, %v224
  %v290 = vpack.c.b16 %v230, %v225
  %v291 = vpack.c.b16 %v231, %v226
  %v292 = vpack.c.b16 %v237, %v232
  %v293 = vpack.c.b16 %v238, %v233
  %v294 = vpack.c.b16 %v239, %v234
  %v295 = vpack.c.b16 %v240, %v235
  %v296 = vpack.c.b16 %v241, %v236
  %v297 = vpack.c.b16 %v247, %v242
  %v298 = vpack.c.b16 %v248, %v243
  %v299 = vpack.c.b16 %v249, %v244
  %v300 = vpack.c.b16 %v250, %v245
  %v301 = vpack.c.b16 %v251, %v246
  %v302 = vpack.c.b16 %v257, %v252
  %v303 = vpack.c.b16 %v258, %v253
  %v304 = vpack.c.b16 %v259, %v254
  %v305 = vpack.c.b16 %v260, %v255
  %v306 = vpack.c.b16 %v261, %v256
  %v307 = vpack.c.b16 %v267, %v262
  %v308 = vpack.c.b16 %v268, %v263
  %v309 = vpack.c.b16 %v269, %v264
  %v310 = vpack.c.b16 %v270, %v265
  %v311 = vpack.c.b16 %v271, %v266
  %v416 = vunpack.c.l.b16 %v65
  %v417 = vunpack.c.l.b16 %v66
  %v418 = vunpack.c.l.b16 %v67
  %v419 = vunpack.c.l.b16 %v68
  %v420 = vunpack.c.l.b16 %v69
  %v421 = vunpack.c.l.b16 %v70
  %v422 = vunpack.c.l.b16 %v71
  %v423 = vunpack.c.l.b16 %v72
  %v424 = vunpack.c.l.b16 %v73
  %v425 = vunpack.c.l.b16 %v74
  %v426 = vunpack.c.l.b16 %v75
  %v427 = vunpack.c.l.b16 %v76
  %v428 = vunpack.c.l.b16 %v77
  %v429 = vunpack.c.l.b16 %v78
  %v430 = vunpack.c.l.b16 %v79
  %v431 = vunpack.c.l.b16 %v80
  %v432 = vunpack.c.l.b16 %v81
  %v433 = vunpack.c.l.b16 %v82
  %v434 = vunpack.c.l.b16 %v83
  %v435 = vunpack.c.l.b16 %v84
  %v436 = vunpack.c.l.b16 %v85
  %v437 = vunpack.c.l.b16 %v86
  %v438 = vunpack.c.l.b16 %v87
  %v439 = vunpack.c.l.b16 %v88
  %v440 = vunpack.c.l.b16 %v89
  %v441 = vunpack.c.l.b16 %v90
  %v442 = vunpack.c.l.b16 %v91
  %v443 = vunpack.c.l.b16 %v92
  %v444 = vunpack.c.l.b16 %v93
  %v445 = vunpack.c.l.b16 %v94
  %v446 = vunpack.c.l.b16 %v95
  %v447 = vunpack.c.l.b16 %v96
  %v448 = vunpack.c.l.b16 %v97
  %v449 = vunpack.c.l.b16 %v98
  %v450 = vunpack.c.l.b16 %v99
  %v451 = vunpack.c.l.b16 %v100
  %v452 = vunpack.c.l.b16 %v101
  %v453 = vunpack.c.l.b16 %v102
  %v454 = vunpack.c.l.b16 %v103
  %v455 = vunpack.c.l.b16 %v104
  %v456 = vunpack.c.l.b16 %v105
  %v457 = vunpack.c.l.b16 %v106
  %v458 = vunpack.c.l.b16 %v107
  %v459 = vunpack.c.l.b16 %v108
  %v460 = vunpack.c.l.b16 %v109
  %v461 = vunpack.c.l.b16 %v110
  %v462 = vunpack.c.l.b16 %v111
  %v463 = vunpack.c.l.b16 %v112
  %v464 = vunpack.c.l.b16 %v113
  %v465 = vunpack.c.l.b16 %v114
  %v466 = vunpack.c.l.b16 %v115
  %v467 = vunpack.c.l.b16 %v116
  %v468 = vunpack.c.l.b16 %v117
  %v469 = vunpack.c.l.b16 %v118
  %v470 = vunpack.c.l.b16 %v119
  %v471 = vunpack.c.l.b16 %v120
  %v472 = vunpack.c.l.b16 %v121
  %v473 = vunpack.c.l.b16 %v122
  %v474 = vunpack.c.l.b16 %v123
  %v475 = vunpack.c.l.b16 %v124
  %v476 = vunpack.c.l.b16 %v125
  %v477 = vunpack.c.l.b16 %v126
  %v478 = vunpack.c.l.b16 %v127
  %v479 = vunpack.c.l.b16 %v128
  %v480 = vunpack.c.l.b16 %v129
  %v481 = vunpack.c.l.b16 %v130
  %v482 = vunpack.c.l.b16 %v131
  %v483 = vunpack.c.l.b16 %v132
  %v484 = vunpack.c.l.b16 %v133
  %v485 = vunpack.c.l.b16 %v134
  %v486 = vunpack.c.l.b16 %v135
  %v487 = vunpack.c.l.b16 %v136
  %v488 = vpack.c.b16 %v417, %v416
  %v489 = vpack.c.b16 %v419, %v418
  %v490 = vpack.c.b16 %v421, %v420
  %v491 = vpack.c.b16 %v423, %v422
  %v492 = vpack.c.b16 %v425, %v424
  %v493 = vpack.c.b16 %v427, %v426
  %v494 = vpack.c.b16 %v429, %v428
  %v495 = vpack.c.b16 %v431, %v430
  %v496 = vpack.c.b16 %v433, %v432
  %v497 = vpack.c.b16 %v435, %v434
  %v498 = vpack.c.b16 %v437, %v436
  %v499 = vpack.c.b16 %v439, %v438
  %v500 = vpack.c.b16 %v441, %v440
  %v501 = vpack.c.b16 %v443, %v442
  %v502 = vpack.c.b16 %v445, %v444
  %v503 = vpack.c.b16 %v447, %v446
  %v504 = vpack.c.b16 %v449, %v448
  %v505 = vpack.c.b16 %v451, %v450
  %v506 = vpack.c.b16 %v453, %v452
  %v507 = vpack.c.b16 %v455, %v454
  %v508 = vpack.c.b16 %v457, %v456
  %v509 = vpack.c.b16 %v459, %v458
  %v510 = vpack.c.b16 %v461, %v460
  %v511 = vpack.c.b16 %v463, %v462
  %v512 = vpack.c.b16 %v465, %v464
  %v513 = vpack.c.b16 %v467, %v466
  %v514 = vpack.c.b16 %v469, %v468
  %v515 = vpack.c.b16 %v471, %v470
  %v516 = vpack.c.b16 %v473, %v472
  %v517 = vpack.c.b16 %v475, %v474
  %v518 = vpack.c.b16 %v477, %v476
  %v519 = vpack.c.b16 %v479, %v478
  %v520 = vpack.c.b16 %v481, %v480
  %v521 = vpack.c.b16 %v483, %v482
  %v522 = vpack.c.b16 %v485, %v484
  %v523 = vpack.c.b16 %v487, %v486
  %vm560 = vcmask 523264
  %v562 = vsel %vm560, %v276, 0
  %v565 = vsel %vm560, %v281, 0
  %v568 = vsel %vm560, %v286, 0
  %v571 = vsel %vm560, %v291, 0
  %v574 = vsel %vm560, %v296, 0
  %v577 = vsel %vm560, %v301, 0
  %v580 = vsel %vm560, %v306, 0
  %v583 = vsel %vm560, %v311, 0
  %585 = vmatprep.subr.bf16.mxu0 0
  %586 = vmatpush1.bf16.msra.mxu0 %v488
  %587 = vmatprep.subr.bf16.mxu0 0
  %588 = vmatpush1.bf16.msra.mxu0 %v489
  %589 = vmatprep.subr.bf16.mxu0 0
  %590 = vmatpush1.bf16.msra.mxu0 %v490
  %591 = vmatprep.subr.bf16.mxu0 0
  %592 = vmatpush1.bf16.msra.mxu0 %v491
  %593 = vmatprep.subr.bf16.mxu0 0
  %594 = vmatpush1.bf16.msra.mxu0 %v492
  %595 = vmatprep.subr.bf16.mxu0 0
  %596 = vmatpush1.bf16.msra.mxu0 %v493
  %597 = vmatprep.subr.bf16.mxu0 0
  %598 = vmatpush1.bf16.msra.mxu0 %v494
  %599 = vmatprep.subr.bf16.mxu0 0
  %600 = vmatpush1.bf16.msra.mxu0 %v495
  %601 = vmatprep.subr.bf16.mxu0 0
  %602 = vmatpush1.bf16.msra.mxu0 %v496
  %603 = vmatprep.subr.bf16.mxu0 0
  %604 = vmatpush1.bf16.msra.mxu0 %v497
  %605 = vmatprep.subr.bf16.mxu0 0
  %606 = vmatpush1.bf16.msra.mxu0 %v498
  %607 = vmatprep.subr.bf16.mxu0 0
  %608 = vmatpush1.bf16.msra.mxu0 %v499
  %609 = vmatprep.subr.bf16.mxu0 0
  %610 = vmatpush1.bf16.msra.mxu0 %v500
  %611 = vmatprep.subr.bf16.mxu0 0
  %612 = vmatpush1.bf16.msra.mxu0 %v501
  %613 = vmatprep.subr.bf16.mxu0 0
  %614 = vmatpush1.bf16.msra.mxu0 %v502
  %615 = vmatprep.subr.bf16.mxu0 0
  %616 = vmatpush1.bf16.msra.mxu0 %v503
  %617 = vmatprep.mubr.bf16.mxu0 %v273
  %618 = vmatmul.mubr.bf16.gmra.mrb[0].mxu0 %v272
  %v619 = vpop.f32.mrb[0].mxu0
  %v620 = vadd.f32 %v142, %v619
  %v621 = vpop.f32.mrb[0].mxu0
  %v622 = vpop.f32.mrb[0].mxu0
  %v623 = vadd.f32 %v142, %v622
  %v624 = vpop.f32.mrb[0].mxu0
  %625 = vmatprep.mubr.bf16.mxu0 %v278
  %626 = vmatmul.mubr.bf16.gmra.mrb[0].mxu0 %v277
  %v627 = vpop.f32.mrb[0].mxu0
  %v628 = vadd.f32 %v142, %v627
  %v629 = vpop.f32.mrb[0].mxu0
  %v630 = vpop.f32.mrb[0].mxu0
  %v631 = vadd.f32 %v142, %v630
  %v632 = vpop.f32.mrb[0].mxu0
  %633 = vmatprep.mubr.bf16.mxu0 %v283
  %634 = vmatmul.mubr.bf16.gmra.mrb[0].mxu0 %v282
  %v635 = vpop.f32.mrb[0].mxu0
  %v636 = vadd.f32 %v142, %v635
  %v637 = vpop.f32.mrb[0].mxu0
  %v638 = vpop.f32.mrb[0].mxu0
  %v639 = vadd.f32 %v142, %v638
  %v640 = vpop.f32.mrb[0].mxu0
  %641 = vmatprep.mubr.bf16.mxu0 %v288
  %642 = vmatmul.mubr.bf16.gmra.mrb[0].mxu0 %v287
  %v643 = vpop.f32.mrb[0].mxu0
  %v644 = vadd.f32 %v142, %v643
  %v645 = vpop.f32.mrb[0].mxu0
  %v646 = vpop.f32.mrb[0].mxu0
  %v647 = vadd.f32 %v142, %v646
  %v648 = vpop.f32.mrb[0].mxu0
  %649 = vmatprep.mubr.bf16.mxu0 %v293
  %650 = vmatmul.mubr.bf16.gmra.mrb[0].mxu0 %v292
  %v651 = vpop.f32.mrb[0].mxu0
  %v652 = vadd.f32 %v142, %v651
  %v653 = vpop.f32.mrb[0].mxu0
  %v654 = vpop.f32.mrb[0].mxu0
  %v655 = vadd.f32 %v142, %v654
  %v656 = vpop.f32.mrb[0].mxu0
  %657 = vmatprep.mubr.bf16.mxu0 %v298
  %658 = vmatmul.mubr.bf16.gmra.mrb[0].mxu0 %v297
  %v659 = vpop.f32.mrb[0].mxu0
  %v660 = vadd.f32 %v142, %v659
  %v661 = vpop.f32.mrb[0].mxu0
  %v662 = vpop.f32.mrb[0].mxu0
  %v663 = vadd.f32 %v142, %v662
  %v664 = vpop.f32.mrb[0].mxu0
  %665 = vmatprep.mubr.bf16.mxu0 %v303
  %666 = vmatmul.mubr.bf16.gmra.mrb[0].mxu0 %v302
  %v667 = vpop.f32.mrb[0].mxu0
  %v668 = vadd.f32 %v142, %v667
  %v669 = vpop.f32.mrb[0].mxu0
  %v670 = vpop.f32.mrb[0].mxu0
  %v671 = vadd.f32 %v142, %v670
  %v672 = vpop.f32.mrb[0].mxu0
  %673 = vmatprep.mubr.bf16.mxu0 %v308
  %674 = vmatmul.mubr.bf16.gmra.mrb[0].mxu0 %v307
  %v675 = vpop.f32.mrb[0].mxu0
  %v676 = vadd.f32 %v142, %v675
  %v677 = vpop.f32.mrb[0].mxu0
  %v678 = vpop.f32.mrb[0].mxu0
  %v679 = vadd.f32 %v142, %v678
  %v680 = vpop.f32.mrb[0].mxu0
  %681 = vdwg.mxu0
  %682 = vmatprep.subr.bf16.mxu0 0
  %683 = vmatpush1.bf16.msra.mxu0 %v504
  %684 = vmatprep.subr.bf16.mxu0 0
  %685 = vmatpush1.bf16.msra.mxu0 %v505
  %686 = vmatprep.subr.bf16.mxu0 0
  %687 = vmatpush1.bf16.msra.mxu0 %v506
  %688 = vmatprep.subr.bf16.mxu0 0
  %689 = vmatpush1.bf16.msra.mxu0 %v507
  %690 = vmatprep.subr.bf16.mxu0 0
  %691 = vmatpush1.bf16.msra.mxu0 %v508
  %692 = vmatprep.subr.bf16.mxu0 0
  %693 = vmatpush1.bf16.msra.mxu0 %v509
  %694 = vmatprep.subr.bf16.mxu0 0
  %695 = vmatpush1.bf16.msra.mxu0 %v510
  %696 = vmatprep.subr.bf16.mxu0 0
  %697 = vmatpush1.bf16.msra.mxu0 %v511
  %698 = vmatprep.subr.bf16.mxu0 0
  %699 = vmatpush1.bf16.msra.mxu0 %v512
  %700 = vmatprep.subr.bf16.mxu0 0
  %701 = vmatpush1.bf16.msra.mxu0 %v513
  %702 = vmatprep.subr.bf16.mxu0 0
  %703 = vmatpush1.bf16.msra.mxu0 %v514
  %704 = vmatprep.subr.bf16.mxu0 0
  %705 = vmatpush1.bf16.msra.mxu0 %v515
  %706 = vmatprep.subr.bf16.mxu0 0
  %707 = vmatpush1.bf16.msra.mxu0 %v516
  %708 = vmatprep.subr.bf16.mxu0 0
  %709 = vmatpush1.bf16.msra.mxu0 %v517
  %710 = vmatprep.subr.bf16.mxu0 0
  %711 = vmatpush1.bf16.msra.mxu0 %v518
  %712 = vmatprep.subr.bf16.mxu0 0
  %713 = vmatpush1.bf16.msra.mxu0 %v519
  %714 = vmatprep.mubr.bf16.mxu0 %v275
  %715 = vmatmul.mubr.bf16.gmra.mrb[0].mxu0 %v274
  %v716 = vpop.f32.mrb[0].mxu0
  %v717 = vadd.f32 %v620, %v716
  %v718 = vpop.f32.mrb[0].mxu0
  %v719 = vpop.f32.mrb[0].mxu0
  %v720 = vadd.f32 %v623, %v719
  %v721 = vpop.f32.mrb[0].mxu0
  %722 = vmatprep.mubr.bf16.mxu0 %v280
  %723 = vmatmul.mubr.bf16.gmra.mrb[0].mxu0 %v279
  %v724 = vpop.f32.mrb[0].mxu0
  %v725 = vadd.f32 %v628, %v724
  %v726 = vpop.f32.mrb[0].mxu0
  %v727 = vpop.f32.mrb[0].mxu0
  %v728 = vadd.f32 %v631, %v727
  %v729 = vpop.f32.mrb[0].mxu0
  %730 = vmatprep.mubr.bf16.mxu0 %v285
  %731 = vmatmul.mubr.bf16.gmra.mrb[0].mxu0 %v284
  %v732 = vpop.f32.mrb[0].mxu0
  %v733 = vadd.f32 %v636, %v732
  %v734 = vpop.f32.mrb[0].mxu0
  %v735 = vpop.f32.mrb[0].mxu0
  %v736 = vadd.f32 %v639, %v735
  %v737 = vpop.f32.mrb[0].mxu0
  %738 = vmatprep.mubr.bf16.mxu0 %v290
  %739 = vmatmul.mubr.bf16.gmra.mrb[0].mxu0 %v289
  %v740 = vpop.f32.mrb[0].mxu0
  %v741 = vadd.f32 %v644, %v740
  %v742 = vpop.f32.mrb[0].mxu0
  %v743 = vpop.f32.mrb[0].mxu0
  %v744 = vadd.f32 %v647, %v743
  %v745 = vpop.f32.mrb[0].mxu0
  %746 = vmatprep.mubr.bf16.mxu0 %v295
  %747 = vmatmul.mubr.bf16.gmra.mrb[0].mxu0 %v294
  %v748 = vpop.f32.mrb[0].mxu0
  %v749 = vadd.f32 %v652, %v748
  %v750 = vpop.f32.mrb[0].mxu0
  %v751 = vpop.f32.mrb[0].mxu0
  %v752 = vadd.f32 %v655, %v751
  %v753 = vpop.f32.mrb[0].mxu0
  %754 = vmatprep.mubr.bf16.mxu0 %v300
  %755 = vmatmul.mubr.bf16.gmra.mrb[0].mxu0 %v299
  %v756 = vpop.f32.mrb[0].mxu0
  %v757 = vadd.f32 %v660, %v756
  %v758 = vpop.f32.mrb[0].mxu0
  %v759 = vpop.f32.mrb[0].mxu0
  %v760 = vadd.f32 %v663, %v759
  %v761 = vpop.f32.mrb[0].mxu0
  %762 = vmatprep.mubr.bf16.mxu0 %v305
  %763 = vmatmul.mubr.bf16.gmra.mrb[0].mxu0 %v304
  %v764 = vpop.f32.mrb[0].mxu0
  %v765 = vadd.f32 %v668, %v764
  %v766 = vpop.f32.mrb[0].mxu0
  %v767 = vpop.f32.mrb[0].mxu0
  %v768 = vadd.f32 %v671, %v767
  %v769 = vpop.f32.mrb[0].mxu0
  %770 = vmatprep.mubr.bf16.mxu0 %v310
  %771 = vmatmul.mubr.bf16.gmra.mrb[0].mxu0 %v309
  %v772 = vpop.f32.mrb[0].mxu0
  %v773 = vadd.f32 %v676, %v772
  %v774 = vpop.f32.mrb[0].mxu0
  %v775 = vpop.f32.mrb[0].mxu0
  %v776 = vadd.f32 %v679, %v775
  %v777 = vpop.f32.mrb[0].mxu0
  %778 = vdwg.mxu0
  %779 = vmatprep.subr.bf16.mxu0 0
  %780 = vmatpush1.bf16.msra.mxu0 %v520
  %781 = vmatprep.subr.bf16.mxu0 0
  %782 = vmatpush1.bf16.msra.mxu0 %v521
  %783 = vmatprep.subr.bf16.mxu0 0
  %784 = vmatpush1.bf16.msra.mxu0 %v522
  %785 = vmatprep.subr.bf16.mxu0 0
  %786 = vmatpush1.bf16.msra.mxu0 %v523
  %787 = vmatprep.subr.bf16.mxu0 0
  %788 = vmatpush1.bf16.msra.mxu0 0
  %789 = vmatprep.subr.bf16.mxu0 0
  %790 = vmatpush1.bf16.msra.mxu0 0
  %791 = vmatprep.subr.bf16.mxu0 0
  %792 = vmatpush1.bf16.msra.mxu0 0
  %793 = vmatprep.subr.bf16.mxu0 0
  %794 = vmatpush1.bf16.msra.mxu0 0
  %795 = vmatprep.subr.bf16.mxu0 0
  %796 = vmatpush1.bf16.msra.mxu0 0
  %797 = vmatprep.subr.bf16.mxu0 0
  %798 = vmatpush1.bf16.msra.mxu0 0
  %799 = vmatprep.subr.bf16.mxu0 0
  %800 = vmatpush1.bf16.msra.mxu0 0
  %801 = vmatprep.subr.bf16.mxu0 0
  %802 = vmatpush1.bf16.msra.mxu0 0
  %803 = vmatprep.subr.bf16.mxu0 0
  %804 = vmatpush1.bf16.msra.mxu0 0
  %805 = vmatprep.subr.bf16.mxu0 0
  %806 = vmatpush1.bf16.msra.mxu0 0
  %807 = vmatprep.subr.bf16.mxu0 0
  %808 = vmatpush1.bf16.msra.mxu0 0
  %809 = vmatprep.subr.bf16.mxu0 0
  %810 = vmatpush1.bf16.msra.mxu0 0
  %811 = vmatprep.mubr.bf16.mxu0 0
  %812 = vmatmul.mubr.bf16.gmra.mrb[0].mxu0 %v562
  %v813 = vpop.f32.mrb[0].mxu0
  %v814 = vadd.f32 %v717, %v813
  %v815 = vpop.f32.mrb[0].mxu0
  %v816 = vpop.f32.mrb[0].mxu0
  %v817 = vadd.f32 %v720, %v816
  %v818 = vpop.f32.mrb[0].mxu0
  %819 = vmatprep.mubr.bf16.mxu0 0
  %820 = vmatmul.mubr.bf16.gmra.mrb[0].mxu0 %v565
  %v821 = vpop.f32.mrb[0].mxu0
  %v822 = vadd.f32 %v725, %v821
  %v823 = vpop.f32.mrb[0].mxu0
  %v824 = vpop.f32.mrb[0].mxu0
  %v825 = vadd.f32 %v728, %v824
  %v826 = vpop.f32.mrb[0].mxu0
  %827 = vmatprep.mubr.bf16.mxu0 0
  %828 = vmatmul.mubr.bf16.gmra.mrb[0].mxu0 %v568
  %v829 = vpop.f32.mrb[0].mxu0
  %v830 = vadd.f32 %v733, %v829
  %v831 = vpop.f32.mrb[0].mxu0
  %v832 = vpop.f32.mrb[0].mxu0
  %v833 = vadd.f32 %v736, %v832
  %v834 = vpop.f32.mrb[0].mxu0
  %835 = vmatprep.mubr.bf16.mxu0 0
  %836 = vmatmul.mubr.bf16.gmra.mrb[0].mxu0 %v571
  %v837 = vpop.f32.mrb[0].mxu0
  %v838 = vadd.f32 %v741, %v837
  %v839 = vpop.f32.mrb[0].mxu0
  %v840 = vpop.f32.mrb[0].mxu0
  %v841 = vadd.f32 %v744, %v840
  %v842 = vpop.f32.mrb[0].mxu0
  %843 = vmatprep.mubr.bf16.mxu0 0
  %844 = vmatmul.mubr.bf16.gmra.mrb[0].mxu0 %v574
  %v845 = vpop.f32.mrb[0].mxu0
  %v846 = vadd.f32 %v749, %v845
  %v847 = vpop.f32.mrb[0].mxu0
  %v848 = vpop.f32.mrb[0].mxu0
  %v849 = vadd.f32 %v752, %v848
  %v850 = vpop.f32.mrb[0].mxu0
  %851 = vmatprep.mubr.bf16.mxu0 0
  %852 = vmatmul.mubr.bf16.gmra.mrb[0].mxu0 %v577
  %v853 = vpop.f32.mrb[0].mxu0
  %v854 = vadd.f32 %v757, %v853
  %v855 = vpop.f32.mrb[0].mxu0
  %v856 = vpop.f32.mrb[0].mxu0
  %v857 = vadd.f32 %v760, %v856
  %v858 = vpop.f32.mrb[0].mxu0
  %859 = vmatprep.mubr.bf16.mxu0 0
  %860 = vmatmul.mubr.bf16.gmra.mrb[0].mxu0 %v580
  %v861 = vpop.f32.mrb[0].mxu0
  %v862 = vadd.f32 %v765, %v861
  %v863 = vpop.f32.mrb[0].mxu0
  %v864 = vpop.f32.mrb[0].mxu0
  %v865 = vadd.f32 %v768, %v864
  %v866 = vpop.f32.mrb[0].mxu0
  %867 = vmatprep.mubr.bf16.mxu0 0
  %868 = vmatmul.mubr.bf16.gmra.mrb[0].mxu0 %v583
  %v869 = vpop.f32.mrb[0].mxu0
  %v870 = vadd.f32 %v773, %v869
  %v871 = vpop.f32.mrb[0].mxu0
  %v872 = vpop.f32.mrb[0].mxu0
  %v873 = vadd.f32 %v776, %v872
  %v874 = vpop.f32.mrb[0].mxu0
  %875 = vdwg.mxu0
  %v876 = vmax.f32 %v814, 0.0
  %v877 = vmax.f32 %v817, 0.0
  %v878 = vmax.f32 %v822, 0.0
  %v879 = vmax.f32 %v825, 0.0
  %v880 = vmax.f32 %v830, 0.0
  %v881 = vmax.f32 %v833, 0.0
  %v882 = vmax.f32 %v838, 0.0
  %v883 = vmax.f32 %v841, 0.0
  %v884 = vmax.f32 %v846, 0.0
  %v885 = vmax.f32 %v849, 0.0
  %v886 = vmax.f32 %v854, 0.0
  %v887 = vmax.f32 %v857, 0.0
  %v888 = vmax.f32 %v862, 0.0
  %v889 = vmax.f32 %v865, 0.0
  %v890 = vmax.f32 %v870, 0.0
  %v891 = vmax.f32 %v873, 0.0
  %892 = vst [vmem:[%s3] sm:$0xff] %v876
  %893 = vst [vmem:[%s3 + $0x8] sm:$0xff] %v877
  %894 = vst [vmem:[%s3 + $0x10] sm:$0xff] %v878
  %895 = vst [vmem:[%s3 + $0x18] sm:$0xff] %v879
  %896 = vst [vmem:[%s3 + $0x20] sm:$0xff] %v880
  %897 = vst [vmem:[%s3 + $0x28] sm:$0xff] %v881
  %898 = vst [vmem:[%s3 + $0x30] sm:$0xff] %v882
  %899 = vst [vmem:[%s3 + $0x38] sm:$0xff] %v883
  %900 = vst [vmem:[%s3 + $0x40] sm:$0xff] %v884
  %901 = vst [vmem:[%s3 + $0x48] sm:$0xff] %v885
  %902 = vst [vmem:[%s3 + $0x50] sm:$0xff] %v886
  %903 = vst [vmem:[%s3 + $0x58] sm:$0xff] %v887
  %904 = vst [vmem:[%s3 + $0x60] sm:$0xff] %v888
  %905 = vst [vmem:[%s3 + $0x68] sm:$0xff] %v889
  %906 = vst [vmem:[%s3 + $0x70] sm:$0xff] %v890
  %907 = vst [vmem:[%s3 + $0x78] sm:$0xff] %v891
  %v908 = vlaneseq
  %v909 = vand.u32 %v908, 127
  %vm910 = vcmp.lt.s32.totalorder %v909, 5
  %v911 = vsel %vm910, %v876, -inf
  %v912 = vsel %vm910, %v877, -inf
  %v913 = vsel %vm910, %v878, -inf
  %v914 = vsel %vm910, %v879, -inf
  %v915 = vsel %vm910, %v880, -inf
  %v916 = vsel %vm910, %v881, -inf
  %v917 = vsel %vm910, %v882, -inf
  %v918 = vsel %vm910, %v883, -inf
  %v919 = vsel %vm910, %v884, -inf
  %v920 = vsel %vm910, %v885, -inf
  %v921 = vsel %vm910, %v886, -inf
  %v922 = vsel %vm910, %v887, -inf
  %v923 = vsel %vm910, %v888, -inf
  %v924 = vsel %vm910, %v889, -inf
  %v925 = vsel %vm910, %v890, -inf
  %v926 = vsel %vm910, %v891, -inf
  %vm927 = vcmask 64512
  %v928 = vsel %vm927, %v911, -inf
  %929 = vmax.xlane.f32.xlu0 %v928
  %v930 = vpop.xlane.xlu0 %929
  %v931 = vsel %vm927, %v912, -inf
  %932 = vmax.xlane.f32.xlu0 %v931
  %v933 = vpop.xlane.xlu0 %932
  %v934 = vsel %vm927, %v913, -inf
  %935 = vmax.xlane.f32.xlu0 %v934
  %v936 = vpop.xlane.xlu0 %935
  %v937 = vsel %vm927, %v914, -inf
  %938 = vmax.xlane.f32.xlu0 %v937
  %v939 = vpop.xlane.xlu0 %938
  %v940 = vsel %vm927, %v915, -inf
  %941 = vmax.xlane.f32.xlu0 %v940
  %v942 = vpop.xlane.xlu0 %941
  %v943 = vsel %vm927, %v916, -inf
  %944 = vmax.xlane.f32.xlu0 %v943
  %v945 = vpop.xlane.xlu0 %944
  %v946 = vsel %vm927, %v917, -inf
  %947 = vmax.xlane.f32.xlu0 %v946
  %v948 = vpop.xlane.xlu0 %947
  %v949 = vsel %vm927, %v918, -inf
  %950 = vmax.xlane.f32.xlu0 %v949
  %v951 = vpop.xlane.xlu0 %950
  %v952 = vsel %vm927, %v919, -inf
  %953 = vmax.xlane.f32.xlu0 %v952
  %v954 = vpop.xlane.xlu0 %953
  %v955 = vsel %vm927, %v920, -inf
  %956 = vmax.xlane.f32.xlu0 %v955
  %v957 = vpop.xlane.xlu0 %956
  %v958 = vsel %vm927, %v921, -inf
  %959 = vmax.xlane.f32.xlu0 %v958
  %v960 = vpop.xlane.xlu0 %959
  %v961 = vsel %vm927, %v922, -inf
  %962 = vmax.xlane.f32.xlu0 %v961
  %v963 = vpop.xlane.xlu0 %962
  %v964 = vsel %vm927, %v923, -inf
  %965 = vmax.xlane.f32.xlu0 %v964
  %v966 = vpop.xlane.xlu0 %965
  %v967 = vsel %vm927, %v924, -inf
  %968 = vmax.xlane.f32.xlu0 %v967
  %v969 = vpop.xlane.xlu0 %968
  %v970 = vsel %vm927, %v925, -inf
  %971 = vmax.xlane.f32.xlu0 %v970
  %v972 = vpop.xlane.xlu0 %971
  %v973 = vsel %vm927, %v926, -inf
  %974 = vmax.xlane.f32.xlu0 %v973
  %v975 = vpop.xlane.xlu0 %974
  %vm976 = vcmp.eq.f32.partialorder %v911, %v930
  %vm977 = vcmp.eq.f32.partialorder %v912, %v933
  %vm978 = vcmp.eq.f32.partialorder %v913, %v936
  %vm979 = vcmp.eq.f32.partialorder %v914, %v939
  %vm980 = vcmp.eq.f32.partialorder %v915, %v942
  %vm981 = vcmp.eq.f32.partialorder %v916, %v945
  %vm982 = vcmp.eq.f32.partialorder %v917, %v948
  %vm983 = vcmp.eq.f32.partialorder %v918, %v951
  %vm984 = vcmp.eq.f32.partialorder %v919, %v954
  %vm985 = vcmp.eq.f32.partialorder %v920, %v957
  %vm986 = vcmp.eq.f32.partialorder %v921, %v960
  %vm987 = vcmp.eq.f32.partialorder %v922, %v963
  %vm988 = vcmp.eq.f32.partialorder %v923, %v966
  %vm989 = vcmp.eq.f32.partialorder %v924, %v969
  %vm990 = vcmp.eq.f32.partialorder %v925, %v972
  %vm991 = vcmp.eq.f32.partialorder %v926, %v975
  %v992 = vsel %vm976, %v909, 8
  %v993 = vsel %vm977, %v909, 8
  %v994 = vsel %vm978, %v909, 8
  %v995 = vsel %vm979, %v909, 8
  %v996 = vsel %vm980, %v909, 8
  %v997 = vsel %vm981, %v909, 8
  %v998 = vsel %vm982, %v909, 8
  %v999 = vsel %vm983, %v909, 8
  %v1000 = vsel %vm984, %v909, 8
  %v1001 = vsel %vm985, %v909, 8
  %v1002 = vsel %vm986, %v909, 8
  %v1003 = vsel %vm987, %v909, 8
  %v1004 = vsel %vm988, %v909, 8
  %v1005 = vsel %vm989, %v909, 8
  %v1006 = vsel %vm990, %v909, 8
  %v1007 = vsel %vm991, %v909, 8
  %v1008 = vsel %vm927, %v992, 2147483647
  %v1009 = vand.u32 %v1008, 65535
  %v1010 = vshra.s32 %v1008, 16
  %v1011 = vcvt.s32.f32 %v1009
  %v1012 = vcvt.s32.f32 %v1010
  %1013 = vmin.xlane.f32.xlu0 %v1012
  %v1014 = vpop.xlane.xlu0 %1013
  %vm1015 = vcmp.eq.f32.partialorder %v1012, %v1014
  %v1016 = vsel %vm1015, %v1011, inf
  %1017 = vmin.xlane.f32.xlu0 %v1016
  %v1018 = vpop.xlane.xlu0 %1017
  %v1019 = vcvt.f32.s32 %v1018
  %v1020 = vcvt.f32.s32 %v1014
  %v1021 = vshll.u32 %v1020, 16
  %v1022 = vadd.s32 %v1021, %v1019
  %v1023 = vsel %vm927, %v993, 2147483647
  %v1024 = vand.u32 %v1023, 65535
  %v1025 = vshra.s32 %v1023, 16
  %v1026 = vcvt.s32.f32 %v1024
  %v1027 = vcvt.s32.f32 %v1025
  %1028 = vmin.xlane.f32.xlu0 %v1027
  %v1029 = vpop.xlane.xlu0 %1028
  %vm1030 = vcmp.eq.f32.partialorder %v1027, %v1029
  %v1031 = vsel %vm1030, %v1026, inf
  %1032 = vmin.xlane.f32.xlu0 %v1031
  %v1033 = vpop.xlane.xlu0 %1032
  %v1034 = vcvt.f32.s32 %v1033
  %v1035 = vcvt.f32.s32 %v1029
  %v1036 = vshll.u32 %v1035, 16
  %v1037 = vadd.s32 %v1036, %v1034
  %v1038 = vsel %vm927, %v994, 2147483647
  %v1039 = vand.u32 %v1038, 65535
  %v1040 = vshra.s32 %v1038, 16
  %v1041 = vcvt.s32.f32 %v1039
  %v1042 = vcvt.s32.f32 %v1040
  %1043 = vmin.xlane.f32.xlu0 %v1042
  %v1044 = vpop.xlane.xlu0 %1043
  %vm1045 = vcmp.eq.f32.partialorder %v1042, %v1044
  %v1046 = vsel %vm1045, %v1041, inf
  %1047 = vmin.xlane.f32.xlu0 %v1046
  %v1048 = vpop.xlane.xlu0 %1047
  %v1049 = vcvt.f32.s32 %v1048
  %v1050 = vcvt.f32.s32 %v1044
  %v1051 = vshll.u32 %v1050, 16
  %v1052 = vadd.s32 %v1051, %v1049
  %v1053 = vsel %vm927, %v995, 2147483647
  %v1054 = vand.u32 %v1053, 65535
  %v1055 = vshra.s32 %v1053, 16
  %v1056 = vcvt.s32.f32 %v1054
  %v1057 = vcvt.s32.f32 %v1055
  %1058 = vmin.xlane.f32.xlu0 %v1057
  %v1059 = vpop.xlane.xlu0 %1058
  %vm1060 = vcmp.eq.f32.partialorder %v1057, %v1059
  %v1061 = vsel %vm1060, %v1056, inf
  %1062 = vmin.xlane.f32.xlu0 %v1061
  %v1063 = vpop.xlane.xlu0 %1062
  %v1064 = vcvt.f32.s32 %v1063
  %v1065 = vcvt.f32.s32 %v1059
  %v1066 = vshll.u32 %v1065, 16
  %v1067 = vadd.s32 %v1066, %v1064
  %v1068 = vsel %vm927, %v996, 2147483647
  %v1069 = vand.u32 %v1068, 65535
  %v1070 = vshra.s32 %v1068, 16
  %v1071 = vcvt.s32.f32 %v1069
  %v1072 = vcvt.s32.f32 %v1070
  %1073 = vmin.xlane.f32.xlu0 %v1072
  %v1074 = vpop.xlane.xlu0 %1073
  %vm1075 = vcmp.eq.f32.partialorder %v1072, %v1074
  %v1076 = vsel %vm1075, %v1071, inf
  %1077 = vmin.xlane.f32.xlu0 %v1076
  %v1078 = vpop.xlane.xlu0 %1077
  %v1079 = vcvt.f32.s32 %v1078
  %v1080 = vcvt.f32.s32 %v1074
  %v1081 = vshll.u32 %v1080, 16
  %v1082 = vadd.s32 %v1081, %v1079
  %v1083 = vsel %vm927, %v997, 2147483647
  %v1084 = vand.u32 %v1083, 65535
  %v1085 = vshra.s32 %v1083, 16
  %v1086 = vcvt.s32.f32 %v1084
  %v1087 = vcvt.s32.f32 %v1085
  %1088 = vmin.xlane.f32.xlu0 %v1087
  %v1089 = vpop.xlane.xlu0 %1088
  %vm1090 = vcmp.eq.f32.partialorder %v1087, %v1089
  %v1091 = vsel %vm1090, %v1086, inf
  %1092 = vmin.xlane.f32.xlu0 %v1091
  %v1093 = vpop.xlane.xlu0 %1092
  %v1094 = vcvt.f32.s32 %v1093
  %v1095 = vcvt.f32.s32 %v1089
  %v1096 = vshll.u32 %v1095, 16
  %v1097 = vadd.s32 %v1096, %v1094
  %v1098 = vsel %vm927, %v998, 2147483647
  %v1099 = vand.u32 %v1098, 65535
  %v1100 = vshra.s32 %v1098, 16
  %v1101 = vcvt.s32.f32 %v1099
  %v1102 = vcvt.s32.f32 %v1100
  %1103 = vmin.xlane.f32.xlu0 %v1102
  %v1104 = vpop.xlane.xlu0 %1103
  %vm1105 = vcmp.eq.f32.partialorder %v1102, %v1104
  %v1106 = vsel %vm1105, %v1101, inf
  %1107 = vmin.xlane.f32.xlu0 %v1106
  %v1108 = vpop.xlane.xlu0 %1107
  %v1109 = vcvt.f32.s32 %v1108
  %v1110 = vcvt.f32.s32 %v1104
  %v1111 = vshll.u32 %v1110, 16
  %v1112 = vadd.s32 %v1111, %v1109
  %v1113 = vsel %vm927, %v999, 2147483647
  %v1114 = vand.u32 %v1113, 65535
  %v1115 = vshra.s32 %v1113, 16
  %v1116 = vcvt.s32.f32 %v1114
  %v1117 = vcvt.s32.f32 %v1115
  %1118 = vmin.xlane.f32.xlu0 %v1117
  %v1119 = vpop.xlane.xlu0 %1118
  %vm1120 = vcmp.eq.f32.partialorder %v1117, %v1119
  %v1121 = vsel %vm1120, %v1116, inf
  %1122 = vmin.xlane.f32.xlu0 %v1121
  %v1123 = vpop.xlane.xlu0 %1122
  %v1124 = vcvt.f32.s32 %v1123
  %v1125 = vcvt.f32.s32 %v1119
  %v1126 = vshll.u32 %v1125, 16
  %v1127 = vadd.s32 %v1126, %v1124
  %v1128 = vsel %vm927, %v1000, 2147483647
  %v1129 = vand.u32 %v1128, 65535
  %v1130 = vshra.s32 %v1128, 16
  %v1131 = vcvt.s32.f32 %v1129
  %v1132 = vcvt.s32.f32 %v1130
  %1133 = vmin.xlane.f32.xlu0 %v1132
  %v1134 = vpop.xlane.xlu0 %1133
  %vm1135 = vcmp.eq.f32.partialorder %v1132, %v1134
  %v1136 = vsel %vm1135, %v1131, inf
  %1137 = vmin.xlane.f32.xlu0 %v1136
  %v1138 = vpop.xlane.xlu0 %1137
  %v1139 = vcvt.f32.s32 %v1138
  %v1140 = vcvt.f32.s32 %v1134
  %v1141 = vshll.u32 %v1140, 16
  %v1142 = vadd.s32 %v1141, %v1139
  %v1143 = vsel %vm927, %v1001, 2147483647
  %v1144 = vand.u32 %v1143, 65535
  %v1145 = vshra.s32 %v1143, 16
  %v1146 = vcvt.s32.f32 %v1144
  %v1147 = vcvt.s32.f32 %v1145
  %1148 = vmin.xlane.f32.xlu0 %v1147
  %v1149 = vpop.xlane.xlu0 %1148
  %vm1150 = vcmp.eq.f32.partialorder %v1147, %v1149
  %v1151 = vsel %vm1150, %v1146, inf
  %1152 = vmin.xlane.f32.xlu0 %v1151
  %v1153 = vpop.xlane.xlu0 %1152
  %v1154 = vcvt.f32.s32 %v1153
  %v1155 = vcvt.f32.s32 %v1149
  %v1156 = vshll.u32 %v1155, 16
  %v1157 = vadd.s32 %v1156, %v1154
  %v1158 = vsel %vm927, %v1002, 2147483647
  %v1159 = vand.u32 %v1158, 65535
  %v1160 = vshra.s32 %v1158, 16
  %v1161 = vcvt.s32.f32 %v1159
  %v1162 = vcvt.s32.f32 %v1160
  %1163 = vmin.xlane.f32.xlu0 %v1162
  %v1164 = vpop.xlane.xlu0 %1163
  %vm1165 = vcmp.eq.f32.partialorder %v1162, %v1164
  %v1166 = vsel %vm1165, %v1161, inf
  %1167 = vmin.xlane.f32.xlu0 %v1166
  %v1168 = vpop.xlane.xlu0 %1167
  %v1169 = vcvt.f32.s32 %v1168
  %v1170 = vcvt.f32.s32 %v1164
  %v1171 = vshll.u32 %v1170, 16
  %v1172 = vadd.s32 %v1171, %v1169
  %v1173 = vsel %vm927, %v1003, 2147483647
  %v1174 = vand.u32 %v1173, 65535
  %v1175 = vshra.s32 %v1173, 16
  %v1176 = vcvt.s32.f32 %v1174
  %v1177 = vcvt.s32.f32 %v1175
  %1178 = vmin.xlane.f32.xlu0 %v1177
  %v1179 = vpop.xlane.xlu0 %1178
  %vm1180 = vcmp.eq.f32.partialorder %v1177, %v1179
  %v1181 = vsel %vm1180, %v1176, inf
  %1182 = vmin.xlane.f32.xlu0 %v1181
  %v1183 = vpop.xlane.xlu0 %1182
  %v1184 = vcvt.f32.s32 %v1183
  %v1185 = vcvt.f32.s32 %v1179
  %v1186 = vshll.u32 %v1185, 16
  %v1187 = vadd.s32 %v1186, %v1184
  %v1188 = vsel %vm927, %v1004, 2147483647
  %v1189 = vand.u32 %v1188, 65535
  %v1190 = vshra.s32 %v1188, 16
  %v1191 = vcvt.s32.f32 %v1189
  %v1192 = vcvt.s32.f32 %v1190
  %1193 = vmin.xlane.f32.xlu0 %v1192
  %v1194 = vpop.xlane.xlu0 %1193
  %vm1195 = vcmp.eq.f32.partialorder %v1192, %v1194
  %v1196 = vsel %vm1195, %v1191, inf
  %1197 = vmin.xlane.f32.xlu0 %v1196
  %v1198 = vpop.xlane.xlu0 %1197
  %v1199 = vcvt.f32.s32 %v1198
  %v1200 = vcvt.f32.s32 %v1194
  %v1201 = vshll.u32 %v1200, 16
  %v1202 = vadd.s32 %v1201, %v1199
  %v1203 = vsel %vm927, %v1005, 2147483647
  %v1204 = vand.u32 %v1203, 65535
  %v1205 = vshra.s32 %v1203, 16
  %v1206 = vcvt.s32.f32 %v1204
  %v1207 = vcvt.s32.f32 %v1205
  %1208 = vmin.xlane.f32.xlu0 %v1207
  %v1209 = vpop.xlane.xlu0 %1208
  %vm1210 = vcmp.eq.f32.partialorder %v1207, %v1209
  %v1211 = vsel %vm1210, %v1206, inf
  %1212 = vmin.xlane.f32.xlu0 %v1211
  %v1213 = vpop.xlane.xlu0 %1212
  %v1214 = vcvt.f32.s32 %v1213
  %v1215 = vcvt.f32.s32 %v1209
  %v1216 = vshll.u32 %v1215, 16
  %v1217 = vadd.s32 %v1216, %v1214
  %v1218 = vsel %vm927, %v1006, 2147483647
  %v1219 = vand.u32 %v1218, 65535
  %v1220 = vshra.s32 %v1218, 16
  %v1221 = vcvt.s32.f32 %v1219
  %v1222 = vcvt.s32.f32 %v1220
  %1223 = vmin.xlane.f32.xlu0 %v1222
  %v1224 = vpop.xlane.xlu0 %1223
  %vm1225 = vcmp.eq.f32.partialorder %v1222, %v1224
  %v1226 = vsel %vm1225, %v1221, inf
  %1227 = vmin.xlane.f32.xlu0 %v1226
  %v1228 = vpop.xlane.xlu0 %1227
  %v1229 = vcvt.f32.s32 %v1228
  %v1230 = vcvt.f32.s32 %v1224
  %v1231 = vshll.u32 %v1230, 16
  %v1232 = vadd.s32 %v1231, %v1229
  %v1233 = vsel %vm927, %v1007, 2147483647
  %v1234 = vand.u32 %v1233, 65535
  %v1235 = vshra.s32 %v1233, 16
  %v1236 = vcvt.s32.f32 %v1234
  %v1237 = vcvt.s32.f32 %v1235
  %1238 = vmin.xlane.f32.xlu0 %v1237
  %v1239 = vpop.xlane.xlu0 %1238
  %vm1240 = vcmp.eq.f32.partialorder %v1237, %v1239
  %v1241 = vsel %vm1240, %v1236, inf
  %1242 = vmin.xlane.f32.xlu0 %v1241
  %v1243 = vpop.xlane.xlu0 %1242
  %v1244 = vcvt.f32.s32 %v1243
  %v1245 = vcvt.f32.s32 %v1239
  %v1246 = vshll.u32 %v1245, 16
  %v1247 = vadd.s32 %v1246, %v1244
  %vm1248 = vcmask 7168
  %1249 = vst.msk [vmem:[%s4] sm:$0xff] %vm1248, %v1022
  %1250 = vst.msk [vmem:[%s4 + $0x8] sm:$0xff] %vm1248, %v1037
  %1251 = vst.msk [vmem:[%s4 + $0x10] sm:$0xff] %vm1248, %v1052
  %1252 = vst.msk [vmem:[%s4 + $0x18] sm:$0xff] %vm1248, %v1067
  %1253 = vst.msk [vmem:[%s4 + $0x20] sm:$0xff] %vm1248, %v1082
  %1254 = vst.msk [vmem:[%s4 + $0x28] sm:$0xff] %vm1248, %v1097
  %1255 = vst.msk [vmem:[%s4 + $0x30] sm:$0xff] %vm1248, %v1112
  %1256 = vst.msk [vmem:[%s4 + $0x38] sm:$0xff] %vm1248, %v1127
  %1257 = vst.msk [vmem:[%s4 + $0x40] sm:$0xff] %vm1248, %v1142
  %1258 = vst.msk [vmem:[%s4 + $0x48] sm:$0xff] %vm1248, %v1157
  %1259 = vst.msk [vmem:[%s4 + $0x50] sm:$0xff] %vm1248, %v1172
  %1260 = vst.msk [vmem:[%s4 + $0x58] sm:$0xff] %vm1248, %v1187
  %1261 = vst.msk [vmem:[%s4 + $0x60] sm:$0xff] %vm1248, %v1202
  %1262 = vst.msk [vmem:[%s4 + $0x68] sm:$0xff] %vm1248, %v1217
  %1263 = vst.msk [vmem:[%s4 + $0x70] sm:$0xff] %vm1248, %v1232
  %1264 = vst.msk [vmem:[%s4 + $0x78] sm:$0xff] %vm1248, %v1247
  %1281 = vrot.lane.b32.xlu0 %v876, 120
  %v1282 = vpop.permute.xlu0 %1281
  %1283 = vrot.lane.b32.xlu0 %v877, 120
  %v1284 = vpop.permute.xlu0 %1283
  %1285 = vrot.lane.b32.xlu0 %v878, 120
  %v1286 = vpop.permute.xlu0 %1285
  %1287 = vrot.lane.b32.xlu0 %v879, 120
  %v1288 = vpop.permute.xlu0 %1287
  %1289 = vrot.lane.b32.xlu0 %v880, 120
  %v1290 = vpop.permute.xlu0 %1289
  %1291 = vrot.lane.b32.xlu0 %v881, 120
  %v1292 = vpop.permute.xlu0 %1291
  %1293 = vrot.lane.b32.xlu0 %v882, 120
  %v1294 = vpop.permute.xlu0 %1293
  %1295 = vrot.lane.b32.xlu0 %v883, 120
  %v1296 = vpop.permute.xlu0 %1295
  %1297 = vrot.lane.b32.xlu0 %v884, 120
  %v1298 = vpop.permute.xlu0 %1297
  %1299 = vrot.lane.b32.xlu0 %v885, 120
  %v1300 = vpop.permute.xlu0 %1299
  %1301 = vrot.lane.b32.xlu0 %v886, 120
  %v1302 = vpop.permute.xlu0 %1301
  %1303 = vrot.lane.b32.xlu0 %v887, 120
  %v1304 = vpop.permute.xlu0 %1303
  %1305 = vrot.lane.b32.xlu0 %v888, 120
  %v1306 = vpop.permute.xlu0 %1305
  %1307 = vrot.lane.b32.xlu0 %v889, 120
  %v1308 = vpop.permute.xlu0 %1307
  %1309 = vrot.lane.b32.xlu0 %v890, 120
  %v1310 = vpop.permute.xlu0 %1309
  %1311 = vrot.lane.b32.xlu0 %v891, 120
  %v1312 = vpop.permute.xlu0 %1311
  %v1329 = vsel %vm910, %v1282, -inf
  %v1330 = vsel %vm910, %v1284, -inf
  %v1331 = vsel %vm910, %v1286, -inf
  %v1332 = vsel %vm910, %v1288, -inf
  %v1333 = vsel %vm910, %v1290, -inf
  %v1334 = vsel %vm910, %v1292, -inf
  %v1335 = vsel %vm910, %v1294, -inf
  %v1336 = vsel %vm910, %v1296, -inf
  %v1337 = vsel %vm910, %v1298, -inf
  %v1338 = vsel %vm910, %v1300, -inf
  %v1339 = vsel %vm910, %v1302, -inf
  %v1340 = vsel %vm910, %v1304, -inf
  %v1341 = vsel %vm910, %v1306, -inf
  %v1342 = vsel %vm910, %v1308, -inf
  %v1343 = vsel %vm910, %v1310, -inf
  %v1344 = vsel %vm910, %v1312, -inf
  %v1345 = vsel %vm927, %v1329, -inf
  %1346 = vmax.xlane.f32.xlu0 %v1345
  %v1347 = vpop.xlane.xlu0 %1346
  %v1348 = vsel %vm927, %v1330, -inf
  %1349 = vmax.xlane.f32.xlu0 %v1348
  %v1350 = vpop.xlane.xlu0 %1349
  %v1351 = vsel %vm927, %v1331, -inf
  %1352 = vmax.xlane.f32.xlu0 %v1351
  %v1353 = vpop.xlane.xlu0 %1352
  %v1354 = vsel %vm927, %v1332, -inf
  %1355 = vmax.xlane.f32.xlu0 %v1354
  %v1356 = vpop.xlane.xlu0 %1355
  %v1357 = vsel %vm927, %v1333, -inf
  %1358 = vmax.xlane.f32.xlu0 %v1357
  %v1359 = vpop.xlane.xlu0 %1358
  %v1360 = vsel %vm927, %v1334, -inf
  %1361 = vmax.xlane.f32.xlu0 %v1360
  %v1362 = vpop.xlane.xlu0 %1361
  %v1363 = vsel %vm927, %v1335, -inf
  %1364 = vmax.xlane.f32.xlu0 %v1363
  %v1365 = vpop.xlane.xlu0 %1364
  %v1366 = vsel %vm927, %v1336, -inf
  %1367 = vmax.xlane.f32.xlu0 %v1366
  %v1368 = vpop.xlane.xlu0 %1367
  %v1369 = vsel %vm927, %v1337, -inf
  %1370 = vmax.xlane.f32.xlu0 %v1369
  %v1371 = vpop.xlane.xlu0 %1370
  %v1372 = vsel %vm927, %v1338, -inf
  %1373 = vmax.xlane.f32.xlu0 %v1372
  %v1374 = vpop.xlane.xlu0 %1373
  %v1375 = vsel %vm927, %v1339, -inf
  %1376 = vmax.xlane.f32.xlu0 %v1375
  %v1377 = vpop.xlane.xlu0 %1376
  %v1378 = vsel %vm927, %v1340, -inf
  %1379 = vmax.xlane.f32.xlu0 %v1378
  %v1380 = vpop.xlane.xlu0 %1379
  %v1381 = vsel %vm927, %v1341, -inf
  %1382 = vmax.xlane.f32.xlu0 %v1381
  %v1383 = vpop.xlane.xlu0 %1382
  %v1384 = vsel %vm927, %v1342, -inf
  %1385 = vmax.xlane.f32.xlu0 %v1384
  %v1386 = vpop.xlane.xlu0 %1385
  %v1387 = vsel %vm927, %v1343, -inf
  %1388 = vmax.xlane.f32.xlu0 %v1387
  %v1389 = vpop.xlane.xlu0 %1388
  %v1390 = vsel %vm927, %v1344, -inf
  %1391 = vmax.xlane.f32.xlu0 %v1390
  %v1392 = vpop.xlane.xlu0 %1391
  %vm1393 = vcmp.eq.f32.partialorder %v1329, %v1347
  %vm1394 = vcmp.eq.f32.partialorder %v1330, %v1350
  %vm1395 = vcmp.eq.f32.partialorder %v1331, %v1353
  %vm1396 = vcmp.eq.f32.partialorder %v1332, %v1356
  %vm1397 = vcmp.eq.f32.partialorder %v1333, %v1359
  %vm1398 = vcmp.eq.f32.partialorder %v1334, %v1362
  %vm1399 = vcmp.eq.f32.partialorder %v1335, %v1365
  %vm1400 = vcmp.eq.f32.partialorder %v1336, %v1368
  %vm1401 = vcmp.eq.f32.partialorder %v1337, %v1371
  %vm1402 = vcmp.eq.f32.partialorder %v1338, %v1374
  %vm1403 = vcmp.eq.f32.partialorder %v1339, %v1377
  %vm1404 = vcmp.eq.f32.partialorder %v1340, %v1380
  %vm1405 = vcmp.eq.f32.partialorder %v1341, %v1383
  %vm1406 = vcmp.eq.f32.partialorder %v1342, %v1386
  %vm1407 = vcmp.eq.f32.partialorder %v1343, %v1389
  %vm1408 = vcmp.eq.f32.partialorder %v1344, %v1392
  %v1409 = vsel %vm1393, %v909, 8
  %v1410 = vsel %vm1394, %v909, 8
  %v1411 = vsel %vm1395, %v909, 8
  %v1412 = vsel %vm1396, %v909, 8
  %v1413 = vsel %vm1397, %v909, 8
  %v1414 = vsel %vm1398, %v909, 8
  %v1415 = vsel %vm1399, %v909, 8
  %v1416 = vsel %vm1400, %v909, 8
  %v1417 = vsel %vm1401, %v909, 8
  %v1418 = vsel %vm1402, %v909, 8
  %v1419 = vsel %vm1403, %v909, 8
  %v1420 = vsel %vm1404, %v909, 8
  %v1421 = vsel %vm1405, %v909, 8
  %v1422 = vsel %vm1406, %v909, 8
  %v1423 = vsel %vm1407, %v909, 8
  %v1424 = vsel %vm1408, %v909, 8
  %v1425 = vsel %vm927, %v1409, 2147483647
  %v1426 = vand.u32 %v1425, 65535
  %v1427 = vshra.s32 %v1425, 16
  %v1428 = vcvt.s32.f32 %v1426
  %v1429 = vcvt.s32.f32 %v1427
  %1430 = vmin.xlane.f32.xlu0 %v1429
  %v1431 = vpop.xlane.xlu0 %1430
  %vm1432 = vcmp.eq.f32.partialorder %v1429, %v1431
  %v1433 = vsel %vm1432, %v1428, inf
  %1434 = vmin.xlane.f32.xlu0 %v1433
  %v1435 = vpop.xlane.xlu0 %1434
  %v1436 = vcvt.f32.s32 %v1435
  %v1437 = vcvt.f32.s32 %v1431
  %v1438 = vshll.u32 %v1437, 16
  %v1439 = vadd.s32 %v1438, %v1436
  %v1440 = vsel %vm927, %v1410, 2147483647
  %v1441 = vand.u32 %v1440, 65535
  %v1442 = vshra.s32 %v1440, 16
  %v1443 = vcvt.s32.f32 %v1441
  %v1444 = vcvt.s32.f32 %v1442
  %1445 = vmin.xlane.f32.xlu0 %v1444
  %v1446 = vpop.xlane.xlu0 %1445
  %vm1447 = vcmp.eq.f32.partialorder %v1444, %v1446
  %v1448 = vsel %vm1447, %v1443, inf
  %1449 = vmin.xlane.f32.xlu0 %v1448
  %v1450 = vpop.xlane.xlu0 %1449
  %v1451 = vcvt.f32.s32 %v1450
  %v1452 = vcvt.f32.s32 %v1446
  %v1453 = vshll.u32 %v1452, 16
  %v1454 = vadd.s32 %v1453, %v1451
  %v1455 = vsel %vm927, %v1411, 2147483647
  %v1456 = vand.u32 %v1455, 65535
  %v1457 = vshra.s32 %v1455, 16
  %v1458 = vcvt.s32.f32 %v1456
  %v1459 = vcvt.s32.f32 %v1457
  %1460 = vmin.xlane.f32.xlu0 %v1459
  %v1461 = vpop.xlane.xlu0 %1460
  %vm1462 = vcmp.eq.f32.partialorder %v1459, %v1461
  %v1463 = vsel %vm1462, %v1458, inf
  %1464 = vmin.xlane.f32.xlu0 %v1463
  %v1465 = vpop.xlane.xlu0 %1464
  %v1466 = vcvt.f32.s32 %v1465
  %v1467 = vcvt.f32.s32 %v1461
  %v1468 = vshll.u32 %v1467, 16
  %v1469 = vadd.s32 %v1468, %v1466
  %v1470 = vsel %vm927, %v1412, 2147483647
  %v1471 = vand.u32 %v1470, 65535
  %v1472 = vshra.s32 %v1470, 16
  %v1473 = vcvt.s32.f32 %v1471
  %v1474 = vcvt.s32.f32 %v1472
  %1475 = vmin.xlane.f32.xlu0 %v1474
  %v1476 = vpop.xlane.xlu0 %1475
  %vm1477 = vcmp.eq.f32.partialorder %v1474, %v1476
  %v1478 = vsel %vm1477, %v1473, inf
  %1479 = vmin.xlane.f32.xlu0 %v1478
  %v1480 = vpop.xlane.xlu0 %1479
  %v1481 = vcvt.f32.s32 %v1480
  %v1482 = vcvt.f32.s32 %v1476
  %v1483 = vshll.u32 %v1482, 16
  %v1484 = vadd.s32 %v1483, %v1481
  %v1485 = vsel %vm927, %v1413, 2147483647
  %v1486 = vand.u32 %v1485, 65535
  %v1487 = vshra.s32 %v1485, 16
  %v1488 = vcvt.s32.f32 %v1486
  %v1489 = vcvt.s32.f32 %v1487
  %1490 = vmin.xlane.f32.xlu0 %v1489
  %v1491 = vpop.xlane.xlu0 %1490
  %vm1492 = vcmp.eq.f32.partialorder %v1489, %v1491
  %v1493 = vsel %vm1492, %v1488, inf
  %1494 = vmin.xlane.f32.xlu0 %v1493
  %v1495 = vpop.xlane.xlu0 %1494
  %v1496 = vcvt.f32.s32 %v1495
  %v1497 = vcvt.f32.s32 %v1491
  %v1498 = vshll.u32 %v1497, 16
  %v1499 = vadd.s32 %v1498, %v1496
  %v1500 = vsel %vm927, %v1414, 2147483647
  %v1501 = vand.u32 %v1500, 65535
  %v1502 = vshra.s32 %v1500, 16
  %v1503 = vcvt.s32.f32 %v1501
  %v1504 = vcvt.s32.f32 %v1502
  %1505 = vmin.xlane.f32.xlu0 %v1504
  %v1506 = vpop.xlane.xlu0 %1505
  %vm1507 = vcmp.eq.f32.partialorder %v1504, %v1506
  %v1508 = vsel %vm1507, %v1503, inf
  %1509 = vmin.xlane.f32.xlu0 %v1508
  %v1510 = vpop.xlane.xlu0 %1509
  %v1511 = vcvt.f32.s32 %v1510
  %v1512 = vcvt.f32.s32 %v1506
  %v1513 = vshll.u32 %v1512, 16
  %v1514 = vadd.s32 %v1513, %v1511
  %v1515 = vsel %vm927, %v1415, 2147483647
  %v1516 = vand.u32 %v1515, 65535
  %v1517 = vshra.s32 %v1515, 16
  %v1518 = vcvt.s32.f32 %v1516
  %v1519 = vcvt.s32.f32 %v1517
  %1520 = vmin.xlane.f32.xlu0 %v1519
  %v1521 = vpop.xlane.xlu0 %1520
  %vm1522 = vcmp.eq.f32.partialorder %v1519, %v1521
  %v1523 = vsel %vm1522, %v1518, inf
  %1524 = vmin.xlane.f32.xlu0 %v1523
  %v1525 = vpop.xlane.xlu0 %1524
  %v1526 = vcvt.f32.s32 %v1525
  %v1527 = vcvt.f32.s32 %v1521
  %v1528 = vshll.u32 %v1527, 16
  %v1529 = vadd.s32 %v1528, %v1526
  %v1530 = vsel %vm927, %v1416, 2147483647
  %v1531 = vand.u32 %v1530, 65535
  %v1532 = vshra.s32 %v1530, 16
  %v1533 = vcvt.s32.f32 %v1531
  %v1534 = vcvt.s32.f32 %v1532
  %1535 = vmin.xlane.f32.xlu0 %v1534
  %v1536 = vpop.xlane.xlu0 %1535
  %vm1537 = vcmp.eq.f32.partialorder %v1534, %v1536
  %v1538 = vsel %vm1537, %v1533, inf
  %1539 = vmin.xlane.f32.xlu0 %v1538
  %v1540 = vpop.xlane.xlu0 %1539
  %v1541 = vcvt.f32.s32 %v1540
  %v1542 = vcvt.f32.s32 %v1536
  %v1543 = vshll.u32 %v1542, 16
  %v1544 = vadd.s32 %v1543, %v1541
  %v1545 = vsel %vm927, %v1417, 2147483647
  %v1546 = vand.u32 %v1545, 65535
  %v1547 = vshra.s32 %v1545, 16
  %v1548 = vcvt.s32.f32 %v1546
  %v1549 = vcvt.s32.f32 %v1547
  %1550 = vmin.xlane.f32.xlu0 %v1549
  %v1551 = vpop.xlane.xlu0 %1550
  %vm1552 = vcmp.eq.f32.partialorder %v1549, %v1551
  %v1553 = vsel %vm1552, %v1548, inf
  %1554 = vmin.xlane.f32.xlu0 %v1553
  %v1555 = vpop.xlane.xlu0 %1554
  %v1556 = vcvt.f32.s32 %v1555
  %v1557 = vcvt.f32.s32 %v1551
  %v1558 = vshll.u32 %v1557, 16
  %v1559 = vadd.s32 %v1558, %v1556
  %v1560 = vsel %vm927, %v1418, 2147483647
  %v1561 = vand.u32 %v1560, 65535
  %v1562 = vshra.s32 %v1560, 16
  %v1563 = vcvt.s32.f32 %v1561
  %v1564 = vcvt.s32.f32 %v1562
  %1565 = vmin.xlane.f32.xlu0 %v1564
  %v1566 = vpop.xlane.xlu0 %1565
  %vm1567 = vcmp.eq.f32.partialorder %v1564, %v1566
  %v1568 = vsel %vm1567, %v1563, inf
  %1569 = vmin.xlane.f32.xlu0 %v1568
  %v1570 = vpop.xlane.xlu0 %1569
  %v1571 = vcvt.f32.s32 %v1570
  %v1572 = vcvt.f32.s32 %v1566
  %v1573 = vshll.u32 %v1572, 16
  %v1574 = vadd.s32 %v1573, %v1571
  %v1575 = vsel %vm927, %v1419, 2147483647
  %v1576 = vand.u32 %v1575, 65535
  %v1577 = vshra.s32 %v1575, 16
  %v1578 = vcvt.s32.f32 %v1576
  %v1579 = vcvt.s32.f32 %v1577
  %1580 = vmin.xlane.f32.xlu0 %v1579
  %v1581 = vpop.xlane.xlu0 %1580
  %vm1582 = vcmp.eq.f32.partialorder %v1579, %v1581
  %v1583 = vsel %vm1582, %v1578, inf
  %1584 = vmin.xlane.f32.xlu0 %v1583
  %v1585 = vpop.xlane.xlu0 %1584
  %v1586 = vcvt.f32.s32 %v1585
  %v1587 = vcvt.f32.s32 %v1581
  %v1588 = vshll.u32 %v1587, 16
  %v1589 = vadd.s32 %v1588, %v1586
  %v1590 = vsel %vm927, %v1420, 2147483647
  %v1591 = vand.u32 %v1590, 65535
  %v1592 = vshra.s32 %v1590, 16
  %v1593 = vcvt.s32.f32 %v1591
  %v1594 = vcvt.s32.f32 %v1592
  %1595 = vmin.xlane.f32.xlu0 %v1594
  %v1596 = vpop.xlane.xlu0 %1595
  %vm1597 = vcmp.eq.f32.partialorder %v1594, %v1596
  %v1598 = vsel %vm1597, %v1593, inf
  %1599 = vmin.xlane.f32.xlu0 %v1598
  %v1600 = vpop.xlane.xlu0 %1599
  %v1601 = vcvt.f32.s32 %v1600
  %v1602 = vcvt.f32.s32 %v1596
  %v1603 = vshll.u32 %v1602, 16
  %v1604 = vadd.s32 %v1603, %v1601
  %v1605 = vsel %vm927, %v1421, 2147483647
  %v1606 = vand.u32 %v1605, 65535
  %v1607 = vshra.s32 %v1605, 16
  %v1608 = vcvt.s32.f32 %v1606
  %v1609 = vcvt.s32.f32 %v1607
  %1610 = vmin.xlane.f32.xlu0 %v1609
  %v1611 = vpop.xlane.xlu0 %1610
  %vm1612 = vcmp.eq.f32.partialorder %v1609, %v1611
  %v1613 = vsel %vm1612, %v1608, inf
  %1614 = vmin.xlane.f32.xlu0 %v1613
  %v1615 = vpop.xlane.xlu0 %1614
  %v1616 = vcvt.f32.s32 %v1615
  %v1617 = vcvt.f32.s32 %v1611
  %v1618 = vshll.u32 %v1617, 16
  %v1619 = vadd.s32 %v1618, %v1616
  %v1620 = vsel %vm927, %v1422, 2147483647
  %v1621 = vand.u32 %v1620, 65535
  %v1622 = vshra.s32 %v1620, 16
  %v1623 = vcvt.s32.f32 %v1621
  %v1624 = vcvt.s32.f32 %v1622
  %1625 = vmin.xlane.f32.xlu0 %v1624
  %v1626 = vpop.xlane.xlu0 %1625
  %vm1627 = vcmp.eq.f32.partialorder %v1624, %v1626
  %v1628 = vsel %vm1627, %v1623, inf
  %1629 = vmin.xlane.f32.xlu0 %v1628
  %v1630 = vpop.xlane.xlu0 %1629
  %v1631 = vcvt.f32.s32 %v1630
  %v1632 = vcvt.f32.s32 %v1626
  %v1633 = vshll.u32 %v1632, 16
  %v1634 = vadd.s32 %v1633, %v1631
  %v1635 = vsel %vm927, %v1423, 2147483647
  %v1636 = vand.u32 %v1635, 65535
  %v1637 = vshra.s32 %v1635, 16
  %v1638 = vcvt.s32.f32 %v1636
  %v1639 = vcvt.s32.f32 %v1637
  %1640 = vmin.xlane.f32.xlu0 %v1639
  %v1641 = vpop.xlane.xlu0 %1640
  %vm1642 = vcmp.eq.f32.partialorder %v1639, %v1641
  %v1643 = vsel %vm1642, %v1638, inf
  %1644 = vmin.xlane.f32.xlu0 %v1643
  %v1645 = vpop.xlane.xlu0 %1644
  %v1646 = vcvt.f32.s32 %v1645
  %v1647 = vcvt.f32.s32 %v1641
  %v1648 = vshll.u32 %v1647, 16
  %v1649 = vadd.s32 %v1648, %v1646
  %v1650 = vsel %vm927, %v1424, 2147483647
  %v1651 = vand.u32 %v1650, 65535
  %v1652 = vshra.s32 %v1650, 16
  %v1653 = vcvt.s32.f32 %v1651
  %v1654 = vcvt.s32.f32 %v1652
  %1655 = vmin.xlane.f32.xlu0 %v1654
  %v1656 = vpop.xlane.xlu0 %1655
  %vm1657 = vcmp.eq.f32.partialorder %v1654, %v1656
  %v1658 = vsel %vm1657, %v1653, inf
  %1659 = vmin.xlane.f32.xlu0 %v1658
  %v1660 = vpop.xlane.xlu0 %1659
  %v1661 = vcvt.f32.s32 %v1660
  %v1662 = vcvt.f32.s32 %v1656
  %v1663 = vshll.u32 %v1662, 16
  %v1664 = vadd.s32 %v1663, %v1661
  %vm1665 = vcmask 15368
  %1666 = vst.msk [vmem:[%s4] sm:$0xff] %vm1665, %v1439
  %1667 = vst.msk [vmem:[%s4 + $0x8] sm:$0xff] %vm1665, %v1454
  %1668 = vst.msk [vmem:[%s4 + $0x10] sm:$0xff] %vm1665, %v1469
  %1669 = vst.msk [vmem:[%s4 + $0x18] sm:$0xff] %vm1665, %v1484
  %1670 = vst.msk [vmem:[%s4 + $0x20] sm:$0xff] %vm1665, %v1499
  %1671 = vst.msk [vmem:[%s4 + $0x28] sm:$0xff] %vm1665, %v1514
  %1672 = vst.msk [vmem:[%s4 + $0x30] sm:$0xff] %vm1665, %v1529
  %1673 = vst.msk [vmem:[%s4 + $0x38] sm:$0xff] %vm1665, %v1544
  %1674 = vst.msk [vmem:[%s4 + $0x40] sm:$0xff] %vm1665, %v1559
  %1675 = vst.msk [vmem:[%s4 + $0x48] sm:$0xff] %vm1665, %v1574
  %1676 = vst.msk [vmem:[%s4 + $0x50] sm:$0xff] %vm1665, %v1589
  %1677 = vst.msk [vmem:[%s4 + $0x58] sm:$0xff] %vm1665, %v1604
  %1678 = vst.msk [vmem:[%s4 + $0x60] sm:$0xff] %vm1665, %v1619
  %1679 = vst.msk [vmem:[%s4 + $0x68] sm:$0xff] %vm1665, %v1634
  %1680 = vst.msk [vmem:[%s4 + $0x70] sm:$0xff] %vm1665, %v1649
  %1681 = vst.msk [vmem:[%s4 + $0x78] sm:$0xff] %vm1665, %v1664
  %1682 = vrot.lane.b32.xlu0 %v876, 112
  %v1683 = vpop.permute.xlu0 %1682
  %1684 = vrot.lane.b32.xlu0 %v877, 112
  %v1685 = vpop.permute.xlu0 %1684
  %1686 = vrot.lane.b32.xlu0 %v878, 112
  %v1687 = vpop.permute.xlu0 %1686
  %1688 = vrot.lane.b32.xlu0 %v879, 112
  %v1689 = vpop.permute.xlu0 %1688
  %1690 = vrot.lane.b32.xlu0 %v880, 112
  %v1691 = vpop.permute.xlu0 %1690
  %1692 = vrot.lane.b32.xlu0 %v881, 112
  %v1693 = vpop.permute.xlu0 %1692
  %1694 = vrot.lane.b32.xlu0 %v882, 112
  %v1695 = vpop.permute.xlu0 %1694
  %1696 = vrot.lane.b32.xlu0 %v883, 112
  %v1697 = vpop.permute.xlu0 %1696
  %1698 = vrot.lane.b32.xlu0 %v884, 112
  %v1699 = vpop.permute.xlu0 %1698
  %1700 = vrot.lane.b32.xlu0 %v885, 112
  %v1701 = vpop.permute.xlu0 %1700
  %1702 = vrot.lane.b32.xlu0 %v886, 112
  %v1703 = vpop.permute.xlu0 %1702
  %1704 = vrot.lane.b32.xlu0 %v887, 112
  %v1705 = vpop.permute.xlu0 %1704
  %1706 = vrot.lane.b32.xlu0 %v888, 112
  %v1707 = vpop.permute.xlu0 %1706
  %1708 = vrot.lane.b32.xlu0 %v889, 112
  %v1709 = vpop.permute.xlu0 %1708
  %1710 = vrot.lane.b32.xlu0 %v890, 112
  %v1711 = vpop.permute.xlu0 %1710
  %1712 = vrot.lane.b32.xlu0 %v891, 112
  %v1713 = vpop.permute.xlu0 %1712
  %v1730 = vsel %vm910, %v1683, -inf
  %v1731 = vsel %vm910, %v1685, -inf
  %v1732 = vsel %vm910, %v1687, -inf
  %v1733 = vsel %vm910, %v1689, -inf
  %v1734 = vsel %vm910, %v1691, -inf
  %v1735 = vsel %vm910, %v1693, -inf
  %v1736 = vsel %vm910, %v1695, -inf
  %v1737 = vsel %vm910, %v1697, -inf
  %v1738 = vsel %vm910, %v1699, -inf
  %v1739 = vsel %vm910, %v1701, -inf
  %v1740 = vsel %vm910, %v1703, -inf
  %v1741 = vsel %vm910, %v1705, -inf
  %v1742 = vsel %vm910, %v1707, -inf
  %v1743 = vsel %vm910, %v1709, -inf
  %v1744 = vsel %vm910, %v1711, -inf
  %v1745 = vsel %vm910, %v1713, -inf
  %v1746 = vsel %vm927, %v1730, -inf
  %1747 = vmax.xlane.f32.xlu0 %v1746
  %v1748 = vpop.xlane.xlu0 %1747
  %v1749 = vsel %vm927, %v1731, -inf
  %1750 = vmax.xlane.f32.xlu0 %v1749
  %v1751 = vpop.xlane.xlu0 %1750
  %v1752 = vsel %vm927, %v1732, -inf
  %1753 = vmax.xlane.f32.xlu0 %v1752
  %v1754 = vpop.xlane.xlu0 %1753
  %v1755 = vsel %vm927, %v1733, -inf
  %1756 = vmax.xlane.f32.xlu0 %v1755
  %v1757 = vpop.xlane.xlu0 %1756
  %v1758 = vsel %vm927, %v1734, -inf
  %1759 = vmax.xlane.f32.xlu0 %v1758
  %v1760 = vpop.xlane.xlu0 %1759
  %v1761 = vsel %vm927, %v1735, -inf
  %1762 = vmax.xlane.f32.xlu0 %v1761
  %v1763 = vpop.xlane.xlu0 %1762
  %v1764 = vsel %vm927, %v1736, -inf
  %1765 = vmax.xlane.f32.xlu0 %v1764
  %v1766 = vpop.xlane.xlu0 %1765
  %v1767 = vsel %vm927, %v1737, -inf
  %1768 = vmax.xlane.f32.xlu0 %v1767
  %v1769 = vpop.xlane.xlu0 %1768
  %v1770 = vsel %vm927, %v1738, -inf
  %1771 = vmax.xlane.f32.xlu0 %v1770
  %v1772 = vpop.xlane.xlu0 %1771
  %v1773 = vsel %vm927, %v1739, -inf
  %1774 = vmax.xlane.f32.xlu0 %v1773
  %v1775 = vpop.xlane.xlu0 %1774
  %v1776 = vsel %vm927, %v1740, -inf
  %1777 = vmax.xlane.f32.xlu0 %v1776
  %v1778 = vpop.xlane.xlu0 %1777
  %v1779 = vsel %vm927, %v1741, -inf
  %1780 = vmax.xlane.f32.xlu0 %v1779
  %v1781 = vpop.xlane.xlu0 %1780
  %v1782 = vsel %vm927, %v1742, -inf
  %1783 = vmax.xlane.f32.xlu0 %v1782
  %v1784 = vpop.xlane.xlu0 %1783
  %v1785 = vsel %vm927, %v1743, -inf
  %1786 = vmax.xlane.f32.xlu0 %v1785
  %v1787 = vpop.xlane.xlu0 %1786
  %v1788 = vsel %vm927, %v1744, -inf
  %1789 = vmax.xlane.f32.xlu0 %v1788
  %v1790 = vpop.xlane.xlu0 %1789
  %v1791 = vsel %vm927, %v1745, -inf
  %1792 = vmax.xlane.f32.xlu0 %v1791
  %v1793 = vpop.xlane.xlu0 %1792
  %vm1794 = vcmp.eq.f32.partialorder %v1730, %v1748
  %vm1795 = vcmp.eq.f32.partialorder %v1731, %v1751
  %vm1796 = vcmp.eq.f32.partialorder %v1732, %v1754
  %vm1797 = vcmp.eq.f32.partialorder %v1733, %v1757
  %vm1798 = vcmp.eq.f32.partialorder %v1734, %v1760
  %vm1799 = vcmp.eq.f32.partialorder %v1735, %v1763
  %vm1800 = vcmp.eq.f32.partialorder %v1736, %v1766
  %vm1801 = vcmp.eq.f32.partialorder %v1737, %v1769
  %vm1802 = vcmp.eq.f32.partialorder %v1738, %v1772
  %vm1803 = vcmp.eq.f32.partialorder %v1739, %v1775
  %vm1804 = vcmp.eq.f32.partialorder %v1740, %v1778
  %vm1805 = vcmp.eq.f32.partialorder %v1741, %v1781
  %vm1806 = vcmp.eq.f32.partialorder %v1742, %v1784
  %vm1807 = vcmp.eq.f32.partialorder %v1743, %v1787
  %vm1808 = vcmp.eq.f32.partialorder %v1744, %v1790
  %vm1809 = vcmp.eq.f32.partialorder %v1745, %v1793
  %v1810 = vsel %vm1794, %v909, 8
  %v1811 = vsel %vm1795, %v909, 8
  %v1812 = vsel %vm1796, %v909, 8
  %v1813 = vsel %vm1797, %v909, 8
  %v1814 = vsel %vm1798, %v909, 8
  %v1815 = vsel %vm1799, %v909, 8
  %v1816 = vsel %vm1800, %v909, 8
  %v1817 = vsel %vm1801, %v909, 8
  %v1818 = vsel %vm1802, %v909, 8
  %v1819 = vsel %vm1803, %v909, 8
  %v1820 = vsel %vm1804, %v909, 8
  %v1821 = vsel %vm1805, %v909, 8
  %v1822 = vsel %vm1806, %v909, 8
  %v1823 = vsel %vm1807, %v909, 8
  %v1824 = vsel %vm1808, %v909, 8
  %v1825 = vsel %vm1809, %v909, 8
  %v1826 = vsel %vm927, %v1810, 2147483647
  %v1827 = vand.u32 %v1826, 65535
  %v1828 = vshra.s32 %v1826, 16
  %v1829 = vcvt.s32.f32 %v1827
  %v1830 = vcvt.s32.f32 %v1828
  %1831 = vmin.xlane.f32.xlu0 %v1830
  %v1832 = vpop.xlane.xlu0 %1831
  %vm1833 = vcmp.eq.f32.partialorder %v1830, %v1832
  %v1834 = vsel %vm1833, %v1829, inf
  %1835 = vmin.xlane.f32.xlu0 %v1834
  %v1836 = vpop.xlane.xlu0 %1835
  %v1837 = vcvt.f32.s32 %v1836
  %v1838 = vcvt.f32.s32 %v1832
  %v1839 = vshll.u32 %v1838, 16
  %v1840 = vadd.s32 %v1839, %v1837
  %v1841 = vsel %vm927, %v1811, 2147483647
  %v1842 = vand.u32 %v1841, 65535
  %v1843 = vshra.s32 %v1841, 16
  %v1844 = vcvt.s32.f32 %v1842
  %v1845 = vcvt.s32.f32 %v1843
  %1846 = vmin.xlane.f32.xlu0 %v1845
  %v1847 = vpop.xlane.xlu0 %1846
  %vm1848 = vcmp.eq.f32.partialorder %v1845, %v1847
  %v1849 = vsel %vm1848, %v1844, inf
  %1850 = vmin.xlane.f32.xlu0 %v1849
  %v1851 = vpop.xlane.xlu0 %1850
  %v1852 = vcvt.f32.s32 %v1851
  %v1853 = vcvt.f32.s32 %v1847
  %v1854 = vshll.u32 %v1853, 16
  %v1855 = vadd.s32 %v1854, %v1852
  %v1856 = vsel %vm927, %v1812, 2147483647
  %v1857 = vand.u32 %v1856, 65535
  %v1858 = vshra.s32 %v1856, 16
  %v1859 = vcvt.s32.f32 %v1857
  %v1860 = vcvt.s32.f32 %v1858
  %1861 = vmin.xlane.f32.xlu0 %v1860
  %v1862 = vpop.xlane.xlu0 %1861
  %vm1863 = vcmp.eq.f32.partialorder %v1860, %v1862
  %v1864 = vsel %vm1863, %v1859, inf
  %1865 = vmin.xlane.f32.xlu0 %v1864
  %v1866 = vpop.xlane.xlu0 %1865
  %v1867 = vcvt.f32.s32 %v1866
  %v1868 = vcvt.f32.s32 %v1862
  %v1869 = vshll.u32 %v1868, 16
  %v1870 = vadd.s32 %v1869, %v1867
  %v1871 = vsel %vm927, %v1813, 2147483647
  %v1872 = vand.u32 %v1871, 65535
  %v1873 = vshra.s32 %v1871, 16
  %v1874 = vcvt.s32.f32 %v1872
  %v1875 = vcvt.s32.f32 %v1873
  %1876 = vmin.xlane.f32.xlu0 %v1875
  %v1877 = vpop.xlane.xlu0 %1876
  %vm1878 = vcmp.eq.f32.partialorder %v1875, %v1877
  %v1879 = vsel %vm1878, %v1874, inf
  %1880 = vmin.xlane.f32.xlu0 %v1879
  %v1881 = vpop.xlane.xlu0 %1880
  %v1882 = vcvt.f32.s32 %v1881
  %v1883 = vcvt.f32.s32 %v1877
  %v1884 = vshll.u32 %v1883, 16
  %v1885 = vadd.s32 %v1884, %v1882
  %v1886 = vsel %vm927, %v1814, 2147483647
  %v1887 = vand.u32 %v1886, 65535
  %v1888 = vshra.s32 %v1886, 16
  %v1889 = vcvt.s32.f32 %v1887
  %v1890 = vcvt.s32.f32 %v1888
  %1891 = vmin.xlane.f32.xlu0 %v1890
  %v1892 = vpop.xlane.xlu0 %1891
  %vm1893 = vcmp.eq.f32.partialorder %v1890, %v1892
  %v1894 = vsel %vm1893, %v1889, inf
  %1895 = vmin.xlane.f32.xlu0 %v1894
  %v1896 = vpop.xlane.xlu0 %1895
  %v1897 = vcvt.f32.s32 %v1896
  %v1898 = vcvt.f32.s32 %v1892
  %v1899 = vshll.u32 %v1898, 16
  %v1900 = vadd.s32 %v1899, %v1897
  %v1901 = vsel %vm927, %v1815, 2147483647
  %v1902 = vand.u32 %v1901, 65535
  %v1903 = vshra.s32 %v1901, 16
  %v1904 = vcvt.s32.f32 %v1902
  %v1905 = vcvt.s32.f32 %v1903
  %1906 = vmin.xlane.f32.xlu0 %v1905
  %v1907 = vpop.xlane.xlu0 %1906
  %vm1908 = vcmp.eq.f32.partialorder %v1905, %v1907
  %v1909 = vsel %vm1908, %v1904, inf
  %1910 = vmin.xlane.f32.xlu0 %v1909
  %v1911 = vpop.xlane.xlu0 %1910
  %v1912 = vcvt.f32.s32 %v1911
  %v1913 = vcvt.f32.s32 %v1907
  %v1914 = vshll.u32 %v1913, 16
  %v1915 = vadd.s32 %v1914, %v1912
  %v1916 = vsel %vm927, %v1816, 2147483647
  %v1917 = vand.u32 %v1916, 65535
  %v1918 = vshra.s32 %v1916, 16
  %v1919 = vcvt.s32.f32 %v1917
  %v1920 = vcvt.s32.f32 %v1918
  %1921 = vmin.xlane.f32.xlu0 %v1920
  %v1922 = vpop.xlane.xlu0 %1921
  %vm1923 = vcmp.eq.f32.partialorder %v1920, %v1922
  %v1924 = vsel %vm1923, %v1919, inf
  %1925 = vmin.xlane.f32.xlu0 %v1924
  %v1926 = vpop.xlane.xlu0 %1925
  %v1927 = vcvt.f32.s32 %v1926
  %v1928 = vcvt.f32.s32 %v1922
  %v1929 = vshll.u32 %v1928, 16
  %v1930 = vadd.s32 %v1929, %v1927
  %v1931 = vsel %vm927, %v1817, 2147483647
  %v1932 = vand.u32 %v1931, 65535
  %v1933 = vshra.s32 %v1931, 16
  %v1934 = vcvt.s32.f32 %v1932
  %v1935 = vcvt.s32.f32 %v1933
  %1936 = vmin.xlane.f32.xlu0 %v1935
  %v1937 = vpop.xlane.xlu0 %1936
  %vm1938 = vcmp.eq.f32.partialorder %v1935, %v1937
  %v1939 = vsel %vm1938, %v1934, inf
  %1940 = vmin.xlane.f32.xlu0 %v1939
  %v1941 = vpop.xlane.xlu0 %1940
  %v1942 = vcvt.f32.s32 %v1941
  %v1943 = vcvt.f32.s32 %v1937
  %v1944 = vshll.u32 %v1943, 16
  %v1945 = vadd.s32 %v1944, %v1942
  %v1946 = vsel %vm927, %v1818, 2147483647
  %v1947 = vand.u32 %v1946, 65535
  %v1948 = vshra.s32 %v1946, 16
  %v1949 = vcvt.s32.f32 %v1947
  %v1950 = vcvt.s32.f32 %v1948
  %1951 = vmin.xlane.f32.xlu0 %v1950
  %v1952 = vpop.xlane.xlu0 %1951
  %vm1953 = vcmp.eq.f32.partialorder %v1950, %v1952
  %v1954 = vsel %vm1953, %v1949, inf
  %1955 = vmin.xlane.f32.xlu0 %v1954
  %v1956 = vpop.xlane.xlu0 %1955
  %v1957 = vcvt.f32.s32 %v1956
  %v1958 = vcvt.f32.s32 %v1952
  %v1959 = vshll.u32 %v1958, 16
  %v1960 = vadd.s32 %v1959, %v1957
  %v1961 = vsel %vm927, %v1819, 2147483647
  %v1962 = vand.u32 %v1961, 65535
  %v1963 = vshra.s32 %v1961, 16
  %v1964 = vcvt.s32.f32 %v1962
  %v1965 = vcvt.s32.f32 %v1963
  %1966 = vmin.xlane.f32.xlu0 %v1965
  %v1967 = vpop.xlane.xlu0 %1966
  %vm1968 = vcmp.eq.f32.partialorder %v1965, %v1967
  %v1969 = vsel %vm1968, %v1964, inf
  %1970 = vmin.xlane.f32.xlu0 %v1969
  %v1971 = vpop.xlane.xlu0 %1970
  %v1972 = vcvt.f32.s32 %v1971
  %v1973 = vcvt.f32.s32 %v1967
  %v1974 = vshll.u32 %v1973, 16
  %v1975 = vadd.s32 %v1974, %v1972
  %v1976 = vsel %vm927, %v1820, 2147483647
  %v1977 = vand.u32 %v1976, 65535
  %v1978 = vshra.s32 %v1976, 16
  %v1979 = vcvt.s32.f32 %v1977
  %v1980 = vcvt.s32.f32 %v1978
  %1981 = vmin.xlane.f32.xlu0 %v1980
  %v1982 = vpop.xlane.xlu0 %1981
  %vm1983 = vcmp.eq.f32.partialorder %v1980, %v1982
  %v1984 = vsel %vm1983, %v1979, inf
  %1985 = vmin.xlane.f32.xlu0 %v1984
  %v1986 = vpop.xlane.xlu0 %1985
  %v1987 = vcvt.f32.s32 %v1986
  %v1988 = vcvt.f32.s32 %v1982
  %v1989 = vshll.u32 %v1988, 16
  %v1990 = vadd.s32 %v1989, %v1987
  %v1991 = vsel %vm927, %v1821, 2147483647
  %v1992 = vand.u32 %v1991, 65535
  %v1993 = vshra.s32 %v1991, 16
  %v1994 = vcvt.s32.f32 %v1992
  %v1995 = vcvt.s32.f32 %v1993
  %1996 = vmin.xlane.f32.xlu0 %v1995
  %v1997 = vpop.xlane.xlu0 %1996
  %vm1998 = vcmp.eq.f32.partialorder %v1995, %v1997
  %v1999 = vsel %vm1998, %v1994, inf
  %2000 = vmin.xlane.f32.xlu0 %v1999
  %v2001 = vpop.xlane.xlu0 %2000
  %v2002 = vcvt.f32.s32 %v2001
  %v2003 = vcvt.f32.s32 %v1997
  %v2004 = vshll.u32 %v2003, 16
  %v2005 = vadd.s32 %v2004, %v2002
  %v2006 = vsel %vm927, %v1822, 2147483647
  %v2007 = vand.u32 %v2006, 65535
  %v2008 = vshra.s32 %v2006, 16
  %v2009 = vcvt.s32.f32 %v2007
  %v2010 = vcvt.s32.f32 %v2008
  %2011 = vmin.xlane.f32.xlu0 %v2010
  %v2012 = vpop.xlane.xlu0 %2011
  %vm2013 = vcmp.eq.f32.partialorder %v2010, %v2012
  %v2014 = vsel %vm2013, %v2009, inf
  %2015 = vmin.xlane.f32.xlu0 %v2014
  %v2016 = vpop.xlane.xlu0 %2015
  %v2017 = vcvt.f32.s32 %v2016
  %v2018 = vcvt.f32.s32 %v2012
  %v2019 = vshll.u32 %v2018, 16
  %v2020 = vadd.s32 %v2019, %v2017
  %v2021 = vsel %vm927, %v1823, 2147483647
  %v2022 = vand.u32 %v2021, 65535
  %v2023 = vshra.s32 %v2021, 16
  %v2024 = vcvt.s32.f32 %v2022
  %v2025 = vcvt.s32.f32 %v2023
  %2026 = vmin.xlane.f32.xlu0 %v2025
  %v2027 = vpop.xlane.xlu0 %2026
  %vm2028 = vcmp.eq.f32.partialorder %v2025, %v2027
  %v2029 = vsel %vm2028, %v2024, inf
  %2030 = vmin.xlane.f32.xlu0 %v2029
  %v2031 = vpop.xlane.xlu0 %2030
  %v2032 = vcvt.f32.s32 %v2031
  %v2033 = vcvt.f32.s32 %v2027
  %v2034 = vshll.u32 %v2033, 16
  %v2035 = vadd.s32 %v2034, %v2032
  %v2036 = vsel %vm927, %v1824, 2147483647
  %v2037 = vand.u32 %v2036, 65535
  %v2038 = vshra.s32 %v2036, 16
  %v2039 = vcvt.s32.f32 %v2037
  %v2040 = vcvt.s32.f32 %v2038
  %2041 = vmin.xlane.f32.xlu0 %v2040
  %v2042 = vpop.xlane.xlu0 %2041
  %vm2043 = vcmp.eq.f32.partialorder %v2040, %v2042
  %v2044 = vsel %vm2043, %v2039, inf
  %2045 = vmin.xlane.f32.xlu0 %v2044
  %v2046 = vpop.xlane.xlu0 %2045
  %v2047 = vcvt.f32.s32 %v2046
  %v2048 = vcvt.f32.s32 %v2042
  %v2049 = vshll.u32 %v2048, 16
  %v2050 = vadd.s32 %v2049, %v2047
  %v2051 = vsel %vm927, %v1825, 2147483647
  %v2052 = vand.u32 %v2051, 65535
  %v2053 = vshra.s32 %v2051, 16
  %v2054 = vcvt.s32.f32 %v2052
  %v2055 = vcvt.s32.f32 %v2053
  %2056 = vmin.xlane.f32.xlu0 %v2055
  %v2057 = vpop.xlane.xlu0 %2056
  %vm2058 = vcmp.eq.f32.partialorder %v2055, %v2057
  %v2059 = vsel %vm2058, %v2054, inf
  %2060 = vmin.xlane.f32.xlu0 %v2059
  %v2061 = vpop.xlane.xlu0 %2060
  %v2062 = vcvt.f32.s32 %v2061
  %v2063 = vcvt.f32.s32 %v2057
  %v2064 = vshll.u32 %v2063, 16
  %v2065 = vadd.s32 %v2064, %v2062
  %vm2066 = vcmask 23568
  %2067 = vst.msk [vmem:[%s4] sm:$0xff] %vm2066, %v1840
  %2068 = vst.msk [vmem:[%s4 + $0x8] sm:$0xff] %vm2066, %v1855
  %2069 = vst.msk [vmem:[%s4 + $0x10] sm:$0xff] %vm2066, %v1870
  %2070 = vst.msk [vmem:[%s4 + $0x18] sm:$0xff] %vm2066, %v1885
  %2071 = vst.msk [vmem:[%s4 + $0x20] sm:$0xff] %vm2066, %v1900
  %2072 = vst.msk [vmem:[%s4 + $0x28] sm:$0xff] %vm2066, %v1915
  %2073 = vst.msk [vmem:[%s4 + $0x30] sm:$0xff] %vm2066, %v1930
  %2074 = vst.msk [vmem:[%s4 + $0x38] sm:$0xff] %vm2066, %v1945
  %2075 = vst.msk [vmem:[%s4 + $0x40] sm:$0xff] %vm2066, %v1960
  %2076 = vst.msk [vmem:[%s4 + $0x48] sm:$0xff] %vm2066, %v1975
  %2077 = vst.msk [vmem:[%s4 + $0x50] sm:$0xff] %vm2066, %v1990
  %2078 = vst.msk [vmem:[%s4 + $0x58] sm:$0xff] %vm2066, %v2005
  %2079 = vst.msk [vmem:[%s4 + $0x60] sm:$0xff] %vm2066, %v2020
  %2080 = vst.msk [vmem:[%s4 + $0x68] sm:$0xff] %vm2066, %v2035
  %2081 = vst.msk [vmem:[%s4 + $0x70] sm:$0xff] %vm2066, %v2050
  %2082 = vst.msk [vmem:[%s4 + $0x78] sm:$0xff] %vm2066, %v2065
  %2083 = vrot.lane.b32.xlu0 %v876, 104
  %v2084 = vpop.permute.xlu0 %2083
  %2085 = vrot.lane.b32.xlu0 %v877, 104
  %v2086 = vpop.permute.xlu0 %2085
  %2087 = vrot.lane.b32.xlu0 %v878, 104
  %v2088 = vpop.permute.xlu0 %2087
  %2089 = vrot.lane.b32.xlu0 %v879, 104
  %v2090 = vpop.permute.xlu0 %2089
  %2091 = vrot.lane.b32.xlu0 %v880, 104
  %v2092 = vpop.permute.xlu0 %2091
  %2093 = vrot.lane.b32.xlu0 %v881, 104
  %v2094 = vpop.permute.xlu0 %2093
  %2095 = vrot.lane.b32.xlu0 %v882, 104
  %v2096 = vpop.permute.xlu0 %2095
  %2097 = vrot.lane.b32.xlu0 %v883, 104
  %v2098 = vpop.permute.xlu0 %2097
  %2099 = vrot.lane.b32.xlu0 %v884, 104
  %v2100 = vpop.permute.xlu0 %2099
  %2101 = vrot.lane.b32.xlu0 %v885, 104
  %v2102 = vpop.permute.xlu0 %2101
  %2103 = vrot.lane.b32.xlu0 %v886, 104
  %v2104 = vpop.permute.xlu0 %2103
  %2105 = vrot.lane.b32.xlu0 %v887, 104
  %v2106 = vpop.permute.xlu0 %2105
  %2107 = vrot.lane.b32.xlu0 %v888, 104
  %v2108 = vpop.permute.xlu0 %2107
  %2109 = vrot.lane.b32.xlu0 %v889, 104
  %v2110 = vpop.permute.xlu0 %2109
  %2111 = vrot.lane.b32.xlu0 %v890, 104
  %v2112 = vpop.permute.xlu0 %2111
  %2113 = vrot.lane.b32.xlu0 %v891, 104
  %v2114 = vpop.permute.xlu0 %2113
  %v2131 = vsel %vm910, %v2084, -inf
  %v2132 = vsel %vm910, %v2086, -inf
  %v2133 = vsel %vm910, %v2088, -inf
  %v2134 = vsel %vm910, %v2090, -inf
  %v2135 = vsel %vm910, %v2092, -inf
  %v2136 = vsel %vm910, %v2094, -inf
  %v2137 = vsel %vm910, %v2096, -inf
  %v2138 = vsel %vm910, %v2098, -inf
  %v2139 = vsel %vm910, %v2100, -inf
  %v2140 = vsel %vm910, %v2102, -inf
  %v2141 = vsel %vm910, %v2104, -inf
  %v2142 = vsel %vm910, %v2106, -inf
  %v2143 = vsel %vm910, %v2108, -inf
  %v2144 = vsel %vm910, %v2110, -inf
  %v2145 = vsel %vm910, %v2112, -inf
  %v2146 = vsel %vm910, %v2114, -inf
  %v2147 = vsel %vm927, %v2131, -inf
  %2148 = vmax.xlane.f32.xlu0 %v2147
  %v2149 = vpop.xlane.xlu0 %2148
  %v2150 = vsel %vm927, %v2132, -inf
  %2151 = vmax.xlane.f32.xlu0 %v2150
  %v2152 = vpop.xlane.xlu0 %2151
  %v2153 = vsel %vm927, %v2133, -inf
  %2154 = vmax.xlane.f32.xlu0 %v2153
  %v2155 = vpop.xlane.xlu0 %2154
  %v2156 = vsel %vm927, %v2134, -inf
  %2157 = vmax.xlane.f32.xlu0 %v2156
  %v2158 = vpop.xlane.xlu0 %2157
  %v2159 = vsel %vm927, %v2135, -inf
  %2160 = vmax.xlane.f32.xlu0 %v2159
  %v2161 = vpop.xlane.xlu0 %2160
  %v2162 = vsel %vm927, %v2136, -inf
  %2163 = vmax.xlane.f32.xlu0 %v2162
  %v2164 = vpop.xlane.xlu0 %2163
  %v2165 = vsel %vm927, %v2137, -inf
  %2166 = vmax.xlane.f32.xlu0 %v2165
  %v2167 = vpop.xlane.xlu0 %2166
  %v2168 = vsel %vm927, %v2138, -inf
  %2169 = vmax.xlane.f32.xlu0 %v2168
  %v2170 = vpop.xlane.xlu0 %2169
  %v2171 = vsel %vm927, %v2139, -inf
  %2172 = vmax.xlane.f32.xlu0 %v2171
  %v2173 = vpop.xlane.xlu0 %2172
  %v2174 = vsel %vm927, %v2140, -inf
  %2175 = vmax.xlane.f32.xlu0 %v2174
  %v2176 = vpop.xlane.xlu0 %2175
  %v2177 = vsel %vm927, %v2141, -inf
  %2178 = vmax.xlane.f32.xlu0 %v2177
  %v2179 = vpop.xlane.xlu0 %2178
  %v2180 = vsel %vm927, %v2142, -inf
  %2181 = vmax.xlane.f32.xlu0 %v2180
  %v2182 = vpop.xlane.xlu0 %2181
  %v2183 = vsel %vm927, %v2143, -inf
  %2184 = vmax.xlane.f32.xlu0 %v2183
  %v2185 = vpop.xlane.xlu0 %2184
  %v2186 = vsel %vm927, %v2144, -inf
  %2187 = vmax.xlane.f32.xlu0 %v2186
  %v2188 = vpop.xlane.xlu0 %2187
  %v2189 = vsel %vm927, %v2145, -inf
  %2190 = vmax.xlane.f32.xlu0 %v2189
  %v2191 = vpop.xlane.xlu0 %2190
  %v2192 = vsel %vm927, %v2146, -inf
  %2193 = vmax.xlane.f32.xlu0 %v2192
  %v2194 = vpop.xlane.xlu0 %2193
  %vm2195 = vcmp.eq.f32.partialorder %v2131, %v2149
  %vm2196 = vcmp.eq.f32.partialorder %v2132, %v2152
  %vm2197 = vcmp.eq.f32.partialorder %v2133, %v2155
  %vm2198 = vcmp.eq.f32.partialorder %v2134, %v2158
  %vm2199 = vcmp.eq.f32.partialorder %v2135, %v2161
  %vm2200 = vcmp.eq.f32.partialorder %v2136, %v2164
  %vm2201 = vcmp.eq.f32.partialorder %v2137, %v2167
  %vm2202 = vcmp.eq.f32.partialorder %v2138, %v2170
  %vm2203 = vcmp.eq.f32.partialorder %v2139, %v2173
  %vm2204 = vcmp.eq.f32.partialorder %v2140, %v2176
  %vm2205 = vcmp.eq.f32.partialorder %v2141, %v2179
  %vm2206 = vcmp.eq.f32.partialorder %v2142, %v2182
  %vm2207 = vcmp.eq.f32.partialorder %v2143, %v2185
  %vm2208 = vcmp.eq.f32.partialorder %v2144, %v2188
  %vm2209 = vcmp.eq.f32.partialorder %v2145, %v2191
  %vm2210 = vcmp.eq.f32.partialorder %v2146, %v2194
  %v2211 = vsel %vm2195, %v909, 8
  %v2212 = vsel %vm2196, %v909, 8
  %v2213 = vsel %vm2197, %v909, 8
  %v2214 = vsel %vm2198, %v909, 8
  %v2215 = vsel %vm2199, %v909, 8
  %v2216 = vsel %vm2200, %v909, 8
  %v2217 = vsel %vm2201, %v909, 8
  %v2218 = vsel %vm2202, %v909, 8
  %v2219 = vsel %vm2203, %v909, 8
  %v2220 = vsel %vm2204, %v909, 8
  %v2221 = vsel %vm2205, %v909, 8
  %v2222 = vsel %vm2206, %v909, 8
  %v2223 = vsel %vm2207, %v909, 8
  %v2224 = vsel %vm2208, %v909, 8
  %v2225 = vsel %vm2209, %v909, 8
  %v2226 = vsel %vm2210, %v909, 8
  %v2227 = vsel %vm927, %v2211, 2147483647
  %v2228 = vand.u32 %v2227, 65535
  %v2229 = vshra.s32 %v2227, 16
  %v2230 = vcvt.s32.f32 %v2228
  %v2231 = vcvt.s32.f32 %v2229
  %2232 = vmin.xlane.f32.xlu0 %v2231
  %v2233 = vpop.xlane.xlu0 %2232
  %vm2234 = vcmp.eq.f32.partialorder %v2231, %v2233
  %v2235 = vsel %vm2234, %v2230, inf
  %2236 = vmin.xlane.f32.xlu0 %v2235
  %v2237 = vpop.xlane.xlu0 %2236
  %v2238 = vcvt.f32.s32 %v2237
  %v2239 = vcvt.f32.s32 %v2233
  %v2240 = vshll.u32 %v2239, 16
  %v2241 = vadd.s32 %v2240, %v2238
  %v2242 = vsel %vm927, %v2212, 2147483647
  %v2243 = vand.u32 %v2242, 65535
  %v2244 = vshra.s32 %v2242, 16
  %v2245 = vcvt.s32.f32 %v2243
  %v2246 = vcvt.s32.f32 %v2244
  %2247 = vmin.xlane.f32.xlu0 %v2246
  %v2248 = vpop.xlane.xlu0 %2247
  %vm2249 = vcmp.eq.f32.partialorder %v2246, %v2248
  %v2250 = vsel %vm2249, %v2245, inf
  %2251 = vmin.xlane.f32.xlu0 %v2250
  %v2252 = vpop.xlane.xlu0 %2251
  %v2253 = vcvt.f32.s32 %v2252
  %v2254 = vcvt.f32.s32 %v2248
  %v2255 = vshll.u32 %v2254, 16
  %v2256 = vadd.s32 %v2255, %v2253
  %v2257 = vsel %vm927, %v2213, 2147483647
  %v2258 = vand.u32 %v2257, 65535
  %v2259 = vshra.s32 %v2257, 16
  %v2260 = vcvt.s32.f32 %v2258
  %v2261 = vcvt.s32.f32 %v2259
  %2262 = vmin.xlane.f32.xlu0 %v2261
  %v2263 = vpop.xlane.xlu0 %2262
  %vm2264 = vcmp.eq.f32.partialorder %v2261, %v2263
  %v2265 = vsel %vm2264, %v2260, inf
  %2266 = vmin.xlane.f32.xlu0 %v2265
  %v2267 = vpop.xlane.xlu0 %2266
  %v2268 = vcvt.f32.s32 %v2267
  %v2269 = vcvt.f32.s32 %v2263
  %v2270 = vshll.u32 %v2269, 16
  %v2271 = vadd.s32 %v2270, %v2268
  %v2272 = vsel %vm927, %v2214, 2147483647
  %v2273 = vand.u32 %v2272, 65535
  %v2274 = vshra.s32 %v2272, 16
  %v2275 = vcvt.s32.f32 %v2273
  %v2276 = vcvt.s32.f32 %v2274
  %2277 = vmin.xlane.f32.xlu0 %v2276
  %v2278 = vpop.xlane.xlu0 %2277
  %vm2279 = vcmp.eq.f32.partialorder %v2276, %v2278
  %v2280 = vsel %vm2279, %v2275, inf
  %2281 = vmin.xlane.f32.xlu0 %v2280
  %v2282 = vpop.xlane.xlu0 %2281
  %v2283 = vcvt.f32.s32 %v2282
  %v2284 = vcvt.f32.s32 %v2278
  %v2285 = vshll.u32 %v2284, 16
  %v2286 = vadd.s32 %v2285, %v2283
  %v2287 = vsel %vm927, %v2215, 2147483647
  %v2288 = vand.u32 %v2287, 65535
  %v2289 = vshra.s32 %v2287, 16
  %v2290 = vcvt.s32.f32 %v2288
  %v2291 = vcvt.s32.f32 %v2289
  %2292 = vmin.xlane.f32.xlu0 %v2291
  %v2293 = vpop.xlane.xlu0 %2292
  %vm2294 = vcmp.eq.f32.partialorder %v2291, %v2293
  %v2295 = vsel %vm2294, %v2290, inf
  %2296 = vmin.xlane.f32.xlu0 %v2295
  %v2297 = vpop.xlane.xlu0 %2296
  %v2298 = vcvt.f32.s32 %v2297
  %v2299 = vcvt.f32.s32 %v2293
  %v2300 = vshll.u32 %v2299, 16
  %v2301 = vadd.s32 %v2300, %v2298
  %v2302 = vsel %vm927, %v2216, 2147483647
  %v2303 = vand.u32 %v2302, 65535
  %v2304 = vshra.s32 %v2302, 16
  %v2305 = vcvt.s32.f32 %v2303
  %v2306 = vcvt.s32.f32 %v2304
  %2307 = vmin.xlane.f32.xlu0 %v2306
  %v2308 = vpop.xlane.xlu0 %2307
  %vm2309 = vcmp.eq.f32.partialorder %v2306, %v2308
  %v2310 = vsel %vm2309, %v2305, inf
  %2311 = vmin.xlane.f32.xlu0 %v2310
  %v2312 = vpop.xlane.xlu0 %2311
  %v2313 = vcvt.f32.s32 %v2312
  %v2314 = vcvt.f32.s32 %v2308
  %v2315 = vshll.u32 %v2314, 16
  %v2316 = vadd.s32 %v2315, %v2313
  %v2317 = vsel %vm927, %v2217, 2147483647
  %v2318 = vand.u32 %v2317, 65535
  %v2319 = vshra.s32 %v2317, 16
  %v2320 = vcvt.s32.f32 %v2318
  %v2321 = vcvt.s32.f32 %v2319
  %2322 = vmin.xlane.f32.xlu0 %v2321
  %v2323 = vpop.xlane.xlu0 %2322
  %vm2324 = vcmp.eq.f32.partialorder %v2321, %v2323
  %v2325 = vsel %vm2324, %v2320, inf
  %2326 = vmin.xlane.f32.xlu0 %v2325
  %v2327 = vpop.xlane.xlu0 %2326
  %v2328 = vcvt.f32.s32 %v2327
  %v2329 = vcvt.f32.s32 %v2323
  %v2330 = vshll.u32 %v2329, 16
  %v2331 = vadd.s32 %v2330, %v2328
  %v2332 = vsel %vm927, %v2218, 2147483647
  %v2333 = vand.u32 %v2332, 65535
  %v2334 = vshra.s32 %v2332, 16
  %v2335 = vcvt.s32.f32 %v2333
  %v2336 = vcvt.s32.f32 %v2334
  %2337 = vmin.xlane.f32.xlu0 %v2336
  %v2338 = vpop.xlane.xlu0 %2337
  %vm2339 = vcmp.eq.f32.partialorder %v2336, %v2338
  %v2340 = vsel %vm2339, %v2335, inf
  %2341 = vmin.xlane.f32.xlu0 %v2340
  %v2342 = vpop.xlane.xlu0 %2341
  %v2343 = vcvt.f32.s32 %v2342
  %v2344 = vcvt.f32.s32 %v2338
  %v2345 = vshll.u32 %v2344, 16
  %v2346 = vadd.s32 %v2345, %v2343
  %v2347 = vsel %vm927, %v2219, 2147483647
  %v2348 = vand.u32 %v2347, 65535
  %v2349 = vshra.s32 %v2347, 16
  %v2350 = vcvt.s32.f32 %v2348
  %v2351 = vcvt.s32.f32 %v2349
  %2352 = vmin.xlane.f32.xlu0 %v2351
  %v2353 = vpop.xlane.xlu0 %2352
  %vm2354 = vcmp.eq.f32.partialorder %v2351, %v2353
  %v2355 = vsel %vm2354, %v2350, inf
  %2356 = vmin.xlane.f32.xlu0 %v2355
  %v2357 = vpop.xlane.xlu0 %2356
  %v2358 = vcvt.f32.s32 %v2357
  %v2359 = vcvt.f32.s32 %v2353
  %v2360 = vshll.u32 %v2359, 16
  %v2361 = vadd.s32 %v2360, %v2358
  %v2362 = vsel %vm927, %v2220, 2147483647
  %v2363 = vand.u32 %v2362, 65535
  %v2364 = vshra.s32 %v2362, 16
  %v2365 = vcvt.s32.f32 %v2363
  %v2366 = vcvt.s32.f32 %v2364
  %2367 = vmin.xlane.f32.xlu0 %v2366
  %v2368 = vpop.xlane.xlu0 %2367
  %vm2369 = vcmp.eq.f32.partialorder %v2366, %v2368
  %v2370 = vsel %vm2369, %v2365, inf
  %2371 = vmin.xlane.f32.xlu0 %v2370
  %v2372 = vpop.xlane.xlu0 %2371
  %v2373 = vcvt.f32.s32 %v2372
  %v2374 = vcvt.f32.s32 %v2368
  %v2375 = vshll.u32 %v2374, 16
  %v2376 = vadd.s32 %v2375, %v2373
  %v2377 = vsel %vm927, %v2221, 2147483647
  %v2378 = vand.u32 %v2377, 65535
  %v2379 = vshra.s32 %v2377, 16
  %v2380 = vcvt.s32.f32 %v2378
  %v2381 = vcvt.s32.f32 %v2379
  %2382 = vmin.xlane.f32.xlu0 %v2381
  %v2383 = vpop.xlane.xlu0 %2382
  %vm2384 = vcmp.eq.f32.partialorder %v2381, %v2383
  %v2385 = vsel %vm2384, %v2380, inf
  %2386 = vmin.xlane.f32.xlu0 %v2385
  %v2387 = vpop.xlane.xlu0 %2386
  %v2388 = vcvt.f32.s32 %v2387
  %v2389 = vcvt.f32.s32 %v2383
  %v2390 = vshll.u32 %v2389, 16
  %v2391 = vadd.s32 %v2390, %v2388
  %v2392 = vsel %vm927, %v2222, 2147483647
  %v2393 = vand.u32 %v2392, 65535
  %v2394 = vshra.s32 %v2392, 16
  %v2395 = vcvt.s32.f32 %v2393
  %v2396 = vcvt.s32.f32 %v2394
  %2397 = vmin.xlane.f32.xlu0 %v2396
  %v2398 = vpop.xlane.xlu0 %2397
  %vm2399 = vcmp.eq.f32.partialorder %v2396, %v2398
  %v2400 = vsel %vm2399, %v2395, inf
  %2401 = vmin.xlane.f32.xlu0 %v2400
  %v2402 = vpop.xlane.xlu0 %2401
  %v2403 = vcvt.f32.s32 %v2402
  %v2404 = vcvt.f32.s32 %v2398
  %v2405 = vshll.u32 %v2404, 16
  %v2406 = vadd.s32 %v2405, %v2403
  %v2407 = vsel %vm927, %v2223, 2147483647
  %v2408 = vand.u32 %v2407, 65535
  %v2409 = vshra.s32 %v2407, 16
  %v2410 = vcvt.s32.f32 %v2408
  %v2411 = vcvt.s32.f32 %v2409
  %2412 = vmin.xlane.f32.xlu0 %v2411
  %v2413 = vpop.xlane.xlu0 %2412
  %vm2414 = vcmp.eq.f32.partialorder %v2411, %v2413
  %v2415 = vsel %vm2414, %v2410, inf
  %2416 = vmin.xlane.f32.xlu0 %v2415
  %v2417 = vpop.xlane.xlu0 %2416
  %v2418 = vcvt.f32.s32 %v2417
  %v2419 = vcvt.f32.s32 %v2413
  %v2420 = vshll.u32 %v2419, 16
  %v2421 = vadd.s32 %v2420, %v2418
  %v2422 = vsel %vm927, %v2224, 2147483647
  %v2423 = vand.u32 %v2422, 65535
  %v2424 = vshra.s32 %v2422, 16
  %v2425 = vcvt.s32.f32 %v2423
  %v2426 = vcvt.s32.f32 %v2424
  %2427 = vmin.xlane.f32.xlu0 %v2426
  %v2428 = vpop.xlane.xlu0 %2427
  %vm2429 = vcmp.eq.f32.partialorder %v2426, %v2428
  %v2430 = vsel %vm2429, %v2425, inf
  %2431 = vmin.xlane.f32.xlu0 %v2430
  %v2432 = vpop.xlane.xlu0 %2431
  %v2433 = vcvt.f32.s32 %v2432
  %v2434 = vcvt.f32.s32 %v2428
  %v2435 = vshll.u32 %v2434, 16
  %v2436 = vadd.s32 %v2435, %v2433
  %v2437 = vsel %vm927, %v2225, 2147483647
  %v2438 = vand.u32 %v2437, 65535
  %v2439 = vshra.s32 %v2437, 16
  %v2440 = vcvt.s32.f32 %v2438
  %v2441 = vcvt.s32.f32 %v2439
  %2442 = vmin.xlane.f32.xlu0 %v2441
  %v2443 = vpop.xlane.xlu0 %2442
  %vm2444 = vcmp.eq.f32.partialorder %v2441, %v2443
  %v2445 = vsel %vm2444, %v2440, inf
  %2446 = vmin.xlane.f32.xlu0 %v2445
  %v2447 = vpop.xlane.xlu0 %2446
  %v2448 = vcvt.f32.s32 %v2447
  %v2449 = vcvt.f32.s32 %v2443
  %v2450 = vshll.u32 %v2449, 16
  %v2451 = vadd.s32 %v2450, %v2448
  %v2452 = vsel %vm927, %v2226, 2147483647
  %v2453 = vand.u32 %v2452, 65535
  %v2454 = vshra.s32 %v2452, 16
  %v2455 = vcvt.s32.f32 %v2453
  %v2456 = vcvt.s32.f32 %v2454
  %2457 = vmin.xlane.f32.xlu0 %v2456
  %v2458 = vpop.xlane.xlu0 %2457
  %vm2459 = vcmp.eq.f32.partialorder %v2456, %v2458
  %v2460 = vsel %vm2459, %v2455, inf
  %2461 = vmin.xlane.f32.xlu0 %v2460
  %v2462 = vpop.xlane.xlu0 %2461
  %v2463 = vcvt.f32.s32 %v2462
  %v2464 = vcvt.f32.s32 %v2458
  %v2465 = vshll.u32 %v2464, 16
  %v2466 = vadd.s32 %v2465, %v2463
  %vm2467 = vcmask 31768
  %2468 = vst.msk [vmem:[%s4] sm:$0xff] %vm2467, %v2241
  %2469 = vst.msk [vmem:[%s4 + $0x8] sm:$0xff] %vm2467, %v2256
  %2470 = vst.msk [vmem:[%s4 + $0x10] sm:$0xff] %vm2467, %v2271
  %2471 = vst.msk [vmem:[%s4 + $0x18] sm:$0xff] %vm2467, %v2286
  %2472 = vst.msk [vmem:[%s4 + $0x20] sm:$0xff] %vm2467, %v2301
  %2473 = vst.msk [vmem:[%s4 + $0x28] sm:$0xff] %vm2467, %v2316
  %2474 = vst.msk [vmem:[%s4 + $0x30] sm:$0xff] %vm2467, %v2331
  %2475 = vst.msk [vmem:[%s4 + $0x38] sm:$0xff] %vm2467, %v2346
  %2476 = vst.msk [vmem:[%s4 + $0x40] sm:$0xff] %vm2467, %v2361
  %2477 = vst.msk [vmem:[%s4 + $0x48] sm:$0xff] %vm2467, %v2376
  %2478 = vst.msk [vmem:[%s4 + $0x50] sm:$0xff] %vm2467, %v2391
  %2479 = vst.msk [vmem:[%s4 + $0x58] sm:$0xff] %vm2467, %v2406
  %2480 = vst.msk [vmem:[%s4 + $0x60] sm:$0xff] %vm2467, %v2421
  %2481 = vst.msk [vmem:[%s4 + $0x68] sm:$0xff] %vm2467, %v2436
  %2482 = vst.msk [vmem:[%s4 + $0x70] sm:$0xff] %vm2467, %v2451
  %2483 = vst.msk [vmem:[%s4 + $0x78] sm:$0xff] %vm2467, %v2466
  %2484 = vrot.lane.b32.xlu0 %v876, 96
  %v2485 = vpop.permute.xlu0 %2484
  %2486 = vrot.lane.b32.xlu0 %v877, 96
  %v2487 = vpop.permute.xlu0 %2486
  %2488 = vrot.lane.b32.xlu0 %v878, 96
  %v2489 = vpop.permute.xlu0 %2488
  %2490 = vrot.lane.b32.xlu0 %v879, 96
  %v2491 = vpop.permute.xlu0 %2490
  %2492 = vrot.lane.b32.xlu0 %v880, 96
  %v2493 = vpop.permute.xlu0 %2492
  %2494 = vrot.lane.b32.xlu0 %v881, 96
  %v2495 = vpop.permute.xlu0 %2494
  %2496 = vrot.lane.b32.xlu0 %v882, 96
  %v2497 = vpop.permute.xlu0 %2496
  %2498 = vrot.lane.b32.xlu0 %v883, 96
  %v2499 = vpop.permute.xlu0 %2498
  %2500 = vrot.lane.b32.xlu0 %v884, 96
  %v2501 = vpop.permute.xlu0 %2500
  %2502 = vrot.lane.b32.xlu0 %v885, 96
  %v2503 = vpop.permute.xlu0 %2502
  %2504 = vrot.lane.b32.xlu0 %v886, 96
  %v2505 = vpop.permute.xlu0 %2504
  %2506 = vrot.lane.b32.xlu0 %v887, 96
  %v2507 = vpop.permute.xlu0 %2506
  %2508 = vrot.lane.b32.xlu0 %v888, 96
  %v2509 = vpop.permute.xlu0 %2508
  %2510 = vrot.lane.b32.xlu0 %v889, 96
  %v2511 = vpop.permute.xlu0 %2510
  %2512 = vrot.lane.b32.xlu0 %v890, 96
  %v2513 = vpop.permute.xlu0 %2512
  %2514 = vrot.lane.b32.xlu0 %v891, 96
  %v2515 = vpop.permute.xlu0 %2514
  %v2532 = vsel %vm910, %v2485, -inf
  %v2533 = vsel %vm910, %v2487, -inf
  %v2534 = vsel %vm910, %v2489, -inf
  %v2535 = vsel %vm910, %v2491, -inf
  %v2536 = vsel %vm910, %v2493, -inf
  %v2537 = vsel %vm910, %v2495, -inf
  %v2538 = vsel %vm910, %v2497, -inf
  %v2539 = vsel %vm910, %v2499, -inf
  %v2540 = vsel %vm910, %v2501, -inf
  %v2541 = vsel %vm910, %v2503, -inf
  %v2542 = vsel %vm910, %v2505, -inf
  %v2543 = vsel %vm910, %v2507, -inf
  %v2544 = vsel %vm910, %v2509, -inf
  %v2545 = vsel %vm910, %v2511, -inf
  %v2546 = vsel %vm910, %v2513, -inf
  %v2547 = vsel %vm910, %v2515, -inf
  %v2548 = vsel %vm927, %v2532, -inf
  %2549 = vmax.xlane.f32.xlu0 %v2548
  %v2550 = vpop.xlane.xlu0 %2549
  %v2551 = vsel %vm927, %v2533, -inf
  %2552 = vmax.xlane.f32.xlu0 %v2551
  %v2553 = vpop.xlane.xlu0 %2552
  %v2554 = vsel %vm927, %v2534, -inf
  %2555 = vmax.xlane.f32.xlu0 %v2554
  %v2556 = vpop.xlane.xlu0 %2555
  %v2557 = vsel %vm927, %v2535, -inf
  %2558 = vmax.xlane.f32.xlu0 %v2557
  %v2559 = vpop.xlane.xlu0 %2558
  %v2560 = vsel %vm927, %v2536, -inf
  %2561 = vmax.xlane.f32.xlu0 %v2560
  %v2562 = vpop.xlane.xlu0 %2561
  %v2563 = vsel %vm927, %v2537, -inf
  %2564 = vmax.xlane.f32.xlu0 %v2563
  %v2565 = vpop.xlane.xlu0 %2564
  %v2566 = vsel %vm927, %v2538, -inf
  %2567 = vmax.xlane.f32.xlu0 %v2566
  %v2568 = vpop.xlane.xlu0 %2567
  %v2569 = vsel %vm927, %v2539, -inf
  %2570 = vmax.xlane.f32.xlu0 %v2569
  %v2571 = vpop.xlane.xlu0 %2570
  %v2572 = vsel %vm927, %v2540, -inf
  %2573 = vmax.xlane.f32.xlu0 %v2572
  %v2574 = vpop.xlane.xlu0 %2573
  %v2575 = vsel %vm927, %v2541, -inf
  %2576 = vmax.xlane.f32.xlu0 %v2575
  %v2577 = vpop.xlane.xlu0 %2576
  %v2578 = vsel %vm927, %v2542, -inf
  %2579 = vmax.xlane.f32.xlu0 %v2578
  %v2580 = vpop.xlane.xlu0 %2579
  %v2581 = vsel %vm927, %v2543, -inf
  %2582 = vmax.xlane.f32.xlu0 %v2581
  %v2583 = vpop.xlane.xlu0 %2582
  %v2584 = vsel %vm927, %v2544, -inf
  %2585 = vmax.xlane.f32.xlu0 %v2584
  %v2586 = vpop.xlane.xlu0 %2585
  %v2587 = vsel %vm927, %v2545, -inf
  %2588 = vmax.xlane.f32.xlu0 %v2587
  %v2589 = vpop.xlane.xlu0 %2588
  %v2590 = vsel %vm927, %v2546, -inf
  %2591 = vmax.xlane.f32.xlu0 %v2590
  %v2592 = vpop.xlane.xlu0 %2591
  %v2593 = vsel %vm927, %v2547, -inf
  %2594 = vmax.xlane.f32.xlu0 %v2593
  %v2595 = vpop.xlane.xlu0 %2594
  %vm2596 = vcmp.eq.f32.partialorder %v2532, %v2550
  %vm2597 = vcmp.eq.f32.partialorder %v2533, %v2553
  %vm2598 = vcmp.eq.f32.partialorder %v2534, %v2556
  %vm2599 = vcmp.eq.f32.partialorder %v2535, %v2559
  %vm2600 = vcmp.eq.f32.partialorder %v2536, %v2562
  %vm2601 = vcmp.eq.f32.partialorder %v2537, %v2565
  %vm2602 = vcmp.eq.f32.partialorder %v2538, %v2568
  %vm2603 = vcmp.eq.f32.partialorder %v2539, %v2571
  %vm2604 = vcmp.eq.f32.partialorder %v2540, %v2574
  %vm2605 = vcmp.eq.f32.partialorder %v2541, %v2577
  %vm2606 = vcmp.eq.f32.partialorder %v2542, %v2580
  %vm2607 = vcmp.eq.f32.partialorder %v2543, %v2583
  %vm2608 = vcmp.eq.f32.partialorder %v2544, %v2586
  %vm2609 = vcmp.eq.f32.partialorder %v2545, %v2589
  %vm2610 = vcmp.eq.f32.partialorder %v2546, %v2592
  %vm2611 = vcmp.eq.f32.partialorder %v2547, %v2595
  %v2612 = vsel %vm2596, %v909, 8
  %v2613 = vsel %vm2597, %v909, 8
  %v2614 = vsel %vm2598, %v909, 8
  %v2615 = vsel %vm2599, %v909, 8
  %v2616 = vsel %vm2600, %v909, 8
  %v2617 = vsel %vm2601, %v909, 8
  %v2618 = vsel %vm2602, %v909, 8
  %v2619 = vsel %vm2603, %v909, 8
  %v2620 = vsel %vm2604, %v909, 8
  %v2621 = vsel %vm2605, %v909, 8
  %v2622 = vsel %vm2606, %v909, 8
  %v2623 = vsel %vm2607, %v909, 8
  %v2624 = vsel %vm2608, %v909, 8
  %v2625 = vsel %vm2609, %v909, 8
  %v2626 = vsel %vm2610, %v909, 8
  %v2627 = vsel %vm2611, %v909, 8
  %v2628 = vsel %vm927, %v2612, 2147483647
  %v2629 = vand.u32 %v2628, 65535
  %v2630 = vshra.s32 %v2628, 16
  %v2631 = vcvt.s32.f32 %v2629
  %v2632 = vcvt.s32.f32 %v2630
  %2633 = vmin.xlane.f32.xlu0 %v2632
  %v2634 = vpop.xlane.xlu0 %2633
  %vm2635 = vcmp.eq.f32.partialorder %v2632, %v2634
  %v2636 = vsel %vm2635, %v2631, inf
  %2637 = vmin.xlane.f32.xlu0 %v2636
  %v2638 = vpop.xlane.xlu0 %2637
  %v2639 = vcvt.f32.s32 %v2638
  %v2640 = vcvt.f32.s32 %v2634
  %v2641 = vshll.u32 %v2640, 16
  %v2642 = vadd.s32 %v2641, %v2639
  %v2643 = vsel %vm927, %v2613, 2147483647
  %v2644 = vand.u32 %v2643, 65535
  %v2645 = vshra.s32 %v2643, 16
  %v2646 = vcvt.s32.f32 %v2644
  %v2647 = vcvt.s32.f32 %v2645
  %2648 = vmin.xlane.f32.xlu0 %v2647
  %v2649 = vpop.xlane.xlu0 %2648
  %vm2650 = vcmp.eq.f32.partialorder %v2647, %v2649
  %v2651 = vsel %vm2650, %v2646, inf
  %2652 = vmin.xlane.f32.xlu0 %v2651
  %v2653 = vpop.xlane.xlu0 %2652
  %v2654 = vcvt.f32.s32 %v2653
  %v2655 = vcvt.f32.s32 %v2649
  %v2656 = vshll.u32 %v2655, 16
  %v2657 = vadd.s32 %v2656, %v2654
  %v2658 = vsel %vm927, %v2614, 2147483647
  %v2659 = vand.u32 %v2658, 65535
  %v2660 = vshra.s32 %v2658, 16
  %v2661 = vcvt.s32.f32 %v2659
  %v2662 = vcvt.s32.f32 %v2660
  %2663 = vmin.xlane.f32.xlu0 %v2662
  %v2664 = vpop.xlane.xlu0 %2663
  %vm2665 = vcmp.eq.f32.partialorder %v2662, %v2664
  %v2666 = vsel %vm2665, %v2661, inf
  %2667 = vmin.xlane.f32.xlu0 %v2666
  %v2668 = vpop.xlane.xlu0 %2667
  %v2669 = vcvt.f32.s32 %v2668
  %v2670 = vcvt.f32.s32 %v2664
  %v2671 = vshll.u32 %v2670, 16
  %v2672 = vadd.s32 %v2671, %v2669
  %v2673 = vsel %vm927, %v2615, 2147483647
  %v2674 = vand.u32 %v2673, 65535
  %v2675 = vshra.s32 %v2673, 16
  %v2676 = vcvt.s32.f32 %v2674
  %v2677 = vcvt.s32.f32 %v2675
  %2678 = vmin.xlane.f32.xlu0 %v2677
  %v2679 = vpop.xlane.xlu0 %2678
  %vm2680 = vcmp.eq.f32.partialorder %v2677, %v2679
  %v2681 = vsel %vm2680, %v2676, inf
  %2682 = vmin.xlane.f32.xlu0 %v2681
  %v2683 = vpop.xlane.xlu0 %2682
  %v2684 = vcvt.f32.s32 %v2683
  %v2685 = vcvt.f32.s32 %v2679
  %v2686 = vshll.u32 %v2685, 16
  %v2687 = vadd.s32 %v2686, %v2684
  %v2688 = vsel %vm927, %v2616, 2147483647
  %v2689 = vand.u32 %v2688, 65535
  %v2690 = vshra.s32 %v2688, 16
  %v2691 = vcvt.s32.f32 %v2689
  %v2692 = vcvt.s32.f32 %v2690
  %2693 = vmin.xlane.f32.xlu0 %v2692
  %v2694 = vpop.xlane.xlu0 %2693
  %vm2695 = vcmp.eq.f32.partialorder %v2692, %v2694
  %v2696 = vsel %vm2695, %v2691, inf
  %2697 = vmin.xlane.f32.xlu0 %v2696
  %v2698 = vpop.xlane.xlu0 %2697
  %v2699 = vcvt.f32.s32 %v2698
  %v2700 = vcvt.f32.s32 %v2694
  %v2701 = vshll.u32 %v2700, 16
  %v2702 = vadd.s32 %v2701, %v2699
  %v2703 = vsel %vm927, %v2617, 2147483647
  %v2704 = vand.u32 %v2703, 65535
  %v2705 = vshra.s32 %v2703, 16
  %v2706 = vcvt.s32.f32 %v2704
  %v2707 = vcvt.s32.f32 %v2705
  %2708 = vmin.xlane.f32.xlu0 %v2707
  %v2709 = vpop.xlane.xlu0 %2708
  %vm2710 = vcmp.eq.f32.partialorder %v2707, %v2709
  %v2711 = vsel %vm2710, %v2706, inf
  %2712 = vmin.xlane.f32.xlu0 %v2711
  %v2713 = vpop.xlane.xlu0 %2712
  %v2714 = vcvt.f32.s32 %v2713
  %v2715 = vcvt.f32.s32 %v2709
  %v2716 = vshll.u32 %v2715, 16
  %v2717 = vadd.s32 %v2716, %v2714
  %v2718 = vsel %vm927, %v2618, 2147483647
  %v2719 = vand.u32 %v2718, 65535
  %v2720 = vshra.s32 %v2718, 16
  %v2721 = vcvt.s32.f32 %v2719
  %v2722 = vcvt.s32.f32 %v2720
  %2723 = vmin.xlane.f32.xlu0 %v2722
  %v2724 = vpop.xlane.xlu0 %2723
  %vm2725 = vcmp.eq.f32.partialorder %v2722, %v2724
  %v2726 = vsel %vm2725, %v2721, inf
  %2727 = vmin.xlane.f32.xlu0 %v2726
  %v2728 = vpop.xlane.xlu0 %2727
  %v2729 = vcvt.f32.s32 %v2728
  %v2730 = vcvt.f32.s32 %v2724
  %v2731 = vshll.u32 %v2730, 16
  %v2732 = vadd.s32 %v2731, %v2729
  %v2733 = vsel %vm927, %v2619, 2147483647
  %v2734 = vand.u32 %v2733, 65535
  %v2735 = vshra.s32 %v2733, 16
  %v2736 = vcvt.s32.f32 %v2734
  %v2737 = vcvt.s32.f32 %v2735
  %2738 = vmin.xlane.f32.xlu0 %v2737
  %v2739 = vpop.xlane.xlu0 %2738
  %vm2740 = vcmp.eq.f32.partialorder %v2737, %v2739
  %v2741 = vsel %vm2740, %v2736, inf
  %2742 = vmin.xlane.f32.xlu0 %v2741
  %v2743 = vpop.xlane.xlu0 %2742
  %v2744 = vcvt.f32.s32 %v2743
  %v2745 = vcvt.f32.s32 %v2739
  %v2746 = vshll.u32 %v2745, 16
  %v2747 = vadd.s32 %v2746, %v2744
  %v2748 = vsel %vm927, %v2620, 2147483647
  %v2749 = vand.u32 %v2748, 65535
  %v2750 = vshra.s32 %v2748, 16
  %v2751 = vcvt.s32.f32 %v2749
  %v2752 = vcvt.s32.f32 %v2750
  %2753 = vmin.xlane.f32.xlu0 %v2752
  %v2754 = vpop.xlane.xlu0 %2753
  %vm2755 = vcmp.eq.f32.partialorder %v2752, %v2754
  %v2756 = vsel %vm2755, %v2751, inf
  %2757 = vmin.xlane.f32.xlu0 %v2756
  %v2758 = vpop.xlane.xlu0 %2757
  %v2759 = vcvt.f32.s32 %v2758
  %v2760 = vcvt.f32.s32 %v2754
  %v2761 = vshll.u32 %v2760, 16
  %v2762 = vadd.s32 %v2761, %v2759
  %v2763 = vsel %vm927, %v2621, 2147483647
  %v2764 = vand.u32 %v2763, 65535
  %v2765 = vshra.s32 %v2763, 16
  %v2766 = vcvt.s32.f32 %v2764
  %v2767 = vcvt.s32.f32 %v2765
  %2768 = vmin.xlane.f32.xlu0 %v2767
  %v2769 = vpop.xlane.xlu0 %2768
  %vm2770 = vcmp.eq.f32.partialorder %v2767, %v2769
  %v2771 = vsel %vm2770, %v2766, inf
  %2772 = vmin.xlane.f32.xlu0 %v2771
  %v2773 = vpop.xlane.xlu0 %2772
  %v2774 = vcvt.f32.s32 %v2773
  %v2775 = vcvt.f32.s32 %v2769
  %v2776 = vshll.u32 %v2775, 16
  %v2777 = vadd.s32 %v2776, %v2774
  %v2778 = vsel %vm927, %v2622, 2147483647
  %v2779 = vand.u32 %v2778, 65535
  %v2780 = vshra.s32 %v2778, 16
  %v2781 = vcvt.s32.f32 %v2779
  %v2782 = vcvt.s32.f32 %v2780
  %2783 = vmin.xlane.f32.xlu0 %v2782
  %v2784 = vpop.xlane.xlu0 %2783
  %vm2785 = vcmp.eq.f32.partialorder %v2782, %v2784
  %v2786 = vsel %vm2785, %v2781, inf
  %2787 = vmin.xlane.f32.xlu0 %v2786
  %v2788 = vpop.xlane.xlu0 %2787
  %v2789 = vcvt.f32.s32 %v2788
  %v2790 = vcvt.f32.s32 %v2784
  %v2791 = vshll.u32 %v2790, 16
  %v2792 = vadd.s32 %v2791, %v2789
  %v2793 = vsel %vm927, %v2623, 2147483647
  %v2794 = vand.u32 %v2793, 65535
  %v2795 = vshra.s32 %v2793, 16
  %v2796 = vcvt.s32.f32 %v2794
  %v2797 = vcvt.s32.f32 %v2795
  %2798 = vmin.xlane.f32.xlu0 %v2797
  %v2799 = vpop.xlane.xlu0 %2798
  %vm2800 = vcmp.eq.f32.partialorder %v2797, %v2799
  %v2801 = vsel %vm2800, %v2796, inf
  %2802 = vmin.xlane.f32.xlu0 %v2801
  %v2803 = vpop.xlane.xlu0 %2802
  %v2804 = vcvt.f32.s32 %v2803
  %v2805 = vcvt.f32.s32 %v2799
  %v2806 = vshll.u32 %v2805, 16
  %v2807 = vadd.s32 %v2806, %v2804
  %v2808 = vsel %vm927, %v2624, 2147483647
  %v2809 = vand.u32 %v2808, 65535
  %v2810 = vshra.s32 %v2808, 16
  %v2811 = vcvt.s32.f32 %v2809
  %v2812 = vcvt.s32.f32 %v2810
  %2813 = vmin.xlane.f32.xlu0 %v2812
  %v2814 = vpop.xlane.xlu0 %2813
  %vm2815 = vcmp.eq.f32.partialorder %v2812, %v2814
  %v2816 = vsel %vm2815, %v2811, inf
  %2817 = vmin.xlane.f32.xlu0 %v2816
  %v2818 = vpop.xlane.xlu0 %2817
  %v2819 = vcvt.f32.s32 %v2818
  %v2820 = vcvt.f32.s32 %v2814
  %v2821 = vshll.u32 %v2820, 16
  %v2822 = vadd.s32 %v2821, %v2819
  %v2823 = vsel %vm927, %v2625, 2147483647
  %v2824 = vand.u32 %v2823, 65535
  %v2825 = vshra.s32 %v2823, 16
  %v2826 = vcvt.s32.f32 %v2824
  %v2827 = vcvt.s32.f32 %v2825
  %2828 = vmin.xlane.f32.xlu0 %v2827
  %v2829 = vpop.xlane.xlu0 %2828
  %vm2830 = vcmp.eq.f32.partialorder %v2827, %v2829
  %v2831 = vsel %vm2830, %v2826, inf
  %2832 = vmin.xlane.f32.xlu0 %v2831
  %v2833 = vpop.xlane.xlu0 %2832
  %v2834 = vcvt.f32.s32 %v2833
  %v2835 = vcvt.f32.s32 %v2829
  %v2836 = vshll.u32 %v2835, 16
  %v2837 = vadd.s32 %v2836, %v2834
  %v2838 = vsel %vm927, %v2626, 2147483647
  %v2839 = vand.u32 %v2838, 65535
  %v2840 = vshra.s32 %v2838, 16
  %v2841 = vcvt.s32.f32 %v2839
  %v2842 = vcvt.s32.f32 %v2840
  %2843 = vmin.xlane.f32.xlu0 %v2842
  %v2844 = vpop.xlane.xlu0 %2843
  %vm2845 = vcmp.eq.f32.partialorder %v2842, %v2844
  %v2846 = vsel %vm2845, %v2841, inf
  %2847 = vmin.xlane.f32.xlu0 %v2846
  %v2848 = vpop.xlane.xlu0 %2847
  %v2849 = vcvt.f32.s32 %v2848
  %v2850 = vcvt.f32.s32 %v2844
  %v2851 = vshll.u32 %v2850, 16
  %v2852 = vadd.s32 %v2851, %v2849
  %v2853 = vsel %vm927, %v2627, 2147483647
  %v2854 = vand.u32 %v2853, 65535
  %v2855 = vshra.s32 %v2853, 16
  %v2856 = vcvt.s32.f32 %v2854
  %v2857 = vcvt.s32.f32 %v2855
  %2858 = vmin.xlane.f32.xlu0 %v2857
  %v2859 = vpop.xlane.xlu0 %2858
  %vm2860 = vcmp.eq.f32.partialorder %v2857, %v2859
  %v2861 = vsel %vm2860, %v2856, inf
  %2862 = vmin.xlane.f32.xlu0 %v2861
  %v2863 = vpop.xlane.xlu0 %2862
  %v2864 = vcvt.f32.s32 %v2863
  %v2865 = vcvt.f32.s32 %v2859
  %v2866 = vshll.u32 %v2865, 16
  %v2867 = vadd.s32 %v2866, %v2864
  %vm2868 = vcmask 39968
  %2869 = vst.msk [vmem:[%s4] sm:$0xff] %vm2868, %v2642
  %2870 = vst.msk [vmem:[%s4 + $0x8] sm:$0xff] %vm2868, %v2657
  %2871 = vst.msk [vmem:[%s4 + $0x10] sm:$0xff] %vm2868, %v2672
  %2872 = vst.msk [vmem:[%s4 + $0x18] sm:$0xff] %vm2868, %v2687
  %2873 = vst.msk [vmem:[%s4 + $0x20] sm:$0xff] %vm2868, %v2702
  %2874 = vst.msk [vmem:[%s4 + $0x28] sm:$0xff] %vm2868, %v2717
  %2875 = vst.msk [vmem:[%s4 + $0x30] sm:$0xff] %vm2868, %v2732
  %2876 = vst.msk [vmem:[%s4 + $0x38] sm:$0xff] %vm2868, %v2747
  %2877 = vst.msk [vmem:[%s4 + $0x40] sm:$0xff] %vm2868, %v2762
  %2878 = vst.msk [vmem:[%s4 + $0x48] sm:$0xff] %vm2868, %v2777
  %2879 = vst.msk [vmem:[%s4 + $0x50] sm:$0xff] %vm2868, %v2792
  %2880 = vst.msk [vmem:[%s4 + $0x58] sm:$0xff] %vm2868, %v2807
  %2881 = vst.msk [vmem:[%s4 + $0x60] sm:$0xff] %vm2868, %v2822
  %2882 = vst.msk [vmem:[%s4 + $0x68] sm:$0xff] %vm2868, %v2837
  %2883 = vst.msk [vmem:[%s4 + $0x70] sm:$0xff] %vm2868, %v2852
  %2884 = vst.msk [vmem:[%s4 + $0x78] sm:$0xff] %vm2868, %v2867
  %2885 = vrot.lane.b32.xlu0 %v876, 88
  %v2886 = vpop.permute.xlu0 %2885
  %2887 = vrot.lane.b32.xlu0 %v877, 88
  %v2888 = vpop.permute.xlu0 %2887
  %2889 = vrot.lane.b32.xlu0 %v878, 88
  %v2890 = vpop.permute.xlu0 %2889
  %2891 = vrot.lane.b32.xlu0 %v879, 88
  %v2892 = vpop.permute.xlu0 %2891
  %2893 = vrot.lane.b32.xlu0 %v880, 88
  %v2894 = vpop.permute.xlu0 %2893
  %2895 = vrot.lane.b32.xlu0 %v881, 88
  %v2896 = vpop.permute.xlu0 %2895
  %2897 = vrot.lane.b32.xlu0 %v882, 88
  %v2898 = vpop.permute.xlu0 %2897
  %2899 = vrot.lane.b32.xlu0 %v883, 88
  %v2900 = vpop.permute.xlu0 %2899
  %2901 = vrot.lane.b32.xlu0 %v884, 88
  %v2902 = vpop.permute.xlu0 %2901
  %2903 = vrot.lane.b32.xlu0 %v885, 88
  %v2904 = vpop.permute.xlu0 %2903
  %2905 = vrot.lane.b32.xlu0 %v886, 88
  %v2906 = vpop.permute.xlu0 %2905
  %2907 = vrot.lane.b32.xlu0 %v887, 88
  %v2908 = vpop.permute.xlu0 %2907
  %2909 = vrot.lane.b32.xlu0 %v888, 88
  %v2910 = vpop.permute.xlu0 %2909
  %2911 = vrot.lane.b32.xlu0 %v889, 88
  %v2912 = vpop.permute.xlu0 %2911
  %2913 = vrot.lane.b32.xlu0 %v890, 88
  %v2914 = vpop.permute.xlu0 %2913
  %2915 = vrot.lane.b32.xlu0 %v891, 88
  %v2916 = vpop.permute.xlu0 %2915
  %v2933 = vsel %vm910, %v2886, -inf
  %v2934 = vsel %vm910, %v2888, -inf
  %v2935 = vsel %vm910, %v2890, -inf
  %v2936 = vsel %vm910, %v2892, -inf
  %v2937 = vsel %vm910, %v2894, -inf
  %v2938 = vsel %vm910, %v2896, -inf
  %v2939 = vsel %vm910, %v2898, -inf
  %v2940 = vsel %vm910, %v2900, -inf
  %v2941 = vsel %vm910, %v2902, -inf
  %v2942 = vsel %vm910, %v2904, -inf
  %v2943 = vsel %vm910, %v2906, -inf
  %v2944 = vsel %vm910, %v2908, -inf
  %v2945 = vsel %vm910, %v2910, -inf
  %v2946 = vsel %vm910, %v2912, -inf
  %v2947 = vsel %vm910, %v2914, -inf
  %v2948 = vsel %vm910, %v2916, -inf
  %v2949 = vsel %vm927, %v2933, -inf
  %2950 = vmax.xlane.f32.xlu0 %v2949
  %v2951 = vpop.xlane.xlu0 %2950
  %v2952 = vsel %vm927, %v2934, -inf
  %2953 = vmax.xlane.f32.xlu0 %v2952
  %v2954 = vpop.xlane.xlu0 %2953
  %v2955 = vsel %vm927, %v2935, -inf
  %2956 = vmax.xlane.f32.xlu0 %v2955
  %v2957 = vpop.xlane.xlu0 %2956
  %v2958 = vsel %vm927, %v2936, -inf
  %2959 = vmax.xlane.f32.xlu0 %v2958
  %v2960 = vpop.xlane.xlu0 %2959
  %v2961 = vsel %vm927, %v2937, -inf
  %2962 = vmax.xlane.f32.xlu0 %v2961
  %v2963 = vpop.xlane.xlu0 %2962
  %v2964 = vsel %vm927, %v2938, -inf
  %2965 = vmax.xlane.f32.xlu0 %v2964
  %v2966 = vpop.xlane.xlu0 %2965
  %v2967 = vsel %vm927, %v2939, -inf
  %2968 = vmax.xlane.f32.xlu0 %v2967
  %v2969 = vpop.xlane.xlu0 %2968
  %v2970 = vsel %vm927, %v2940, -inf
  %2971 = vmax.xlane.f32.xlu0 %v2970
  %v2972 = vpop.xlane.xlu0 %2971
  %v2973 = vsel %vm927, %v2941, -inf
  %2974 = vmax.xlane.f32.xlu0 %v2973
  %v2975 = vpop.xlane.xlu0 %2974
  %v2976 = vsel %vm927, %v2942, -inf
  %2977 = vmax.xlane.f32.xlu0 %v2976
  %v2978 = vpop.xlane.xlu0 %2977
  %v2979 = vsel %vm927, %v2943, -inf
  %2980 = vmax.xlane.f32.xlu0 %v2979
  %v2981 = vpop.xlane.xlu0 %2980
  %v2982 = vsel %vm927, %v2944, -inf
  %2983 = vmax.xlane.f32.xlu0 %v2982
  %v2984 = vpop.xlane.xlu0 %2983
  %v2985 = vsel %vm927, %v2945, -inf
  %2986 = vmax.xlane.f32.xlu0 %v2985
  %v2987 = vpop.xlane.xlu0 %2986
  %v2988 = vsel %vm927, %v2946, -inf
  %2989 = vmax.xlane.f32.xlu0 %v2988
  %v2990 = vpop.xlane.xlu0 %2989
  %v2991 = vsel %vm927, %v2947, -inf
  %2992 = vmax.xlane.f32.xlu0 %v2991
  %v2993 = vpop.xlane.xlu0 %2992
  %v2994 = vsel %vm927, %v2948, -inf
  %2995 = vmax.xlane.f32.xlu0 %v2994
  %v2996 = vpop.xlane.xlu0 %2995
  %vm2997 = vcmp.eq.f32.partialorder %v2933, %v2951
  %vm2998 = vcmp.eq.f32.partialorder %v2934, %v2954
  %vm2999 = vcmp.eq.f32.partialorder %v2935, %v2957
  %vm3000 = vcmp.eq.f32.partialorder %v2936, %v2960
  %vm3001 = vcmp.eq.f32.partialorder %v2937, %v2963
  %vm3002 = vcmp.eq.f32.partialorder %v2938, %v2966
  %vm3003 = vcmp.eq.f32.partialorder %v2939, %v2969
  %vm3004 = vcmp.eq.f32.partialorder %v2940, %v2972
  %vm3005 = vcmp.eq.f32.partialorder %v2941, %v2975
  %vm3006 = vcmp.eq.f32.partialorder %v2942, %v2978
  %vm3007 = vcmp.eq.f32.partialorder %v2943, %v2981
  %vm3008 = vcmp.eq.f32.partialorder %v2944, %v2984
  %vm3009 = vcmp.eq.f32.partialorder %v2945, %v2987
  %vm3010 = vcmp.eq.f32.partialorder %v2946, %v2990
  %vm3011 = vcmp.eq.f32.partialorder %v2947, %v2993
  %vm3012 = vcmp.eq.f32.partialorder %v2948, %v2996
  %v3013 = vsel %vm2997, %v909, 8
  %v3014 = vsel %vm2998, %v909, 8
  %v3015 = vsel %vm2999, %v909, 8
  %v3016 = vsel %vm3000, %v909, 8
  %v3017 = vsel %vm3001, %v909, 8
  %v3018 = vsel %vm3002, %v909, 8
  %v3019 = vsel %vm3003, %v909, 8
  %v3020 = vsel %vm3004, %v909, 8
  %v3021 = vsel %vm3005, %v909, 8
  %v3022 = vsel %vm3006, %v909, 8
  %v3023 = vsel %vm3007, %v909, 8
  %v3024 = vsel %vm3008, %v909, 8
  %v3025 = vsel %vm3009, %v909, 8
  %v3026 = vsel %vm3010, %v909, 8
  %v3027 = vsel %vm3011, %v909, 8
  %v3028 = vsel %vm3012, %v909, 8
  %v3029 = vsel %vm927, %v3013, 2147483647
  %v3030 = vand.u32 %v3029, 65535
  %v3031 = vshra.s32 %v3029, 16
  %v3032 = vcvt.s32.f32 %v3030
  %v3033 = vcvt.s32.f32 %v3031
  %3034 = vmin.xlane.f32.xlu0 %v3033
  %v3035 = vpop.xlane.xlu0 %3034
  %vm3036 = vcmp.eq.f32.partialorder %v3033, %v3035
  %v3037 = vsel %vm3036, %v3032, inf
  %3038 = vmin.xlane.f32.xlu0 %v3037
  %v3039 = vpop.xlane.xlu0 %3038
  %v3040 = vcvt.f32.s32 %v3039
  %v3041 = vcvt.f32.s32 %v3035
  %v3042 = vshll.u32 %v3041, 16
  %v3043 = vadd.s32 %v3042, %v3040
  %v3044 = vsel %vm927, %v3014, 2147483647
  %v3045 = vand.u32 %v3044, 65535
  %v3046 = vshra.s32 %v3044, 16
  %v3047 = vcvt.s32.f32 %v3045
  %v3048 = vcvt.s32.f32 %v3046
  %3049 = vmin.xlane.f32.xlu0 %v3048
  %v3050 = vpop.xlane.xlu0 %3049
  %vm3051 = vcmp.eq.f32.partialorder %v3048, %v3050
  %v3052 = vsel %vm3051, %v3047, inf
  %3053 = vmin.xlane.f32.xlu0 %v3052
  %v3054 = vpop.xlane.xlu0 %3053
  %v3055 = vcvt.f32.s32 %v3054
  %v3056 = vcvt.f32.s32 %v3050
  %v3057 = vshll.u32 %v3056, 16
  %v3058 = vadd.s32 %v3057, %v3055
  %v3059 = vsel %vm927, %v3015, 2147483647
  %v3060 = vand.u32 %v3059, 65535
  %v3061 = vshra.s32 %v3059, 16
  %v3062 = vcvt.s32.f32 %v3060
  %v3063 = vcvt.s32.f32 %v3061
  %3064 = vmin.xlane.f32.xlu0 %v3063
  %v3065 = vpop.xlane.xlu0 %3064
  %vm3066 = vcmp.eq.f32.partialorder %v3063, %v3065
  %v3067 = vsel %vm3066, %v3062, inf
  %3068 = vmin.xlane.f32.xlu0 %v3067
  %v3069 = vpop.xlane.xlu0 %3068
  %v3070 = vcvt.f32.s32 %v3069
  %v3071 = vcvt.f32.s32 %v3065
  %v3072 = vshll.u32 %v3071, 16
  %v3073 = vadd.s32 %v3072, %v3070
  %v3074 = vsel %vm927, %v3016, 2147483647
  %v3075 = vand.u32 %v3074, 65535
  %v3076 = vshra.s32 %v3074, 16
  %v3077 = vcvt.s32.f32 %v3075
  %v3078 = vcvt.s32.f32 %v3076
  %3079 = vmin.xlane.f32.xlu0 %v3078
  %v3080 = vpop.xlane.xlu0 %3079
  %vm3081 = vcmp.eq.f32.partialorder %v3078, %v3080
  %v3082 = vsel %vm3081, %v3077, inf
  %3083 = vmin.xlane.f32.xlu0 %v3082
  %v3084 = vpop.xlane.xlu0 %3083
  %v3085 = vcvt.f32.s32 %v3084
  %v3086 = vcvt.f32.s32 %v3080
  %v3087 = vshll.u32 %v3086, 16
  %v3088 = vadd.s32 %v3087, %v3085
  %v3089 = vsel %vm927, %v3017, 2147483647
  %v3090 = vand.u32 %v3089, 65535
  %v3091 = vshra.s32 %v3089, 16
  %v3092 = vcvt.s32.f32 %v3090
  %v3093 = vcvt.s32.f32 %v3091
  %3094 = vmin.xlane.f32.xlu0 %v3093
  %v3095 = vpop.xlane.xlu0 %3094
  %vm3096 = vcmp.eq.f32.partialorder %v3093, %v3095
  %v3097 = vsel %vm3096, %v3092, inf
  %3098 = vmin.xlane.f32.xlu0 %v3097
  %v3099 = vpop.xlane.xlu0 %3098
  %v3100 = vcvt.f32.s32 %v3099
  %v3101 = vcvt.f32.s32 %v3095
  %v3102 = vshll.u32 %v3101, 16
  %v3103 = vadd.s32 %v3102, %v3100
  %v3104 = vsel %vm927, %v3018, 2147483647
  %v3105 = vand.u32 %v3104, 65535
  %v3106 = vshra.s32 %v3104, 16
  %v3107 = vcvt.s32.f32 %v3105
  %v3108 = vcvt.s32.f32 %v3106
  %3109 = vmin.xlane.f32.xlu0 %v3108
  %v3110 = vpop.xlane.xlu0 %3109
  %vm3111 = vcmp.eq.f32.partialorder %v3108, %v3110
  %v3112 = vsel %vm3111, %v3107, inf
  %3113 = vmin.xlane.f32.xlu0 %v3112
  %v3114 = vpop.xlane.xlu0 %3113
  %v3115 = vcvt.f32.s32 %v3114
  %v3116 = vcvt.f32.s32 %v3110
  %v3117 = vshll.u32 %v3116, 16
  %v3118 = vadd.s32 %v3117, %v3115
  %v3119 = vsel %vm927, %v3019, 2147483647
  %v3120 = vand.u32 %v3119, 65535
  %v3121 = vshra.s32 %v3119, 16
  %v3122 = vcvt.s32.f32 %v3120
  %v3123 = vcvt.s32.f32 %v3121
  %3124 = vmin.xlane.f32.xlu0 %v3123
  %v3125 = vpop.xlane.xlu0 %3124
  %vm3126 = vcmp.eq.f32.partialorder %v3123, %v3125
  %v3127 = vsel %vm3126, %v3122, inf
  %3128 = vmin.xlane.f32.xlu0 %v3127
  %v3129 = vpop.xlane.xlu0 %3128
  %v3130 = vcvt.f32.s32 %v3129
  %v3131 = vcvt.f32.s32 %v3125
  %v3132 = vshll.u32 %v3131, 16
  %v3133 = vadd.s32 %v3132, %v3130
  %v3134 = vsel %vm927, %v3020, 2147483647
  %v3135 = vand.u32 %v3134, 65535
  %v3136 = vshra.s32 %v3134, 16
  %v3137 = vcvt.s32.f32 %v3135
  %v3138 = vcvt.s32.f32 %v3136
  %3139 = vmin.xlane.f32.xlu0 %v3138
  %v3140 = vpop.xlane.xlu0 %3139
  %vm3141 = vcmp.eq.f32.partialorder %v3138, %v3140
  %v3142 = vsel %vm3141, %v3137, inf
  %3143 = vmin.xlane.f32.xlu0 %v3142
  %v3144 = vpop.xlane.xlu0 %3143
  %v3145 = vcvt.f32.s32 %v3144
  %v3146 = vcvt.f32.s32 %v3140
  %v3147 = vshll.u32 %v3146, 16
  %v3148 = vadd.s32 %v3147, %v3145
  %v3149 = vsel %vm927, %v3021, 2147483647
  %v3150 = vand.u32 %v3149, 65535
  %v3151 = vshra.s32 %v3149, 16
  %v3152 = vcvt.s32.f32 %v3150
  %v3153 = vcvt.s32.f32 %v3151
  %3154 = vmin.xlane.f32.xlu0 %v3153
  %v3155 = vpop.xlane.xlu0 %3154
  %vm3156 = vcmp.eq.f32.partialorder %v3153, %v3155
  %v3157 = vsel %vm3156, %v3152, inf
  %3158 = vmin.xlane.f32.xlu0 %v3157
  %v3159 = vpop.xlane.xlu0 %3158
  %v3160 = vcvt.f32.s32 %v3159
  %v3161 = vcvt.f32.s32 %v3155
  %v3162 = vshll.u32 %v3161, 16
  %v3163 = vadd.s32 %v3162, %v3160
  %v3164 = vsel %vm927, %v3022, 2147483647
  %v3165 = vand.u32 %v3164, 65535
  %v3166 = vshra.s32 %v3164, 16
  %v3167 = vcvt.s32.f32 %v3165
  %v3168 = vcvt.s32.f32 %v3166
  %3169 = vmin.xlane.f32.xlu0 %v3168
  %v3170 = vpop.xlane.xlu0 %3169
  %vm3171 = vcmp.eq.f32.partialorder %v3168, %v3170
  %v3172 = vsel %vm3171, %v3167, inf
  %3173 = vmin.xlane.f32.xlu0 %v3172
  %v3174 = vpop.xlane.xlu0 %3173
  %v3175 = vcvt.f32.s32 %v3174
  %v3176 = vcvt.f32.s32 %v3170
  %v3177 = vshll.u32 %v3176, 16
  %v3178 = vadd.s32 %v3177, %v3175
  %v3179 = vsel %vm927, %v3023, 2147483647
  %v3180 = vand.u32 %v3179, 65535
  %v3181 = vshra.s32 %v3179, 16
  %v3182 = vcvt.s32.f32 %v3180
  %v3183 = vcvt.s32.f32 %v3181
  %3184 = vmin.xlane.f32.xlu0 %v3183
  %v3185 = vpop.xlane.xlu0 %3184
  %vm3186 = vcmp.eq.f32.partialorder %v3183, %v3185
  %v3187 = vsel %vm3186, %v3182, inf
  %3188 = vmin.xlane.f32.xlu0 %v3187
  %v3189 = vpop.xlane.xlu0 %3188
  %v3190 = vcvt.f32.s32 %v3189
  %v3191 = vcvt.f32.s32 %v3185
  %v3192 = vshll.u32 %v3191, 16
  %v3193 = vadd.s32 %v3192, %v3190
  %v3194 = vsel %vm927, %v3024, 2147483647
  %v3195 = vand.u32 %v3194, 65535
  %v3196 = vshra.s32 %v3194, 16
  %v3197 = vcvt.s32.f32 %v3195
  %v3198 = vcvt.s32.f32 %v3196
  %3199 = vmin.xlane.f32.xlu0 %v3198
  %v3200 = vpop.xlane.xlu0 %3199
  %vm3201 = vcmp.eq.f32.partialorder %v3198, %v3200
  %v3202 = vsel %vm3201, %v3197, inf
  %3203 = vmin.xlane.f32.xlu0 %v3202
  %v3204 = vpop.xlane.xlu0 %3203
  %v3205 = vcvt.f32.s32 %v3204
  %v3206 = vcvt.f32.s32 %v3200
  %v3207 = vshll.u32 %v3206, 16
  %v3208 = vadd.s32 %v3207, %v3205
  %v3209 = vsel %vm927, %v3025, 2147483647
  %v3210 = vand.u32 %v3209, 65535
  %v3211 = vshra.s32 %v3209, 16
  %v3212 = vcvt.s32.f32 %v3210
  %v3213 = vcvt.s32.f32 %v3211
  %3214 = vmin.xlane.f32.xlu0 %v3213
  %v3215 = vpop.xlane.xlu0 %3214
  %vm3216 = vcmp.eq.f32.partialorder %v3213, %v3215
  %v3217 = vsel %vm3216, %v3212, inf
  %3218 = vmin.xlane.f32.xlu0 %v3217
  %v3219 = vpop.xlane.xlu0 %3218
  %v3220 = vcvt.f32.s32 %v3219
  %v3221 = vcvt.f32.s32 %v3215
  %v3222 = vshll.u32 %v3221, 16
  %v3223 = vadd.s32 %v3222, %v3220
  %v3224 = vsel %vm927, %v3026, 2147483647
  %v3225 = vand.u32 %v3224, 65535
  %v3226 = vshra.s32 %v3224, 16
  %v3227 = vcvt.s32.f32 %v3225
  %v3228 = vcvt.s32.f32 %v3226
  %3229 = vmin.xlane.f32.xlu0 %v3228
  %v3230 = vpop.xlane.xlu0 %3229
  %vm3231 = vcmp.eq.f32.partialorder %v3228, %v3230
  %v3232 = vsel %vm3231, %v3227, inf
  %3233 = vmin.xlane.f32.xlu0 %v3232
  %v3234 = vpop.xlane.xlu0 %3233
  %v3235 = vcvt.f32.s32 %v3234
  %v3236 = vcvt.f32.s32 %v3230
  %v3237 = vshll.u32 %v3236, 16
  %v3238 = vadd.s32 %v3237, %v3235
  %v3239 = vsel %vm927, %v3027, 2147483647
  %v3240 = vand.u32 %v3239, 65535
  %v3241 = vshra.s32 %v3239, 16
  %v3242 = vcvt.s32.f32 %v3240
  %v3243 = vcvt.s32.f32 %v3241
  %3244 = vmin.xlane.f32.xlu0 %v3243
  %v3245 = vpop.xlane.xlu0 %3244
  %vm3246 = vcmp.eq.f32.partialorder %v3243, %v3245
  %v3247 = vsel %vm3246, %v3242, inf
  %3248 = vmin.xlane.f32.xlu0 %v3247
  %v3249 = vpop.xlane.xlu0 %3248
  %v3250 = vcvt.f32.s32 %v3249
  %v3251 = vcvt.f32.s32 %v3245
  %v3252 = vshll.u32 %v3251, 16
  %v3253 = vadd.s32 %v3252, %v3250
  %v3254 = vsel %vm927, %v3028, 2147483647
  %v3255 = vand.u32 %v3254, 65535
  %v3256 = vshra.s32 %v3254, 16
  %v3257 = vcvt.s32.f32 %v3255
  %v3258 = vcvt.s32.f32 %v3256
  %3259 = vmin.xlane.f32.xlu0 %v3258
  %v3260 = vpop.xlane.xlu0 %3259
  %vm3261 = vcmp.eq.f32.partialorder %v3258, %v3260
  %v3262 = vsel %vm3261, %v3257, inf
  %3263 = vmin.xlane.f32.xlu0 %v3262
  %v3264 = vpop.xlane.xlu0 %3263
  %v3265 = vcvt.f32.s32 %v3264
  %v3266 = vcvt.f32.s32 %v3260
  %v3267 = vshll.u32 %v3266, 16
  %v3268 = vadd.s32 %v3267, %v3265
  %vm3269 = vcmask 48168
  %3270 = vst.msk [vmem:[%s4] sm:$0xff] %vm3269, %v3043
  %3271 = vst.msk [vmem:[%s4 + $0x8] sm:$0xff] %vm3269, %v3058
  %3272 = vst.msk [vmem:[%s4 + $0x10] sm:$0xff] %vm3269, %v3073
  %3273 = vst.msk [vmem:[%s4 + $0x18] sm:$0xff] %vm3269, %v3088
  %3274 = vst.msk [vmem:[%s4 + $0x20] sm:$0xff] %vm3269, %v3103
  %3275 = vst.msk [vmem:[%s4 + $0x28] sm:$0xff] %vm3269, %v3118
  %3276 = vst.msk [vmem:[%s4 + $0x30] sm:$0xff] %vm3269, %v3133
  %3277 = vst.msk [vmem:[%s4 + $0x38] sm:$0xff] %vm3269, %v3148
  %3278 = vst.msk [vmem:[%s4 + $0x40] sm:$0xff] %vm3269, %v3163
  %3279 = vst.msk [vmem:[%s4 + $0x48] sm:$0xff] %vm3269, %v3178
  %3280 = vst.msk [vmem:[%s4 + $0x50] sm:$0xff] %vm3269, %v3193
  %3281 = vst.msk [vmem:[%s4 + $0x58] sm:$0xff] %vm3269, %v3208
  %3282 = vst.msk [vmem:[%s4 + $0x60] sm:$0xff] %vm3269, %v3223
  %3283 = vst.msk [vmem:[%s4 + $0x68] sm:$0xff] %vm3269, %v3238
  %3284 = vst.msk [vmem:[%s4 + $0x70] sm:$0xff] %vm3269, %v3253
  %3285 = vst.msk [vmem:[%s4 + $0x78] sm:$0xff] %vm3269, %v3268
  %3286 = vrot.lane.b32.xlu0 %v876, 80
  %v3287 = vpop.permute.xlu0 %3286
  %3288 = vrot.lane.b32.xlu0 %v877, 80
  %v3289 = vpop.permute.xlu0 %3288
  %3290 = vrot.lane.b32.xlu0 %v878, 80
  %v3291 = vpop.permute.xlu0 %3290
  %3292 = vrot.lane.b32.xlu0 %v879, 80
  %v3293 = vpop.permute.xlu0 %3292
  %3294 = vrot.lane.b32.xlu0 %v880, 80
  %v3295 = vpop.permute.xlu0 %3294
  %3296 = vrot.lane.b32.xlu0 %v881, 80
  %v3297 = vpop.permute.xlu0 %3296
  %3298 = vrot.lane.b32.xlu0 %v882, 80
  %v3299 = vpop.permute.xlu0 %3298
  %3300 = vrot.lane.b32.xlu0 %v883, 80
  %v3301 = vpop.permute.xlu0 %3300
  %3302 = vrot.lane.b32.xlu0 %v884, 80
  %v3303 = vpop.permute.xlu0 %3302
  %3304 = vrot.lane.b32.xlu0 %v885, 80
  %v3305 = vpop.permute.xlu0 %3304
  %3306 = vrot.lane.b32.xlu0 %v886, 80
  %v3307 = vpop.permute.xlu0 %3306
  %3308 = vrot.lane.b32.xlu0 %v887, 80
  %v3309 = vpop.permute.xlu0 %3308
  %3310 = vrot.lane.b32.xlu0 %v888, 80
  %v3311 = vpop.permute.xlu0 %3310
  %3312 = vrot.lane.b32.xlu0 %v889, 80
  %v3313 = vpop.permute.xlu0 %3312
  %3314 = vrot.lane.b32.xlu0 %v890, 80
  %v3315 = vpop.permute.xlu0 %3314
  %3316 = vrot.lane.b32.xlu0 %v891, 80
  %v3317 = vpop.permute.xlu0 %3316
  %v3334 = vsel %vm910, %v3287, -inf
  %v3335 = vsel %vm910, %v3289, -inf
  %v3336 = vsel %vm910, %v3291, -inf
  %v3337 = vsel %vm910, %v3293, -inf
  %v3338 = vsel %vm910, %v3295, -inf
  %v3339 = vsel %vm910, %v3297, -inf
  %v3340 = vsel %vm910, %v3299, -inf
  %v3341 = vsel %vm910, %v3301, -inf
  %v3342 = vsel %vm910, %v3303, -inf
  %v3343 = vsel %vm910, %v3305, -inf
  %v3344 = vsel %vm910, %v3307, -inf
  %v3345 = vsel %vm910, %v3309, -inf
  %v3346 = vsel %vm910, %v3311, -inf
  %v3347 = vsel %vm910, %v3313, -inf
  %v3348 = vsel %vm910, %v3315, -inf
  %v3349 = vsel %vm910, %v3317, -inf
  %v3350 = vsel %vm927, %v3334, -inf
  %3351 = vmax.xlane.f32.xlu0 %v3350
  %v3352 = vpop.xlane.xlu0 %3351
  %v3353 = vsel %vm927, %v3335, -inf
  %3354 = vmax.xlane.f32.xlu0 %v3353
  %v3355 = vpop.xlane.xlu0 %3354
  %v3356 = vsel %vm927, %v3336, -inf
  %3357 = vmax.xlane.f32.xlu0 %v3356
  %v3358 = vpop.xlane.xlu0 %3357
  %v3359 = vsel %vm927, %v3337, -inf
  %3360 = vmax.xlane.f32.xlu0 %v3359
  %v3361 = vpop.xlane.xlu0 %3360
  %v3362 = vsel %vm927, %v3338, -inf
  %3363 = vmax.xlane.f32.xlu0 %v3362
  %v3364 = vpop.xlane.xlu0 %3363
  %v3365 = vsel %vm927, %v3339, -inf
  %3366 = vmax.xlane.f32.xlu0 %v3365
  %v3367 = vpop.xlane.xlu0 %3366
  %v3368 = vsel %vm927, %v3340, -inf
  %3369 = vmax.xlane.f32.xlu0 %v3368
  %v3370 = vpop.xlane.xlu0 %3369
  %v3371 = vsel %vm927, %v3341, -inf
  %3372 = vmax.xlane.f32.xlu0 %v3371
  %v3373 = vpop.xlane.xlu0 %3372
  %v3374 = vsel %vm927, %v3342, -inf
  %3375 = vmax.xlane.f32.xlu0 %v3374
  %v3376 = vpop.xlane.xlu0 %3375
  %v3377 = vsel %vm927, %v3343, -inf
  %3378 = vmax.xlane.f32.xlu0 %v3377
  %v3379 = vpop.xlane.xlu0 %3378
  %v3380 = vsel %vm927, %v3344, -inf
  %3381 = vmax.xlane.f32.xlu0 %v3380
  %v3382 = vpop.xlane.xlu0 %3381
  %v3383 = vsel %vm927, %v3345, -inf
  %3384 = vmax.xlane.f32.xlu0 %v3383
  %v3385 = vpop.xlane.xlu0 %3384
  %v3386 = vsel %vm927, %v3346, -inf
  %3387 = vmax.xlane.f32.xlu0 %v3386
  %v3388 = vpop.xlane.xlu0 %3387
  %v3389 = vsel %vm927, %v3347, -inf
  %3390 = vmax.xlane.f32.xlu0 %v3389
  %v3391 = vpop.xlane.xlu0 %3390
  %v3392 = vsel %vm927, %v3348, -inf
  %3393 = vmax.xlane.f32.xlu0 %v3392
  %v3394 = vpop.xlane.xlu0 %3393
  %v3395 = vsel %vm927, %v3349, -inf
  %3396 = vmax.xlane.f32.xlu0 %v3395
  %v3397 = vpop.xlane.xlu0 %3396
  %vm3398 = vcmp.eq.f32.partialorder %v3334, %v3352
  %vm3399 = vcmp.eq.f32.partialorder %v3335, %v3355
  %vm3400 = vcmp.eq.f32.partialorder %v3336, %v3358
  %vm3401 = vcmp.eq.f32.partialorder %v3337, %v3361
  %vm3402 = vcmp.eq.f32.partialorder %v3338, %v3364
  %vm3403 = vcmp.eq.f32.partialorder %v3339, %v3367
  %vm3404 = vcmp.eq.f32.partialorder %v3340, %v3370
  %vm3405 = vcmp.eq.f32.partialorder %v3341, %v3373
  %vm3406 = vcmp.eq.f32.partialorder %v3342, %v3376
  %vm3407 = vcmp.eq.f32.partialorder %v3343, %v3379
  %vm3408 = vcmp.eq.f32.partialorder %v3344, %v3382
  %vm3409 = vcmp.eq.f32.partialorder %v3345, %v3385
  %vm3410 = vcmp.eq.f32.partialorder %v3346, %v3388
  %vm3411 = vcmp.eq.f32.partialorder %v3347, %v3391
  %vm3412 = vcmp.eq.f32.partialorder %v3348, %v3394
  %vm3413 = vcmp.eq.f32.partialorder %v3349, %v3397
  %v3414 = vsel %vm3398, %v909, 8
  %v3415 = vsel %vm3399, %v909, 8
  %v3416 = vsel %vm3400, %v909, 8
  %v3417 = vsel %vm3401, %v909, 8
  %v3418 = vsel %vm3402, %v909, 8
  %v3419 = vsel %vm3403, %v909, 8
  %v3420 = vsel %vm3404, %v909, 8
  %v3421 = vsel %vm3405, %v909, 8
  %v3422 = vsel %vm3406, %v909, 8
  %v3423 = vsel %vm3407, %v909, 8
  %v3424 = vsel %vm3408, %v909, 8
  %v3425 = vsel %vm3409, %v909, 8
  %v3426 = vsel %vm3410, %v909, 8
  %v3427 = vsel %vm3411, %v909, 8
  %v3428 = vsel %vm3412, %v909, 8
  %v3429 = vsel %vm3413, %v909, 8
  %v3430 = vsel %vm927, %v3414, 2147483647
  %v3431 = vand.u32 %v3430, 65535
  %v3432 = vshra.s32 %v3430, 16
  %v3433 = vcvt.s32.f32 %v3431
  %v3434 = vcvt.s32.f32 %v3432
  %3435 = vmin.xlane.f32.xlu0 %v3434
  %v3436 = vpop.xlane.xlu0 %3435
  %vm3437 = vcmp.eq.f32.partialorder %v3434, %v3436
  %v3438 = vsel %vm3437, %v3433, inf
  %3439 = vmin.xlane.f32.xlu0 %v3438
  %v3440 = vpop.xlane.xlu0 %3439
  %v3441 = vcvt.f32.s32 %v3440
  %v3442 = vcvt.f32.s32 %v3436
  %v3443 = vshll.u32 %v3442, 16
  %v3444 = vadd.s32 %v3443, %v3441
  %v3445 = vsel %vm927, %v3415, 2147483647
  %v3446 = vand.u32 %v3445, 65535
  %v3447 = vshra.s32 %v3445, 16
  %v3448 = vcvt.s32.f32 %v3446
  %v3449 = vcvt.s32.f32 %v3447
  %3450 = vmin.xlane.f32.xlu0 %v3449
  %v3451 = vpop.xlane.xlu0 %3450
  %vm3452 = vcmp.eq.f32.partialorder %v3449, %v3451
  %v3453 = vsel %vm3452, %v3448, inf
  %3454 = vmin.xlane.f32.xlu0 %v3453
  %v3455 = vpop.xlane.xlu0 %3454
  %v3456 = vcvt.f32.s32 %v3455
  %v3457 = vcvt.f32.s32 %v3451
  %v3458 = vshll.u32 %v3457, 16
  %v3459 = vadd.s32 %v3458, %v3456
  %v3460 = vsel %vm927, %v3416, 2147483647
  %v3461 = vand.u32 %v3460, 65535
  %v3462 = vshra.s32 %v3460, 16
  %v3463 = vcvt.s32.f32 %v3461
  %v3464 = vcvt.s32.f32 %v3462
  %3465 = vmin.xlane.f32.xlu0 %v3464
  %v3466 = vpop.xlane.xlu0 %3465
  %vm3467 = vcmp.eq.f32.partialorder %v3464, %v3466
  %v3468 = vsel %vm3467, %v3463, inf
  %3469 = vmin.xlane.f32.xlu0 %v3468
  %v3470 = vpop.xlane.xlu0 %3469
  %v3471 = vcvt.f32.s32 %v3470
  %v3472 = vcvt.f32.s32 %v3466
  %v3473 = vshll.u32 %v3472, 16
  %v3474 = vadd.s32 %v3473, %v3471
  %v3475 = vsel %vm927, %v3417, 2147483647
  %v3476 = vand.u32 %v3475, 65535
  %v3477 = vshra.s32 %v3475, 16
  %v3478 = vcvt.s32.f32 %v3476
  %v3479 = vcvt.s32.f32 %v3477
  %3480 = vmin.xlane.f32.xlu0 %v3479
  %v3481 = vpop.xlane.xlu0 %3480
  %vm3482 = vcmp.eq.f32.partialorder %v3479, %v3481
  %v3483 = vsel %vm3482, %v3478, inf
  %3484 = vmin.xlane.f32.xlu0 %v3483
  %v3485 = vpop.xlane.xlu0 %3484
  %v3486 = vcvt.f32.s32 %v3485
  %v3487 = vcvt.f32.s32 %v3481
  %v3488 = vshll.u32 %v3487, 16
  %v3489 = vadd.s32 %v3488, %v3486
  %v3490 = vsel %vm927, %v3418, 2147483647
  %v3491 = vand.u32 %v3490, 65535
  %v3492 = vshra.s32 %v3490, 16
  %v3493 = vcvt.s32.f32 %v3491
  %v3494 = vcvt.s32.f32 %v3492
  %3495 = vmin.xlane.f32.xlu0 %v3494
  %v3496 = vpop.xlane.xlu0 %3495
  %vm3497 = vcmp.eq.f32.partialorder %v3494, %v3496
  %v3498 = vsel %vm3497, %v3493, inf
  %3499 = vmin.xlane.f32.xlu0 %v3498
  %v3500 = vpop.xlane.xlu0 %3499
  %v3501 = vcvt.f32.s32 %v3500
  %v3502 = vcvt.f32.s32 %v3496
  %v3503 = vshll.u32 %v3502, 16
  %v3504 = vadd.s32 %v3503, %v3501
  %v3505 = vsel %vm927, %v3419, 2147483647
  %v3506 = vand.u32 %v3505, 65535
  %v3507 = vshra.s32 %v3505, 16
  %v3508 = vcvt.s32.f32 %v3506
  %v3509 = vcvt.s32.f32 %v3507
  %3510 = vmin.xlane.f32.xlu0 %v3509
  %v3511 = vpop.xlane.xlu0 %3510
  %vm3512 = vcmp.eq.f32.partialorder %v3509, %v3511
  %v3513 = vsel %vm3512, %v3508, inf
  %3514 = vmin.xlane.f32.xlu0 %v3513
  %v3515 = vpop.xlane.xlu0 %3514
  %v3516 = vcvt.f32.s32 %v3515
  %v3517 = vcvt.f32.s32 %v3511
  %v3518 = vshll.u32 %v3517, 16
  %v3519 = vadd.s32 %v3518, %v3516
  %v3520 = vsel %vm927, %v3420, 2147483647
  %v3521 = vand.u32 %v3520, 65535
  %v3522 = vshra.s32 %v3520, 16
  %v3523 = vcvt.s32.f32 %v3521
  %v3524 = vcvt.s32.f32 %v3522
  %3525 = vmin.xlane.f32.xlu0 %v3524
  %v3526 = vpop.xlane.xlu0 %3525
  %vm3527 = vcmp.eq.f32.partialorder %v3524, %v3526
  %v3528 = vsel %vm3527, %v3523, inf
  %3529 = vmin.xlane.f32.xlu0 %v3528
  %v3530 = vpop.xlane.xlu0 %3529
  %v3531 = vcvt.f32.s32 %v3530
  %v3532 = vcvt.f32.s32 %v3526
  %v3533 = vshll.u32 %v3532, 16
  %v3534 = vadd.s32 %v3533, %v3531
  %v3535 = vsel %vm927, %v3421, 2147483647
  %v3536 = vand.u32 %v3535, 65535
  %v3537 = vshra.s32 %v3535, 16
  %v3538 = vcvt.s32.f32 %v3536
  %v3539 = vcvt.s32.f32 %v3537
  %3540 = vmin.xlane.f32.xlu0 %v3539
  %v3541 = vpop.xlane.xlu0 %3540
  %vm3542 = vcmp.eq.f32.partialorder %v3539, %v3541
  %v3543 = vsel %vm3542, %v3538, inf
  %3544 = vmin.xlane.f32.xlu0 %v3543
  %v3545 = vpop.xlane.xlu0 %3544
  %v3546 = vcvt.f32.s32 %v3545
  %v3547 = vcvt.f32.s32 %v3541
  %v3548 = vshll.u32 %v3547, 16
  %v3549 = vadd.s32 %v3548, %v3546
  %v3550 = vsel %vm927, %v3422, 2147483647
  %v3551 = vand.u32 %v3550, 65535
  %v3552 = vshra.s32 %v3550, 16
  %v3553 = vcvt.s32.f32 %v3551
  %v3554 = vcvt.s32.f32 %v3552
  %3555 = vmin.xlane.f32.xlu0 %v3554
  %v3556 = vpop.xlane.xlu0 %3555
  %vm3557 = vcmp.eq.f32.partialorder %v3554, %v3556
  %v3558 = vsel %vm3557, %v3553, inf
  %3559 = vmin.xlane.f32.xlu0 %v3558
  %v3560 = vpop.xlane.xlu0 %3559
  %v3561 = vcvt.f32.s32 %v3560
  %v3562 = vcvt.f32.s32 %v3556
  %v3563 = vshll.u32 %v3562, 16
  %v3564 = vadd.s32 %v3563, %v3561
  %v3565 = vsel %vm927, %v3423, 2147483647
  %v3566 = vand.u32 %v3565, 65535
  %v3567 = vshra.s32 %v3565, 16
  %v3568 = vcvt.s32.f32 %v3566
  %v3569 = vcvt.s32.f32 %v3567
  %3570 = vmin.xlane.f32.xlu0 %v3569
  %v3571 = vpop.xlane.xlu0 %3570
  %vm3572 = vcmp.eq.f32.partialorder %v3569, %v3571
  %v3573 = vsel %vm3572, %v3568, inf
  %3574 = vmin.xlane.f32.xlu0 %v3573
  %v3575 = vpop.xlane.xlu0 %3574
  %v3576 = vcvt.f32.s32 %v3575
  %v3577 = vcvt.f32.s32 %v3571
  %v3578 = vshll.u32 %v3577, 16
  %v3579 = vadd.s32 %v3578, %v3576
  %v3580 = vsel %vm927, %v3424, 2147483647
  %v3581 = vand.u32 %v3580, 65535
  %v3582 = vshra.s32 %v3580, 16
  %v3583 = vcvt.s32.f32 %v3581
  %v3584 = vcvt.s32.f32 %v3582
  %3585 = vmin.xlane.f32.xlu0 %v3584
  %v3586 = vpop.xlane.xlu0 %3585
  %vm3587 = vcmp.eq.f32.partialorder %v3584, %v3586
  %v3588 = vsel %vm3587, %v3583, inf
  %3589 = vmin.xlane.f32.xlu0 %v3588
  %v3590 = vpop.xlane.xlu0 %3589
  %v3591 = vcvt.f32.s32 %v3590
  %v3592 = vcvt.f32.s32 %v3586
  %v3593 = vshll.u32 %v3592, 16
  %v3594 = vadd.s32 %v3593, %v3591
  %v3595 = vsel %vm927, %v3425, 2147483647
  %v3596 = vand.u32 %v3595, 65535
  %v3597 = vshra.s32 %v3595, 16
  %v3598 = vcvt.s32.f32 %v3596
  %v3599 = vcvt.s32.f32 %v3597
  %3600 = vmin.xlane.f32.xlu0 %v3599
  %v3601 = vpop.xlane.xlu0 %3600
  %vm3602 = vcmp.eq.f32.partialorder %v3599, %v3601
  %v3603 = vsel %vm3602, %v3598, inf
  %3604 = vmin.xlane.f32.xlu0 %v3603
  %v3605 = vpop.xlane.xlu0 %3604
  %v3606 = vcvt.f32.s32 %v3605
  %v3607 = vcvt.f32.s32 %v3601
  %v3608 = vshll.u32 %v3607, 16
  %v3609 = vadd.s32 %v3608, %v3606
  %v3610 = vsel %vm927, %v3426, 2147483647
  %v3611 = vand.u32 %v3610, 65535
  %v3612 = vshra.s32 %v3610, 16
  %v3613 = vcvt.s32.f32 %v3611
  %v3614 = vcvt.s32.f32 %v3612
  %3615 = vmin.xlane.f32.xlu0 %v3614
  %v3616 = vpop.xlane.xlu0 %3615
  %vm3617 = vcmp.eq.f32.partialorder %v3614, %v3616
  %v3618 = vsel %vm3617, %v3613, inf
  %3619 = vmin.xlane.f32.xlu0 %v3618
  %v3620 = vpop.xlane.xlu0 %3619
  %v3621 = vcvt.f32.s32 %v3620
  %v3622 = vcvt.f32.s32 %v3616
  %v3623 = vshll.u32 %v3622, 16
  %v3624 = vadd.s32 %v3623, %v3621
  %v3625 = vsel %vm927, %v3427, 2147483647
  %v3626 = vand.u32 %v3625, 65535
  %v3627 = vshra.s32 %v3625, 16
  %v3628 = vcvt.s32.f32 %v3626
  %v3629 = vcvt.s32.f32 %v3627
  %3630 = vmin.xlane.f32.xlu0 %v3629
  %v3631 = vpop.xlane.xlu0 %3630
  %vm3632 = vcmp.eq.f32.partialorder %v3629, %v3631
  %v3633 = vsel %vm3632, %v3628, inf
  %3634 = vmin.xlane.f32.xlu0 %v3633
  %v3635 = vpop.xlane.xlu0 %3634
  %v3636 = vcvt.f32.s32 %v3635
  %v3637 = vcvt.f32.s32 %v3631
  %v3638 = vshll.u32 %v3637, 16
  %v3639 = vadd.s32 %v3638, %v3636
  %v3640 = vsel %vm927, %v3428, 2147483647
  %v3641 = vand.u32 %v3640, 65535
  %v3642 = vshra.s32 %v3640, 16
  %v3643 = vcvt.s32.f32 %v3641
  %v3644 = vcvt.s32.f32 %v3642
  %3645 = vmin.xlane.f32.xlu0 %v3644
  %v3646 = vpop.xlane.xlu0 %3645
  %vm3647 = vcmp.eq.f32.partialorder %v3644, %v3646
  %v3648 = vsel %vm3647, %v3643, inf
  %3649 = vmin.xlane.f32.xlu0 %v3648
  %v3650 = vpop.xlane.xlu0 %3649
  %v3651 = vcvt.f32.s32 %v3650
  %v3652 = vcvt.f32.s32 %v3646
  %v3653 = vshll.u32 %v3652, 16
  %v3654 = vadd.s32 %v3653, %v3651
  %v3655 = vsel %vm927, %v3429, 2147483647
  %v3656 = vand.u32 %v3655, 65535
  %v3657 = vshra.s32 %v3655, 16
  %v3658 = vcvt.s32.f32 %v3656
  %v3659 = vcvt.s32.f32 %v3657
  %3660 = vmin.xlane.f32.xlu0 %v3659
  %v3661 = vpop.xlane.xlu0 %3660
  %vm3662 = vcmp.eq.f32.partialorder %v3659, %v3661
  %v3663 = vsel %vm3662, %v3658, inf
  %3664 = vmin.xlane.f32.xlu0 %v3663
  %v3665 = vpop.xlane.xlu0 %3664
  %v3666 = vcvt.f32.s32 %v3665
  %v3667 = vcvt.f32.s32 %v3661
  %v3668 = vshll.u32 %v3667, 16
  %v3669 = vadd.s32 %v3668, %v3666
  %vm3670 = vcmask 56368
  %3671 = vst.msk [vmem:[%s4] sm:$0xff] %vm3670, %v3444
  %3672 = vst.msk [vmem:[%s4 + $0x8] sm:$0xff] %vm3670, %v3459
  %3673 = vst.msk [vmem:[%s4 + $0x10] sm:$0xff] %vm3670, %v3474
  %3674 = vst.msk [vmem:[%s4 + $0x18] sm:$0xff] %vm3670, %v3489
  %3675 = vst.msk [vmem:[%s4 + $0x20] sm:$0xff] %vm3670, %v3504
  %3676 = vst.msk [vmem:[%s4 + $0x28] sm:$0xff] %vm3670, %v3519
  %3677 = vst.msk [vmem:[%s4 + $0x30] sm:$0xff] %vm3670, %v3534
  %3678 = vst.msk [vmem:[%s4 + $0x38] sm:$0xff] %vm3670, %v3549
  %3679 = vst.msk [vmem:[%s4 + $0x40] sm:$0xff] %vm3670, %v3564
  %3680 = vst.msk [vmem:[%s4 + $0x48] sm:$0xff] %vm3670, %v3579
  %3681 = vst.msk [vmem:[%s4 + $0x50] sm:$0xff] %vm3670, %v3594
  %3682 = vst.msk [vmem:[%s4 + $0x58] sm:$0xff] %vm3670, %v3609
  %3683 = vst.msk [vmem:[%s4 + $0x60] sm:$0xff] %vm3670, %v3624
  %3684 = vst.msk [vmem:[%s4 + $0x68] sm:$0xff] %vm3670, %v3639
  %3685 = vst.msk [vmem:[%s4 + $0x70] sm:$0xff] %vm3670, %v3654
  %3686 = vst.msk [vmem:[%s4 + $0x78] sm:$0xff] %vm3670, %v3669
  %3687 = vrot.lane.b32.xlu0 %v876, 72
  %v3688 = vpop.permute.xlu0 %3687
  %3689 = vrot.lane.b32.xlu0 %v877, 72
  %v3690 = vpop.permute.xlu0 %3689
  %3691 = vrot.lane.b32.xlu0 %v878, 72
  %v3692 = vpop.permute.xlu0 %3691
  %3693 = vrot.lane.b32.xlu0 %v879, 72
  %v3694 = vpop.permute.xlu0 %3693
  %3695 = vrot.lane.b32.xlu0 %v880, 72
  %v3696 = vpop.permute.xlu0 %3695
  %3697 = vrot.lane.b32.xlu0 %v881, 72
  %v3698 = vpop.permute.xlu0 %3697
  %3699 = vrot.lane.b32.xlu0 %v882, 72
  %v3700 = vpop.permute.xlu0 %3699
  %3701 = vrot.lane.b32.xlu0 %v883, 72
  %v3702 = vpop.permute.xlu0 %3701
  %3703 = vrot.lane.b32.xlu0 %v884, 72
  %v3704 = vpop.permute.xlu0 %3703
  %3705 = vrot.lane.b32.xlu0 %v885, 72
  %v3706 = vpop.permute.xlu0 %3705
  %3707 = vrot.lane.b32.xlu0 %v886, 72
  %v3708 = vpop.permute.xlu0 %3707
  %3709 = vrot.lane.b32.xlu0 %v887, 72
  %v3710 = vpop.permute.xlu0 %3709
  %3711 = vrot.lane.b32.xlu0 %v888, 72
  %v3712 = vpop.permute.xlu0 %3711
  %3713 = vrot.lane.b32.xlu0 %v889, 72
  %v3714 = vpop.permute.xlu0 %3713
  %3715 = vrot.lane.b32.xlu0 %v890, 72
  %v3716 = vpop.permute.xlu0 %3715
  %3717 = vrot.lane.b32.xlu0 %v891, 72
  %v3718 = vpop.permute.xlu0 %3717
  %v3735 = vsel %vm910, %v3688, -inf
  %v3736 = vsel %vm910, %v3690, -inf
  %v3737 = vsel %vm910, %v3692, -inf
  %v3738 = vsel %vm910, %v3694, -inf
  %v3739 = vsel %vm910, %v3696, -inf
  %v3740 = vsel %vm910, %v3698, -inf
  %v3741 = vsel %vm910, %v3700, -inf
  %v3742 = vsel %vm910, %v3702, -inf
  %v3743 = vsel %vm910, %v3704, -inf
  %v3744 = vsel %vm910, %v3706, -inf
  %v3745 = vsel %vm910, %v3708, -inf
  %v3746 = vsel %vm910, %v3710, -inf
  %v3747 = vsel %vm910, %v3712, -inf
  %v3748 = vsel %vm910, %v3714, -inf
  %v3749 = vsel %vm910, %v3716, -inf
  %v3750 = vsel %vm910, %v3718, -inf
  %v3751 = vsel %vm927, %v3735, -inf
  %3752 = vmax.xlane.f32.xlu0 %v3751
  %v3753 = vpop.xlane.xlu0 %3752
  %v3754 = vsel %vm927, %v3736, -inf
  %3755 = vmax.xlane.f32.xlu0 %v3754
  %v3756 = vpop.xlane.xlu0 %3755
  %v3757 = vsel %vm927, %v3737, -inf
  %3758 = vmax.xlane.f32.xlu0 %v3757
  %v3759 = vpop.xlane.xlu0 %3758
  %v3760 = vsel %vm927, %v3738, -inf
  %3761 = vmax.xlane.f32.xlu0 %v3760
  %v3762 = vpop.xlane.xlu0 %3761
  %v3763 = vsel %vm927, %v3739, -inf
  %3764 = vmax.xlane.f32.xlu0 %v3763
  %v3765 = vpop.xlane.xlu0 %3764
  %v3766 = vsel %vm927, %v3740, -inf
  %3767 = vmax.xlane.f32.xlu0 %v3766
  %v3768 = vpop.xlane.xlu0 %3767
  %v3769 = vsel %vm927, %v3741, -inf
  %3770 = vmax.xlane.f32.xlu0 %v3769
  %v3771 = vpop.xlane.xlu0 %3770
  %v3772 = vsel %vm927, %v3742, -inf
  %3773 = vmax.xlane.f32.xlu0 %v3772
  %v3774 = vpop.xlane.xlu0 %3773
  %v3775 = vsel %vm927, %v3743, -inf
  %3776 = vmax.xlane.f32.xlu0 %v3775
  %v3777 = vpop.xlane.xlu0 %3776
  %v3778 = vsel %vm927, %v3744, -inf
  %3779 = vmax.xlane.f32.xlu0 %v3778
  %v3780 = vpop.xlane.xlu0 %3779
  %v3781 = vsel %vm927, %v3745, -inf
  %3782 = vmax.xlane.f32.xlu0 %v3781
  %v3783 = vpop.xlane.xlu0 %3782
  %v3784 = vsel %vm927, %v3746, -inf
  %3785 = vmax.xlane.f32.xlu0 %v3784
  %v3786 = vpop.xlane.xlu0 %3785
  %v3787 = vsel %vm927, %v3747, -inf
  %3788 = vmax.xlane.f32.xlu0 %v3787
  %v3789 = vpop.xlane.xlu0 %3788
  %v3790 = vsel %vm927, %v3748, -inf
  %3791 = vmax.xlane.f32.xlu0 %v3790
  %v3792 = vpop.xlane.xlu0 %3791
  %v3793 = vsel %vm927, %v3749, -inf
  %3794 = vmax.xlane.f32.xlu0 %v3793
  %v3795 = vpop.xlane.xlu0 %3794
  %v3796 = vsel %vm927, %v3750, -inf
  %3797 = vmax.xlane.f32.xlu0 %v3796
  %v3798 = vpop.xlane.xlu0 %3797
  %vm3799 = vcmp.eq.f32.partialorder %v3735, %v3753
  %vm3800 = vcmp.eq.f32.partialorder %v3736, %v3756
  %vm3801 = vcmp.eq.f32.partialorder %v3737, %v3759
  %vm3802 = vcmp.eq.f32.partialorder %v3738, %v3762
  %vm3803 = vcmp.eq.f32.partialorder %v3739, %v3765
  %vm3804 = vcmp.eq.f32.partialorder %v3740, %v3768
  %vm3805 = vcmp.eq.f32.partialorder %v3741, %v3771
  %vm3806 = vcmp.eq.f32.partialorder %v3742, %v3774
  %vm3807 = vcmp.eq.f32.partialorder %v3743, %v3777
  %vm3808 = vcmp.eq.f32.partialorder %v3744, %v3780
  %vm3809 = vcmp.eq.f32.partialorder %v3745, %v3783
  %vm3810 = vcmp.eq.f32.partialorder %v3746, %v3786
  %vm3811 = vcmp.eq.f32.partialorder %v3747, %v3789
  %vm3812 = vcmp.eq.f32.partialorder %v3748, %v3792
  %vm3813 = vcmp.eq.f32.partialorder %v3749, %v3795
  %vm3814 = vcmp.eq.f32.partialorder %v3750, %v3798
  %v3815 = vsel %vm3799, %v909, 8
  %v3816 = vsel %vm3800, %v909, 8
  %v3817 = vsel %vm3801, %v909, 8
  %v3818 = vsel %vm3802, %v909, 8
  %v3819 = vsel %vm3803, %v909, 8
  %v3820 = vsel %vm3804, %v909, 8
  %v3821 = vsel %vm3805, %v909, 8
  %v3822 = vsel %vm3806, %v909, 8
  %v3823 = vsel %vm3807, %v909, 8
  %v3824 = vsel %vm3808, %v909, 8
  %v3825 = vsel %vm3809, %v909, 8
  %v3826 = vsel %vm3810, %v909, 8
  %v3827 = vsel %vm3811, %v909, 8
  %v3828 = vsel %vm3812, %v909, 8
  %v3829 = vsel %vm3813, %v909, 8
  %v3830 = vsel %vm3814, %v909, 8
  %v3831 = vsel %vm927, %v3815, 2147483647
  %v3832 = vand.u32 %v3831, 65535
  %v3833 = vshra.s32 %v3831, 16
  %v3834 = vcvt.s32.f32 %v3832
  %v3835 = vcvt.s32.f32 %v3833
  %3836 = vmin.xlane.f32.xlu0 %v3835
  %v3837 = vpop.xlane.xlu0 %3836
  %vm3838 = vcmp.eq.f32.partialorder %v3835, %v3837
  %v3839 = vsel %vm3838, %v3834, inf
  %3840 = vmin.xlane.f32.xlu0 %v3839
  %v3841 = vpop.xlane.xlu0 %3840
  %v3842 = vcvt.f32.s32 %v3841
  %v3843 = vcvt.f32.s32 %v3837
  %v3844 = vshll.u32 %v3843, 16
  %v3845 = vadd.s32 %v3844, %v3842
  %v3846 = vsel %vm927, %v3816, 2147483647
  %v3847 = vand.u32 %v3846, 65535
  %v3848 = vshra.s32 %v3846, 16
  %v3849 = vcvt.s32.f32 %v3847
  %v3850 = vcvt.s32.f32 %v3848
  %3851 = vmin.xlane.f32.xlu0 %v3850
  %v3852 = vpop.xlane.xlu0 %3851
  %vm3853 = vcmp.eq.f32.partialorder %v3850, %v3852
  %v3854 = vsel %vm3853, %v3849, inf
  %3855 = vmin.xlane.f32.xlu0 %v3854
  %v3856 = vpop.xlane.xlu0 %3855
  %v3857 = vcvt.f32.s32 %v3856
  %v3858 = vcvt.f32.s32 %v3852
  %v3859 = vshll.u32 %v3858, 16
  %v3860 = vadd.s32 %v3859, %v3857
  %v3861 = vsel %vm927, %v3817, 2147483647
  %v3862 = vand.u32 %v3861, 65535
  %v3863 = vshra.s32 %v3861, 16
  %v3864 = vcvt.s32.f32 %v3862
  %v3865 = vcvt.s32.f32 %v3863
  %3866 = vmin.xlane.f32.xlu0 %v3865
  %v3867 = vpop.xlane.xlu0 %3866
  %vm3868 = vcmp.eq.f32.partialorder %v3865, %v3867
  %v3869 = vsel %vm3868, %v3864, inf
  %3870 = vmin.xlane.f32.xlu0 %v3869
  %v3871 = vpop.xlane.xlu0 %3870
  %v3872 = vcvt.f32.s32 %v3871
  %v3873 = vcvt.f32.s32 %v3867
  %v3874 = vshll.u32 %v3873, 16
  %v3875 = vadd.s32 %v3874, %v3872
  %v3876 = vsel %vm927, %v3818, 2147483647
  %v3877 = vand.u32 %v3876, 65535
  %v3878 = vshra.s32 %v3876, 16
  %v3879 = vcvt.s32.f32 %v3877
  %v3880 = vcvt.s32.f32 %v3878
  %3881 = vmin.xlane.f32.xlu0 %v3880
  %v3882 = vpop.xlane.xlu0 %3881
  %vm3883 = vcmp.eq.f32.partialorder %v3880, %v3882
  %v3884 = vsel %vm3883, %v3879, inf
  %3885 = vmin.xlane.f32.xlu0 %v3884
  %v3886 = vpop.xlane.xlu0 %3885
  %v3887 = vcvt.f32.s32 %v3886
  %v3888 = vcvt.f32.s32 %v3882
  %v3889 = vshll.u32 %v3888, 16
  %v3890 = vadd.s32 %v3889, %v3887
  %v3891 = vsel %vm927, %v3819, 2147483647
  %v3892 = vand.u32 %v3891, 65535
  %v3893 = vshra.s32 %v3891, 16
  %v3894 = vcvt.s32.f32 %v3892
  %v3895 = vcvt.s32.f32 %v3893
  %3896 = vmin.xlane.f32.xlu0 %v3895
  %v3897 = vpop.xlane.xlu0 %3896
  %vm3898 = vcmp.eq.f32.partialorder %v3895, %v3897
  %v3899 = vsel %vm3898, %v3894, inf
  %3900 = vmin.xlane.f32.xlu0 %v3899
  %v3901 = vpop.xlane.xlu0 %3900
  %v3902 = vcvt.f32.s32 %v3901
  %v3903 = vcvt.f32.s32 %v3897
  %v3904 = vshll.u32 %v3903, 16
  %v3905 = vadd.s32 %v3904, %v3902
  %v3906 = vsel %vm927, %v3820, 2147483647
  %v3907 = vand.u32 %v3906, 65535
  %v3908 = vshra.s32 %v3906, 16
  %v3909 = vcvt.s32.f32 %v3907
  %v3910 = vcvt.s32.f32 %v3908
  %3911 = vmin.xlane.f32.xlu0 %v3910
  %v3912 = vpop.xlane.xlu0 %3911
  %vm3913 = vcmp.eq.f32.partialorder %v3910, %v3912
  %v3914 = vsel %vm3913, %v3909, inf
  %3915 = vmin.xlane.f32.xlu0 %v3914
  %v3916 = vpop.xlane.xlu0 %3915
  %v3917 = vcvt.f32.s32 %v3916
  %v3918 = vcvt.f32.s32 %v3912
  %v3919 = vshll.u32 %v3918, 16
  %v3920 = vadd.s32 %v3919, %v3917
  %v3921 = vsel %vm927, %v3821, 2147483647
  %v3922 = vand.u32 %v3921, 65535
  %v3923 = vshra.s32 %v3921, 16
  %v3924 = vcvt.s32.f32 %v3922
  %v3925 = vcvt.s32.f32 %v3923
  %3926 = vmin.xlane.f32.xlu0 %v3925
  %v3927 = vpop.xlane.xlu0 %3926
  %vm3928 = vcmp.eq.f32.partialorder %v3925, %v3927
  %v3929 = vsel %vm3928, %v3924, inf
  %3930 = vmin.xlane.f32.xlu0 %v3929
  %v3931 = vpop.xlane.xlu0 %3930
  %v3932 = vcvt.f32.s32 %v3931
  %v3933 = vcvt.f32.s32 %v3927
  %v3934 = vshll.u32 %v3933, 16
  %v3935 = vadd.s32 %v3934, %v3932
  %v3936 = vsel %vm927, %v3822, 2147483647
  %v3937 = vand.u32 %v3936, 65535
  %v3938 = vshra.s32 %v3936, 16
  %v3939 = vcvt.s32.f32 %v3937
  %v3940 = vcvt.s32.f32 %v3938
  %3941 = vmin.xlane.f32.xlu0 %v3940
  %v3942 = vpop.xlane.xlu0 %3941
  %vm3943 = vcmp.eq.f32.partialorder %v3940, %v3942
  %v3944 = vsel %vm3943, %v3939, inf
  %3945 = vmin.xlane.f32.xlu0 %v3944
  %v3946 = vpop.xlane.xlu0 %3945
  %v3947 = vcvt.f32.s32 %v3946
  %v3948 = vcvt.f32.s32 %v3942
  %v3949 = vshll.u32 %v3948, 16
  %v3950 = vadd.s32 %v3949, %v3947
  %v3951 = vsel %vm927, %v3823, 2147483647
  %v3952 = vand.u32 %v3951, 65535
  %v3953 = vshra.s32 %v3951, 16
  %v3954 = vcvt.s32.f32 %v3952
  %v3955 = vcvt.s32.f32 %v3953
  %3956 = vmin.xlane.f32.xlu0 %v3955
  %v3957 = vpop.xlane.xlu0 %3956
  %vm3958 = vcmp.eq.f32.partialorder %v3955, %v3957
  %v3959 = vsel %vm3958, %v3954, inf
  %3960 = vmin.xlane.f32.xlu0 %v3959
  %v3961 = vpop.xlane.xlu0 %3960
  %v3962 = vcvt.f32.s32 %v3961
  %v3963 = vcvt.f32.s32 %v3957
  %v3964 = vshll.u32 %v3963, 16
  %v3965 = vadd.s32 %v3964, %v3962
  %v3966 = vsel %vm927, %v3824, 2147483647
  %v3967 = vand.u32 %v3966, 65535
  %v3968 = vshra.s32 %v3966, 16
  %v3969 = vcvt.s32.f32 %v3967
  %v3970 = vcvt.s32.f32 %v3968
  %3971 = vmin.xlane.f32.xlu0 %v3970
  %v3972 = vpop.xlane.xlu0 %3971
  %vm3973 = vcmp.eq.f32.partialorder %v3970, %v3972
  %v3974 = vsel %vm3973, %v3969, inf
  %3975 = vmin.xlane.f32.xlu0 %v3974
  %v3976 = vpop.xlane.xlu0 %3975
  %v3977 = vcvt.f32.s32 %v3976
  %v3978 = vcvt.f32.s32 %v3972
  %v3979 = vshll.u32 %v3978, 16
  %v3980 = vadd.s32 %v3979, %v3977
  %v3981 = vsel %vm927, %v3825, 2147483647
  %v3982 = vand.u32 %v3981, 65535
  %v3983 = vshra.s32 %v3981, 16
  %v3984 = vcvt.s32.f32 %v3982
  %v3985 = vcvt.s32.f32 %v3983
  %3986 = vmin.xlane.f32.xlu0 %v3985
  %v3987 = vpop.xlane.xlu0 %3986
  %vm3988 = vcmp.eq.f32.partialorder %v3985, %v3987
  %v3989 = vsel %vm3988, %v3984, inf
  %3990 = vmin.xlane.f32.xlu0 %v3989
  %v3991 = vpop.xlane.xlu0 %3990
  %v3992 = vcvt.f32.s32 %v3991
  %v3993 = vcvt.f32.s32 %v3987
  %v3994 = vshll.u32 %v3993, 16
  %v3995 = vadd.s32 %v3994, %v3992
  %v3996 = vsel %vm927, %v3826, 2147483647
  %v3997 = vand.u32 %v3996, 65535
  %v3998 = vshra.s32 %v3996, 16
  %v3999 = vcvt.s32.f32 %v3997
  %v4000 = vcvt.s32.f32 %v3998
  %4001 = vmin.xlane.f32.xlu0 %v4000
  %v4002 = vpop.xlane.xlu0 %4001
  %vm4003 = vcmp.eq.f32.partialorder %v4000, %v4002
  %v4004 = vsel %vm4003, %v3999, inf
  %4005 = vmin.xlane.f32.xlu0 %v4004
  %v4006 = vpop.xlane.xlu0 %4005
  %v4007 = vcvt.f32.s32 %v4006
  %v4008 = vcvt.f32.s32 %v4002
  %v4009 = vshll.u32 %v4008, 16
  %v4010 = vadd.s32 %v4009, %v4007
  %v4011 = vsel %vm927, %v3827, 2147483647
  %v4012 = vand.u32 %v4011, 65535
  %v4013 = vshra.s32 %v4011, 16
  %v4014 = vcvt.s32.f32 %v4012
  %v4015 = vcvt.s32.f32 %v4013
  %4016 = vmin.xlane.f32.xlu0 %v4015
  %v4017 = vpop.xlane.xlu0 %4016
  %vm4018 = vcmp.eq.f32.partialorder %v4015, %v4017
  %v4019 = vsel %vm4018, %v4014, inf
  %4020 = vmin.xlane.f32.xlu0 %v4019
  %v4021 = vpop.xlane.xlu0 %4020
  %v4022 = vcvt.f32.s32 %v4021
  %v4023 = vcvt.f32.s32 %v4017
  %v4024 = vshll.u32 %v4023, 16
  %v4025 = vadd.s32 %v4024, %v4022
  %v4026 = vsel %vm927, %v3828, 2147483647
  %v4027 = vand.u32 %v4026, 65535
  %v4028 = vshra.s32 %v4026, 16
  %v4029 = vcvt.s32.f32 %v4027
  %v4030 = vcvt.s32.f32 %v4028
  %4031 = vmin.xlane.f32.xlu0 %v4030
  %v4032 = vpop.xlane.xlu0 %4031
  %vm4033 = vcmp.eq.f32.partialorder %v4030, %v4032
  %v4034 = vsel %vm4033, %v4029, inf
  %4035 = vmin.xlane.f32.xlu0 %v4034
  %v4036 = vpop.xlane.xlu0 %4035
  %v4037 = vcvt.f32.s32 %v4036
  %v4038 = vcvt.f32.s32 %v4032
  %v4039 = vshll.u32 %v4038, 16
  %v4040 = vadd.s32 %v4039, %v4037
  %v4041 = vsel %vm927, %v3829, 2147483647
  %v4042 = vand.u32 %v4041, 65535
  %v4043 = vshra.s32 %v4041, 16
  %v4044 = vcvt.s32.f32 %v4042
  %v4045 = vcvt.s32.f32 %v4043
  %4046 = vmin.xlane.f32.xlu0 %v4045
  %v4047 = vpop.xlane.xlu0 %4046
  %vm4048 = vcmp.eq.f32.partialorder %v4045, %v4047
  %v4049 = vsel %vm4048, %v4044, inf
  %4050 = vmin.xlane.f32.xlu0 %v4049
  %v4051 = vpop.xlane.xlu0 %4050
  %v4052 = vcvt.f32.s32 %v4051
  %v4053 = vcvt.f32.s32 %v4047
  %v4054 = vshll.u32 %v4053, 16
  %v4055 = vadd.s32 %v4054, %v4052
  %v4056 = vsel %vm927, %v3830, 2147483647
  %v4057 = vand.u32 %v4056, 65535
  %v4058 = vshra.s32 %v4056, 16
  %v4059 = vcvt.s32.f32 %v4057
  %v4060 = vcvt.s32.f32 %v4058
  %4061 = vmin.xlane.f32.xlu0 %v4060
  %v4062 = vpop.xlane.xlu0 %4061
  %vm4063 = vcmp.eq.f32.partialorder %v4060, %v4062
  %v4064 = vsel %vm4063, %v4059, inf
  %4065 = vmin.xlane.f32.xlu0 %v4064
  %v4066 = vpop.xlane.xlu0 %4065
  %v4067 = vcvt.f32.s32 %v4066
  %v4068 = vcvt.f32.s32 %v4062
  %v4069 = vshll.u32 %v4068, 16
  %v4070 = vadd.s32 %v4069, %v4067
  %vm4071 = vcmask 64568
  %4072 = vst.msk [vmem:[%s4] sm:$0xff] %vm4071, %v3845
  %4073 = vst.msk [vmem:[%s4 + $0x8] sm:$0xff] %vm4071, %v3860
  %4074 = vst.msk [vmem:[%s4 + $0x10] sm:$0xff] %vm4071, %v3875
  %4075 = vst.msk [vmem:[%s4 + $0x18] sm:$0xff] %vm4071, %v3890
  %4076 = vst.msk [vmem:[%s4 + $0x20] sm:$0xff] %vm4071, %v3905
  %4077 = vst.msk [vmem:[%s4 + $0x28] sm:$0xff] %vm4071, %v3920
  %4078 = vst.msk [vmem:[%s4 + $0x30] sm:$0xff] %vm4071, %v3935
  %4079 = vst.msk [vmem:[%s4 + $0x38] sm:$0xff] %vm4071, %v3950
  %4080 = vst.msk [vmem:[%s4 + $0x40] sm:$0xff] %vm4071, %v3965
  %4081 = vst.msk [vmem:[%s4 + $0x48] sm:$0xff] %vm4071, %v3980
  %4082 = vst.msk [vmem:[%s4 + $0x50] sm:$0xff] %vm4071, %v3995
  %4083 = vst.msk [vmem:[%s4 + $0x58] sm:$0xff] %vm4071, %v4010
  %4084 = vst.msk [vmem:[%s4 + $0x60] sm:$0xff] %vm4071, %v4025
  %4085 = vst.msk [vmem:[%s4 + $0x68] sm:$0xff] %vm4071, %v4040
  %4086 = vst.msk [vmem:[%s4 + $0x70] sm:$0xff] %vm4071, %v4055
  %4087 = vst.msk [vmem:[%s4 + $0x78] sm:$0xff] %vm4071, %v4070
  %4088 = vrot.lane.b32.xlu0 %v876, 64
  %v4089 = vpop.permute.xlu0 %4088
  %4090 = vrot.lane.b32.xlu0 %v877, 64
  %v4091 = vpop.permute.xlu0 %4090
  %4092 = vrot.lane.b32.xlu0 %v878, 64
  %v4093 = vpop.permute.xlu0 %4092
  %4094 = vrot.lane.b32.xlu0 %v879, 64
  %v4095 = vpop.permute.xlu0 %4094
  %4096 = vrot.lane.b32.xlu0 %v880, 64
  %v4097 = vpop.permute.xlu0 %4096
  %4098 = vrot.lane.b32.xlu0 %v881, 64
  %v4099 = vpop.permute.xlu0 %4098
  %4100 = vrot.lane.b32.xlu0 %v882, 64
  %v4101 = vpop.permute.xlu0 %4100
  %4102 = vrot.lane.b32.xlu0 %v883, 64
  %v4103 = vpop.permute.xlu0 %4102
  %4104 = vrot.lane.b32.xlu0 %v884, 64
  %v4105 = vpop.permute.xlu0 %4104
  %4106 = vrot.lane.b32.xlu0 %v885, 64
  %v4107 = vpop.permute.xlu0 %4106
  %4108 = vrot.lane.b32.xlu0 %v886, 64
  %v4109 = vpop.permute.xlu0 %4108
  %4110 = vrot.lane.b32.xlu0 %v887, 64
  %v4111 = vpop.permute.xlu0 %4110
  %4112 = vrot.lane.b32.xlu0 %v888, 64
  %v4113 = vpop.permute.xlu0 %4112
  %4114 = vrot.lane.b32.xlu0 %v889, 64
  %v4115 = vpop.permute.xlu0 %4114
  %4116 = vrot.lane.b32.xlu0 %v890, 64
  %v4117 = vpop.permute.xlu0 %4116
  %4118 = vrot.lane.b32.xlu0 %v891, 64
  %v4119 = vpop.permute.xlu0 %4118
  %v4136 = vsel %vm910, %v4089, -inf
  %v4137 = vsel %vm910, %v4091, -inf
  %v4138 = vsel %vm910, %v4093, -inf
  %v4139 = vsel %vm910, %v4095, -inf
  %v4140 = vsel %vm910, %v4097, -inf
  %v4141 = vsel %vm910, %v4099, -inf
  %v4142 = vsel %vm910, %v4101, -inf
  %v4143 = vsel %vm910, %v4103, -inf
  %v4144 = vsel %vm910, %v4105, -inf
  %v4145 = vsel %vm910, %v4107, -inf
  %v4146 = vsel %vm910, %v4109, -inf
  %v4147 = vsel %vm910, %v4111, -inf
  %v4148 = vsel %vm910, %v4113, -inf
  %v4149 = vsel %vm910, %v4115, -inf
  %v4150 = vsel %vm910, %v4117, -inf
  %v4151 = vsel %vm910, %v4119, -inf
  %v4152 = vsel %vm927, %v4136, -inf
  %4153 = vmax.xlane.f32.xlu0 %v4152
  %v4154 = vpop.xlane.xlu0 %4153
  %v4155 = vsel %vm927, %v4137, -inf
  %4156 = vmax.xlane.f32.xlu0 %v4155
  %v4157 = vpop.xlane.xlu0 %4156
  %v4158 = vsel %vm927, %v4138, -inf
  %4159 = vmax.xlane.f32.xlu0 %v4158
  %v4160 = vpop.xlane.xlu0 %4159
  %v4161 = vsel %vm927, %v4139, -inf
  %4162 = vmax.xlane.f32.xlu0 %v4161
  %v4163 = vpop.xlane.xlu0 %4162
  %v4164 = vsel %vm927, %v4140, -inf
  %4165 = vmax.xlane.f32.xlu0 %v4164
  %v4166 = vpop.xlane.xlu0 %4165
  %v4167 = vsel %vm927, %v4141, -inf
  %4168 = vmax.xlane.f32.xlu0 %v4167
  %v4169 = vpop.xlane.xlu0 %4168
  %v4170 = vsel %vm927, %v4142, -inf
  %4171 = vmax.xlane.f32.xlu0 %v4170
  %v4172 = vpop.xlane.xlu0 %4171
  %v4173 = vsel %vm927, %v4143, -inf
  %4174 = vmax.xlane.f32.xlu0 %v4173
  %v4175 = vpop.xlane.xlu0 %4174
  %v4176 = vsel %vm927, %v4144, -inf
  %4177 = vmax.xlane.f32.xlu0 %v4176
  %v4178 = vpop.xlane.xlu0 %4177
  %v4179 = vsel %vm927, %v4145, -inf
  %4180 = vmax.xlane.f32.xlu0 %v4179
  %v4181 = vpop.xlane.xlu0 %4180
  %v4182 = vsel %vm927, %v4146, -inf
  %4183 = vmax.xlane.f32.xlu0 %v4182
  %v4184 = vpop.xlane.xlu0 %4183
  %v4185 = vsel %vm927, %v4147, -inf
  %4186 = vmax.xlane.f32.xlu0 %v4185
  %v4187 = vpop.xlane.xlu0 %4186
  %v4188 = vsel %vm927, %v4148, -inf
  %4189 = vmax.xlane.f32.xlu0 %v4188
  %v4190 = vpop.xlane.xlu0 %4189
  %v4191 = vsel %vm927, %v4149, -inf
  %4192 = vmax.xlane.f32.xlu0 %v4191
  %v4193 = vpop.xlane.xlu0 %4192
  %v4194 = vsel %vm927, %v4150, -inf
  %4195 = vmax.xlane.f32.xlu0 %v4194
  %v4196 = vpop.xlane.xlu0 %4195
  %v4197 = vsel %vm927, %v4151, -inf
  %4198 = vmax.xlane.f32.xlu0 %v4197
  %v4199 = vpop.xlane.xlu0 %4198
  %vm4200 = vcmp.eq.f32.partialorder %v4136, %v4154
  %vm4201 = vcmp.eq.f32.partialorder %v4137, %v4157
  %vm4202 = vcmp.eq.f32.partialorder %v4138, %v4160
  %vm4203 = vcmp.eq.f32.partialorder %v4139, %v4163
  %vm4204 = vcmp.eq.f32.partialorder %v4140, %v4166
  %vm4205 = vcmp.eq.f32.partialorder %v4141, %v4169
  %vm4206 = vcmp.eq.f32.partialorder %v4142, %v4172
  %vm4207 = vcmp.eq.f32.partialorder %v4143, %v4175
  %vm4208 = vcmp.eq.f32.partialorder %v4144, %v4178
  %vm4209 = vcmp.eq.f32.partialorder %v4145, %v4181
  %vm4210 = vcmp.eq.f32.partialorder %v4146, %v4184
  %vm4211 = vcmp.eq.f32.partialorder %v4147, %v4187
  %vm4212 = vcmp.eq.f32.partialorder %v4148, %v4190
  %vm4213 = vcmp.eq.f32.partialorder %v4149, %v4193
  %vm4214 = vcmp.eq.f32.partialorder %v4150, %v4196
  %vm4215 = vcmp.eq.f32.partialorder %v4151, %v4199
  %v4216 = vsel %vm4200, %v909, 8
  %v4217 = vsel %vm4201, %v909, 8
  %v4218 = vsel %vm4202, %v909, 8
  %v4219 = vsel %vm4203, %v909, 8
  %v4220 = vsel %vm4204, %v909, 8
  %v4221 = vsel %vm4205, %v909, 8
  %v4222 = vsel %vm4206, %v909, 8
  %v4223 = vsel %vm4207, %v909, 8
  %v4224 = vsel %vm4208, %v909, 8
  %v4225 = vsel %vm4209, %v909, 8
  %v4226 = vsel %vm4210, %v909, 8
  %v4227 = vsel %vm4211, %v909, 8
  %v4228 = vsel %vm4212, %v909, 8
  %v4229 = vsel %vm4213, %v909, 8
  %v4230 = vsel %vm4214, %v909, 8
  %v4231 = vsel %vm4215, %v909, 8
  %v4232 = vsel %vm927, %v4216, 2147483647
  %v4233 = vand.u32 %v4232, 65535
  %v4234 = vshra.s32 %v4232, 16
  %v4235 = vcvt.s32.f32 %v4233
  %v4236 = vcvt.s32.f32 %v4234
  %4237 = vmin.xlane.f32.xlu0 %v4236
  %v4238 = vpop.xlane.xlu0 %4237
  %vm4239 = vcmp.eq.f32.partialorder %v4236, %v4238
  %v4240 = vsel %vm4239, %v4235, inf
  %4241 = vmin.xlane.f32.xlu0 %v4240
  %v4242 = vpop.xlane.xlu0 %4241
  %v4243 = vcvt.f32.s32 %v4242
  %v4244 = vcvt.f32.s32 %v4238
  %v4245 = vshll.u32 %v4244, 16
  %v4246 = vadd.s32 %v4245, %v4243
  %v4247 = vsel %vm927, %v4217, 2147483647
  %v4248 = vand.u32 %v4247, 65535
  %v4249 = vshra.s32 %v4247, 16
  %v4250 = vcvt.s32.f32 %v4248
  %v4251 = vcvt.s32.f32 %v4249
  %4252 = vmin.xlane.f32.xlu0 %v4251
  %v4253 = vpop.xlane.xlu0 %4252
  %vm4254 = vcmp.eq.f32.partialorder %v4251, %v4253
  %v4255 = vsel %vm4254, %v4250, inf
  %4256 = vmin.xlane.f32.xlu0 %v4255
  %v4257 = vpop.xlane.xlu0 %4256
  %v4258 = vcvt.f32.s32 %v4257
  %v4259 = vcvt.f32.s32 %v4253
  %v4260 = vshll.u32 %v4259, 16
  %v4261 = vadd.s32 %v4260, %v4258
  %v4262 = vsel %vm927, %v4218, 2147483647
  %v4263 = vand.u32 %v4262, 65535
  %v4264 = vshra.s32 %v4262, 16
  %v4265 = vcvt.s32.f32 %v4263
  %v4266 = vcvt.s32.f32 %v4264
  %4267 = vmin.xlane.f32.xlu0 %v4266
  %v4268 = vpop.xlane.xlu0 %4267
  %vm4269 = vcmp.eq.f32.partialorder %v4266, %v4268
  %v4270 = vsel %vm4269, %v4265, inf
  %4271 = vmin.xlane.f32.xlu0 %v4270
  %v4272 = vpop.xlane.xlu0 %4271
  %v4273 = vcvt.f32.s32 %v4272
  %v4274 = vcvt.f32.s32 %v4268
  %v4275 = vshll.u32 %v4274, 16
  %v4276 = vadd.s32 %v4275, %v4273
  %v4277 = vsel %vm927, %v4219, 2147483647
  %v4278 = vand.u32 %v4277, 65535
  %v4279 = vshra.s32 %v4277, 16
  %v4280 = vcvt.s32.f32 %v4278
  %v4281 = vcvt.s32.f32 %v4279
  %4282 = vmin.xlane.f32.xlu0 %v4281
  %v4283 = vpop.xlane.xlu0 %4282
  %vm4284 = vcmp.eq.f32.partialorder %v4281, %v4283
  %v4285 = vsel %vm4284, %v4280, inf
  %4286 = vmin.xlane.f32.xlu0 %v4285
  %v4287 = vpop.xlane.xlu0 %4286
  %v4288 = vcvt.f32.s32 %v4287
  %v4289 = vcvt.f32.s32 %v4283
  %v4290 = vshll.u32 %v4289, 16
  %v4291 = vadd.s32 %v4290, %v4288
  %v4292 = vsel %vm927, %v4220, 2147483647
  %v4293 = vand.u32 %v4292, 65535
  %v4294 = vshra.s32 %v4292, 16
  %v4295 = vcvt.s32.f32 %v4293
  %v4296 = vcvt.s32.f32 %v4294
  %4297 = vmin.xlane.f32.xlu0 %v4296
  %v4298 = vpop.xlane.xlu0 %4297
  %vm4299 = vcmp.eq.f32.partialorder %v4296, %v4298
  %v4300 = vsel %vm4299, %v4295, inf
  %4301 = vmin.xlane.f32.xlu0 %v4300
  %v4302 = vpop.xlane.xlu0 %4301
  %v4303 = vcvt.f32.s32 %v4302
  %v4304 = vcvt.f32.s32 %v4298
  %v4305 = vshll.u32 %v4304, 16
  %v4306 = vadd.s32 %v4305, %v4303
  %v4307 = vsel %vm927, %v4221, 2147483647
  %v4308 = vand.u32 %v4307, 65535
  %v4309 = vshra.s32 %v4307, 16
  %v4310 = vcvt.s32.f32 %v4308
  %v4311 = vcvt.s32.f32 %v4309
  %4312 = vmin.xlane.f32.xlu0 %v4311
  %v4313 = vpop.xlane.xlu0 %4312
  %vm4314 = vcmp.eq.f32.partialorder %v4311, %v4313
  %v4315 = vsel %vm4314, %v4310, inf
  %4316 = vmin.xlane.f32.xlu0 %v4315
  %v4317 = vpop.xlane.xlu0 %4316
  %v4318 = vcvt.f32.s32 %v4317
  %v4319 = vcvt.f32.s32 %v4313
  %v4320 = vshll.u32 %v4319, 16
  %v4321 = vadd.s32 %v4320, %v4318
  %v4322 = vsel %vm927, %v4222, 2147483647
  %v4323 = vand.u32 %v4322, 65535
  %v4324 = vshra.s32 %v4322, 16
  %v4325 = vcvt.s32.f32 %v4323
  %v4326 = vcvt.s32.f32 %v4324
  %4327 = vmin.xlane.f32.xlu0 %v4326
  %v4328 = vpop.xlane.xlu0 %4327
  %vm4329 = vcmp.eq.f32.partialorder %v4326, %v4328
  %v4330 = vsel %vm4329, %v4325, inf
  %4331 = vmin.xlane.f32.xlu0 %v4330
  %v4332 = vpop.xlane.xlu0 %4331
  %v4333 = vcvt.f32.s32 %v4332
  %v4334 = vcvt.f32.s32 %v4328
  %v4335 = vshll.u32 %v4334, 16
  %v4336 = vadd.s32 %v4335, %v4333
  %v4337 = vsel %vm927, %v4223, 2147483647
  %v4338 = vand.u32 %v4337, 65535
  %v4339 = vshra.s32 %v4337, 16
  %v4340 = vcvt.s32.f32 %v4338
  %v4341 = vcvt.s32.f32 %v4339
  %4342 = vmin.xlane.f32.xlu0 %v4341
  %v4343 = vpop.xlane.xlu0 %4342
  %vm4344 = vcmp.eq.f32.partialorder %v4341, %v4343
  %v4345 = vsel %vm4344, %v4340, inf
  %4346 = vmin.xlane.f32.xlu0 %v4345
  %v4347 = vpop.xlane.xlu0 %4346
  %v4348 = vcvt.f32.s32 %v4347
  %v4349 = vcvt.f32.s32 %v4343
  %v4350 = vshll.u32 %v4349, 16
  %v4351 = vadd.s32 %v4350, %v4348
  %v4352 = vsel %vm927, %v4224, 2147483647
  %v4353 = vand.u32 %v4352, 65535
  %v4354 = vshra.s32 %v4352, 16
  %v4355 = vcvt.s32.f32 %v4353
  %v4356 = vcvt.s32.f32 %v4354
  %4357 = vmin.xlane.f32.xlu0 %v4356
  %v4358 = vpop.xlane.xlu0 %4357
  %vm4359 = vcmp.eq.f32.partialorder %v4356, %v4358
  %v4360 = vsel %vm4359, %v4355, inf
  %4361 = vmin.xlane.f32.xlu0 %v4360
  %v4362 = vpop.xlane.xlu0 %4361
  %v4363 = vcvt.f32.s32 %v4362
  %v4364 = vcvt.f32.s32 %v4358
  %v4365 = vshll.u32 %v4364, 16
  %v4366 = vadd.s32 %v4365, %v4363
  %v4367 = vsel %vm927, %v4225, 2147483647
  %v4368 = vand.u32 %v4367, 65535
  %v4369 = vshra.s32 %v4367, 16
  %v4370 = vcvt.s32.f32 %v4368
  %v4371 = vcvt.s32.f32 %v4369
  %4372 = vmin.xlane.f32.xlu0 %v4371
  %v4373 = vpop.xlane.xlu0 %4372
  %vm4374 = vcmp.eq.f32.partialorder %v4371, %v4373
  %v4375 = vsel %vm4374, %v4370, inf
  %4376 = vmin.xlane.f32.xlu0 %v4375
  %v4377 = vpop.xlane.xlu0 %4376
  %v4378 = vcvt.f32.s32 %v4377
  %v4379 = vcvt.f32.s32 %v4373
  %v4380 = vshll.u32 %v4379, 16
  %v4381 = vadd.s32 %v4380, %v4378
  %v4382 = vsel %vm927, %v4226, 2147483647
  %v4383 = vand.u32 %v4382, 65535
  %v4384 = vshra.s32 %v4382, 16
  %v4385 = vcvt.s32.f32 %v4383
  %v4386 = vcvt.s32.f32 %v4384
  %4387 = vmin.xlane.f32.xlu0 %v4386
  %v4388 = vpop.xlane.xlu0 %4387
  %vm4389 = vcmp.eq.f32.partialorder %v4386, %v4388
  %v4390 = vsel %vm4389, %v4385, inf
  %4391 = vmin.xlane.f32.xlu0 %v4390
  %v4392 = vpop.xlane.xlu0 %4391
  %v4393 = vcvt.f32.s32 %v4392
  %v4394 = vcvt.f32.s32 %v4388
  %v4395 = vshll.u32 %v4394, 16
  %v4396 = vadd.s32 %v4395, %v4393
  %v4397 = vsel %vm927, %v4227, 2147483647
  %v4398 = vand.u32 %v4397, 65535
  %v4399 = vshra.s32 %v4397, 16
  %v4400 = vcvt.s32.f32 %v4398
  %v4401 = vcvt.s32.f32 %v4399
  %4402 = vmin.xlane.f32.xlu0 %v4401
  %v4403 = vpop.xlane.xlu0 %4402
  %vm4404 = vcmp.eq.f32.partialorder %v4401, %v4403
  %v4405 = vsel %vm4404, %v4400, inf
  %4406 = vmin.xlane.f32.xlu0 %v4405
  %v4407 = vpop.xlane.xlu0 %4406
  %v4408 = vcvt.f32.s32 %v4407
  %v4409 = vcvt.f32.s32 %v4403
  %v4410 = vshll.u32 %v4409, 16
  %v4411 = vadd.s32 %v4410, %v4408
  %v4412 = vsel %vm927, %v4228, 2147483647
  %v4413 = vand.u32 %v4412, 65535
  %v4414 = vshra.s32 %v4412, 16
  %v4415 = vcvt.s32.f32 %v4413
  %v4416 = vcvt.s32.f32 %v4414
  %4417 = vmin.xlane.f32.xlu0 %v4416
  %v4418 = vpop.xlane.xlu0 %4417
  %vm4419 = vcmp.eq.f32.partialorder %v4416, %v4418
  %v4420 = vsel %vm4419, %v4415, inf
  %4421 = vmin.xlane.f32.xlu0 %v4420
  %v4422 = vpop.xlane.xlu0 %4421
  %v4423 = vcvt.f32.s32 %v4422
  %v4424 = vcvt.f32.s32 %v4418
  %v4425 = vshll.u32 %v4424, 16
  %v4426 = vadd.s32 %v4425, %v4423
  %v4427 = vsel %vm927, %v4229, 2147483647
  %v4428 = vand.u32 %v4427, 65535
  %v4429 = vshra.s32 %v4427, 16
  %v4430 = vcvt.s32.f32 %v4428
  %v4431 = vcvt.s32.f32 %v4429
  %4432 = vmin.xlane.f32.xlu0 %v4431
  %v4433 = vpop.xlane.xlu0 %4432
  %vm4434 = vcmp.eq.f32.partialorder %v4431, %v4433
  %v4435 = vsel %vm4434, %v4430, inf
  %4436 = vmin.xlane.f32.xlu0 %v4435
  %v4437 = vpop.xlane.xlu0 %4436
  %v4438 = vcvt.f32.s32 %v4437
  %v4439 = vcvt.f32.s32 %v4433
  %v4440 = vshll.u32 %v4439, 16
  %v4441 = vadd.s32 %v4440, %v4438
  %v4442 = vsel %vm927, %v4230, 2147483647
  %v4443 = vand.u32 %v4442, 65535
  %v4444 = vshra.s32 %v4442, 16
  %v4445 = vcvt.s32.f32 %v4443
  %v4446 = vcvt.s32.f32 %v4444
  %4447 = vmin.xlane.f32.xlu0 %v4446
  %v4448 = vpop.xlane.xlu0 %4447
  %vm4449 = vcmp.eq.f32.partialorder %v4446, %v4448
  %v4450 = vsel %vm4449, %v4445, inf
  %4451 = vmin.xlane.f32.xlu0 %v4450
  %v4452 = vpop.xlane.xlu0 %4451
  %v4453 = vcvt.f32.s32 %v4452
  %v4454 = vcvt.f32.s32 %v4448
  %v4455 = vshll.u32 %v4454, 16
  %v4456 = vadd.s32 %v4455, %v4453
  %v4457 = vsel %vm927, %v4231, 2147483647
  %v4458 = vand.u32 %v4457, 65535
  %v4459 = vshra.s32 %v4457, 16
  %v4460 = vcvt.s32.f32 %v4458
  %v4461 = vcvt.s32.f32 %v4459
  %4462 = vmin.xlane.f32.xlu0 %v4461
  %v4463 = vpop.xlane.xlu0 %4462
  %vm4464 = vcmp.eq.f32.partialorder %v4461, %v4463
  %v4465 = vsel %vm4464, %v4460, inf
  %4466 = vmin.xlane.f32.xlu0 %v4465
  %v4467 = vpop.xlane.xlu0 %4466
  %v4468 = vcvt.f32.s32 %v4467
  %v4469 = vcvt.f32.s32 %v4463
  %v4470 = vshll.u32 %v4469, 16
  %v4471 = vadd.s32 %v4470, %v4468
  %vm4472 = vcmask 72768
  %4473 = vst.msk [vmem:[%s4] sm:$0xff] %vm4472, %v4246
  %4474 = vst.msk [vmem:[%s4 + $0x8] sm:$0xff] %vm4472, %v4261
  %4475 = vst.msk [vmem:[%s4 + $0x10] sm:$0xff] %vm4472, %v4276
  %4476 = vst.msk [vmem:[%s4 + $0x18] sm:$0xff] %vm4472, %v4291
  %4477 = vst.msk [vmem:[%s4 + $0x20] sm:$0xff] %vm4472, %v4306
  %4478 = vst.msk [vmem:[%s4 + $0x28] sm:$0xff] %vm4472, %v4321
  %4479 = vst.msk [vmem:[%s4 + $0x30] sm:$0xff] %vm4472, %v4336
  %4480 = vst.msk [vmem:[%s4 + $0x38] sm:$0xff] %vm4472, %v4351
  %4481 = vst.msk [vmem:[%s4 + $0x40] sm:$0xff] %vm4472, %v4366
  %4482 = vst.msk [vmem:[%s4 + $0x48] sm:$0xff] %vm4472, %v4381
  %4483 = vst.msk [vmem:[%s4 + $0x50] sm:$0xff] %vm4472, %v4396
  %4484 = vst.msk [vmem:[%s4 + $0x58] sm:$0xff] %vm4472, %v4411
  %4485 = vst.msk [vmem:[%s4 + $0x60] sm:$0xff] %vm4472, %v4426
  %4486 = vst.msk [vmem:[%s4 + $0x68] sm:$0xff] %vm4472, %v4441
  %4487 = vst.msk [vmem:[%s4 + $0x70] sm:$0xff] %vm4472, %v4456
  %4488 = vst.msk [vmem:[%s4 + $0x78] sm:$0xff] %vm4472, %v4471
  %4489 = vrot.lane.b32.xlu0 %v876, 56
  %v4490 = vpop.permute.xlu0 %4489
  %4491 = vrot.lane.b32.xlu0 %v877, 56
  %v4492 = vpop.permute.xlu0 %4491
  %4493 = vrot.lane.b32.xlu0 %v878, 56
  %v4494 = vpop.permute.xlu0 %4493
  %4495 = vrot.lane.b32.xlu0 %v879, 56
  %v4496 = vpop.permute.xlu0 %4495
  %4497 = vrot.lane.b32.xlu0 %v880, 56
  %v4498 = vpop.permute.xlu0 %4497
  %4499 = vrot.lane.b32.xlu0 %v881, 56
  %v4500 = vpop.permute.xlu0 %4499
  %4501 = vrot.lane.b32.xlu0 %v882, 56
  %v4502 = vpop.permute.xlu0 %4501
  %4503 = vrot.lane.b32.xlu0 %v883, 56
  %v4504 = vpop.permute.xlu0 %4503
  %4505 = vrot.lane.b32.xlu0 %v884, 56
  %v4506 = vpop.permute.xlu0 %4505
  %4507 = vrot.lane.b32.xlu0 %v885, 56
  %v4508 = vpop.permute.xlu0 %4507
  %4509 = vrot.lane.b32.xlu0 %v886, 56
  %v4510 = vpop.permute.xlu0 %4509
  %4511 = vrot.lane.b32.xlu0 %v887, 56
  %v4512 = vpop.permute.xlu0 %4511
  %4513 = vrot.lane.b32.xlu0 %v888, 56
  %v4514 = vpop.permute.xlu0 %4513
  %4515 = vrot.lane.b32.xlu0 %v889, 56
  %v4516 = vpop.permute.xlu0 %4515
  %4517 = vrot.lane.b32.xlu0 %v890, 56
  %v4518 = vpop.permute.xlu0 %4517
  %4519 = vrot.lane.b32.xlu0 %v891, 56
  %v4520 = vpop.permute.xlu0 %4519
  %v4537 = vsel %vm910, %v4490, -inf
  %v4538 = vsel %vm910, %v4492, -inf
  %v4539 = vsel %vm910, %v4494, -inf
  %v4540 = vsel %vm910, %v4496, -inf
  %v4541 = vsel %vm910, %v4498, -inf
  %v4542 = vsel %vm910, %v4500, -inf
  %v4543 = vsel %vm910, %v4502, -inf
  %v4544 = vsel %vm910, %v4504, -inf
  %v4545 = vsel %vm910, %v4506, -inf
  %v4546 = vsel %vm910, %v4508, -inf
  %v4547 = vsel %vm910, %v4510, -inf
  %v4548 = vsel %vm910, %v4512, -inf
  %v4549 = vsel %vm910, %v4514, -inf
  %v4550 = vsel %vm910, %v4516, -inf
  %v4551 = vsel %vm910, %v4518, -inf
  %v4552 = vsel %vm910, %v4520, -inf
  %v4553 = vsel %vm927, %v4537, -inf
  %4554 = vmax.xlane.f32.xlu0 %v4553
  %v4555 = vpop.xlane.xlu0 %4554
  %v4556 = vsel %vm927, %v4538, -inf
  %4557 = vmax.xlane.f32.xlu0 %v4556
  %v4558 = vpop.xlane.xlu0 %4557
  %v4559 = vsel %vm927, %v4539, -inf
  %4560 = vmax.xlane.f32.xlu0 %v4559
  %v4561 = vpop.xlane.xlu0 %4560
  %v4562 = vsel %vm927, %v4540, -inf
  %4563 = vmax.xlane.f32.xlu0 %v4562
  %v4564 = vpop.xlane.xlu0 %4563
  %v4565 = vsel %vm927, %v4541, -inf
  %4566 = vmax.xlane.f32.xlu0 %v4565
  %v4567 = vpop.xlane.xlu0 %4566
  %v4568 = vsel %vm927, %v4542, -inf
  %4569 = vmax.xlane.f32.xlu0 %v4568
  %v4570 = vpop.xlane.xlu0 %4569
  %v4571 = vsel %vm927, %v4543, -inf
  %4572 = vmax.xlane.f32.xlu0 %v4571
  %v4573 = vpop.xlane.xlu0 %4572
  %v4574 = vsel %vm927, %v4544, -inf
  %4575 = vmax.xlane.f32.xlu0 %v4574
  %v4576 = vpop.xlane.xlu0 %4575
  %v4577 = vsel %vm927, %v4545, -inf
  %4578 = vmax.xlane.f32.xlu0 %v4577
  %v4579 = vpop.xlane.xlu0 %4578
  %v4580 = vsel %vm927, %v4546, -inf
  %4581 = vmax.xlane.f32.xlu0 %v4580
  %v4582 = vpop.xlane.xlu0 %4581
  %v4583 = vsel %vm927, %v4547, -inf
  %4584 = vmax.xlane.f32.xlu0 %v4583
  %v4585 = vpop.xlane.xlu0 %4584
  %v4586 = vsel %vm927, %v4548, -inf
  %4587 = vmax.xlane.f32.xlu0 %v4586
  %v4588 = vpop.xlane.xlu0 %4587
  %v4589 = vsel %vm927, %v4549, -inf
  %4590 = vmax.xlane.f32.xlu0 %v4589
  %v4591 = vpop.xlane.xlu0 %4590
  %v4592 = vsel %vm927, %v4550, -inf
  %4593 = vmax.xlane.f32.xlu0 %v4592
  %v4594 = vpop.xlane.xlu0 %4593
  %v4595 = vsel %vm927, %v4551, -inf
  %4596 = vmax.xlane.f32.xlu0 %v4595
  %v4597 = vpop.xlane.xlu0 %4596
  %v4598 = vsel %vm927, %v4552, -inf
  %4599 = vmax.xlane.f32.xlu0 %v4598
  %v4600 = vpop.xlane.xlu0 %4599
  %vm4601 = vcmp.eq.f32.partialorder %v4537, %v4555
  %vm4602 = vcmp.eq.f32.partialorder %v4538, %v4558
  %vm4603 = vcmp.eq.f32.partialorder %v4539, %v4561
  %vm4604 = vcmp.eq.f32.partialorder %v4540, %v4564
  %vm4605 = vcmp.eq.f32.partialorder %v4541, %v4567
  %vm4606 = vcmp.eq.f32.partialorder %v4542, %v4570
  %vm4607 = vcmp.eq.f32.partialorder %v4543, %v4573
  %vm4608 = vcmp.eq.f32.partialorder %v4544, %v4576
  %vm4609 = vcmp.eq.f32.partialorder %v4545, %v4579
  %vm4610 = vcmp.eq.f32.partialorder %v4546, %v4582
  %vm4611 = vcmp.eq.f32.partialorder %v4547, %v4585
  %vm4612 = vcmp.eq.f32.partialorder %v4548, %v4588
  %vm4613 = vcmp.eq.f32.partialorder %v4549, %v4591
  %vm4614 = vcmp.eq.f32.partialorder %v4550, %v4594
  %vm4615 = vcmp.eq.f32.partialorder %v4551, %v4597
  %vm4616 = vcmp.eq.f32.partialorder %v4552, %v4600
  %v4617 = vsel %vm4601, %v909, 8
  %v4618 = vsel %vm4602, %v909, 8
  %v4619 = vsel %vm4603, %v909, 8
  %v4620 = vsel %vm4604, %v909, 8
  %v4621 = vsel %vm4605, %v909, 8
  %v4622 = vsel %vm4606, %v909, 8
  %v4623 = vsel %vm4607, %v909, 8
  %v4624 = vsel %vm4608, %v909, 8
  %v4625 = vsel %vm4609, %v909, 8
  %v4626 = vsel %vm4610, %v909, 8
  %v4627 = vsel %vm4611, %v909, 8
  %v4628 = vsel %vm4612, %v909, 8
  %v4629 = vsel %vm4613, %v909, 8
  %v4630 = vsel %vm4614, %v909, 8
  %v4631 = vsel %vm4615, %v909, 8
  %v4632 = vsel %vm4616, %v909, 8
  %v4633 = vsel %vm927, %v4617, 2147483647
  %v4634 = vand.u32 %v4633, 65535
  %v4635 = vshra.s32 %v4633, 16
  %v4636 = vcvt.s32.f32 %v4634
  %v4637 = vcvt.s32.f32 %v4635
  %4638 = vmin.xlane.f32.xlu0 %v4637
  %v4639 = vpop.xlane.xlu0 %4638
  %vm4640 = vcmp.eq.f32.partialorder %v4637, %v4639
  %v4641 = vsel %vm4640, %v4636, inf
  %4642 = vmin.xlane.f32.xlu0 %v4641
  %v4643 = vpop.xlane.xlu0 %4642
  %v4644 = vcvt.f32.s32 %v4643
  %v4645 = vcvt.f32.s32 %v4639
  %v4646 = vshll.u32 %v4645, 16
  %v4647 = vadd.s32 %v4646, %v4644
  %v4648 = vsel %vm927, %v4618, 2147483647
  %v4649 = vand.u32 %v4648, 65535
  %v4650 = vshra.s32 %v4648, 16
  %v4651 = vcvt.s32.f32 %v4649
  %v4652 = vcvt.s32.f32 %v4650
  %4653 = vmin.xlane.f32.xlu0 %v4652
  %v4654 = vpop.xlane.xlu0 %4653
  %vm4655 = vcmp.eq.f32.partialorder %v4652, %v4654
  %v4656 = vsel %vm4655, %v4651, inf
  %4657 = vmin.xlane.f32.xlu0 %v4656
  %v4658 = vpop.xlane.xlu0 %4657
  %v4659 = vcvt.f32.s32 %v4658
  %v4660 = vcvt.f32.s32 %v4654
  %v4661 = vshll.u32 %v4660, 16
  %v4662 = vadd.s32 %v4661, %v4659
  %v4663 = vsel %vm927, %v4619, 2147483647
  %v4664 = vand.u32 %v4663, 65535
  %v4665 = vshra.s32 %v4663, 16
  %v4666 = vcvt.s32.f32 %v4664
  %v4667 = vcvt.s32.f32 %v4665
  %4668 = vmin.xlane.f32.xlu0 %v4667
  %v4669 = vpop.xlane.xlu0 %4668
  %vm4670 = vcmp.eq.f32.partialorder %v4667, %v4669
  %v4671 = vsel %vm4670, %v4666, inf
  %4672 = vmin.xlane.f32.xlu0 %v4671
  %v4673 = vpop.xlane.xlu0 %4672
  %v4674 = vcvt.f32.s32 %v4673
  %v4675 = vcvt.f32.s32 %v4669
  %v4676 = vshll.u32 %v4675, 16
  %v4677 = vadd.s32 %v4676, %v4674
  %v4678 = vsel %vm927, %v4620, 2147483647
  %v4679 = vand.u32 %v4678, 65535
  %v4680 = vshra.s32 %v4678, 16
  %v4681 = vcvt.s32.f32 %v4679
  %v4682 = vcvt.s32.f32 %v4680
  %4683 = vmin.xlane.f32.xlu0 %v4682
  %v4684 = vpop.xlane.xlu0 %4683
  %vm4685 = vcmp.eq.f32.partialorder %v4682, %v4684
  %v4686 = vsel %vm4685, %v4681, inf
  %4687 = vmin.xlane.f32.xlu0 %v4686
  %v4688 = vpop.xlane.xlu0 %4687
  %v4689 = vcvt.f32.s32 %v4688
  %v4690 = vcvt.f32.s32 %v4684
  %v4691 = vshll.u32 %v4690, 16
  %v4692 = vadd.s32 %v4691, %v4689
  %v4693 = vsel %vm927, %v4621, 2147483647
  %v4694 = vand.u32 %v4693, 65535
  %v4695 = vshra.s32 %v4693, 16
  %v4696 = vcvt.s32.f32 %v4694
  %v4697 = vcvt.s32.f32 %v4695
  %4698 = vmin.xlane.f32.xlu0 %v4697
  %v4699 = vpop.xlane.xlu0 %4698
  %vm4700 = vcmp.eq.f32.partialorder %v4697, %v4699
  %v4701 = vsel %vm4700, %v4696, inf
  %4702 = vmin.xlane.f32.xlu0 %v4701
  %v4703 = vpop.xlane.xlu0 %4702
  %v4704 = vcvt.f32.s32 %v4703
  %v4705 = vcvt.f32.s32 %v4699
  %v4706 = vshll.u32 %v4705, 16
  %v4707 = vadd.s32 %v4706, %v4704
  %v4708 = vsel %vm927, %v4622, 2147483647
  %v4709 = vand.u32 %v4708, 65535
  %v4710 = vshra.s32 %v4708, 16
  %v4711 = vcvt.s32.f32 %v4709
  %v4712 = vcvt.s32.f32 %v4710
  %4713 = vmin.xlane.f32.xlu0 %v4712
  %v4714 = vpop.xlane.xlu0 %4713
  %vm4715 = vcmp.eq.f32.partialorder %v4712, %v4714
  %v4716 = vsel %vm4715, %v4711, inf
  %4717 = vmin.xlane.f32.xlu0 %v4716
  %v4718 = vpop.xlane.xlu0 %4717
  %v4719 = vcvt.f32.s32 %v4718
  %v4720 = vcvt.f32.s32 %v4714
  %v4721 = vshll.u32 %v4720, 16
  %v4722 = vadd.s32 %v4721, %v4719
  %v4723 = vsel %vm927, %v4623, 2147483647
  %v4724 = vand.u32 %v4723, 65535
  %v4725 = vshra.s32 %v4723, 16
  %v4726 = vcvt.s32.f32 %v4724
  %v4727 = vcvt.s32.f32 %v4725
  %4728 = vmin.xlane.f32.xlu0 %v4727
  %v4729 = vpop.xlane.xlu0 %4728
  %vm4730 = vcmp.eq.f32.partialorder %v4727, %v4729
  %v4731 = vsel %vm4730, %v4726, inf
  %4732 = vmin.xlane.f32.xlu0 %v4731
  %v4733 = vpop.xlane.xlu0 %4732
  %v4734 = vcvt.f32.s32 %v4733
  %v4735 = vcvt.f32.s32 %v4729
  %v4736 = vshll.u32 %v4735, 16
  %v4737 = vadd.s32 %v4736, %v4734
  %v4738 = vsel %vm927, %v4624, 2147483647
  %v4739 = vand.u32 %v4738, 65535
  %v4740 = vshra.s32 %v4738, 16
  %v4741 = vcvt.s32.f32 %v4739
  %v4742 = vcvt.s32.f32 %v4740
  %4743 = vmin.xlane.f32.xlu0 %v4742
  %v4744 = vpop.xlane.xlu0 %4743
  %vm4745 = vcmp.eq.f32.partialorder %v4742, %v4744
  %v4746 = vsel %vm4745, %v4741, inf
  %4747 = vmin.xlane.f32.xlu0 %v4746
  %v4748 = vpop.xlane.xlu0 %4747
  %v4749 = vcvt.f32.s32 %v4748
  %v4750 = vcvt.f32.s32 %v4744
  %v4751 = vshll.u32 %v4750, 16
  %v4752 = vadd.s32 %v4751, %v4749
  %v4753 = vsel %vm927, %v4625, 2147483647
  %v4754 = vand.u32 %v4753, 65535
  %v4755 = vshra.s32 %v4753, 16
  %v4756 = vcvt.s32.f32 %v4754
  %v4757 = vcvt.s32.f32 %v4755
  %4758 = vmin.xlane.f32.xlu0 %v4757
  %v4759 = vpop.xlane.xlu0 %4758
  %vm4760 = vcmp.eq.f32.partialorder %v4757, %v4759
  %v4761 = vsel %vm4760, %v4756, inf
  %4762 = vmin.xlane.f32.xlu0 %v4761
  %v4763 = vpop.xlane.xlu0 %4762
  %v4764 = vcvt.f32.s32 %v4763
  %v4765 = vcvt.f32.s32 %v4759
  %v4766 = vshll.u32 %v4765, 16
  %v4767 = vadd.s32 %v4766, %v4764
  %v4768 = vsel %vm927, %v4626, 2147483647
  %v4769 = vand.u32 %v4768, 65535
  %v4770 = vshra.s32 %v4768, 16
  %v4771 = vcvt.s32.f32 %v4769
  %v4772 = vcvt.s32.f32 %v4770
  %4773 = vmin.xlane.f32.xlu0 %v4772
  %v4774 = vpop.xlane.xlu0 %4773
  %vm4775 = vcmp.eq.f32.partialorder %v4772, %v4774
  %v4776 = vsel %vm4775, %v4771, inf
  %4777 = vmin.xlane.f32.xlu0 %v4776
  %v4778 = vpop.xlane.xlu0 %4777
  %v4779 = vcvt.f32.s32 %v4778
  %v4780 = vcvt.f32.s32 %v4774
  %v4781 = vshll.u32 %v4780, 16
  %v4782 = vadd.s32 %v4781, %v4779
  %v4783 = vsel %vm927, %v4627, 2147483647
  %v4784 = vand.u32 %v4783, 65535
  %v4785 = vshra.s32 %v4783, 16
  %v4786 = vcvt.s32.f32 %v4784
  %v4787 = vcvt.s32.f32 %v4785
  %4788 = vmin.xlane.f32.xlu0 %v4787
  %v4789 = vpop.xlane.xlu0 %4788
  %vm4790 = vcmp.eq.f32.partialorder %v4787, %v4789
  %v4791 = vsel %vm4790, %v4786, inf
  %4792 = vmin.xlane.f32.xlu0 %v4791
  %v4793 = vpop.xlane.xlu0 %4792
  %v4794 = vcvt.f32.s32 %v4793
  %v4795 = vcvt.f32.s32 %v4789
  %v4796 = vshll.u32 %v4795, 16
  %v4797 = vadd.s32 %v4796, %v4794
  %v4798 = vsel %vm927, %v4628, 2147483647
  %v4799 = vand.u32 %v4798, 65535
  %v4800 = vshra.s32 %v4798, 16
  %v4801 = vcvt.s32.f32 %v4799
  %v4802 = vcvt.s32.f32 %v4800
  %4803 = vmin.xlane.f32.xlu0 %v4802
  %v4804 = vpop.xlane.xlu0 %4803
  %vm4805 = vcmp.eq.f32.partialorder %v4802, %v4804
  %v4806 = vsel %vm4805, %v4801, inf
  %4807 = vmin.xlane.f32.xlu0 %v4806
  %v4808 = vpop.xlane.xlu0 %4807
  %v4809 = vcvt.f32.s32 %v4808
  %v4810 = vcvt.f32.s32 %v4804
  %v4811 = vshll.u32 %v4810, 16
  %v4812 = vadd.s32 %v4811, %v4809
  %v4813 = vsel %vm927, %v4629, 2147483647
  %v4814 = vand.u32 %v4813, 65535
  %v4815 = vshra.s32 %v4813, 16
  %v4816 = vcvt.s32.f32 %v4814
  %v4817 = vcvt.s32.f32 %v4815
  %4818 = vmin.xlane.f32.xlu0 %v4817
  %v4819 = vpop.xlane.xlu0 %4818
  %vm4820 = vcmp.eq.f32.partialorder %v4817, %v4819
  %v4821 = vsel %vm4820, %v4816, inf
  %4822 = vmin.xlane.f32.xlu0 %v4821
  %v4823 = vpop.xlane.xlu0 %4822
  %v4824 = vcvt.f32.s32 %v4823
  %v4825 = vcvt.f32.s32 %v4819
  %v4826 = vshll.u32 %v4825, 16
  %v4827 = vadd.s32 %v4826, %v4824
  %v4828 = vsel %vm927, %v4630, 2147483647
  %v4829 = vand.u32 %v4828, 65535
  %v4830 = vshra.s32 %v4828, 16
  %v4831 = vcvt.s32.f32 %v4829
  %v4832 = vcvt.s32.f32 %v4830
  %4833 = vmin.xlane.f32.xlu0 %v4832
  %v4834 = vpop.xlane.xlu0 %4833
  %vm4835 = vcmp.eq.f32.partialorder %v4832, %v4834
  %v4836 = vsel %vm4835, %v4831, inf
  %4837 = vmin.xlane.f32.xlu0 %v4836
  %v4838 = vpop.xlane.xlu0 %4837
  %v4839 = vcvt.f32.s32 %v4838
  %v4840 = vcvt.f32.s32 %v4834
  %v4841 = vshll.u32 %v4840, 16
  %v4842 = vadd.s32 %v4841, %v4839
  %v4843 = vsel %vm927, %v4631, 2147483647
  %v4844 = vand.u32 %v4843, 65535
  %v4845 = vshra.s32 %v4843, 16
  %v4846 = vcvt.s32.f32 %v4844
  %v4847 = vcvt.s32.f32 %v4845
  %4848 = vmin.xlane.f32.xlu0 %v4847
  %v4849 = vpop.xlane.xlu0 %4848
  %vm4850 = vcmp.eq.f32.partialorder %v4847, %v4849
  %v4851 = vsel %vm4850, %v4846, inf
  %4852 = vmin.xlane.f32.xlu0 %v4851
  %v4853 = vpop.xlane.xlu0 %4852
  %v4854 = vcvt.f32.s32 %v4853
  %v4855 = vcvt.f32.s32 %v4849
  %v4856 = vshll.u32 %v4855, 16
  %v4857 = vadd.s32 %v4856, %v4854
  %v4858 = vsel %vm927, %v4632, 2147483647
  %v4859 = vand.u32 %v4858, 65535
  %v4860 = vshra.s32 %v4858, 16
  %v4861 = vcvt.s32.f32 %v4859
  %v4862 = vcvt.s32.f32 %v4860
  %4863 = vmin.xlane.f32.xlu0 %v4862
  %v4864 = vpop.xlane.xlu0 %4863
  %vm4865 = vcmp.eq.f32.partialorder %v4862, %v4864
  %v4866 = vsel %vm4865, %v4861, inf
  %4867 = vmin.xlane.f32.xlu0 %v4866
  %v4868 = vpop.xlane.xlu0 %4867
  %v4869 = vcvt.f32.s32 %v4868
  %v4870 = vcvt.f32.s32 %v4864
  %v4871 = vshll.u32 %v4870, 16
  %v4872 = vadd.s32 %v4871, %v4869
  %vm4873 = vcmask 80968
  %4874 = vst.msk [vmem:[%s4] sm:$0xff] %vm4873, %v4647
  %4875 = vst.msk [vmem:[%s4 + $0x8] sm:$0xff] %vm4873, %v4662
  %4876 = vst.msk [vmem:[%s4 + $0x10] sm:$0xff] %vm4873, %v4677
  %4877 = vst.msk [vmem:[%s4 + $0x18] sm:$0xff] %vm4873, %v4692
  %4878 = vst.msk [vmem:[%s4 + $0x20] sm:$0xff] %vm4873, %v4707
  %4879 = vst.msk [vmem:[%s4 + $0x28] sm:$0xff] %vm4873, %v4722
  %4880 = vst.msk [vmem:[%s4 + $0x30] sm:$0xff] %vm4873, %v4737
  %4881 = vst.msk [vmem:[%s4 + $0x38] sm:$0xff] %vm4873, %v4752
  %4882 = vst.msk [vmem:[%s4 + $0x40] sm:$0xff] %vm4873, %v4767
  %4883 = vst.msk [vmem:[%s4 + $0x48] sm:$0xff] %vm4873, %v4782
  %4884 = vst.msk [vmem:[%s4 + $0x50] sm:$0xff] %vm4873, %v4797
  %4885 = vst.msk [vmem:[%s4 + $0x58] sm:$0xff] %vm4873, %v4812
  %4886 = vst.msk [vmem:[%s4 + $0x60] sm:$0xff] %vm4873, %v4827
  %4887 = vst.msk [vmem:[%s4 + $0x68] sm:$0xff] %vm4873, %v4842
  %4888 = vst.msk [vmem:[%s4 + $0x70] sm:$0xff] %vm4873, %v4857
  %4889 = vst.msk [vmem:[%s4 + $0x78] sm:$0xff] %vm4873, %v4872
  %4890 = vrot.lane.b32.xlu0 %v876, 48
  %v4891 = vpop.permute.xlu0 %4890
  %4892 = vrot.lane.b32.xlu0 %v877, 48
  %v4893 = vpop.permute.xlu0 %4892
  %4894 = vrot.lane.b32.xlu0 %v878, 48
  %v4895 = vpop.permute.xlu0 %4894
  %4896 = vrot.lane.b32.xlu0 %v879, 48
  %v4897 = vpop.permute.xlu0 %4896
  %4898 = vrot.lane.b32.xlu0 %v880, 48
  %v4899 = vpop.permute.xlu0 %4898
  %4900 = vrot.lane.b32.xlu0 %v881, 48
  %v4901 = vpop.permute.xlu0 %4900
  %4902 = vrot.lane.b32.xlu0 %v882, 48
  %v4903 = vpop.permute.xlu0 %4902
  %4904 = vrot.lane.b32.xlu0 %v883, 48
  %v4905 = vpop.permute.xlu0 %4904
  %4906 = vrot.lane.b32.xlu0 %v884, 48
  %v4907 = vpop.permute.xlu0 %4906
  %4908 = vrot.lane.b32.xlu0 %v885, 48
  %v4909 = vpop.permute.xlu0 %4908
  %4910 = vrot.lane.b32.xlu0 %v886, 48
  %v4911 = vpop.permute.xlu0 %4910
  %4912 = vrot.lane.b32.xlu0 %v887, 48
  %v4913 = vpop.permute.xlu0 %4912
  %4914 = vrot.lane.b32.xlu0 %v888, 48
  %v4915 = vpop.permute.xlu0 %4914
  %4916 = vrot.lane.b32.xlu0 %v889, 48
  %v4917 = vpop.permute.xlu0 %4916
  %4918 = vrot.lane.b32.xlu0 %v890, 48
  %v4919 = vpop.permute.xlu0 %4918
  %4920 = vrot.lane.b32.xlu0 %v891, 48
  %v4921 = vpop.permute.xlu0 %4920
  %v4938 = vsel %vm910, %v4891, -inf
  %v4939 = vsel %vm910, %v4893, -inf
  %v4940 = vsel %vm910, %v4895, -inf
  %v4941 = vsel %vm910, %v4897, -inf
  %v4942 = vsel %vm910, %v4899, -inf
  %v4943 = vsel %vm910, %v4901, -inf
  %v4944 = vsel %vm910, %v4903, -inf
  %v4945 = vsel %vm910, %v4905, -inf
  %v4946 = vsel %vm910, %v4907, -inf
  %v4947 = vsel %vm910, %v4909, -inf
  %v4948 = vsel %vm910, %v4911, -inf
  %v4949 = vsel %vm910, %v4913, -inf
  %v4950 = vsel %vm910, %v4915, -inf
  %v4951 = vsel %vm910, %v4917, -inf
  %v4952 = vsel %vm910, %v4919, -inf
  %v4953 = vsel %vm910, %v4921, -inf
  %v4954 = vsel %vm927, %v4938, -inf
  %4955 = vmax.xlane.f32.xlu0 %v4954
  %v4956 = vpop.xlane.xlu0 %4955
  %v4957 = vsel %vm927, %v4939, -inf
  %4958 = vmax.xlane.f32.xlu0 %v4957
  %v4959 = vpop.xlane.xlu0 %4958
  %v4960 = vsel %vm927, %v4940, -inf
  %4961 = vmax.xlane.f32.xlu0 %v4960
  %v4962 = vpop.xlane.xlu0 %4961
  %v4963 = vsel %vm927, %v4941, -inf
  %4964 = vmax.xlane.f32.xlu0 %v4963
  %v4965 = vpop.xlane.xlu0 %4964
  %v4966 = vsel %vm927, %v4942, -inf
  %4967 = vmax.xlane.f32.xlu0 %v4966
  %v4968 = vpop.xlane.xlu0 %4967
  %v4969 = vsel %vm927, %v4943, -inf
  %4970 = vmax.xlane.f32.xlu0 %v4969
  %v4971 = vpop.xlane.xlu0 %4970
  %v4972 = vsel %vm927, %v4944, -inf
  %4973 = vmax.xlane.f32.xlu0 %v4972
  %v4974 = vpop.xlane.xlu0 %4973
  %v4975 = vsel %vm927, %v4945, -inf
  %4976 = vmax.xlane.f32.xlu0 %v4975
  %v4977 = vpop.xlane.xlu0 %4976
  %v4978 = vsel %vm927, %v4946, -inf
  %4979 = vmax.xlane.f32.xlu0 %v4978
  %v4980 = vpop.xlane.xlu0 %4979
  %v4981 = vsel %vm927, %v4947, -inf
  %4982 = vmax.xlane.f32.xlu0 %v4981
  %v4983 = vpop.xlane.xlu0 %4982
  %v4984 = vsel %vm927, %v4948, -inf
  %4985 = vmax.xlane.f32.xlu0 %v4984
  %v4986 = vpop.xlane.xlu0 %4985
  %v4987 = vsel %vm927, %v4949, -inf
  %4988 = vmax.xlane.f32.xlu0 %v4987
  %v4989 = vpop.xlane.xlu0 %4988
  %v4990 = vsel %vm927, %v4950, -inf
  %4991 = vmax.xlane.f32.xlu0 %v4990
  %v4992 = vpop.xlane.xlu0 %4991
  %v4993 = vsel %vm927, %v4951, -inf
  %4994 = vmax.xlane.f32.xlu0 %v4993
  %v4995 = vpop.xlane.xlu0 %4994
  %v4996 = vsel %vm927, %v4952, -inf
  %4997 = vmax.xlane.f32.xlu0 %v4996
  %v4998 = vpop.xlane.xlu0 %4997
  %v4999 = vsel %vm927, %v4953, -inf
  %5000 = vmax.xlane.f32.xlu0 %v4999
  %v5001 = vpop.xlane.xlu0 %5000
  %vm5002 = vcmp.eq.f32.partialorder %v4938, %v4956
  %vm5003 = vcmp.eq.f32.partialorder %v4939, %v4959
  %vm5004 = vcmp.eq.f32.partialorder %v4940, %v4962
  %vm5005 = vcmp.eq.f32.partialorder %v4941, %v4965
  %vm5006 = vcmp.eq.f32.partialorder %v4942, %v4968
  %vm5007 = vcmp.eq.f32.partialorder %v4943, %v4971
  %vm5008 = vcmp.eq.f32.partialorder %v4944, %v4974
  %vm5009 = vcmp.eq.f32.partialorder %v4945, %v4977
  %vm5010 = vcmp.eq.f32.partialorder %v4946, %v4980
  %vm5011 = vcmp.eq.f32.partialorder %v4947, %v4983
  %vm5012 = vcmp.eq.f32.partialorder %v4948, %v4986
  %vm5013 = vcmp.eq.f32.partialorder %v4949, %v4989
  %vm5014 = vcmp.eq.f32.partialorder %v4950, %v4992
  %vm5015 = vcmp.eq.f32.partialorder %v4951, %v4995
  %vm5016 = vcmp.eq.f32.partialorder %v4952, %v4998
  %vm5017 = vcmp.eq.f32.partialorder %v4953, %v5001
  %v5018 = vsel %vm5002, %v909, 8
  %v5019 = vsel %vm5003, %v909, 8
  %v5020 = vsel %vm5004, %v909, 8
  %v5021 = vsel %vm5005, %v909, 8
  %v5022 = vsel %vm5006, %v909, 8
  %v5023 = vsel %vm5007, %v909, 8
  %v5024 = vsel %vm5008, %v909, 8
  %v5025 = vsel %vm5009, %v909, 8
  %v5026 = vsel %vm5010, %v909, 8
  %v5027 = vsel %vm5011, %v909, 8
  %v5028 = vsel %vm5012, %v909, 8
  %v5029 = vsel %vm5013, %v909, 8
  %v5030 = vsel %vm5014, %v909, 8
  %v5031 = vsel %vm5015, %v909, 8
  %v5032 = vsel %vm5016, %v909, 8
  %v5033 = vsel %vm5017, %v909, 8
  %v5034 = vsel %vm927, %v5018, 2147483647
  %v5035 = vand.u32 %v5034, 65535
  %v5036 = vshra.s32 %v5034, 16
  %v5037 = vcvt.s32.f32 %v5035
  %v5038 = vcvt.s32.f32 %v5036
  %5039 = vmin.xlane.f32.xlu0 %v5038
  %v5040 = vpop.xlane.xlu0 %5039
  %vm5041 = vcmp.eq.f32.partialorder %v5038, %v5040
  %v5042 = vsel %vm5041, %v5037, inf
  %5043 = vmin.xlane.f32.xlu0 %v5042
  %v5044 = vpop.xlane.xlu0 %5043
  %v5045 = vcvt.f32.s32 %v5044
  %v5046 = vcvt.f32.s32 %v5040
  %v5047 = vshll.u32 %v5046, 16
  %v5048 = vadd.s32 %v5047, %v5045
  %v5049 = vsel %vm927, %v5019, 2147483647
  %v5050 = vand.u32 %v5049, 65535
  %v5051 = vshra.s32 %v5049, 16
  %v5052 = vcvt.s32.f32 %v5050
  %v5053 = vcvt.s32.f32 %v5051
  %5054 = vmin.xlane.f32.xlu0 %v5053
  %v5055 = vpop.xlane.xlu0 %5054
  %vm5056 = vcmp.eq.f32.partialorder %v5053, %v5055
  %v5057 = vsel %vm5056, %v5052, inf
  %5058 = vmin.xlane.f32.xlu0 %v5057
  %v5059 = vpop.xlane.xlu0 %5058
  %v5060 = vcvt.f32.s32 %v5059
  %v5061 = vcvt.f32.s32 %v5055
  %v5062 = vshll.u32 %v5061, 16
  %v5063 = vadd.s32 %v5062, %v5060
  %v5064 = vsel %vm927, %v5020, 2147483647
  %v5065 = vand.u32 %v5064, 65535
  %v5066 = vshra.s32 %v5064, 16
  %v5067 = vcvt.s32.f32 %v5065
  %v5068 = vcvt.s32.f32 %v5066
  %5069 = vmin.xlane.f32.xlu0 %v5068
  %v5070 = vpop.xlane.xlu0 %5069
  %vm5071 = vcmp.eq.f32.partialorder %v5068, %v5070
  %v5072 = vsel %vm5071, %v5067, inf
  %5073 = vmin.xlane.f32.xlu0 %v5072
  %v5074 = vpop.xlane.xlu0 %5073
  %v5075 = vcvt.f32.s32 %v5074
  %v5076 = vcvt.f32.s32 %v5070
  %v5077 = vshll.u32 %v5076, 16
  %v5078 = vadd.s32 %v5077, %v5075
  %v5079 = vsel %vm927, %v5021, 2147483647
  %v5080 = vand.u32 %v5079, 65535
  %v5081 = vshra.s32 %v5079, 16
  %v5082 = vcvt.s32.f32 %v5080
  %v5083 = vcvt.s32.f32 %v5081
  %5084 = vmin.xlane.f32.xlu0 %v5083
  %v5085 = vpop.xlane.xlu0 %5084
  %vm5086 = vcmp.eq.f32.partialorder %v5083, %v5085
  %v5087 = vsel %vm5086, %v5082, inf
  %5088 = vmin.xlane.f32.xlu0 %v5087
  %v5089 = vpop.xlane.xlu0 %5088
  %v5090 = vcvt.f32.s32 %v5089
  %v5091 = vcvt.f32.s32 %v5085
  %v5092 = vshll.u32 %v5091, 16
  %v5093 = vadd.s32 %v5092, %v5090
  %v5094 = vsel %vm927, %v5022, 2147483647
  %v5095 = vand.u32 %v5094, 65535
  %v5096 = vshra.s32 %v5094, 16
  %v5097 = vcvt.s32.f32 %v5095
  %v5098 = vcvt.s32.f32 %v5096
  %5099 = vmin.xlane.f32.xlu0 %v5098
  %v5100 = vpop.xlane.xlu0 %5099
  %vm5101 = vcmp.eq.f32.partialorder %v5098, %v5100
  %v5102 = vsel %vm5101, %v5097, inf
  %5103 = vmin.xlane.f32.xlu0 %v5102
  %v5104 = vpop.xlane.xlu0 %5103
  %v5105 = vcvt.f32.s32 %v5104
  %v5106 = vcvt.f32.s32 %v5100
  %v5107 = vshll.u32 %v5106, 16
  %v5108 = vadd.s32 %v5107, %v5105
  %v5109 = vsel %vm927, %v5023, 2147483647
  %v5110 = vand.u32 %v5109, 65535
  %v5111 = vshra.s32 %v5109, 16
  %v5112 = vcvt.s32.f32 %v5110
  %v5113 = vcvt.s32.f32 %v5111
  %5114 = vmin.xlane.f32.xlu0 %v5113
  %v5115 = vpop.xlane.xlu0 %5114
  %vm5116 = vcmp.eq.f32.partialorder %v5113, %v5115
  %v5117 = vsel %vm5116, %v5112, inf
  %5118 = vmin.xlane.f32.xlu0 %v5117
  %v5119 = vpop.xlane.xlu0 %5118
  %v5120 = vcvt.f32.s32 %v5119
  %v5121 = vcvt.f32.s32 %v5115
  %v5122 = vshll.u32 %v5121, 16
  %v5123 = vadd.s32 %v5122, %v5120
  %v5124 = vsel %vm927, %v5024, 2147483647
  %v5125 = vand.u32 %v5124, 65535
  %v5126 = vshra.s32 %v5124, 16
  %v5127 = vcvt.s32.f32 %v5125
  %v5128 = vcvt.s32.f32 %v5126
  %5129 = vmin.xlane.f32.xlu0 %v5128
  %v5130 = vpop.xlane.xlu0 %5129
  %vm5131 = vcmp.eq.f32.partialorder %v5128, %v5130
  %v5132 = vsel %vm5131, %v5127, inf
  %5133 = vmin.xlane.f32.xlu0 %v5132
  %v5134 = vpop.xlane.xlu0 %5133
  %v5135 = vcvt.f32.s32 %v5134
  %v5136 = vcvt.f32.s32 %v5130
  %v5137 = vshll.u32 %v5136, 16
  %v5138 = vadd.s32 %v5137, %v5135
  %v5139 = vsel %vm927, %v5025, 2147483647
  %v5140 = vand.u32 %v5139, 65535
  %v5141 = vshra.s32 %v5139, 16
  %v5142 = vcvt.s32.f32 %v5140
  %v5143 = vcvt.s32.f32 %v5141
  %5144 = vmin.xlane.f32.xlu0 %v5143
  %v5145 = vpop.xlane.xlu0 %5144
  %vm5146 = vcmp.eq.f32.partialorder %v5143, %v5145
  %v5147 = vsel %vm5146, %v5142, inf
  %5148 = vmin.xlane.f32.xlu0 %v5147
  %v5149 = vpop.xlane.xlu0 %5148
  %v5150 = vcvt.f32.s32 %v5149
  %v5151 = vcvt.f32.s32 %v5145
  %v5152 = vshll.u32 %v5151, 16
  %v5153 = vadd.s32 %v5152, %v5150
  %v5154 = vsel %vm927, %v5026, 2147483647
  %v5155 = vand.u32 %v5154, 65535
  %v5156 = vshra.s32 %v5154, 16
  %v5157 = vcvt.s32.f32 %v5155
  %v5158 = vcvt.s32.f32 %v5156
  %5159 = vmin.xlane.f32.xlu0 %v5158
  %v5160 = vpop.xlane.xlu0 %5159
  %vm5161 = vcmp.eq.f32.partialorder %v5158, %v5160
  %v5162 = vsel %vm5161, %v5157, inf
  %5163 = vmin.xlane.f32.xlu0 %v5162
  %v5164 = vpop.xlane.xlu0 %5163
  %v5165 = vcvt.f32.s32 %v5164
  %v5166 = vcvt.f32.s32 %v5160
  %v5167 = vshll.u32 %v5166, 16
  %v5168 = vadd.s32 %v5167, %v5165
  %v5169 = vsel %vm927, %v5027, 2147483647
  %v5170 = vand.u32 %v5169, 65535
  %v5171 = vshra.s32 %v5169, 16
  %v5172 = vcvt.s32.f32 %v5170
  %v5173 = vcvt.s32.f32 %v5171
  %5174 = vmin.xlane.f32.xlu0 %v5173
  %v5175 = vpop.xlane.xlu0 %5174
  %vm5176 = vcmp.eq.f32.partialorder %v5173, %v5175
  %v5177 = vsel %vm5176, %v5172, inf
  %5178 = vmin.xlane.f32.xlu0 %v5177
  %v5179 = vpop.xlane.xlu0 %5178
  %v5180 = vcvt.f32.s32 %v5179
  %v5181 = vcvt.f32.s32 %v5175
  %v5182 = vshll.u32 %v5181, 16
  %v5183 = vadd.s32 %v5182, %v5180
  %v5184 = vsel %vm927, %v5028, 2147483647
  %v5185 = vand.u32 %v5184, 65535
  %v5186 = vshra.s32 %v5184, 16
  %v5187 = vcvt.s32.f32 %v5185
  %v5188 = vcvt.s32.f32 %v5186
  %5189 = vmin.xlane.f32.xlu0 %v5188
  %v5190 = vpop.xlane.xlu0 %5189
  %vm5191 = vcmp.eq.f32.partialorder %v5188, %v5190
  %v5192 = vsel %vm5191, %v5187, inf
  %5193 = vmin.xlane.f32.xlu0 %v5192
  %v5194 = vpop.xlane.xlu0 %5193
  %v5195 = vcvt.f32.s32 %v5194
  %v5196 = vcvt.f32.s32 %v5190
  %v5197 = vshll.u32 %v5196, 16
  %v5198 = vadd.s32 %v5197, %v5195
  %v5199 = vsel %vm927, %v5029, 2147483647
  %v5200 = vand.u32 %v5199, 65535
  %v5201 = vshra.s32 %v5199, 16
  %v5202 = vcvt.s32.f32 %v5200
  %v5203 = vcvt.s32.f32 %v5201
  %5204 = vmin.xlane.f32.xlu0 %v5203
  %v5205 = vpop.xlane.xlu0 %5204
  %vm5206 = vcmp.eq.f32.partialorder %v5203, %v5205
  %v5207 = vsel %vm5206, %v5202, inf
  %5208 = vmin.xlane.f32.xlu0 %v5207
  %v5209 = vpop.xlane.xlu0 %5208
  %v5210 = vcvt.f32.s32 %v5209
  %v5211 = vcvt.f32.s32 %v5205
  %v5212 = vshll.u32 %v5211, 16
  %v5213 = vadd.s32 %v5212, %v5210
  %v5214 = vsel %vm927, %v5030, 2147483647
  %v5215 = vand.u32 %v5214, 65535
  %v5216 = vshra.s32 %v5214, 16
  %v5217 = vcvt.s32.f32 %v5215
  %v5218 = vcvt.s32.f32 %v5216
  %5219 = vmin.xlane.f32.xlu0 %v5218
  %v5220 = vpop.xlane.xlu0 %5219
  %vm5221 = vcmp.eq.f32.partialorder %v5218, %v5220
  %v5222 = vsel %vm5221, %v5217, inf
  %5223 = vmin.xlane.f32.xlu0 %v5222
  %v5224 = vpop.xlane.xlu0 %5223
  %v5225 = vcvt.f32.s32 %v5224
  %v5226 = vcvt.f32.s32 %v5220
  %v5227 = vshll.u32 %v5226, 16
  %v5228 = vadd.s32 %v5227, %v5225
  %v5229 = vsel %vm927, %v5031, 2147483647
  %v5230 = vand.u32 %v5229, 65535
  %v5231 = vshra.s32 %v5229, 16
  %v5232 = vcvt.s32.f32 %v5230
  %v5233 = vcvt.s32.f32 %v5231
  %5234 = vmin.xlane.f32.xlu0 %v5233
  %v5235 = vpop.xlane.xlu0 %5234
  %vm5236 = vcmp.eq.f32.partialorder %v5233, %v5235
  %v5237 = vsel %vm5236, %v5232, inf
  %5238 = vmin.xlane.f32.xlu0 %v5237
  %v5239 = vpop.xlane.xlu0 %5238
  %v5240 = vcvt.f32.s32 %v5239
  %v5241 = vcvt.f32.s32 %v5235
  %v5242 = vshll.u32 %v5241, 16
  %v5243 = vadd.s32 %v5242, %v5240
  %v5244 = vsel %vm927, %v5032, 2147483647
  %v5245 = vand.u32 %v5244, 65535
  %v5246 = vshra.s32 %v5244, 16
  %v5247 = vcvt.s32.f32 %v5245
  %v5248 = vcvt.s32.f32 %v5246
  %5249 = vmin.xlane.f32.xlu0 %v5248
  %v5250 = vpop.xlane.xlu0 %5249
  %vm5251 = vcmp.eq.f32.partialorder %v5248, %v5250
  %v5252 = vsel %vm5251, %v5247, inf
  %5253 = vmin.xlane.f32.xlu0 %v5252
  %v5254 = vpop.xlane.xlu0 %5253
  %v5255 = vcvt.f32.s32 %v5254
  %v5256 = vcvt.f32.s32 %v5250
  %v5257 = vshll.u32 %v5256, 16
  %v5258 = vadd.s32 %v5257, %v5255
  %v5259 = vsel %vm927, %v5033, 2147483647
  %v5260 = vand.u32 %v5259, 65535
  %v5261 = vshra.s32 %v5259, 16
  %v5262 = vcvt.s32.f32 %v5260
  %v5263 = vcvt.s32.f32 %v5261
  %5264 = vmin.xlane.f32.xlu0 %v5263
  %v5265 = vpop.xlane.xlu0 %5264
  %vm5266 = vcmp.eq.f32.partialorder %v5263, %v5265
  %v5267 = vsel %vm5266, %v5262, inf
  %5268 = vmin.xlane.f32.xlu0 %v5267
  %v5269 = vpop.xlane.xlu0 %5268
  %v5270 = vcvt.f32.s32 %v5269
  %v5271 = vcvt.f32.s32 %v5265
  %v5272 = vshll.u32 %v5271, 16
  %v5273 = vadd.s32 %v5272, %v5270
  %vm5274 = vcmask 89168
  %5275 = vst.msk [vmem:[%s4] sm:$0xff] %vm5274, %v5048
  %5276 = vst.msk [vmem:[%s4 + $0x8] sm:$0xff] %vm5274, %v5063
  %5277 = vst.msk [vmem:[%s4 + $0x10] sm:$0xff] %vm5274, %v5078
  %5278 = vst.msk [vmem:[%s4 + $0x18] sm:$0xff] %vm5274, %v5093
  %5279 = vst.msk [vmem:[%s4 + $0x20] sm:$0xff] %vm5274, %v5108
  %5280 = vst.msk [vmem:[%s4 + $0x28] sm:$0xff] %vm5274, %v5123
  %5281 = vst.msk [vmem:[%s4 + $0x30] sm:$0xff] %vm5274, %v5138
  %5282 = vst.msk [vmem:[%s4 + $0x38] sm:$0xff] %vm5274, %v5153
  %5283 = vst.msk [vmem:[%s4 + $0x40] sm:$0xff] %vm5274, %v5168
  %5284 = vst.msk [vmem:[%s4 + $0x48] sm:$0xff] %vm5274, %v5183
  %5285 = vst.msk [vmem:[%s4 + $0x50] sm:$0xff] %vm5274, %v5198
  %5286 = vst.msk [vmem:[%s4 + $0x58] sm:$0xff] %vm5274, %v5213
  %5287 = vst.msk [vmem:[%s4 + $0x60] sm:$0xff] %vm5274, %v5228
  %5288 = vst.msk [vmem:[%s4 + $0x68] sm:$0xff] %vm5274, %v5243
  %5289 = vst.msk [vmem:[%s4 + $0x70] sm:$0xff] %vm5274, %v5258
  %5290 = vst.msk [vmem:[%s4 + $0x78] sm:$0xff] %vm5274, %v5273
  %5291 = vrot.lane.b32.xlu0 %v876, 40
  %v5292 = vpop.permute.xlu0 %5291
  %5293 = vrot.lane.b32.xlu0 %v877, 40
  %v5294 = vpop.permute.xlu0 %5293
  %5295 = vrot.lane.b32.xlu0 %v878, 40
  %v5296 = vpop.permute.xlu0 %5295
  %5297 = vrot.lane.b32.xlu0 %v879, 40
  %v5298 = vpop.permute.xlu0 %5297
  %5299 = vrot.lane.b32.xlu0 %v880, 40
  %v5300 = vpop.permute.xlu0 %5299
  %5301 = vrot.lane.b32.xlu0 %v881, 40
  %v5302 = vpop.permute.xlu0 %5301
  %5303 = vrot.lane.b32.xlu0 %v882, 40
  %v5304 = vpop.permute.xlu0 %5303
  %5305 = vrot.lane.b32.xlu0 %v883, 40
  %v5306 = vpop.permute.xlu0 %5305
  %5307 = vrot.lane.b32.xlu0 %v884, 40
  %v5308 = vpop.permute.xlu0 %5307
  %5309 = vrot.lane.b32.xlu0 %v885, 40
  %v5310 = vpop.permute.xlu0 %5309
  %5311 = vrot.lane.b32.xlu0 %v886, 40
  %v5312 = vpop.permute.xlu0 %5311
  %5313 = vrot.lane.b32.xlu0 %v887, 40
  %v5314 = vpop.permute.xlu0 %5313
  %5315 = vrot.lane.b32.xlu0 %v888, 40
  %v5316 = vpop.permute.xlu0 %5315
  %5317 = vrot.lane.b32.xlu0 %v889, 40
  %v5318 = vpop.permute.xlu0 %5317
  %5319 = vrot.lane.b32.xlu0 %v890, 40
  %v5320 = vpop.permute.xlu0 %5319
  %5321 = vrot.lane.b32.xlu0 %v891, 40
  %v5322 = vpop.permute.xlu0 %5321
  %v5339 = vsel %vm910, %v5292, -inf
  %v5340 = vsel %vm910, %v5294, -inf
  %v5341 = vsel %vm910, %v5296, -inf
  %v5342 = vsel %vm910, %v5298, -inf
  %v5343 = vsel %vm910, %v5300, -inf
  %v5344 = vsel %vm910, %v5302, -inf
  %v5345 = vsel %vm910, %v5304, -inf
  %v5346 = vsel %vm910, %v5306, -inf
  %v5347 = vsel %vm910, %v5308, -inf
  %v5348 = vsel %vm910, %v5310, -inf
  %v5349 = vsel %vm910, %v5312, -inf
  %v5350 = vsel %vm910, %v5314, -inf
  %v5351 = vsel %vm910, %v5316, -inf
  %v5352 = vsel %vm910, %v5318, -inf
  %v5353 = vsel %vm910, %v5320, -inf
  %v5354 = vsel %vm910, %v5322, -inf
  %v5355 = vsel %vm927, %v5339, -inf
  %5356 = vmax.xlane.f32.xlu0 %v5355
  %v5357 = vpop.xlane.xlu0 %5356
  %v5358 = vsel %vm927, %v5340, -inf
  %5359 = vmax.xlane.f32.xlu0 %v5358
  %v5360 = vpop.xlane.xlu0 %5359
  %v5361 = vsel %vm927, %v5341, -inf
  %5362 = vmax.xlane.f32.xlu0 %v5361
  %v5363 = vpop.xlane.xlu0 %5362
  %v5364 = vsel %vm927, %v5342, -inf
  %5365 = vmax.xlane.f32.xlu0 %v5364
  %v5366 = vpop.xlane.xlu0 %5365
  %v5367 = vsel %vm927, %v5343, -inf
  %5368 = vmax.xlane.f32.xlu0 %v5367
  %v5369 = vpop.xlane.xlu0 %5368
  %v5370 = vsel %vm927, %v5344, -inf
  %5371 = vmax.xlane.f32.xlu0 %v5370
  %v5372 = vpop.xlane.xlu0 %5371
  %v5373 = vsel %vm927, %v5345, -inf
  %5374 = vmax.xlane.f32.xlu0 %v5373
  %v5375 = vpop.xlane.xlu0 %5374
  %v5376 = vsel %vm927, %v5346, -inf
  %5377 = vmax.xlane.f32.xlu0 %v5376
  %v5378 = vpop.xlane.xlu0 %5377
  %v5379 = vsel %vm927, %v5347, -inf
  %5380 = vmax.xlane.f32.xlu0 %v5379
  %v5381 = vpop.xlane.xlu0 %5380
  %v5382 = vsel %vm927, %v5348, -inf
  %5383 = vmax.xlane.f32.xlu0 %v5382
  %v5384 = vpop.xlane.xlu0 %5383
  %v5385 = vsel %vm927, %v5349, -inf
  %5386 = vmax.xlane.f32.xlu0 %v5385
  %v5387 = vpop.xlane.xlu0 %5386
  %v5388 = vsel %vm927, %v5350, -inf
  %5389 = vmax.xlane.f32.xlu0 %v5388
  %v5390 = vpop.xlane.xlu0 %5389
  %v5391 = vsel %vm927, %v5351, -inf
  %5392 = vmax.xlane.f32.xlu0 %v5391
  %v5393 = vpop.xlane.xlu0 %5392
  %v5394 = vsel %vm927, %v5352, -inf
  %5395 = vmax.xlane.f32.xlu0 %v5394
  %v5396 = vpop.xlane.xlu0 %5395
  %v5397 = vsel %vm927, %v5353, -inf
  %5398 = vmax.xlane.f32.xlu0 %v5397
  %v5399 = vpop.xlane.xlu0 %5398
  %v5400 = vsel %vm927, %v5354, -inf
  %5401 = vmax.xlane.f32.xlu0 %v5400
  %v5402 = vpop.xlane.xlu0 %5401
  %vm5403 = vcmp.eq.f32.partialorder %v5339, %v5357
  %vm5404 = vcmp.eq.f32.partialorder %v5340, %v5360
  %vm5405 = vcmp.eq.f32.partialorder %v5341, %v5363
  %vm5406 = vcmp.eq.f32.partialorder %v5342, %v5366
  %vm5407 = vcmp.eq.f32.partialorder %v5343, %v5369
  %vm5408 = vcmp.eq.f32.partialorder %v5344, %v5372
  %vm5409 = vcmp.eq.f32.partialorder %v5345, %v5375
  %vm5410 = vcmp.eq.f32.partialorder %v5346, %v5378
  %vm5411 = vcmp.eq.f32.partialorder %v5347, %v5381
  %vm5412 = vcmp.eq.f32.partialorder %v5348, %v5384
  %vm5413 = vcmp.eq.f32.partialorder %v5349, %v5387
  %vm5414 = vcmp.eq.f32.partialorder %v5350, %v5390
  %vm5415 = vcmp.eq.f32.partialorder %v5351, %v5393
  %vm5416 = vcmp.eq.f32.partialorder %v5352, %v5396
  %vm5417 = vcmp.eq.f32.partialorder %v5353, %v5399
  %vm5418 = vcmp.eq.f32.partialorder %v5354, %v5402
  %v5419 = vsel %vm5403, %v909, 8
  %v5420 = vsel %vm5404, %v909, 8
  %v5421 = vsel %vm5405, %v909, 8
  %v5422 = vsel %vm5406, %v909, 8
  %v5423 = vsel %vm5407, %v909, 8
  %v5424 = vsel %vm5408, %v909, 8
  %v5425 = vsel %vm5409, %v909, 8
  %v5426 = vsel %vm5410, %v909, 8
  %v5427 = vsel %vm5411, %v909, 8
  %v5428 = vsel %vm5412, %v909, 8
  %v5429 = vsel %vm5413, %v909, 8
  %v5430 = vsel %vm5414, %v909, 8
  %v5431 = vsel %vm5415, %v909, 8
  %v5432 = vsel %vm5416, %v909, 8
  %v5433 = vsel %vm5417, %v909, 8
  %v5434 = vsel %vm5418, %v909, 8
  %v5435 = vsel %vm927, %v5419, 2147483647
  %v5436 = vand.u32 %v5435, 65535
  %v5437 = vshra.s32 %v5435, 16
  %v5438 = vcvt.s32.f32 %v5436
  %v5439 = vcvt.s32.f32 %v5437
  %5440 = vmin.xlane.f32.xlu0 %v5439
  %v5441 = vpop.xlane.xlu0 %5440
  %vm5442 = vcmp.eq.f32.partialorder %v5439, %v5441
  %v5443 = vsel %vm5442, %v5438, inf
  %5444 = vmin.xlane.f32.xlu0 %v5443
  %v5445 = vpop.xlane.xlu0 %5444
  %v5446 = vcvt.f32.s32 %v5445
  %v5447 = vcvt.f32.s32 %v5441
  %v5448 = vshll.u32 %v5447, 16
  %v5449 = vadd.s32 %v5448, %v5446
  %v5450 = vsel %vm927, %v5420, 2147483647
  %v5451 = vand.u32 %v5450, 65535
  %v5452 = vshra.s32 %v5450, 16
  %v5453 = vcvt.s32.f32 %v5451
  %v5454 = vcvt.s32.f32 %v5452
  %5455 = vmin.xlane.f32.xlu0 %v5454
  %v5456 = vpop.xlane.xlu0 %5455
  %vm5457 = vcmp.eq.f32.partialorder %v5454, %v5456
  %v5458 = vsel %vm5457, %v5453, inf
  %5459 = vmin.xlane.f32.xlu0 %v5458
  %v5460 = vpop.xlane.xlu0 %5459
  %v5461 = vcvt.f32.s32 %v5460
  %v5462 = vcvt.f32.s32 %v5456
  %v5463 = vshll.u32 %v5462, 16
  %v5464 = vadd.s32 %v5463, %v5461
  %v5465 = vsel %vm927, %v5421, 2147483647
  %v5466 = vand.u32 %v5465, 65535
  %v5467 = vshra.s32 %v5465, 16
  %v5468 = vcvt.s32.f32 %v5466
  %v5469 = vcvt.s32.f32 %v5467
  %5470 = vmin.xlane.f32.xlu0 %v5469
  %v5471 = vpop.xlane.xlu0 %5470
  %vm5472 = vcmp.eq.f32.partialorder %v5469, %v5471
  %v5473 = vsel %vm5472, %v5468, inf
  %5474 = vmin.xlane.f32.xlu0 %v5473
  %v5475 = vpop.xlane.xlu0 %5474
  %v5476 = vcvt.f32.s32 %v5475
  %v5477 = vcvt.f32.s32 %v5471
  %v5478 = vshll.u32 %v5477, 16
  %v5479 = vadd.s32 %v5478, %v5476
  %v5480 = vsel %vm927, %v5422, 2147483647
  %v5481 = vand.u32 %v5480, 65535
  %v5482 = vshra.s32 %v5480, 16
  %v5483 = vcvt.s32.f32 %v5481
  %v5484 = vcvt.s32.f32 %v5482
  %5485 = vmin.xlane.f32.xlu0 %v5484
  %v5486 = vpop.xlane.xlu0 %5485
  %vm5487 = vcmp.eq.f32.partialorder %v5484, %v5486
  %v5488 = vsel %vm5487, %v5483, inf
  %5489 = vmin.xlane.f32.xlu0 %v5488
  %v5490 = vpop.xlane.xlu0 %5489
  %v5491 = vcvt.f32.s32 %v5490
  %v5492 = vcvt.f32.s32 %v5486
  %v5493 = vshll.u32 %v5492, 16
  %v5494 = vadd.s32 %v5493, %v5491
  %v5495 = vsel %vm927, %v5423, 2147483647
  %v5496 = vand.u32 %v5495, 65535
  %v5497 = vshra.s32 %v5495, 16
  %v5498 = vcvt.s32.f32 %v5496
  %v5499 = vcvt.s32.f32 %v5497
  %5500 = vmin.xlane.f32.xlu0 %v5499
  %v5501 = vpop.xlane.xlu0 %5500
  %vm5502 = vcmp.eq.f32.partialorder %v5499, %v5501
  %v5503 = vsel %vm5502, %v5498, inf
  %5504 = vmin.xlane.f32.xlu0 %v5503
  %v5505 = vpop.xlane.xlu0 %5504
  %v5506 = vcvt.f32.s32 %v5505
  %v5507 = vcvt.f32.s32 %v5501
  %v5508 = vshll.u32 %v5507, 16
  %v5509 = vadd.s32 %v5508, %v5506
  %v5510 = vsel %vm927, %v5424, 2147483647
  %v5511 = vand.u32 %v5510, 65535
  %v5512 = vshra.s32 %v5510, 16
  %v5513 = vcvt.s32.f32 %v5511
  %v5514 = vcvt.s32.f32 %v5512
  %5515 = vmin.xlane.f32.xlu0 %v5514
  %v5516 = vpop.xlane.xlu0 %5515
  %vm5517 = vcmp.eq.f32.partialorder %v5514, %v5516
  %v5518 = vsel %vm5517, %v5513, inf
  %5519 = vmin.xlane.f32.xlu0 %v5518
  %v5520 = vpop.xlane.xlu0 %5519
  %v5521 = vcvt.f32.s32 %v5520
  %v5522 = vcvt.f32.s32 %v5516
  %v5523 = vshll.u32 %v5522, 16
  %v5524 = vadd.s32 %v5523, %v5521
  %v5525 = vsel %vm927, %v5425, 2147483647
  %v5526 = vand.u32 %v5525, 65535
  %v5527 = vshra.s32 %v5525, 16
  %v5528 = vcvt.s32.f32 %v5526
  %v5529 = vcvt.s32.f32 %v5527
  %5530 = vmin.xlane.f32.xlu0 %v5529
  %v5531 = vpop.xlane.xlu0 %5530
  %vm5532 = vcmp.eq.f32.partialorder %v5529, %v5531
  %v5533 = vsel %vm5532, %v5528, inf
  %5534 = vmin.xlane.f32.xlu0 %v5533
  %v5535 = vpop.xlane.xlu0 %5534
  %v5536 = vcvt.f32.s32 %v5535
  %v5537 = vcvt.f32.s32 %v5531
  %v5538 = vshll.u32 %v5537, 16
  %v5539 = vadd.s32 %v5538, %v5536
  %v5540 = vsel %vm927, %v5426, 2147483647
  %v5541 = vand.u32 %v5540, 65535
  %v5542 = vshra.s32 %v5540, 16
  %v5543 = vcvt.s32.f32 %v5541
  %v5544 = vcvt.s32.f32 %v5542
  %5545 = vmin.xlane.f32.xlu0 %v5544
  %v5546 = vpop.xlane.xlu0 %5545
  %vm5547 = vcmp.eq.f32.partialorder %v5544, %v5546
  %v5548 = vsel %vm5547, %v5543, inf
  %5549 = vmin.xlane.f32.xlu0 %v5548
  %v5550 = vpop.xlane.xlu0 %5549
  %v5551 = vcvt.f32.s32 %v5550
  %v5552 = vcvt.f32.s32 %v5546
  %v5553 = vshll.u32 %v5552, 16
  %v5554 = vadd.s32 %v5553, %v5551
  %v5555 = vsel %vm927, %v5427, 2147483647
  %v5556 = vand.u32 %v5555, 65535
  %v5557 = vshra.s32 %v5555, 16
  %v5558 = vcvt.s32.f32 %v5556
  %v5559 = vcvt.s32.f32 %v5557
  %5560 = vmin.xlane.f32.xlu0 %v5559
  %v5561 = vpop.xlane.xlu0 %5560
  %vm5562 = vcmp.eq.f32.partialorder %v5559, %v5561
  %v5563 = vsel %vm5562, %v5558, inf
  %5564 = vmin.xlane.f32.xlu0 %v5563
  %v5565 = vpop.xlane.xlu0 %5564
  %v5566 = vcvt.f32.s32 %v5565
  %v5567 = vcvt.f32.s32 %v5561
  %v5568 = vshll.u32 %v5567, 16
  %v5569 = vadd.s32 %v5568, %v5566
  %v5570 = vsel %vm927, %v5428, 2147483647
  %v5571 = vand.u32 %v5570, 65535
  %v5572 = vshra.s32 %v5570, 16
  %v5573 = vcvt.s32.f32 %v5571
  %v5574 = vcvt.s32.f32 %v5572
  %5575 = vmin.xlane.f32.xlu0 %v5574
  %v5576 = vpop.xlane.xlu0 %5575
  %vm5577 = vcmp.eq.f32.partialorder %v5574, %v5576
  %v5578 = vsel %vm5577, %v5573, inf
  %5579 = vmin.xlane.f32.xlu0 %v5578
  %v5580 = vpop.xlane.xlu0 %5579
  %v5581 = vcvt.f32.s32 %v5580
  %v5582 = vcvt.f32.s32 %v5576
  %v5583 = vshll.u32 %v5582, 16
  %v5584 = vadd.s32 %v5583, %v5581
  %v5585 = vsel %vm927, %v5429, 2147483647
  %v5586 = vand.u32 %v5585, 65535
  %v5587 = vshra.s32 %v5585, 16
  %v5588 = vcvt.s32.f32 %v5586
  %v5589 = vcvt.s32.f32 %v5587
  %5590 = vmin.xlane.f32.xlu0 %v5589
  %v5591 = vpop.xlane.xlu0 %5590
  %vm5592 = vcmp.eq.f32.partialorder %v5589, %v5591
  %v5593 = vsel %vm5592, %v5588, inf
  %5594 = vmin.xlane.f32.xlu0 %v5593
  %v5595 = vpop.xlane.xlu0 %5594
  %v5596 = vcvt.f32.s32 %v5595
  %v5597 = vcvt.f32.s32 %v5591
  %v5598 = vshll.u32 %v5597, 16
  %v5599 = vadd.s32 %v5598, %v5596
  %v5600 = vsel %vm927, %v5430, 2147483647
  %v5601 = vand.u32 %v5600, 65535
  %v5602 = vshra.s32 %v5600, 16
  %v5603 = vcvt.s32.f32 %v5601
  %v5604 = vcvt.s32.f32 %v5602
  %5605 = vmin.xlane.f32.xlu0 %v5604
  %v5606 = vpop.xlane.xlu0 %5605
  %vm5607 = vcmp.eq.f32.partialorder %v5604, %v5606
  %v5608 = vsel %vm5607, %v5603, inf
  %5609 = vmin.xlane.f32.xlu0 %v5608
  %v5610 = vpop.xlane.xlu0 %5609
  %v5611 = vcvt.f32.s32 %v5610
  %v5612 = vcvt.f32.s32 %v5606
  %v5613 = vshll.u32 %v5612, 16
  %v5614 = vadd.s32 %v5613, %v5611
  %v5615 = vsel %vm927, %v5431, 2147483647
  %v5616 = vand.u32 %v5615, 65535
  %v5617 = vshra.s32 %v5615, 16
  %v5618 = vcvt.s32.f32 %v5616
  %v5619 = vcvt.s32.f32 %v5617
  %5620 = vmin.xlane.f32.xlu0 %v5619
  %v5621 = vpop.xlane.xlu0 %5620
  %vm5622 = vcmp.eq.f32.partialorder %v5619, %v5621
  %v5623 = vsel %vm5622, %v5618, inf
  %5624 = vmin.xlane.f32.xlu0 %v5623
  %v5625 = vpop.xlane.xlu0 %5624
  %v5626 = vcvt.f32.s32 %v5625
  %v5627 = vcvt.f32.s32 %v5621
  %v5628 = vshll.u32 %v5627, 16
  %v5629 = vadd.s32 %v5628, %v5626
  %v5630 = vsel %vm927, %v5432, 2147483647
  %v5631 = vand.u32 %v5630, 65535
  %v5632 = vshra.s32 %v5630, 16
  %v5633 = vcvt.s32.f32 %v5631
  %v5634 = vcvt.s32.f32 %v5632
  %5635 = vmin.xlane.f32.xlu0 %v5634
  %v5636 = vpop.xlane.xlu0 %5635
  %vm5637 = vcmp.eq.f32.partialorder %v5634, %v5636
  %v5638 = vsel %vm5637, %v5633, inf
  %5639 = vmin.xlane.f32.xlu0 %v5638
  %v5640 = vpop.xlane.xlu0 %5639
  %v5641 = vcvt.f32.s32 %v5640
  %v5642 = vcvt.f32.s32 %v5636
  %v5643 = vshll.u32 %v5642, 16
  %v5644 = vadd.s32 %v5643, %v5641
  %v5645 = vsel %vm927, %v5433, 2147483647
  %v5646 = vand.u32 %v5645, 65535
  %v5647 = vshra.s32 %v5645, 16
  %v5648 = vcvt.s32.f32 %v5646
  %v5649 = vcvt.s32.f32 %v5647
  %5650 = vmin.xlane.f32.xlu0 %v5649
  %v5651 = vpop.xlane.xlu0 %5650
  %vm5652 = vcmp.eq.f32.partialorder %v5649, %v5651
  %v5653 = vsel %vm5652, %v5648, inf
  %5654 = vmin.xlane.f32.xlu0 %v5653
  %v5655 = vpop.xlane.xlu0 %5654
  %v5656 = vcvt.f32.s32 %v5655
  %v5657 = vcvt.f32.s32 %v5651
  %v5658 = vshll.u32 %v5657, 16
  %v5659 = vadd.s32 %v5658, %v5656
  %v5660 = vsel %vm927, %v5434, 2147483647
  %v5661 = vand.u32 %v5660, 65535
  %v5662 = vshra.s32 %v5660, 16
  %v5663 = vcvt.s32.f32 %v5661
  %v5664 = vcvt.s32.f32 %v5662
  %5665 = vmin.xlane.f32.xlu0 %v5664
  %v5666 = vpop.xlane.xlu0 %5665
  %vm5667 = vcmp.eq.f32.partialorder %v5664, %v5666
  %v5668 = vsel %vm5667, %v5663, inf
  %5669 = vmin.xlane.f32.xlu0 %v5668
  %v5670 = vpop.xlane.xlu0 %5669
  %v5671 = vcvt.f32.s32 %v5670
  %v5672 = vcvt.f32.s32 %v5666
  %v5673 = vshll.u32 %v5672, 16
  %v5674 = vadd.s32 %v5673, %v5671
  %vm5675 = vcmask 97368
  %5676 = vst.msk [vmem:[%s4] sm:$0xff] %vm5675, %v5449
  %5677 = vst.msk [vmem:[%s4 + $0x8] sm:$0xff] %vm5675, %v5464
  %5678 = vst.msk [vmem:[%s4 + $0x10] sm:$0xff] %vm5675, %v5479
  %5679 = vst.msk [vmem:[%s4 + $0x18] sm:$0xff] %vm5675, %v5494
  %5680 = vst.msk [vmem:[%s4 + $0x20] sm:$0xff] %vm5675, %v5509
  %5681 = vst.msk [vmem:[%s4 + $0x28] sm:$0xff] %vm5675, %v5524
  %5682 = vst.msk [vmem:[%s4 + $0x30] sm:$0xff] %vm5675, %v5539
  %5683 = vst.msk [vmem:[%s4 + $0x38] sm:$0xff] %vm5675, %v5554
  %5684 = vst.msk [vmem:[%s4 + $0x40] sm:$0xff] %vm5675, %v5569
  %5685 = vst.msk [vmem:[%s4 + $0x48] sm:$0xff] %vm5675, %v5584
  %5686 = vst.msk [vmem:[%s4 + $0x50] sm:$0xff] %vm5675, %v5599
  %5687 = vst.msk [vmem:[%s4 + $0x58] sm:$0xff] %vm5675, %v5614
  %5688 = vst.msk [vmem:[%s4 + $0x60] sm:$0xff] %vm5675, %v5629
  %5689 = vst.msk [vmem:[%s4 + $0x68] sm:$0xff] %vm5675, %v5644
  %5690 = vst.msk [vmem:[%s4 + $0x70] sm:$0xff] %vm5675, %v5659
  %5691 = vst.msk [vmem:[%s4 + $0x78] sm:$0xff] %vm5675, %v5674
  %5692 = vrot.lane.b32.xlu0 %v876, 32
  %v5693 = vpop.permute.xlu0 %5692
  %5694 = vrot.lane.b32.xlu0 %v877, 32
  %v5695 = vpop.permute.xlu0 %5694
  %5696 = vrot.lane.b32.xlu0 %v878, 32
  %v5697 = vpop.permute.xlu0 %5696
  %5698 = vrot.lane.b32.xlu0 %v879, 32
  %v5699 = vpop.permute.xlu0 %5698
  %5700 = vrot.lane.b32.xlu0 %v880, 32
  %v5701 = vpop.permute.xlu0 %5700
  %5702 = vrot.lane.b32.xlu0 %v881, 32
  %v5703 = vpop.permute.xlu0 %5702
  %5704 = vrot.lane.b32.xlu0 %v882, 32
  %v5705 = vpop.permute.xlu0 %5704
  %5706 = vrot.lane.b32.xlu0 %v883, 32
  %v5707 = vpop.permute.xlu0 %5706
  %5708 = vrot.lane.b32.xlu0 %v884, 32
  %v5709 = vpop.permute.xlu0 %5708
  %5710 = vrot.lane.b32.xlu0 %v885, 32
  %v5711 = vpop.permute.xlu0 %5710
  %5712 = vrot.lane.b32.xlu0 %v886, 32
  %v5713 = vpop.permute.xlu0 %5712
  %5714 = vrot.lane.b32.xlu0 %v887, 32
  %v5715 = vpop.permute.xlu0 %5714
  %5716 = vrot.lane.b32.xlu0 %v888, 32
  %v5717 = vpop.permute.xlu0 %5716
  %5718 = vrot.lane.b32.xlu0 %v889, 32
  %v5719 = vpop.permute.xlu0 %5718
  %5720 = vrot.lane.b32.xlu0 %v890, 32
  %v5721 = vpop.permute.xlu0 %5720
  %5722 = vrot.lane.b32.xlu0 %v891, 32
  %v5723 = vpop.permute.xlu0 %5722
  %v5740 = vsel %vm910, %v5693, -inf
  %v5741 = vsel %vm910, %v5695, -inf
  %v5742 = vsel %vm910, %v5697, -inf
  %v5743 = vsel %vm910, %v5699, -inf
  %v5744 = vsel %vm910, %v5701, -inf
  %v5745 = vsel %vm910, %v5703, -inf
  %v5746 = vsel %vm910, %v5705, -inf
  %v5747 = vsel %vm910, %v5707, -inf
  %v5748 = vsel %vm910, %v5709, -inf
  %v5749 = vsel %vm910, %v5711, -inf
  %v5750 = vsel %vm910, %v5713, -inf
  %v5751 = vsel %vm910, %v5715, -inf
  %v5752 = vsel %vm910, %v5717, -inf
  %v5753 = vsel %vm910, %v5719, -inf
  %v5754 = vsel %vm910, %v5721, -inf
  %v5755 = vsel %vm910, %v5723, -inf
  %v5756 = vsel %vm927, %v5740, -inf
  %5757 = vmax.xlane.f32.xlu0 %v5756
  %v5758 = vpop.xlane.xlu0 %5757
  %v5759 = vsel %vm927, %v5741, -inf
  %5760 = vmax.xlane.f32.xlu0 %v5759
  %v5761 = vpop.xlane.xlu0 %5760
  %v5762 = vsel %vm927, %v5742, -inf
  %5763 = vmax.xlane.f32.xlu0 %v5762
  %v5764 = vpop.xlane.xlu0 %5763
  %v5765 = vsel %vm927, %v5743, -inf
  %5766 = vmax.xlane.f32.xlu0 %v5765
  %v5767 = vpop.xlane.xlu0 %5766
  %v5768 = vsel %vm927, %v5744, -inf
  %5769 = vmax.xlane.f32.xlu0 %v5768
  %v5770 = vpop.xlane.xlu0 %5769
  %v5771 = vsel %vm927, %v5745, -inf
  %5772 = vmax.xlane.f32.xlu0 %v5771
  %v5773 = vpop.xlane.xlu0 %5772
  %v5774 = vsel %vm927, %v5746, -inf
  %5775 = vmax.xlane.f32.xlu0 %v5774
  %v5776 = vpop.xlane.xlu0 %5775
  %v5777 = vsel %vm927, %v5747, -inf
  %5778 = vmax.xlane.f32.xlu0 %v5777
  %v5779 = vpop.xlane.xlu0 %5778
  %v5780 = vsel %vm927, %v5748, -inf
  %5781 = vmax.xlane.f32.xlu0 %v5780
  %v5782 = vpop.xlane.xlu0 %5781
  %v5783 = vsel %vm927, %v5749, -inf
  %5784 = vmax.xlane.f32.xlu0 %v5783
  %v5785 = vpop.xlane.xlu0 %5784
  %v5786 = vsel %vm927, %v5750, -inf
  %5787 = vmax.xlane.f32.xlu0 %v5786
  %v5788 = vpop.xlane.xlu0 %5787
  %v5789 = vsel %vm927, %v5751, -inf
  %5790 = vmax.xlane.f32.xlu0 %v5789
  %v5791 = vpop.xlane.xlu0 %5790
  %v5792 = vsel %vm927, %v5752, -inf
  %5793 = vmax.xlane.f32.xlu0 %v5792
  %v5794 = vpop.xlane.xlu0 %5793
  %v5795 = vsel %vm927, %v5753, -inf
  %5796 = vmax.xlane.f32.xlu0 %v5795
  %v5797 = vpop.xlane.xlu0 %5796
  %v5798 = vsel %vm927, %v5754, -inf
  %5799 = vmax.xlane.f32.xlu0 %v5798
  %v5800 = vpop.xlane.xlu0 %5799
  %v5801 = vsel %vm927, %v5755, -inf
  %5802 = vmax.xlane.f32.xlu0 %v5801
  %v5803 = vpop.xlane.xlu0 %5802
  %vm5804 = vcmp.eq.f32.partialorder %v5740, %v5758
  %vm5805 = vcmp.eq.f32.partialorder %v5741, %v5761
  %vm5806 = vcmp.eq.f32.partialorder %v5742, %v5764
  %vm5807 = vcmp.eq.f32.partialorder %v5743, %v5767
  %vm5808 = vcmp.eq.f32.partialorder %v5744, %v5770
  %vm5809 = vcmp.eq.f32.partialorder %v5745, %v5773
  %vm5810 = vcmp.eq.f32.partialorder %v5746, %v5776
  %vm5811 = vcmp.eq.f32.partialorder %v5747, %v5779
  %vm5812 = vcmp.eq.f32.partialorder %v5748, %v5782
  %vm5813 = vcmp.eq.f32.partialorder %v5749, %v5785
  %vm5814 = vcmp.eq.f32.partialorder %v5750, %v5788
  %vm5815 = vcmp.eq.f32.partialorder %v5751, %v5791
  %vm5816 = vcmp.eq.f32.partialorder %v5752, %v5794
  %vm5817 = vcmp.eq.f32.partialorder %v5753, %v5797
  %vm5818 = vcmp.eq.f32.partialorder %v5754, %v5800
  %vm5819 = vcmp.eq.f32.partialorder %v5755, %v5803
  %v5820 = vsel %vm5804, %v909, 8
  %v5821 = vsel %vm5805, %v909, 8
  %v5822 = vsel %vm5806, %v909, 8
  %v5823 = vsel %vm5807, %v909, 8
  %v5824 = vsel %vm5808, %v909, 8
  %v5825 = vsel %vm5809, %v909, 8
  %v5826 = vsel %vm5810, %v909, 8
  %v5827 = vsel %vm5811, %v909, 8
  %v5828 = vsel %vm5812, %v909, 8
  %v5829 = vsel %vm5813, %v909, 8
  %v5830 = vsel %vm5814, %v909, 8
  %v5831 = vsel %vm5815, %v909, 8
  %v5832 = vsel %vm5816, %v909, 8
  %v5833 = vsel %vm5817, %v909, 8
  %v5834 = vsel %vm5818, %v909, 8
  %v5835 = vsel %vm5819, %v909, 8
  %v5836 = vsel %vm927, %v5820, 2147483647
  %v5837 = vand.u32 %v5836, 65535
  %v5838 = vshra.s32 %v5836, 16
  %v5839 = vcvt.s32.f32 %v5837
  %v5840 = vcvt.s32.f32 %v5838
  %5841 = vmin.xlane.f32.xlu0 %v5840
  %v5842 = vpop.xlane.xlu0 %5841
  %vm5843 = vcmp.eq.f32.partialorder %v5840, %v5842
  %v5844 = vsel %vm5843, %v5839, inf
  %5845 = vmin.xlane.f32.xlu0 %v5844
  %v5846 = vpop.xlane.xlu0 %5845
  %v5847 = vcvt.f32.s32 %v5846
  %v5848 = vcvt.f32.s32 %v5842
  %v5849 = vshll.u32 %v5848, 16
  %v5850 = vadd.s32 %v5849, %v5847
  %v5851 = vsel %vm927, %v5821, 2147483647
  %v5852 = vand.u32 %v5851, 65535
  %v5853 = vshra.s32 %v5851, 16
  %v5854 = vcvt.s32.f32 %v5852
  %v5855 = vcvt.s32.f32 %v5853
  %5856 = vmin.xlane.f32.xlu0 %v5855
  %v5857 = vpop.xlane.xlu0 %5856
  %vm5858 = vcmp.eq.f32.partialorder %v5855, %v5857
  %v5859 = vsel %vm5858, %v5854, inf
  %5860 = vmin.xlane.f32.xlu0 %v5859
  %v5861 = vpop.xlane.xlu0 %5860
  %v5862 = vcvt.f32.s32 %v5861
  %v5863 = vcvt.f32.s32 %v5857
  %v5864 = vshll.u32 %v5863, 16
  %v5865 = vadd.s32 %v5864, %v5862
  %v5866 = vsel %vm927, %v5822, 2147483647
  %v5867 = vand.u32 %v5866, 65535
  %v5868 = vshra.s32 %v5866, 16
  %v5869 = vcvt.s32.f32 %v5867
  %v5870 = vcvt.s32.f32 %v5868
  %5871 = vmin.xlane.f32.xlu0 %v5870
  %v5872 = vpop.xlane.xlu0 %5871
  %vm5873 = vcmp.eq.f32.partialorder %v5870, %v5872
  %v5874 = vsel %vm5873, %v5869, inf
  %5875 = vmin.xlane.f32.xlu0 %v5874
  %v5876 = vpop.xlane.xlu0 %5875
  %v5877 = vcvt.f32.s32 %v5876
  %v5878 = vcvt.f32.s32 %v5872
  %v5879 = vshll.u32 %v5878, 16
  %v5880 = vadd.s32 %v5879, %v5877
  %v5881 = vsel %vm927, %v5823, 2147483647
  %v5882 = vand.u32 %v5881, 65535
  %v5883 = vshra.s32 %v5881, 16
  %v5884 = vcvt.s32.f32 %v5882
  %v5885 = vcvt.s32.f32 %v5883
  %5886 = vmin.xlane.f32.xlu0 %v5885
  %v5887 = vpop.xlane.xlu0 %5886
  %vm5888 = vcmp.eq.f32.partialorder %v5885, %v5887
  %v5889 = vsel %vm5888, %v5884, inf
  %5890 = vmin.xlane.f32.xlu0 %v5889
  %v5891 = vpop.xlane.xlu0 %5890
  %v5892 = vcvt.f32.s32 %v5891
  %v5893 = vcvt.f32.s32 %v5887
  %v5894 = vshll.u32 %v5893, 16
  %v5895 = vadd.s32 %v5894, %v5892
  %v5896 = vsel %vm927, %v5824, 2147483647
  %v5897 = vand.u32 %v5896, 65535
  %v5898 = vshra.s32 %v5896, 16
  %v5899 = vcvt.s32.f32 %v5897
  %v5900 = vcvt.s32.f32 %v5898
  %5901 = vmin.xlane.f32.xlu0 %v5900
  %v5902 = vpop.xlane.xlu0 %5901
  %vm5903 = vcmp.eq.f32.partialorder %v5900, %v5902
  %v5904 = vsel %vm5903, %v5899, inf
  %5905 = vmin.xlane.f32.xlu0 %v5904
  %v5906 = vpop.xlane.xlu0 %5905
  %v5907 = vcvt.f32.s32 %v5906
  %v5908 = vcvt.f32.s32 %v5902
  %v5909 = vshll.u32 %v5908, 16
  %v5910 = vadd.s32 %v5909, %v5907
  %v5911 = vsel %vm927, %v5825, 2147483647
  %v5912 = vand.u32 %v5911, 65535
  %v5913 = vshra.s32 %v5911, 16
  %v5914 = vcvt.s32.f32 %v5912
  %v5915 = vcvt.s32.f32 %v5913
  %5916 = vmin.xlane.f32.xlu0 %v5915
  %v5917 = vpop.xlane.xlu0 %5916
  %vm5918 = vcmp.eq.f32.partialorder %v5915, %v5917
  %v5919 = vsel %vm5918, %v5914, inf
  %5920 = vmin.xlane.f32.xlu0 %v5919
  %v5921 = vpop.xlane.xlu0 %5920
  %v5922 = vcvt.f32.s32 %v5921
  %v5923 = vcvt.f32.s32 %v5917
  %v5924 = vshll.u32 %v5923, 16
  %v5925 = vadd.s32 %v5924, %v5922
  %v5926 = vsel %vm927, %v5826, 2147483647
  %v5927 = vand.u32 %v5926, 65535
  %v5928 = vshra.s32 %v5926, 16
  %v5929 = vcvt.s32.f32 %v5927
  %v5930 = vcvt.s32.f32 %v5928
  %5931 = vmin.xlane.f32.xlu0 %v5930
  %v5932 = vpop.xlane.xlu0 %5931
  %vm5933 = vcmp.eq.f32.partialorder %v5930, %v5932
  %v5934 = vsel %vm5933, %v5929, inf
  %5935 = vmin.xlane.f32.xlu0 %v5934
  %v5936 = vpop.xlane.xlu0 %5935
  %v5937 = vcvt.f32.s32 %v5936
  %v5938 = vcvt.f32.s32 %v5932
  %v5939 = vshll.u32 %v5938, 16
  %v5940 = vadd.s32 %v5939, %v5937
  %v5941 = vsel %vm927, %v5827, 2147483647
  %v5942 = vand.u32 %v5941, 65535
  %v5943 = vshra.s32 %v5941, 16
  %v5944 = vcvt.s32.f32 %v5942
  %v5945 = vcvt.s32.f32 %v5943
  %5946 = vmin.xlane.f32.xlu0 %v5945
  %v5947 = vpop.xlane.xlu0 %5946
  %vm5948 = vcmp.eq.f32.partialorder %v5945, %v5947
  %v5949 = vsel %vm5948, %v5944, inf
  %5950 = vmin.xlane.f32.xlu0 %v5949
  %v5951 = vpop.xlane.xlu0 %5950
  %v5952 = vcvt.f32.s32 %v5951
  %v5953 = vcvt.f32.s32 %v5947
  %v5954 = vshll.u32 %v5953, 16
  %v5955 = vadd.s32 %v5954, %v5952
  %v5956 = vsel %vm927, %v5828, 2147483647
  %v5957 = vand.u32 %v5956, 65535
  %v5958 = vshra.s32 %v5956, 16
  %v5959 = vcvt.s32.f32 %v5957
  %v5960 = vcvt.s32.f32 %v5958
  %5961 = vmin.xlane.f32.xlu0 %v5960
  %v5962 = vpop.xlane.xlu0 %5961
  %vm5963 = vcmp.eq.f32.partialorder %v5960, %v5962
  %v5964 = vsel %vm5963, %v5959, inf
  %5965 = vmin.xlane.f32.xlu0 %v5964
  %v5966 = vpop.xlane.xlu0 %5965
  %v5967 = vcvt.f32.s32 %v5966
  %v5968 = vcvt.f32.s32 %v5962
  %v5969 = vshll.u32 %v5968, 16
  %v5970 = vadd.s32 %v5969, %v5967
  %v5971 = vsel %vm927, %v5829, 2147483647
  %v5972 = vand.u32 %v5971, 65535
  %v5973 = vshra.s32 %v5971, 16
  %v5974 = vcvt.s32.f32 %v5972
  %v5975 = vcvt.s32.f32 %v5973
  %5976 = vmin.xlane.f32.xlu0 %v5975
  %v5977 = vpop.xlane.xlu0 %5976
  %vm5978 = vcmp.eq.f32.partialorder %v5975, %v5977
  %v5979 = vsel %vm5978, %v5974, inf
  %5980 = vmin.xlane.f32.xlu0 %v5979
  %v5981 = vpop.xlane.xlu0 %5980
  %v5982 = vcvt.f32.s32 %v5981
  %v5983 = vcvt.f32.s32 %v5977
  %v5984 = vshll.u32 %v5983, 16
  %v5985 = vadd.s32 %v5984, %v5982
  %v5986 = vsel %vm927, %v5830, 2147483647
  %v5987 = vand.u32 %v5986, 65535
  %v5988 = vshra.s32 %v5986, 16
  %v5989 = vcvt.s32.f32 %v5987
  %v5990 = vcvt.s32.f32 %v5988
  %5991 = vmin.xlane.f32.xlu0 %v5990
  %v5992 = vpop.xlane.xlu0 %5991
  %vm5993 = vcmp.eq.f32.partialorder %v5990, %v5992
  %v5994 = vsel %vm5993, %v5989, inf
  %5995 = vmin.xlane.f32.xlu0 %v5994
  %v5996 = vpop.xlane.xlu0 %5995
  %v5997 = vcvt.f32.s32 %v5996
  %v5998 = vcvt.f32.s32 %v5992
  %v5999 = vshll.u32 %v5998, 16
  %v6000 = vadd.s32 %v5999, %v5997
  %v6001 = vsel %vm927, %v5831, 2147483647
  %v6002 = vand.u32 %v6001, 65535
  %v6003 = vshra.s32 %v6001, 16
  %v6004 = vcvt.s32.f32 %v6002
  %v6005 = vcvt.s32.f32 %v6003
  %6006 = vmin.xlane.f32.xlu0 %v6005
  %v6007 = vpop.xlane.xlu0 %6006
  %vm6008 = vcmp.eq.f32.partialorder %v6005, %v6007
  %v6009 = vsel %vm6008, %v6004, inf
  %6010 = vmin.xlane.f32.xlu0 %v6009
  %v6011 = vpop.xlane.xlu0 %6010
  %v6012 = vcvt.f32.s32 %v6011
  %v6013 = vcvt.f32.s32 %v6007
  %v6014 = vshll.u32 %v6013, 16
  %v6015 = vadd.s32 %v6014, %v6012
  %v6016 = vsel %vm927, %v5832, 2147483647
  %v6017 = vand.u32 %v6016, 65535
  %v6018 = vshra.s32 %v6016, 16
  %v6019 = vcvt.s32.f32 %v6017
  %v6020 = vcvt.s32.f32 %v6018
  %6021 = vmin.xlane.f32.xlu0 %v6020
  %v6022 = vpop.xlane.xlu0 %6021
  %vm6023 = vcmp.eq.f32.partialorder %v6020, %v6022
  %v6024 = vsel %vm6023, %v6019, inf
  %6025 = vmin.xlane.f32.xlu0 %v6024
  %v6026 = vpop.xlane.xlu0 %6025
  %v6027 = vcvt.f32.s32 %v6026
  %v6028 = vcvt.f32.s32 %v6022
  %v6029 = vshll.u32 %v6028, 16
  %v6030 = vadd.s32 %v6029, %v6027
  %v6031 = vsel %vm927, %v5833, 2147483647
  %v6032 = vand.u32 %v6031, 65535
  %v6033 = vshra.s32 %v6031, 16
  %v6034 = vcvt.s32.f32 %v6032
  %v6035 = vcvt.s32.f32 %v6033
  %6036 = vmin.xlane.f32.xlu0 %v6035
  %v6037 = vpop.xlane.xlu0 %6036
  %vm6038 = vcmp.eq.f32.partialorder %v6035, %v6037
  %v6039 = vsel %vm6038, %v6034, inf
  %6040 = vmin.xlane.f32.xlu0 %v6039
  %v6041 = vpop.xlane.xlu0 %6040
  %v6042 = vcvt.f32.s32 %v6041
  %v6043 = vcvt.f32.s32 %v6037
  %v6044 = vshll.u32 %v6043, 16
  %v6045 = vadd.s32 %v6044, %v6042
  %v6046 = vsel %vm927, %v5834, 2147483647
  %v6047 = vand.u32 %v6046, 65535
  %v6048 = vshra.s32 %v6046, 16
  %v6049 = vcvt.s32.f32 %v6047
  %v6050 = vcvt.s32.f32 %v6048
  %6051 = vmin.xlane.f32.xlu0 %v6050
  %v6052 = vpop.xlane.xlu0 %6051
  %vm6053 = vcmp.eq.f32.partialorder %v6050, %v6052
  %v6054 = vsel %vm6053, %v6049, inf
  %6055 = vmin.xlane.f32.xlu0 %v6054
  %v6056 = vpop.xlane.xlu0 %6055
  %v6057 = vcvt.f32.s32 %v6056
  %v6058 = vcvt.f32.s32 %v6052
  %v6059 = vshll.u32 %v6058, 16
  %v6060 = vadd.s32 %v6059, %v6057
  %v6061 = vsel %vm927, %v5835, 2147483647
  %v6062 = vand.u32 %v6061, 65535
  %v6063 = vshra.s32 %v6061, 16
  %v6064 = vcvt.s32.f32 %v6062
  %v6065 = vcvt.s32.f32 %v6063
  %6066 = vmin.xlane.f32.xlu0 %v6065
  %v6067 = vpop.xlane.xlu0 %6066
  %vm6068 = vcmp.eq.f32.partialorder %v6065, %v6067
  %v6069 = vsel %vm6068, %v6064, inf
  %6070 = vmin.xlane.f32.xlu0 %v6069
  %v6071 = vpop.xlane.xlu0 %6070
  %v6072 = vcvt.f32.s32 %v6071
  %v6073 = vcvt.f32.s32 %v6067
  %v6074 = vshll.u32 %v6073, 16
  %v6075 = vadd.s32 %v6074, %v6072
  %vm6076 = vcmask 105568
  %6077 = vst.msk [vmem:[%s4] sm:$0xff] %vm6076, %v5850
  %6078 = vst.msk [vmem:[%s4 + $0x8] sm:$0xff] %vm6076, %v5865
  %6079 = vst.msk [vmem:[%s4 + $0x10] sm:$0xff] %vm6076, %v5880
  %6080 = vst.msk [vmem:[%s4 + $0x18] sm:$0xff] %vm6076, %v5895
  %6081 = vst.msk [vmem:[%s4 + $0x20] sm:$0xff] %vm6076, %v5910
  %6082 = vst.msk [vmem:[%s4 + $0x28] sm:$0xff] %vm6076, %v5925
  %6083 = vst.msk [vmem:[%s4 + $0x30] sm:$0xff] %vm6076, %v5940
  %6084 = vst.msk [vmem:[%s4 + $0x38] sm:$0xff] %vm6076, %v5955
  %6085 = vst.msk [vmem:[%s4 + $0x40] sm:$0xff] %vm6076, %v5970
  %6086 = vst.msk [vmem:[%s4 + $0x48] sm:$0xff] %vm6076, %v5985
  %6087 = vst.msk [vmem:[%s4 + $0x50] sm:$0xff] %vm6076, %v6000
  %6088 = vst.msk [vmem:[%s4 + $0x58] sm:$0xff] %vm6076, %v6015
  %6089 = vst.msk [vmem:[%s4 + $0x60] sm:$0xff] %vm6076, %v6030
  %6090 = vst.msk [vmem:[%s4 + $0x68] sm:$0xff] %vm6076, %v6045
  %6091 = vst.msk [vmem:[%s4 + $0x70] sm:$0xff] %vm6076, %v6060
  %6092 = vst.msk [vmem:[%s4 + $0x78] sm:$0xff] %vm6076, %v6075
  %6093 = vrot.lane.b32.xlu0 %v876, 24
  %v6094 = vpop.permute.xlu0 %6093
  %6095 = vrot.lane.b32.xlu0 %v877, 24
  %v6096 = vpop.permute.xlu0 %6095
  %6097 = vrot.lane.b32.xlu0 %v878, 24
  %v6098 = vpop.permute.xlu0 %6097
  %6099 = vrot.lane.b32.xlu0 %v879, 24
  %v6100 = vpop.permute.xlu0 %6099
  %6101 = vrot.lane.b32.xlu0 %v880, 24
  %v6102 = vpop.permute.xlu0 %6101
  %6103 = vrot.lane.b32.xlu0 %v881, 24
  %v6104 = vpop.permute.xlu0 %6103
  %6105 = vrot.lane.b32.xlu0 %v882, 24
  %v6106 = vpop.permute.xlu0 %6105
  %6107 = vrot.lane.b32.xlu0 %v883, 24
  %v6108 = vpop.permute.xlu0 %6107
  %6109 = vrot.lane.b32.xlu0 %v884, 24
  %v6110 = vpop.permute.xlu0 %6109
  %6111 = vrot.lane.b32.xlu0 %v885, 24
  %v6112 = vpop.permute.xlu0 %6111
  %6113 = vrot.lane.b32.xlu0 %v886, 24
  %v6114 = vpop.permute.xlu0 %6113
  %6115 = vrot.lane.b32.xlu0 %v887, 24
  %v6116 = vpop.permute.xlu0 %6115
  %6117 = vrot.lane.b32.xlu0 %v888, 24
  %v6118 = vpop.permute.xlu0 %6117
  %6119 = vrot.lane.b32.xlu0 %v889, 24
  %v6120 = vpop.permute.xlu0 %6119
  %6121 = vrot.lane.b32.xlu0 %v890, 24
  %v6122 = vpop.permute.xlu0 %6121
  %6123 = vrot.lane.b32.xlu0 %v891, 24
  %v6124 = vpop.permute.xlu0 %6123
  %v6141 = vsel %vm910, %v6094, -inf
  %v6142 = vsel %vm910, %v6096, -inf
  %v6143 = vsel %vm910, %v6098, -inf
  %v6144 = vsel %vm910, %v6100, -inf
  %v6145 = vsel %vm910, %v6102, -inf
  %v6146 = vsel %vm910, %v6104, -inf
  %v6147 = vsel %vm910, %v6106, -inf
  %v6148 = vsel %vm910, %v6108, -inf
  %v6149 = vsel %vm910, %v6110, -inf
  %v6150 = vsel %vm910, %v6112, -inf
  %v6151 = vsel %vm910, %v6114, -inf
  %v6152 = vsel %vm910, %v6116, -inf
  %v6153 = vsel %vm910, %v6118, -inf
  %v6154 = vsel %vm910, %v6120, -inf
  %v6155 = vsel %vm910, %v6122, -inf
  %v6156 = vsel %vm910, %v6124, -inf
  %v6157 = vsel %vm927, %v6141, -inf
  %6158 = vmax.xlane.f32.xlu0 %v6157
  %v6159 = vpop.xlane.xlu0 %6158
  %v6160 = vsel %vm927, %v6142, -inf
  %6161 = vmax.xlane.f32.xlu0 %v6160
  %v6162 = vpop.xlane.xlu0 %6161
  %v6163 = vsel %vm927, %v6143, -inf
  %6164 = vmax.xlane.f32.xlu0 %v6163
  %v6165 = vpop.xlane.xlu0 %6164
  %v6166 = vsel %vm927, %v6144, -inf
  %6167 = vmax.xlane.f32.xlu0 %v6166
  %v6168 = vpop.xlane.xlu0 %6167
  %v6169 = vsel %vm927, %v6145, -inf
  %6170 = vmax.xlane.f32.xlu0 %v6169
  %v6171 = vpop.xlane.xlu0 %6170
  %v6172 = vsel %vm927, %v6146, -inf
  %6173 = vmax.xlane.f32.xlu0 %v6172
  %v6174 = vpop.xlane.xlu0 %6173
  %v6175 = vsel %vm927, %v6147, -inf
  %6176 = vmax.xlane.f32.xlu0 %v6175
  %v6177 = vpop.xlane.xlu0 %6176
  %v6178 = vsel %vm927, %v6148, -inf
  %6179 = vmax.xlane.f32.xlu0 %v6178
  %v6180 = vpop.xlane.xlu0 %6179
  %v6181 = vsel %vm927, %v6149, -inf
  %6182 = vmax.xlane.f32.xlu0 %v6181
  %v6183 = vpop.xlane.xlu0 %6182
  %v6184 = vsel %vm927, %v6150, -inf
  %6185 = vmax.xlane.f32.xlu0 %v6184
  %v6186 = vpop.xlane.xlu0 %6185
  %v6187 = vsel %vm927, %v6151, -inf
  %6188 = vmax.xlane.f32.xlu0 %v6187
  %v6189 = vpop.xlane.xlu0 %6188
  %v6190 = vsel %vm927, %v6152, -inf
  %6191 = vmax.xlane.f32.xlu0 %v6190
  %v6192 = vpop.xlane.xlu0 %6191
  %v6193 = vsel %vm927, %v6153, -inf
  %6194 = vmax.xlane.f32.xlu0 %v6193
  %v6195 = vpop.xlane.xlu0 %6194
  %v6196 = vsel %vm927, %v6154, -inf
  %6197 = vmax.xlane.f32.xlu0 %v6196
  %v6198 = vpop.xlane.xlu0 %6197
  %v6199 = vsel %vm927, %v6155, -inf
  %6200 = vmax.xlane.f32.xlu0 %v6199
  %v6201 = vpop.xlane.xlu0 %6200
  %v6202 = vsel %vm927, %v6156, -inf
  %6203 = vmax.xlane.f32.xlu0 %v6202
  %v6204 = vpop.xlane.xlu0 %6203
  %vm6205 = vcmp.eq.f32.partialorder %v6141, %v6159
  %vm6206 = vcmp.eq.f32.partialorder %v6142, %v6162
  %vm6207 = vcmp.eq.f32.partialorder %v6143, %v6165
  %vm6208 = vcmp.eq.f32.partialorder %v6144, %v6168
  %vm6209 = vcmp.eq.f32.partialorder %v6145, %v6171
  %vm6210 = vcmp.eq.f32.partialorder %v6146, %v6174
  %vm6211 = vcmp.eq.f32.partialorder %v6147, %v6177
  %vm6212 = vcmp.eq.f32.partialorder %v6148, %v6180
  %vm6213 = vcmp.eq.f32.partialorder %v6149, %v6183
  %vm6214 = vcmp.eq.f32.partialorder %v6150, %v6186
  %vm6215 = vcmp.eq.f32.partialorder %v6151, %v6189
  %vm6216 = vcmp.eq.f32.partialorder %v6152, %v6192
  %vm6217 = vcmp.eq.f32.partialorder %v6153, %v6195
  %vm6218 = vcmp.eq.f32.partialorder %v6154, %v6198
  %vm6219 = vcmp.eq.f32.partialorder %v6155, %v6201
  %vm6220 = vcmp.eq.f32.partialorder %v6156, %v6204
  %v6221 = vsel %vm6205, %v909, 8
  %v6222 = vsel %vm6206, %v909, 8
  %v6223 = vsel %vm6207, %v909, 8
  %v6224 = vsel %vm6208, %v909, 8
  %v6225 = vsel %vm6209, %v909, 8
  %v6226 = vsel %vm6210, %v909, 8
  %v6227 = vsel %vm6211, %v909, 8
  %v6228 = vsel %vm6212, %v909, 8
  %v6229 = vsel %vm6213, %v909, 8
  %v6230 = vsel %vm6214, %v909, 8
  %v6231 = vsel %vm6215, %v909, 8
  %v6232 = vsel %vm6216, %v909, 8
  %v6233 = vsel %vm6217, %v909, 8
  %v6234 = vsel %vm6218, %v909, 8
  %v6235 = vsel %vm6219, %v909, 8
  %v6236 = vsel %vm6220, %v909, 8
  %v6237 = vsel %vm927, %v6221, 2147483647
  %v6238 = vand.u32 %v6237, 65535
  %v6239 = vshra.s32 %v6237, 16
  %v6240 = vcvt.s32.f32 %v6238
  %v6241 = vcvt.s32.f32 %v6239
  %6242 = vmin.xlane.f32.xlu0 %v6241
  %v6243 = vpop.xlane.xlu0 %6242
  %vm6244 = vcmp.eq.f32.partialorder %v6241, %v6243
  %v6245 = vsel %vm6244, %v6240, inf
  %6246 = vmin.xlane.f32.xlu0 %v6245
  %v6247 = vpop.xlane.xlu0 %6246
  %v6248 = vcvt.f32.s32 %v6247
  %v6249 = vcvt.f32.s32 %v6243
  %v6250 = vshll.u32 %v6249, 16
  %v6251 = vadd.s32 %v6250, %v6248
  %v6252 = vsel %vm927, %v6222, 2147483647
  %v6253 = vand.u32 %v6252, 65535
  %v6254 = vshra.s32 %v6252, 16
  %v6255 = vcvt.s32.f32 %v6253
  %v6256 = vcvt.s32.f32 %v6254
  %6257 = vmin.xlane.f32.xlu0 %v6256
  %v6258 = vpop.xlane.xlu0 %6257
  %vm6259 = vcmp.eq.f32.partialorder %v6256, %v6258
  %v6260 = vsel %vm6259, %v6255, inf
  %6261 = vmin.xlane.f32.xlu0 %v6260
  %v6262 = vpop.xlane.xlu0 %6261
  %v6263 = vcvt.f32.s32 %v6262
  %v6264 = vcvt.f32.s32 %v6258
  %v6265 = vshll.u32 %v6264, 16
  %v6266 = vadd.s32 %v6265, %v6263
  %v6267 = vsel %vm927, %v6223, 2147483647
  %v6268 = vand.u32 %v6267, 65535
  %v6269 = vshra.s32 %v6267, 16
  %v6270 = vcvt.s32.f32 %v6268
  %v6271 = vcvt.s32.f32 %v6269
  %6272 = vmin.xlane.f32.xlu0 %v6271
  %v6273 = vpop.xlane.xlu0 %6272
  %vm6274 = vcmp.eq.f32.partialorder %v6271, %v6273
  %v6275 = vsel %vm6274, %v6270, inf
  %6276 = vmin.xlane.f32.xlu0 %v6275
  %v6277 = vpop.xlane.xlu0 %6276
  %v6278 = vcvt.f32.s32 %v6277
  %v6279 = vcvt.f32.s32 %v6273
  %v6280 = vshll.u32 %v6279, 16
  %v6281 = vadd.s32 %v6280, %v6278
  %v6282 = vsel %vm927, %v6224, 2147483647
  %v6283 = vand.u32 %v6282, 65535
  %v6284 = vshra.s32 %v6282, 16
  %v6285 = vcvt.s32.f32 %v6283
  %v6286 = vcvt.s32.f32 %v6284
  %6287 = vmin.xlane.f32.xlu0 %v6286
  %v6288 = vpop.xlane.xlu0 %6287
  %vm6289 = vcmp.eq.f32.partialorder %v6286, %v6288
  %v6290 = vsel %vm6289, %v6285, inf
  %6291 = vmin.xlane.f32.xlu0 %v6290
  %v6292 = vpop.xlane.xlu0 %6291
  %v6293 = vcvt.f32.s32 %v6292
  %v6294 = vcvt.f32.s32 %v6288
  %v6295 = vshll.u32 %v6294, 16
  %v6296 = vadd.s32 %v6295, %v6293
  %v6297 = vsel %vm927, %v6225, 2147483647
  %v6298 = vand.u32 %v6297, 65535
  %v6299 = vshra.s32 %v6297, 16
  %v6300 = vcvt.s32.f32 %v6298
  %v6301 = vcvt.s32.f32 %v6299
  %6302 = vmin.xlane.f32.xlu0 %v6301
  %v6303 = vpop.xlane.xlu0 %6302
  %vm6304 = vcmp.eq.f32.partialorder %v6301, %v6303
  %v6305 = vsel %vm6304, %v6300, inf
  %6306 = vmin.xlane.f32.xlu0 %v6305
  %v6307 = vpop.xlane.xlu0 %6306
  %v6308 = vcvt.f32.s32 %v6307
  %v6309 = vcvt.f32.s32 %v6303
  %v6310 = vshll.u32 %v6309, 16
  %v6311 = vadd.s32 %v6310, %v6308
  %v6312 = vsel %vm927, %v6226, 2147483647
  %v6313 = vand.u32 %v6312, 65535
  %v6314 = vshra.s32 %v6312, 16
  %v6315 = vcvt.s32.f32 %v6313
  %v6316 = vcvt.s32.f32 %v6314
  %6317 = vmin.xlane.f32.xlu0 %v6316
  %v6318 = vpop.xlane.xlu0 %6317
  %vm6319 = vcmp.eq.f32.partialorder %v6316, %v6318
  %v6320 = vsel %vm6319, %v6315, inf
  %6321 = vmin.xlane.f32.xlu0 %v6320
  %v6322 = vpop.xlane.xlu0 %6321
  %v6323 = vcvt.f32.s32 %v6322
  %v6324 = vcvt.f32.s32 %v6318
  %v6325 = vshll.u32 %v6324, 16
  %v6326 = vadd.s32 %v6325, %v6323
  %v6327 = vsel %vm927, %v6227, 2147483647
  %v6328 = vand.u32 %v6327, 65535
  %v6329 = vshra.s32 %v6327, 16
  %v6330 = vcvt.s32.f32 %v6328
  %v6331 = vcvt.s32.f32 %v6329
  %6332 = vmin.xlane.f32.xlu0 %v6331
  %v6333 = vpop.xlane.xlu0 %6332
  %vm6334 = vcmp.eq.f32.partialorder %v6331, %v6333
  %v6335 = vsel %vm6334, %v6330, inf
  %6336 = vmin.xlane.f32.xlu0 %v6335
  %v6337 = vpop.xlane.xlu0 %6336
  %v6338 = vcvt.f32.s32 %v6337
  %v6339 = vcvt.f32.s32 %v6333
  %v6340 = vshll.u32 %v6339, 16
  %v6341 = vadd.s32 %v6340, %v6338
  %v6342 = vsel %vm927, %v6228, 2147483647
  %v6343 = vand.u32 %v6342, 65535
  %v6344 = vshra.s32 %v6342, 16
  %v6345 = vcvt.s32.f32 %v6343
  %v6346 = vcvt.s32.f32 %v6344
  %6347 = vmin.xlane.f32.xlu0 %v6346
  %v6348 = vpop.xlane.xlu0 %6347
  %vm6349 = vcmp.eq.f32.partialorder %v6346, %v6348
  %v6350 = vsel %vm6349, %v6345, inf
  %6351 = vmin.xlane.f32.xlu0 %v6350
  %v6352 = vpop.xlane.xlu0 %6351
  %v6353 = vcvt.f32.s32 %v6352
  %v6354 = vcvt.f32.s32 %v6348
  %v6355 = vshll.u32 %v6354, 16
  %v6356 = vadd.s32 %v6355, %v6353
  %v6357 = vsel %vm927, %v6229, 2147483647
  %v6358 = vand.u32 %v6357, 65535
  %v6359 = vshra.s32 %v6357, 16
  %v6360 = vcvt.s32.f32 %v6358
  %v6361 = vcvt.s32.f32 %v6359
  %6362 = vmin.xlane.f32.xlu0 %v6361
  %v6363 = vpop.xlane.xlu0 %6362
  %vm6364 = vcmp.eq.f32.partialorder %v6361, %v6363
  %v6365 = vsel %vm6364, %v6360, inf
  %6366 = vmin.xlane.f32.xlu0 %v6365
  %v6367 = vpop.xlane.xlu0 %6366
  %v6368 = vcvt.f32.s32 %v6367
  %v6369 = vcvt.f32.s32 %v6363
  %v6370 = vshll.u32 %v6369, 16
  %v6371 = vadd.s32 %v6370, %v6368
  %v6372 = vsel %vm927, %v6230, 2147483647
  %v6373 = vand.u32 %v6372, 65535
  %v6374 = vshra.s32 %v6372, 16
  %v6375 = vcvt.s32.f32 %v6373
  %v6376 = vcvt.s32.f32 %v6374
  %6377 = vmin.xlane.f32.xlu0 %v6376
  %v6378 = vpop.xlane.xlu0 %6377
  %vm6379 = vcmp.eq.f32.partialorder %v6376, %v6378
  %v6380 = vsel %vm6379, %v6375, inf
  %6381 = vmin.xlane.f32.xlu0 %v6380
  %v6382 = vpop.xlane.xlu0 %6381
  %v6383 = vcvt.f32.s32 %v6382
  %v6384 = vcvt.f32.s32 %v6378
  %v6385 = vshll.u32 %v6384, 16
  %v6386 = vadd.s32 %v6385, %v6383
  %v6387 = vsel %vm927, %v6231, 2147483647
  %v6388 = vand.u32 %v6387, 65535
  %v6389 = vshra.s32 %v6387, 16
  %v6390 = vcvt.s32.f32 %v6388
  %v6391 = vcvt.s32.f32 %v6389
  %6392 = vmin.xlane.f32.xlu0 %v6391
  %v6393 = vpop.xlane.xlu0 %6392
  %vm6394 = vcmp.eq.f32.partialorder %v6391, %v6393
  %v6395 = vsel %vm6394, %v6390, inf
  %6396 = vmin.xlane.f32.xlu0 %v6395
  %v6397 = vpop.xlane.xlu0 %6396
  %v6398 = vcvt.f32.s32 %v6397
  %v6399 = vcvt.f32.s32 %v6393
  %v6400 = vshll.u32 %v6399, 16
  %v6401 = vadd.s32 %v6400, %v6398
  %v6402 = vsel %vm927, %v6232, 2147483647
  %v6403 = vand.u32 %v6402, 65535
  %v6404 = vshra.s32 %v6402, 16
  %v6405 = vcvt.s32.f32 %v6403
  %v6406 = vcvt.s32.f32 %v6404
  %6407 = vmin.xlane.f32.xlu0 %v6406
  %v6408 = vpop.xlane.xlu0 %6407
  %vm6409 = vcmp.eq.f32.partialorder %v6406, %v6408
  %v6410 = vsel %vm6409, %v6405, inf
  %6411 = vmin.xlane.f32.xlu0 %v6410
  %v6412 = vpop.xlane.xlu0 %6411
  %v6413 = vcvt.f32.s32 %v6412
  %v6414 = vcvt.f32.s32 %v6408
  %v6415 = vshll.u32 %v6414, 16
  %v6416 = vadd.s32 %v6415, %v6413
  %v6417 = vsel %vm927, %v6233, 2147483647
  %v6418 = vand.u32 %v6417, 65535
  %v6419 = vshra.s32 %v6417, 16
  %v6420 = vcvt.s32.f32 %v6418
  %v6421 = vcvt.s32.f32 %v6419
  %6422 = vmin.xlane.f32.xlu0 %v6421
  %v6423 = vpop.xlane.xlu0 %6422
  %vm6424 = vcmp.eq.f32.partialorder %v6421, %v6423
  %v6425 = vsel %vm6424, %v6420, inf
  %6426 = vmin.xlane.f32.xlu0 %v6425
  %v6427 = vpop.xlane.xlu0 %6426
  %v6428 = vcvt.f32.s32 %v6427
  %v6429 = vcvt.f32.s32 %v6423
  %v6430 = vshll.u32 %v6429, 16
  %v6431 = vadd.s32 %v6430, %v6428
  %v6432 = vsel %vm927, %v6234, 2147483647
  %v6433 = vand.u32 %v6432, 65535
  %v6434 = vshra.s32 %v6432, 16
  %v6435 = vcvt.s32.f32 %v6433
  %v6436 = vcvt.s32.f32 %v6434
  %6437 = vmin.xlane.f32.xlu0 %v6436
  %v6438 = vpop.xlane.xlu0 %6437
  %vm6439 = vcmp.eq.f32.partialorder %v6436, %v6438
  %v6440 = vsel %vm6439, %v6435, inf
  %6441 = vmin.xlane.f32.xlu0 %v6440
  %v6442 = vpop.xlane.xlu0 %6441
  %v6443 = vcvt.f32.s32 %v6442
  %v6444 = vcvt.f32.s32 %v6438
  %v6445 = vshll.u32 %v6444, 16
  %v6446 = vadd.s32 %v6445, %v6443
  %v6447 = vsel %vm927, %v6235, 2147483647
  %v6448 = vand.u32 %v6447, 65535
  %v6449 = vshra.s32 %v6447, 16
  %v6450 = vcvt.s32.f32 %v6448
  %v6451 = vcvt.s32.f32 %v6449
  %6452 = vmin.xlane.f32.xlu0 %v6451
  %v6453 = vpop.xlane.xlu0 %6452
  %vm6454 = vcmp.eq.f32.partialorder %v6451, %v6453
  %v6455 = vsel %vm6454, %v6450, inf
  %6456 = vmin.xlane.f32.xlu0 %v6455
  %v6457 = vpop.xlane.xlu0 %6456
  %v6458 = vcvt.f32.s32 %v6457
  %v6459 = vcvt.f32.s32 %v6453
  %v6460 = vshll.u32 %v6459, 16
  %v6461 = vadd.s32 %v6460, %v6458
  %v6462 = vsel %vm927, %v6236, 2147483647
  %v6463 = vand.u32 %v6462, 65535
  %v6464 = vshra.s32 %v6462, 16
  %v6465 = vcvt.s32.f32 %v6463
  %v6466 = vcvt.s32.f32 %v6464
  %6467 = vmin.xlane.f32.xlu0 %v6466
  %v6468 = vpop.xlane.xlu0 %6467
  %vm6469 = vcmp.eq.f32.partialorder %v6466, %v6468
  %v6470 = vsel %vm6469, %v6465, inf
  %6471 = vmin.xlane.f32.xlu0 %v6470
  %v6472 = vpop.xlane.xlu0 %6471
  %v6473 = vcvt.f32.s32 %v6472
  %v6474 = vcvt.f32.s32 %v6468
  %v6475 = vshll.u32 %v6474, 16
  %v6476 = vadd.s32 %v6475, %v6473
  %vm6477 = vcmask 113768
  %6478 = vst.msk [vmem:[%s4] sm:$0xff] %vm6477, %v6251
  %6479 = vst.msk [vmem:[%s4 + $0x8] sm:$0xff] %vm6477, %v6266
  %6480 = vst.msk [vmem:[%s4 + $0x10] sm:$0xff] %vm6477, %v6281
  %6481 = vst.msk [vmem:[%s4 + $0x18] sm:$0xff] %vm6477, %v6296
  %6482 = vst.msk [vmem:[%s4 + $0x20] sm:$0xff] %vm6477, %v6311
  %6483 = vst.msk [vmem:[%s4 + $0x28] sm:$0xff] %vm6477, %v6326
  %6484 = vst.msk [vmem:[%s4 + $0x30] sm:$0xff] %vm6477, %v6341
  %6485 = vst.msk [vmem:[%s4 + $0x38] sm:$0xff] %vm6477, %v6356
  %6486 = vst.msk [vmem:[%s4 + $0x40] sm:$0xff] %vm6477, %v6371
  %6487 = vst.msk [vmem:[%s4 + $0x48] sm:$0xff] %vm6477, %v6386
  %6488 = vst.msk [vmem:[%s4 + $0x50] sm:$0xff] %vm6477, %v6401
  %6489 = vst.msk [vmem:[%s4 + $0x58] sm:$0xff] %vm6477, %v6416
  %6490 = vst.msk [vmem:[%s4 + $0x60] sm:$0xff] %vm6477, %v6431
  %6491 = vst.msk [vmem:[%s4 + $0x68] sm:$0xff] %vm6477, %v6446
  %6492 = vst.msk [vmem:[%s4 + $0x70] sm:$0xff] %vm6477, %v6461
  %6493 = vst.msk [vmem:[%s4 + $0x78] sm:$0xff] %vm6477, %v6476
  %6494 = vrot.lane.b32.xlu0 %v876, 16
  %v6495 = vpop.permute.xlu0 %6494
  %6496 = vrot.lane.b32.xlu0 %v877, 16
  %v6497 = vpop.permute.xlu0 %6496
  %6498 = vrot.lane.b32.xlu0 %v878, 16
  %v6499 = vpop.permute.xlu0 %6498
  %6500 = vrot.lane.b32.xlu0 %v879, 16
  %v6501 = vpop.permute.xlu0 %6500
  %6502 = vrot.lane.b32.xlu0 %v880, 16
  %v6503 = vpop.permute.xlu0 %6502
  %6504 = vrot.lane.b32.xlu0 %v881, 16
  %v6505 = vpop.permute.xlu0 %6504
  %6506 = vrot.lane.b32.xlu0 %v882, 16
  %v6507 = vpop.permute.xlu0 %6506
  %6508 = vrot.lane.b32.xlu0 %v883, 16
  %v6509 = vpop.permute.xlu0 %6508
  %6510 = vrot.lane.b32.xlu0 %v884, 16
  %v6511 = vpop.permute.xlu0 %6510
  %6512 = vrot.lane.b32.xlu0 %v885, 16
  %v6513 = vpop.permute.xlu0 %6512
  %6514 = vrot.lane.b32.xlu0 %v886, 16
  %v6515 = vpop.permute.xlu0 %6514
  %6516 = vrot.lane.b32.xlu0 %v887, 16
  %v6517 = vpop.permute.xlu0 %6516
  %6518 = vrot.lane.b32.xlu0 %v888, 16
  %v6519 = vpop.permute.xlu0 %6518
  %6520 = vrot.lane.b32.xlu0 %v889, 16
  %v6521 = vpop.permute.xlu0 %6520
  %6522 = vrot.lane.b32.xlu0 %v890, 16
  %v6523 = vpop.permute.xlu0 %6522
  %6524 = vrot.lane.b32.xlu0 %v891, 16
  %v6525 = vpop.permute.xlu0 %6524
  %v6542 = vsel %vm910, %v6495, -inf
  %v6543 = vsel %vm910, %v6497, -inf
  %v6544 = vsel %vm910, %v6499, -inf
  %v6545 = vsel %vm910, %v6501, -inf
  %v6546 = vsel %vm910, %v6503, -inf
  %v6547 = vsel %vm910, %v6505, -inf
  %v6548 = vsel %vm910, %v6507, -inf
  %v6549 = vsel %vm910, %v6509, -inf
  %v6550 = vsel %vm910, %v6511, -inf
  %v6551 = vsel %vm910, %v6513, -inf
  %v6552 = vsel %vm910, %v6515, -inf
  %v6553 = vsel %vm910, %v6517, -inf
  %v6554 = vsel %vm910, %v6519, -inf
  %v6555 = vsel %vm910, %v6521, -inf
  %v6556 = vsel %vm910, %v6523, -inf
  %v6557 = vsel %vm910, %v6525, -inf
  %v6558 = vsel %vm927, %v6542, -inf
  %6559 = vmax.xlane.f32.xlu0 %v6558
  %v6560 = vpop.xlane.xlu0 %6559
  %v6561 = vsel %vm927, %v6543, -inf
  %6562 = vmax.xlane.f32.xlu0 %v6561
  %v6563 = vpop.xlane.xlu0 %6562
  %v6564 = vsel %vm927, %v6544, -inf
  %6565 = vmax.xlane.f32.xlu0 %v6564
  %v6566 = vpop.xlane.xlu0 %6565
  %v6567 = vsel %vm927, %v6545, -inf
  %6568 = vmax.xlane.f32.xlu0 %v6567
  %v6569 = vpop.xlane.xlu0 %6568
  %v6570 = vsel %vm927, %v6546, -inf
  %6571 = vmax.xlane.f32.xlu0 %v6570
  %v6572 = vpop.xlane.xlu0 %6571
  %v6573 = vsel %vm927, %v6547, -inf
  %6574 = vmax.xlane.f32.xlu0 %v6573
  %v6575 = vpop.xlane.xlu0 %6574
  %v6576 = vsel %vm927, %v6548, -inf
  %6577 = vmax.xlane.f32.xlu0 %v6576
  %v6578 = vpop.xlane.xlu0 %6577
  %v6579 = vsel %vm927, %v6549, -inf
  %6580 = vmax.xlane.f32.xlu0 %v6579
  %v6581 = vpop.xlane.xlu0 %6580
  %v6582 = vsel %vm927, %v6550, -inf
  %6583 = vmax.xlane.f32.xlu0 %v6582
  %v6584 = vpop.xlane.xlu0 %6583
  %v6585 = vsel %vm927, %v6551, -inf
  %6586 = vmax.xlane.f32.xlu0 %v6585
  %v6587 = vpop.xlane.xlu0 %6586
  %v6588 = vsel %vm927, %v6552, -inf
  %6589 = vmax.xlane.f32.xlu0 %v6588
  %v6590 = vpop.xlane.xlu0 %6589
  %v6591 = vsel %vm927, %v6553, -inf
  %6592 = vmax.xlane.f32.xlu0 %v6591
  %v6593 = vpop.xlane.xlu0 %6592
  %v6594 = vsel %vm927, %v6554, -inf
  %6595 = vmax.xlane.f32.xlu0 %v6594
  %v6596 = vpop.xlane.xlu0 %6595
  %v6597 = vsel %vm927, %v6555, -inf
  %6598 = vmax.xlane.f32.xlu0 %v6597
  %v6599 = vpop.xlane.xlu0 %6598
  %v6600 = vsel %vm927, %v6556, -inf
  %6601 = vmax.xlane.f32.xlu0 %v6600
  %v6602 = vpop.xlane.xlu0 %6601
  %v6603 = vsel %vm927, %v6557, -inf
  %6604 = vmax.xlane.f32.xlu0 %v6603
  %v6605 = vpop.xlane.xlu0 %6604
  %vm6606 = vcmp.eq.f32.partialorder %v6542, %v6560
  %vm6607 = vcmp.eq.f32.partialorder %v6543, %v6563
  %vm6608 = vcmp.eq.f32.partialorder %v6544, %v6566
  %vm6609 = vcmp.eq.f32.partialorder %v6545, %v6569
  %vm6610 = vcmp.eq.f32.partialorder %v6546, %v6572
  %vm6611 = vcmp.eq.f32.partialorder %v6547, %v6575
  %vm6612 = vcmp.eq.f32.partialorder %v6548, %v6578
  %vm6613 = vcmp.eq.f32.partialorder %v6549, %v6581
  %vm6614 = vcmp.eq.f32.partialorder %v6550, %v6584
  %vm6615 = vcmp.eq.f32.partialorder %v6551, %v6587
  %vm6616 = vcmp.eq.f32.partialorder %v6552, %v6590
  %vm6617 = vcmp.eq.f32.partialorder %v6553, %v6593
  %vm6618 = vcmp.eq.f32.partialorder %v6554, %v6596
  %vm6619 = vcmp.eq.f32.partialorder %v6555, %v6599
  %vm6620 = vcmp.eq.f32.partialorder %v6556, %v6602
  %vm6621 = vcmp.eq.f32.partialorder %v6557, %v6605
  %v6622 = vsel %vm6606, %v909, 8
  %v6623 = vsel %vm6607, %v909, 8
  %v6624 = vsel %vm6608, %v909, 8
  %v6625 = vsel %vm6609, %v909, 8
  %v6626 = vsel %vm6610, %v909, 8
  %v6627 = vsel %vm6611, %v909, 8
  %v6628 = vsel %vm6612, %v909, 8
  %v6629 = vsel %vm6613, %v909, 8
  %v6630 = vsel %vm6614, %v909, 8
  %v6631 = vsel %vm6615, %v909, 8
  %v6632 = vsel %vm6616, %v909, 8
  %v6633 = vsel %vm6617, %v909, 8
  %v6634 = vsel %vm6618, %v909, 8
  %v6635 = vsel %vm6619, %v909, 8
  %v6636 = vsel %vm6620, %v909, 8
  %v6637 = vsel %vm6621, %v909, 8
  %v6638 = vsel %vm927, %v6622, 2147483647
  %v6639 = vand.u32 %v6638, 65535
  %v6640 = vshra.s32 %v6638, 16
  %v6641 = vcvt.s32.f32 %v6639
  %v6642 = vcvt.s32.f32 %v6640
  %6643 = vmin.xlane.f32.xlu0 %v6642
  %v6644 = vpop.xlane.xlu0 %6643
  %vm6645 = vcmp.eq.f32.partialorder %v6642, %v6644
  %v6646 = vsel %vm6645, %v6641, inf
  %6647 = vmin.xlane.f32.xlu0 %v6646
  %v6648 = vpop.xlane.xlu0 %6647
  %v6649 = vcvt.f32.s32 %v6648
  %v6650 = vcvt.f32.s32 %v6644
  %v6651 = vshll.u32 %v6650, 16
  %v6652 = vadd.s32 %v6651, %v6649
  %v6653 = vsel %vm927, %v6623, 2147483647
  %v6654 = vand.u32 %v6653, 65535
  %v6655 = vshra.s32 %v6653, 16
  %v6656 = vcvt.s32.f32 %v6654
  %v6657 = vcvt.s32.f32 %v6655
  %6658 = vmin.xlane.f32.xlu0 %v6657
  %v6659 = vpop.xlane.xlu0 %6658
  %vm6660 = vcmp.eq.f32.partialorder %v6657, %v6659
  %v6661 = vsel %vm6660, %v6656, inf
  %6662 = vmin.xlane.f32.xlu0 %v6661
  %v6663 = vpop.xlane.xlu0 %6662
  %v6664 = vcvt.f32.s32 %v6663
  %v6665 = vcvt.f32.s32 %v6659
  %v6666 = vshll.u32 %v6665, 16
  %v6667 = vadd.s32 %v6666, %v6664
  %v6668 = vsel %vm927, %v6624, 2147483647
  %v6669 = vand.u32 %v6668, 65535
  %v6670 = vshra.s32 %v6668, 16
  %v6671 = vcvt.s32.f32 %v6669
  %v6672 = vcvt.s32.f32 %v6670
  %6673 = vmin.xlane.f32.xlu0 %v6672
  %v6674 = vpop.xlane.xlu0 %6673
  %vm6675 = vcmp.eq.f32.partialorder %v6672, %v6674
  %v6676 = vsel %vm6675, %v6671, inf
  %6677 = vmin.xlane.f32.xlu0 %v6676
  %v6678 = vpop.xlane.xlu0 %6677
  %v6679 = vcvt.f32.s32 %v6678
  %v6680 = vcvt.f32.s32 %v6674
  %v6681 = vshll.u32 %v6680, 16
  %v6682 = vadd.s32 %v6681, %v6679
  %v6683 = vsel %vm927, %v6625, 2147483647
  %v6684 = vand.u32 %v6683, 65535
  %v6685 = vshra.s32 %v6683, 16
  %v6686 = vcvt.s32.f32 %v6684
  %v6687 = vcvt.s32.f32 %v6685
  %6688 = vmin.xlane.f32.xlu0 %v6687
  %v6689 = vpop.xlane.xlu0 %6688
  %vm6690 = vcmp.eq.f32.partialorder %v6687, %v6689
  %v6691 = vsel %vm6690, %v6686, inf
  %6692 = vmin.xlane.f32.xlu0 %v6691
  %v6693 = vpop.xlane.xlu0 %6692
  %v6694 = vcvt.f32.s32 %v6693
  %v6695 = vcvt.f32.s32 %v6689
  %v6696 = vshll.u32 %v6695, 16
  %v6697 = vadd.s32 %v6696, %v6694
  %v6698 = vsel %vm927, %v6626, 2147483647
  %v6699 = vand.u32 %v6698, 65535
  %v6700 = vshra.s32 %v6698, 16
  %v6701 = vcvt.s32.f32 %v6699
  %v6702 = vcvt.s32.f32 %v6700
  %6703 = vmin.xlane.f32.xlu0 %v6702
  %v6704 = vpop.xlane.xlu0 %6703
  %vm6705 = vcmp.eq.f32.partialorder %v6702, %v6704
  %v6706 = vsel %vm6705, %v6701, inf
  %6707 = vmin.xlane.f32.xlu0 %v6706
  %v6708 = vpop.xlane.xlu0 %6707
  %v6709 = vcvt.f32.s32 %v6708
  %v6710 = vcvt.f32.s32 %v6704
  %v6711 = vshll.u32 %v6710, 16
  %v6712 = vadd.s32 %v6711, %v6709
  %v6713 = vsel %vm927, %v6627, 2147483647
  %v6714 = vand.u32 %v6713, 65535
  %v6715 = vshra.s32 %v6713, 16
  %v6716 = vcvt.s32.f32 %v6714
  %v6717 = vcvt.s32.f32 %v6715
  %6718 = vmin.xlane.f32.xlu0 %v6717
  %v6719 = vpop.xlane.xlu0 %6718
  %vm6720 = vcmp.eq.f32.partialorder %v6717, %v6719
  %v6721 = vsel %vm6720, %v6716, inf
  %6722 = vmin.xlane.f32.xlu0 %v6721
  %v6723 = vpop.xlane.xlu0 %6722
  %v6724 = vcvt.f32.s32 %v6723
  %v6725 = vcvt.f32.s32 %v6719
  %v6726 = vshll.u32 %v6725, 16
  %v6727 = vadd.s32 %v6726, %v6724
  %v6728 = vsel %vm927, %v6628, 2147483647
  %v6729 = vand.u32 %v6728, 65535
  %v6730 = vshra.s32 %v6728, 16
  %v6731 = vcvt.s32.f32 %v6729
  %v6732 = vcvt.s32.f32 %v6730
  %6733 = vmin.xlane.f32.xlu0 %v6732
  %v6734 = vpop.xlane.xlu0 %6733
  %vm6735 = vcmp.eq.f32.partialorder %v6732, %v6734
  %v6736 = vsel %vm6735, %v6731, inf
  %6737 = vmin.xlane.f32.xlu0 %v6736
  %v6738 = vpop.xlane.xlu0 %6737
  %v6739 = vcvt.f32.s32 %v6738
  %v6740 = vcvt.f32.s32 %v6734
  %v6741 = vshll.u32 %v6740, 16
  %v6742 = vadd.s32 %v6741, %v6739
  %v6743 = vsel %vm927, %v6629, 2147483647
  %v6744 = vand.u32 %v6743, 65535
  %v6745 = vshra.s32 %v6743, 16
  %v6746 = vcvt.s32.f32 %v6744
  %v6747 = vcvt.s32.f32 %v6745
  %6748 = vmin.xlane.f32.xlu0 %v6747
  %v6749 = vpop.xlane.xlu0 %6748
  %vm6750 = vcmp.eq.f32.partialorder %v6747, %v6749
  %v6751 = vsel %vm6750, %v6746, inf
  %6752 = vmin.xlane.f32.xlu0 %v6751
  %v6753 = vpop.xlane.xlu0 %6752
  %v6754 = vcvt.f32.s32 %v6753
  %v6755 = vcvt.f32.s32 %v6749
  %v6756 = vshll.u32 %v6755, 16
  %v6757 = vadd.s32 %v6756, %v6754
  %v6758 = vsel %vm927, %v6630, 2147483647
  %v6759 = vand.u32 %v6758, 65535
  %v6760 = vshra.s32 %v6758, 16
  %v6761 = vcvt.s32.f32 %v6759
  %v6762 = vcvt.s32.f32 %v6760
  %6763 = vmin.xlane.f32.xlu0 %v6762
  %v6764 = vpop.xlane.xlu0 %6763
  %vm6765 = vcmp.eq.f32.partialorder %v6762, %v6764
  %v6766 = vsel %vm6765, %v6761, inf
  %6767 = vmin.xlane.f32.xlu0 %v6766
  %v6768 = vpop.xlane.xlu0 %6767
  %v6769 = vcvt.f32.s32 %v6768
  %v6770 = vcvt.f32.s32 %v6764
  %v6771 = vshll.u32 %v6770, 16
  %v6772 = vadd.s32 %v6771, %v6769
  %v6773 = vsel %vm927, %v6631, 2147483647
  %v6774 = vand.u32 %v6773, 65535
  %v6775 = vshra.s32 %v6773, 16
  %v6776 = vcvt.s32.f32 %v6774
  %v6777 = vcvt.s32.f32 %v6775
  %6778 = vmin.xlane.f32.xlu0 %v6777
  %v6779 = vpop.xlane.xlu0 %6778
  %vm6780 = vcmp.eq.f32.partialorder %v6777, %v6779
  %v6781 = vsel %vm6780, %v6776, inf
  %6782 = vmin.xlane.f32.xlu0 %v6781
  %v6783 = vpop.xlane.xlu0 %6782
  %v6784 = vcvt.f32.s32 %v6783
  %v6785 = vcvt.f32.s32 %v6779
  %v6786 = vshll.u32 %v6785, 16
  %v6787 = vadd.s32 %v6786, %v6784
  %v6788 = vsel %vm927, %v6632, 2147483647
  %v6789 = vand.u32 %v6788, 65535
  %v6790 = vshra.s32 %v6788, 16
  %v6791 = vcvt.s32.f32 %v6789
  %v6792 = vcvt.s32.f32 %v6790
  %6793 = vmin.xlane.f32.xlu0 %v6792
  %v6794 = vpop.xlane.xlu0 %6793
  %vm6795 = vcmp.eq.f32.partialorder %v6792, %v6794
  %v6796 = vsel %vm6795, %v6791, inf
  %6797 = vmin.xlane.f32.xlu0 %v6796
  %v6798 = vpop.xlane.xlu0 %6797
  %v6799 = vcvt.f32.s32 %v6798
  %v6800 = vcvt.f32.s32 %v6794
  %v6801 = vshll.u32 %v6800, 16
  %v6802 = vadd.s32 %v6801, %v6799
  %v6803 = vsel %vm927, %v6633, 2147483647
  %v6804 = vand.u32 %v6803, 65535
  %v6805 = vshra.s32 %v6803, 16
  %v6806 = vcvt.s32.f32 %v6804
  %v6807 = vcvt.s32.f32 %v6805
  %6808 = vmin.xlane.f32.xlu0 %v6807
  %v6809 = vpop.xlane.xlu0 %6808
  %vm6810 = vcmp.eq.f32.partialorder %v6807, %v6809
  %v6811 = vsel %vm6810, %v6806, inf
  %6812 = vmin.xlane.f32.xlu0 %v6811
  %v6813 = vpop.xlane.xlu0 %6812
  %v6814 = vcvt.f32.s32 %v6813
  %v6815 = vcvt.f32.s32 %v6809
  %v6816 = vshll.u32 %v6815, 16
  %v6817 = vadd.s32 %v6816, %v6814
  %v6818 = vsel %vm927, %v6634, 2147483647
  %v6819 = vand.u32 %v6818, 65535
  %v6820 = vshra.s32 %v6818, 16
  %v6821 = vcvt.s32.f32 %v6819
  %v6822 = vcvt.s32.f32 %v6820
  %6823 = vmin.xlane.f32.xlu0 %v6822
  %v6824 = vpop.xlane.xlu0 %6823
  %vm6825 = vcmp.eq.f32.partialorder %v6822, %v6824
  %v6826 = vsel %vm6825, %v6821, inf
  %6827 = vmin.xlane.f32.xlu0 %v6826
  %v6828 = vpop.xlane.xlu0 %6827
  %v6829 = vcvt.f32.s32 %v6828
  %v6830 = vcvt.f32.s32 %v6824
  %v6831 = vshll.u32 %v6830, 16
  %v6832 = vadd.s32 %v6831, %v6829
  %v6833 = vsel %vm927, %v6635, 2147483647
  %v6834 = vand.u32 %v6833, 65535
  %v6835 = vshra.s32 %v6833, 16
  %v6836 = vcvt.s32.f32 %v6834
  %v6837 = vcvt.s32.f32 %v6835
  %6838 = vmin.xlane.f32.xlu0 %v6837
  %v6839 = vpop.xlane.xlu0 %6838
  %vm6840 = vcmp.eq.f32.partialorder %v6837, %v6839
  %v6841 = vsel %vm6840, %v6836, inf
  %6842 = vmin.xlane.f32.xlu0 %v6841
  %v6843 = vpop.xlane.xlu0 %6842
  %v6844 = vcvt.f32.s32 %v6843
  %v6845 = vcvt.f32.s32 %v6839
  %v6846 = vshll.u32 %v6845, 16
  %v6847 = vadd.s32 %v6846, %v6844
  %v6848 = vsel %vm927, %v6636, 2147483647
  %v6849 = vand.u32 %v6848, 65535
  %v6850 = vshra.s32 %v6848, 16
  %v6851 = vcvt.s32.f32 %v6849
  %v6852 = vcvt.s32.f32 %v6850
  %6853 = vmin.xlane.f32.xlu0 %v6852
  %v6854 = vpop.xlane.xlu0 %6853
  %vm6855 = vcmp.eq.f32.partialorder %v6852, %v6854
  %v6856 = vsel %vm6855, %v6851, inf
  %6857 = vmin.xlane.f32.xlu0 %v6856
  %v6858 = vpop.xlane.xlu0 %6857
  %v6859 = vcvt.f32.s32 %v6858
  %v6860 = vcvt.f32.s32 %v6854
  %v6861 = vshll.u32 %v6860, 16
  %v6862 = vadd.s32 %v6861, %v6859
  %v6863 = vsel %vm927, %v6637, 2147483647
  %v6864 = vand.u32 %v6863, 65535
  %v6865 = vshra.s32 %v6863, 16
  %v6866 = vcvt.s32.f32 %v6864
  %v6867 = vcvt.s32.f32 %v6865
  %6868 = vmin.xlane.f32.xlu0 %v6867
  %v6869 = vpop.xlane.xlu0 %6868
  %vm6870 = vcmp.eq.f32.partialorder %v6867, %v6869
  %v6871 = vsel %vm6870, %v6866, inf
  %6872 = vmin.xlane.f32.xlu0 %v6871
  %v6873 = vpop.xlane.xlu0 %6872
  %v6874 = vcvt.f32.s32 %v6873
  %v6875 = vcvt.f32.s32 %v6869
  %v6876 = vshll.u32 %v6875, 16
  %v6877 = vadd.s32 %v6876, %v6874
  %vm6878 = vcmask 121968
  %6879 = vst.msk [vmem:[%s4] sm:$0xff] %vm6878, %v6652
  %6880 = vst.msk [vmem:[%s4 + $0x8] sm:$0xff] %vm6878, %v6667
  %6881 = vst.msk [vmem:[%s4 + $0x10] sm:$0xff] %vm6878, %v6682
  %6882 = vst.msk [vmem:[%s4 + $0x18] sm:$0xff] %vm6878, %v6697
  %6883 = vst.msk [vmem:[%s4 + $0x20] sm:$0xff] %vm6878, %v6712
  %6884 = vst.msk [vmem:[%s4 + $0x28] sm:$0xff] %vm6878, %v6727
  %6885 = vst.msk [vmem:[%s4 + $0x30] sm:$0xff] %vm6878, %v6742
  %6886 = vst.msk [vmem:[%s4 + $0x38] sm:$0xff] %vm6878, %v6757
  %6887 = vst.msk [vmem:[%s4 + $0x40] sm:$0xff] %vm6878, %v6772
  %6888 = vst.msk [vmem:[%s4 + $0x48] sm:$0xff] %vm6878, %v6787
  %6889 = vst.msk [vmem:[%s4 + $0x50] sm:$0xff] %vm6878, %v6802
  %6890 = vst.msk [vmem:[%s4 + $0x58] sm:$0xff] %vm6878, %v6817
  %6891 = vst.msk [vmem:[%s4 + $0x60] sm:$0xff] %vm6878, %v6832
  %6892 = vst.msk [vmem:[%s4 + $0x68] sm:$0xff] %vm6878, %v6847
  %6893 = vst.msk [vmem:[%s4 + $0x70] sm:$0xff] %vm6878, %v6862
  %6894 = vst.msk [vmem:[%s4 + $0x78] sm:$0xff] %vm6878, %v6877
  %6895 = vrot.lane.b32.xlu0 %v876, 8
  %v6896 = vpop.permute.xlu0 %6895
  %6897 = vrot.lane.b32.xlu0 %v877, 8
  %v6898 = vpop.permute.xlu0 %6897
  %6899 = vrot.lane.b32.xlu0 %v878, 8
  %v6900 = vpop.permute.xlu0 %6899
  %6901 = vrot.lane.b32.xlu0 %v879, 8
  %v6902 = vpop.permute.xlu0 %6901
  %6903 = vrot.lane.b32.xlu0 %v880, 8
  %v6904 = vpop.permute.xlu0 %6903
  %6905 = vrot.lane.b32.xlu0 %v881, 8
  %v6906 = vpop.permute.xlu0 %6905
  %6907 = vrot.lane.b32.xlu0 %v882, 8
  %v6908 = vpop.permute.xlu0 %6907
  %6909 = vrot.lane.b32.xlu0 %v883, 8
  %v6910 = vpop.permute.xlu0 %6909
  %6911 = vrot.lane.b32.xlu0 %v884, 8
  %v6912 = vpop.permute.xlu0 %6911
  %6913 = vrot.lane.b32.xlu0 %v885, 8
  %v6914 = vpop.permute.xlu0 %6913
  %6915 = vrot.lane.b32.xlu0 %v886, 8
  %v6916 = vpop.permute.xlu0 %6915
  %6917 = vrot.lane.b32.xlu0 %v887, 8
  %v6918 = vpop.permute.xlu0 %6917
  %6919 = vrot.lane.b32.xlu0 %v888, 8
  %v6920 = vpop.permute.xlu0 %6919
  %6921 = vrot.lane.b32.xlu0 %v889, 8
  %v6922 = vpop.permute.xlu0 %6921
  %6923 = vrot.lane.b32.xlu0 %v890, 8
  %v6924 = vpop.permute.xlu0 %6923
  %6925 = vrot.lane.b32.xlu0 %v891, 8
  %v6926 = vpop.permute.xlu0 %6925
  %v6943 = vsel %vm910, %v6896, -inf
  %v6944 = vsel %vm910, %v6898, -inf
  %v6945 = vsel %vm910, %v6900, -inf
  %v6946 = vsel %vm910, %v6902, -inf
  %v6947 = vsel %vm910, %v6904, -inf
  %v6948 = vsel %vm910, %v6906, -inf
  %v6949 = vsel %vm910, %v6908, -inf
  %v6950 = vsel %vm910, %v6910, -inf
  %v6951 = vsel %vm910, %v6912, -inf
  %v6952 = vsel %vm910, %v6914, -inf
  %v6953 = vsel %vm910, %v6916, -inf
  %v6954 = vsel %vm910, %v6918, -inf
  %v6955 = vsel %vm910, %v6920, -inf
  %v6956 = vsel %vm910, %v6922, -inf
  %v6957 = vsel %vm910, %v6924, -inf
  %v6958 = vsel %vm910, %v6926, -inf
  %v6959 = vsel %vm927, %v6943, -inf
  %6960 = vmax.xlane.f32.xlu0 %v6959
  %v6961 = vpop.xlane.xlu0 %6960
  %v6962 = vsel %vm927, %v6944, -inf
  %6963 = vmax.xlane.f32.xlu0 %v6962
  %v6964 = vpop.xlane.xlu0 %6963
  %v6965 = vsel %vm927, %v6945, -inf
  %6966 = vmax.xlane.f32.xlu0 %v6965
  %v6967 = vpop.xlane.xlu0 %6966
  %v6968 = vsel %vm927, %v6946, -inf
  %6969 = vmax.xlane.f32.xlu0 %v6968
  %v6970 = vpop.xlane.xlu0 %6969
  %v6971 = vsel %vm927, %v6947, -inf
  %6972 = vmax.xlane.f32.xlu0 %v6971
  %v6973 = vpop.xlane.xlu0 %6972
  %v6974 = vsel %vm927, %v6948, -inf
  %6975 = vmax.xlane.f32.xlu0 %v6974
  %v6976 = vpop.xlane.xlu0 %6975
  %v6977 = vsel %vm927, %v6949, -inf
  %6978 = vmax.xlane.f32.xlu0 %v6977
  %v6979 = vpop.xlane.xlu0 %6978
  %v6980 = vsel %vm927, %v6950, -inf
  %6981 = vmax.xlane.f32.xlu0 %v6980
  %v6982 = vpop.xlane.xlu0 %6981
  %v6983 = vsel %vm927, %v6951, -inf
  %6984 = vmax.xlane.f32.xlu0 %v6983
  %v6985 = vpop.xlane.xlu0 %6984
  %v6986 = vsel %vm927, %v6952, -inf
  %6987 = vmax.xlane.f32.xlu0 %v6986
  %v6988 = vpop.xlane.xlu0 %6987
  %v6989 = vsel %vm927, %v6953, -inf
  %6990 = vmax.xlane.f32.xlu0 %v6989
  %v6991 = vpop.xlane.xlu0 %6990
  %v6992 = vsel %vm927, %v6954, -inf
  %6993 = vmax.xlane.f32.xlu0 %v6992
  %v6994 = vpop.xlane.xlu0 %6993
  %v6995 = vsel %vm927, %v6955, -inf
  %6996 = vmax.xlane.f32.xlu0 %v6995
  %v6997 = vpop.xlane.xlu0 %6996
  %v6998 = vsel %vm927, %v6956, -inf
  %6999 = vmax.xlane.f32.xlu0 %v6998
  %v7000 = vpop.xlane.xlu0 %6999
  %v7001 = vsel %vm927, %v6957, -inf
  %7002 = vmax.xlane.f32.xlu0 %v7001
  %v7003 = vpop.xlane.xlu0 %7002
  %v7004 = vsel %vm927, %v6958, -inf
  %7005 = vmax.xlane.f32.xlu0 %v7004
  %v7006 = vpop.xlane.xlu0 %7005
  %vm7007 = vcmp.eq.f32.partialorder %v6943, %v6961
  %vm7008 = vcmp.eq.f32.partialorder %v6944, %v6964
  %vm7009 = vcmp.eq.f32.partialorder %v6945, %v6967
  %vm7010 = vcmp.eq.f32.partialorder %v6946, %v6970
  %vm7011 = vcmp.eq.f32.partialorder %v6947, %v6973
  %vm7012 = vcmp.eq.f32.partialorder %v6948, %v6976
  %vm7013 = vcmp.eq.f32.partialorder %v6949, %v6979
  %vm7014 = vcmp.eq.f32.partialorder %v6950, %v6982
  %vm7015 = vcmp.eq.f32.partialorder %v6951, %v6985
  %vm7016 = vcmp.eq.f32.partialorder %v6952, %v6988
  %vm7017 = vcmp.eq.f32.partialorder %v6953, %v6991
  %vm7018 = vcmp.eq.f32.partialorder %v6954, %v6994
  %vm7019 = vcmp.eq.f32.partialorder %v6955, %v6997
  %vm7020 = vcmp.eq.f32.partialorder %v6956, %v7000
  %vm7021 = vcmp.eq.f32.partialorder %v6957, %v7003
  %vm7022 = vcmp.eq.f32.partialorder %v6958, %v7006
  %v7023 = vsel %vm7007, %v909, 8
  %v7024 = vsel %vm7008, %v909, 8
  %v7025 = vsel %vm7009, %v909, 8
  %v7026 = vsel %vm7010, %v909, 8
  %v7027 = vsel %vm7011, %v909, 8
  %v7028 = vsel %vm7012, %v909, 8
  %v7029 = vsel %vm7013, %v909, 8
  %v7030 = vsel %vm7014, %v909, 8
  %v7031 = vsel %vm7015, %v909, 8
  %v7032 = vsel %vm7016, %v909, 8
  %v7033 = vsel %vm7017, %v909, 8
  %v7034 = vsel %vm7018, %v909, 8
  %v7035 = vsel %vm7019, %v909, 8
  %v7036 = vsel %vm7020, %v909, 8
  %v7037 = vsel %vm7021, %v909, 8
  %v7038 = vsel %vm7022, %v909, 8
  %v7039 = vsel %vm927, %v7023, 2147483647
  %v7040 = vand.u32 %v7039, 65535
  %v7041 = vshra.s32 %v7039, 16
  %v7042 = vcvt.s32.f32 %v7040
  %v7043 = vcvt.s32.f32 %v7041
  %7044 = vmin.xlane.f32.xlu0 %v7043
  %v7045 = vpop.xlane.xlu0 %7044
  %vm7046 = vcmp.eq.f32.partialorder %v7043, %v7045
  %v7047 = vsel %vm7046, %v7042, inf
  %7048 = vmin.xlane.f32.xlu0 %v7047
  %v7049 = vpop.xlane.xlu0 %7048
  %v7050 = vcvt.f32.s32 %v7049
  %v7051 = vcvt.f32.s32 %v7045
  %v7052 = vshll.u32 %v7051, 16
  %v7053 = vadd.s32 %v7052, %v7050
  %v7054 = vsel %vm927, %v7024, 2147483647
  %v7055 = vand.u32 %v7054, 65535
  %v7056 = vshra.s32 %v7054, 16
  %v7057 = vcvt.s32.f32 %v7055
  %v7058 = vcvt.s32.f32 %v7056
  %7059 = vmin.xlane.f32.xlu0 %v7058
  %v7060 = vpop.xlane.xlu0 %7059
  %vm7061 = vcmp.eq.f32.partialorder %v7058, %v7060
  %v7062 = vsel %vm7061, %v7057, inf
  %7063 = vmin.xlane.f32.xlu0 %v7062
  %v7064 = vpop.xlane.xlu0 %7063
  %v7065 = vcvt.f32.s32 %v7064
  %v7066 = vcvt.f32.s32 %v7060
  %v7067 = vshll.u32 %v7066, 16
  %v7068 = vadd.s32 %v7067, %v7065
  %v7069 = vsel %vm927, %v7025, 2147483647
  %v7070 = vand.u32 %v7069, 65535
  %v7071 = vshra.s32 %v7069, 16
  %v7072 = vcvt.s32.f32 %v7070
  %v7073 = vcvt.s32.f32 %v7071
  %7074 = vmin.xlane.f32.xlu0 %v7073
  %v7075 = vpop.xlane.xlu0 %7074
  %vm7076 = vcmp.eq.f32.partialorder %v7073, %v7075
  %v7077 = vsel %vm7076, %v7072, inf
  %7078 = vmin.xlane.f32.xlu0 %v7077
  %v7079 = vpop.xlane.xlu0 %7078
  %v7080 = vcvt.f32.s32 %v7079
  %v7081 = vcvt.f32.s32 %v7075
  %v7082 = vshll.u32 %v7081, 16
  %v7083 = vadd.s32 %v7082, %v7080
  %v7084 = vsel %vm927, %v7026, 2147483647
  %v7085 = vand.u32 %v7084, 65535
  %v7086 = vshra.s32 %v7084, 16
  %v7087 = vcvt.s32.f32 %v7085
  %v7088 = vcvt.s32.f32 %v7086
  %7089 = vmin.xlane.f32.xlu0 %v7088
  %v7090 = vpop.xlane.xlu0 %7089
  %vm7091 = vcmp.eq.f32.partialorder %v7088, %v7090
  %v7092 = vsel %vm7091, %v7087, inf
  %7093 = vmin.xlane.f32.xlu0 %v7092
  %v7094 = vpop.xlane.xlu0 %7093
  %v7095 = vcvt.f32.s32 %v7094
  %v7096 = vcvt.f32.s32 %v7090
  %v7097 = vshll.u32 %v7096, 16
  %v7098 = vadd.s32 %v7097, %v7095
  %v7099 = vsel %vm927, %v7027, 2147483647
  %v7100 = vand.u32 %v7099, 65535
  %v7101 = vshra.s32 %v7099, 16
  %v7102 = vcvt.s32.f32 %v7100
  %v7103 = vcvt.s32.f32 %v7101
  %7104 = vmin.xlane.f32.xlu0 %v7103
  %v7105 = vpop.xlane.xlu0 %7104
  %vm7106 = vcmp.eq.f32.partialorder %v7103, %v7105
  %v7107 = vsel %vm7106, %v7102, inf
  %7108 = vmin.xlane.f32.xlu0 %v7107
  %v7109 = vpop.xlane.xlu0 %7108
  %v7110 = vcvt.f32.s32 %v7109
  %v7111 = vcvt.f32.s32 %v7105
  %v7112 = vshll.u32 %v7111, 16
  %v7113 = vadd.s32 %v7112, %v7110
  %v7114 = vsel %vm927, %v7028, 2147483647
  %v7115 = vand.u32 %v7114, 65535
  %v7116 = vshra.s32 %v7114, 16
  %v7117 = vcvt.s32.f32 %v7115
  %v7118 = vcvt.s32.f32 %v7116
  %7119 = vmin.xlane.f32.xlu0 %v7118
  %v7120 = vpop.xlane.xlu0 %7119
  %vm7121 = vcmp.eq.f32.partialorder %v7118, %v7120
  %v7122 = vsel %vm7121, %v7117, inf
  %7123 = vmin.xlane.f32.xlu0 %v7122
  %v7124 = vpop.xlane.xlu0 %7123
  %v7125 = vcvt.f32.s32 %v7124
  %v7126 = vcvt.f32.s32 %v7120
  %v7127 = vshll.u32 %v7126, 16
  %v7128 = vadd.s32 %v7127, %v7125
  %v7129 = vsel %vm927, %v7029, 2147483647
  %v7130 = vand.u32 %v7129, 65535
  %v7131 = vshra.s32 %v7129, 16
  %v7132 = vcvt.s32.f32 %v7130
  %v7133 = vcvt.s32.f32 %v7131
  %7134 = vmin.xlane.f32.xlu0 %v7133
  %v7135 = vpop.xlane.xlu0 %7134
  %vm7136 = vcmp.eq.f32.partialorder %v7133, %v7135
  %v7137 = vsel %vm7136, %v7132, inf
  %7138 = vmin.xlane.f32.xlu0 %v7137
  %v7139 = vpop.xlane.xlu0 %7138
  %v7140 = vcvt.f32.s32 %v7139
  %v7141 = vcvt.f32.s32 %v7135
  %v7142 = vshll.u32 %v7141, 16
  %v7143 = vadd.s32 %v7142, %v7140
  %v7144 = vsel %vm927, %v7030, 2147483647
  %v7145 = vand.u32 %v7144, 65535
  %v7146 = vshra.s32 %v7144, 16
  %v7147 = vcvt.s32.f32 %v7145
  %v7148 = vcvt.s32.f32 %v7146
  %7149 = vmin.xlane.f32.xlu0 %v7148
  %v7150 = vpop.xlane.xlu0 %7149
  %vm7151 = vcmp.eq.f32.partialorder %v7148, %v7150
  %v7152 = vsel %vm7151, %v7147, inf
  %7153 = vmin.xlane.f32.xlu0 %v7152
  %v7154 = vpop.xlane.xlu0 %7153
  %v7155 = vcvt.f32.s32 %v7154
  %v7156 = vcvt.f32.s32 %v7150
  %v7157 = vshll.u32 %v7156, 16
  %v7158 = vadd.s32 %v7157, %v7155
  %v7159 = vsel %vm927, %v7031, 2147483647
  %v7160 = vand.u32 %v7159, 65535
  %v7161 = vshra.s32 %v7159, 16
  %v7162 = vcvt.s32.f32 %v7160
  %v7163 = vcvt.s32.f32 %v7161
  %7164 = vmin.xlane.f32.xlu0 %v7163
  %v7165 = vpop.xlane.xlu0 %7164
  %vm7166 = vcmp.eq.f32.partialorder %v7163, %v7165
  %v7167 = vsel %vm7166, %v7162, inf
  %7168 = vmin.xlane.f32.xlu0 %v7167
  %v7169 = vpop.xlane.xlu0 %7168
  %v7170 = vcvt.f32.s32 %v7169
  %v7171 = vcvt.f32.s32 %v7165
  %v7172 = vshll.u32 %v7171, 16
  %v7173 = vadd.s32 %v7172, %v7170
  %v7174 = vsel %vm927, %v7032, 2147483647
  %v7175 = vand.u32 %v7174, 65535
  %v7176 = vshra.s32 %v7174, 16
  %v7177 = vcvt.s32.f32 %v7175
  %v7178 = vcvt.s32.f32 %v7176
  %7179 = vmin.xlane.f32.xlu0 %v7178
  %v7180 = vpop.xlane.xlu0 %7179
  %vm7181 = vcmp.eq.f32.partialorder %v7178, %v7180
  %v7182 = vsel %vm7181, %v7177, inf
  %7183 = vmin.xlane.f32.xlu0 %v7182
  %v7184 = vpop.xlane.xlu0 %7183
  %v7185 = vcvt.f32.s32 %v7184
  %v7186 = vcvt.f32.s32 %v7180
  %v7187 = vshll.u32 %v7186, 16
  %v7188 = vadd.s32 %v7187, %v7185
  %v7189 = vsel %vm927, %v7033, 2147483647
  %v7190 = vand.u32 %v7189, 65535
  %v7191 = vshra.s32 %v7189, 16
  %v7192 = vcvt.s32.f32 %v7190
  %v7193 = vcvt.s32.f32 %v7191
  %7194 = vmin.xlane.f32.xlu0 %v7193
  %v7195 = vpop.xlane.xlu0 %7194
  %vm7196 = vcmp.eq.f32.partialorder %v7193, %v7195
  %v7197 = vsel %vm7196, %v7192, inf
  %7198 = vmin.xlane.f32.xlu0 %v7197
  %v7199 = vpop.xlane.xlu0 %7198
  %v7200 = vcvt.f32.s32 %v7199
  %v7201 = vcvt.f32.s32 %v7195
  %v7202 = vshll.u32 %v7201, 16
  %v7203 = vadd.s32 %v7202, %v7200
  %v7204 = vsel %vm927, %v7034, 2147483647
  %v7205 = vand.u32 %v7204, 65535
  %v7206 = vshra.s32 %v7204, 16
  %v7207 = vcvt.s32.f32 %v7205
  %v7208 = vcvt.s32.f32 %v7206
  %7209 = vmin.xlane.f32.xlu0 %v7208
  %v7210 = vpop.xlane.xlu0 %7209
  %vm7211 = vcmp.eq.f32.partialorder %v7208, %v7210
  %v7212 = vsel %vm7211, %v7207, inf
  %7213 = vmin.xlane.f32.xlu0 %v7212
  %v7214 = vpop.xlane.xlu0 %7213
  %v7215 = vcvt.f32.s32 %v7214
  %v7216 = vcvt.f32.s32 %v7210
  %v7217 = vshll.u32 %v7216, 16
  %v7218 = vadd.s32 %v7217, %v7215
  %v7219 = vsel %vm927, %v7035, 2147483647
  %v7220 = vand.u32 %v7219, 65535
  %v7221 = vshra.s32 %v7219, 16
  %v7222 = vcvt.s32.f32 %v7220
  %v7223 = vcvt.s32.f32 %v7221
  %7224 = vmin.xlane.f32.xlu0 %v7223
  %v7225 = vpop.xlane.xlu0 %7224
  %vm7226 = vcmp.eq.f32.partialorder %v7223, %v7225
  %v7227 = vsel %vm7226, %v7222, inf
  %7228 = vmin.xlane.f32.xlu0 %v7227
  %v7229 = vpop.xlane.xlu0 %7228
  %v7230 = vcvt.f32.s32 %v7229
  %v7231 = vcvt.f32.s32 %v7225
  %v7232 = vshll.u32 %v7231, 16
  %v7233 = vadd.s32 %v7232, %v7230
  %v7234 = vsel %vm927, %v7036, 2147483647
  %v7235 = vand.u32 %v7234, 65535
  %v7236 = vshra.s32 %v7234, 16
  %v7237 = vcvt.s32.f32 %v7235
  %v7238 = vcvt.s32.f32 %v7236
  %7239 = vmin.xlane.f32.xlu0 %v7238
  %v7240 = vpop.xlane.xlu0 %7239
  %vm7241 = vcmp.eq.f32.partialorder %v7238, %v7240
  %v7242 = vsel %vm7241, %v7237, inf
  %7243 = vmin.xlane.f32.xlu0 %v7242
  %v7244 = vpop.xlane.xlu0 %7243
  %v7245 = vcvt.f32.s32 %v7244
  %v7246 = vcvt.f32.s32 %v7240
  %v7247 = vshll.u32 %v7246, 16
  %v7248 = vadd.s32 %v7247, %v7245
  %v7249 = vsel %vm927, %v7037, 2147483647
  %v7250 = vand.u32 %v7249, 65535
  %v7251 = vshra.s32 %v7249, 16
  %v7252 = vcvt.s32.f32 %v7250
  %v7253 = vcvt.s32.f32 %v7251
  %7254 = vmin.xlane.f32.xlu0 %v7253
  %v7255 = vpop.xlane.xlu0 %7254
  %vm7256 = vcmp.eq.f32.partialorder %v7253, %v7255
  %v7257 = vsel %vm7256, %v7252, inf
  %7258 = vmin.xlane.f32.xlu0 %v7257
  %v7259 = vpop.xlane.xlu0 %7258
  %v7260 = vcvt.f32.s32 %v7259
  %v7261 = vcvt.f32.s32 %v7255
  %v7262 = vshll.u32 %v7261, 16
  %v7263 = vadd.s32 %v7262, %v7260
  %v7264 = vsel %vm927, %v7038, 2147483647
  %v7265 = vand.u32 %v7264, 65535
  %v7266 = vshra.s32 %v7264, 16
  %v7267 = vcvt.s32.f32 %v7265
  %v7268 = vcvt.s32.f32 %v7266
  %7269 = vmin.xlane.f32.xlu0 %v7268
  %v7270 = vpop.xlane.xlu0 %7269
  %vm7271 = vcmp.eq.f32.partialorder %v7268, %v7270
  %v7272 = vsel %vm7271, %v7267, inf
  %7273 = vmin.xlane.f32.xlu0 %v7272
  %v7274 = vpop.xlane.xlu0 %7273
  %v7275 = vcvt.f32.s32 %v7274
  %v7276 = vcvt.f32.s32 %v7270
  %v7277 = vshll.u32 %v7276, 16
  %v7278 = vadd.s32 %v7277, %v7275
  %vm7279 = vcmask 130168
  %7280 = vst.msk [vmem:[%s4] sm:$0xff] %vm7279, %v7053
  %7281 = vst.msk [vmem:[%s4 + $0x8] sm:$0xff] %vm7279, %v7068
  %7282 = vst.msk [vmem:[%s4 + $0x10] sm:$0xff] %vm7279, %v7083
  %7283 = vst.msk [vmem:[%s4 + $0x18] sm:$0xff] %vm7279, %v7098
  %7284 = vst.msk [vmem:[%s4 + $0x20] sm:$0xff] %vm7279, %v7113
  %7285 = vst.msk [vmem:[%s4 + $0x28] sm:$0xff] %vm7279, %v7128
  %7286 = vst.msk [vmem:[%s4 + $0x30] sm:$0xff] %vm7279, %v7143
  %7287 = vst.msk [vmem:[%s4 + $0x38] sm:$0xff] %vm7279, %v7158
  %7288 = vst.msk [vmem:[%s4 + $0x40] sm:$0xff] %vm7279, %v7173
  %7289 = vst.msk [vmem:[%s4 + $0x48] sm:$0xff] %vm7279, %v7188
  %7290 = vst.msk [vmem:[%s4 + $0x50] sm:$0xff] %vm7279, %v7203
  %7291 = vst.msk [vmem:[%s4 + $0x58] sm:$0xff] %vm7279, %v7218
  %7292 = vst.msk [vmem:[%s4 + $0x60] sm:$0xff] %vm7279, %v7233
  %7293 = vst.msk [vmem:[%s4 + $0x68] sm:$0xff] %vm7279, %v7248
  %7294 = vst.msk [vmem:[%s4 + $0x70] sm:$0xff] %vm7279, %v7263
  %7295 = vst.msk [vmem:[%s4 + $0x78] sm:$0xff] %vm7279, %v7278
  // Predicated region
  $region14: #{_lambda_.7} parent=0 // pred_check
    _
  $region15: #{_lambda_.7} parent=0 // pred_check_branch
    %7297 = sbr.rel (0) target = $region17
  $region16: #{_lambda_.7} parent=0 // pred_region
    _
  $region17: #{_lambda_.7} parent=0 // pred_fallthru
    _
  // Predicated region
  $region18: #{_lambda_.7} parent=0 // pred_check
    _
  $region19: #{_lambda_.7} parent=0 // pred_check_branch
    %7299 = sbr.rel (0) target = $region21
  $region20: #{_lambda_.7} parent=0 // pred_region
    _
  $region21: #{_lambda_.7} parent=0 // pred_fallthru
    _
  // Predicated region
  $region22: #{_lambda_.7} parent=0 // pred_check
    _
  $region23: #{_lambda_.7} parent=0 // pred_check_branch
    %7301 = sbr.rel (0) target = $region25
  $region24: #{_lambda_.7} parent=0 // pred_region
    _
  $region25: #{_lambda_.7} parent=0 // pred_fallthru
    _
  // Predicated region
  $region26: #{_lambda_.7} parent=0 // pred_check
    _
  $region27: #{_lambda_.7} parent=0 // pred_check_branch
    %7303 = sbr.rel (0) target = $region29
  $region28: #{_lambda_.7} parent=0 // pred_region
    _
  $region29: #{_lambda_.7} parent=0 // pred_fallthru
    _

</llo_original>
